<compile_context>
chip_gen: v7x
topology: tpu7x:2x2x1
jax: 0.10.0
libtpu: 0.0.40
codegen_flags: <defaults>
</compile_context>

<pallas_src>
import math

import jax
import jax.numpy as jnp
from jax import lax
from jax.experimental import pallas as pl
from jax.experimental.pallas import tpu as pltpu


def _gelu(x):
    # exact (erf-based) GELU == torch.nn.functional.gelu default
    return 0.5 * x * (1.0 + lax.erf(x * (1.0 / math.sqrt(2.0))))


# --------------------------------------------------------------------------
# Pallas kernel: full FNO1d forward for one block of Bt batch elements.
# --------------------------------------------------------------------------
def fno1d_kernel(inp_ref, W1_ref, b1_ref, Fblk_ref, Gblk_ref, Wmix_ref,
                 WcT_ref, bconv_ref,
                 Wd1_ref, bd1_ref, Wd2_ref, bd2_ref, Wd3_ref, bd3_ref,
                 out_ref):
    Bt, N_x, _ = out_ref.shape
    R = Bt * N_x
    w = W1_ref.shape[1]
    two_m = Wmix_ref.shape[1] // w            # 2 * modes
    L = Wmix_ref.shape[0]
    cdt = W1_ref.dtype                        # matmul operand dtype (bf16 / f32)
    f32 = jnp.float32

    Fblk = Fblk_ref[...]                      # (Bt*2m, R)   kron(I_Bt, [Fr;Fi])
    Gblk = Gblk_ref[...]                      # (R, Bt*2m)   kron(I_Bt, [Gr^T|Gi^T])

    # ---- lifting layer: Linear(5, width) over R = Bt*N_x rows ----
    h = jnp.dot(inp_ref[...].astype(cdt), W1_ref[...],
                preferred_element_type=f32) + b1_ref[...]          # (R, w) f32

    # ---- Fourier layers (small static trip count -> Python unroll).
    # TODO(synk): switch to lax.fori_loop with dynamic Wmix_ref[l] indexing if
    # n_layers grows beyond ~4 (bounds vreg live ranges).
    for l in range(L):
        Wmix_l = Wmix_ref[l]                  # (2m*w, 2m*w)
        WcT_l = WcT_ref[l]                    # (w, w)
        bconv_l = bconv_ref[l]                # (1, w)

        hc = h.astype(cdt)                    # single cast reused below

        # pointwise Conv1d(width, width, kernel_size=1)
        pw = jnp.dot(hc, WcT_l, preferred_element_type=f32) + bconv_l

        # truncated rFFT (ortho), real+imag stacked, all batches in ONE matmul
        Xf = jnp.dot(Fblk, hc, preferred_element_type=f32)          # (Bt*2m, w)
        Xf3 = Xf.reshape(Bt, two_m, w)                              # free (leading split)
        # flatten mode axis into lanes with static slices (safe relayout)
        Xff = jnp.concatenate([Xf3[:, k, :] for k in range(two_m)],
                              axis=-1).astype(cdt)                  # (Bt, 2m*w)

        # per-mode complex channel mixing: ONE block-structured matmul
        Of = jnp.dot(Xff, Wmix_l, preferred_element_type=f32)       # (Bt, 2m*w)

        # unflatten back to (Bt*2m, w) rows for the inverse transform
        O3 = jnp.concatenate([Of[:, k * w:(k + 1) * w][:, None, :]
                              for k in range(two_m)], axis=1)       # (Bt, 2m, w)
        Oall = O3.reshape(Bt * two_m, w).astype(cdt)                # free (leading merge)

        # zero-padded irFFT (ortho), all batches in ONE matmul
        spec = jnp.dot(Gblk, Oall, preferred_element_type=f32)      # (R, w)

        # residual update (f32)
        h = h + _gelu(spec + pw)

    # ---- fused decoders: [temp | pressure | velocity] ----
    t = _gelu(jnp.dot(h.astype(cdt), Wd1_ref[...],
                      preferred_element_type=f32) + bd1_ref[...])   # (R, 3w)
    t = _gelu(jnp.dot(t.astype(cdt), Wd2_ref[...],
                      preferred_element_type=f32) + bd2_ref[...])   # (R, 3h)
    o = jnp.dot(t.astype(cdt), Wd3_ref[...],
                preferred_element_type=f32) + bd3_ref[...]          # (R, 3)
    out_ref[...] = o.reshape(Bt, N_x, 3)


# --------------------------------------------------------------------------
# DFT matrices, parameter init / packing, device-aware tiling, wrapper.
# --------------------------------------------------------------------------
def make_dft_mats(N_x, modes):
    """Stacked real matrices implementing truncated rfft / zero-padded irfft
    with norm='ortho' (built by applying jnp.fft to basis vectors)."""
    kf = N_x // 2 + 1
    Rm = jnp.fft.rfft(jnp.eye(N_x, dtype=jnp.float32), norm="ortho")  # (N_x, kf)
    Fr = jnp.real(Rm)[:, :modes].T.astype(jnp.float32)                # (m, N_x)
    Fi = jnp.imag(Rm)[:, :modes].T.astype(jnp.float32)
    E = jnp.eye(modes, kf, dtype=jnp.complex64)
    Gr = jnp.fft.irfft(E, n=N_x, norm="ortho")                        # (m, N_x)
    Gi = jnp.fft.irfft(1j * E, n=N_x, norm="ortho")
    Fhat = jnp.concatenate([Fr, Fi], axis=0)                          # (2m, N_x)
    Ghat = jnp.concatenate([Gr.T, Gi.T], axis=1).astype(jnp.float32)  # (N_x, 2m)
    return Fhat, Ghat


_DEC_NAMES = ("temp", "press", "vel")


def init_params(key, *, width, modes, hidden_mlp, n_layers):
    """Deterministic parameter init in torch-native layouts."""
    ks = jax.random.split(key, 10)

    def nrm(k, shape, scale):
        return scale * jax.random.normal(k, shape, dtype=jnp.float32)

    p = {
        "W1": nrm(ks[0], (width, 5), 1.0 / math.sqrt(5.0)),          # (out, in)
        "b1": nrm(ks[1], (width,), 0.1),
        "wr": nrm(ks[2], (n_layers, width, width, modes), 1.0 / (width * width)),
        "wi": nrm(ks[3], (n_layers, width, width, modes), 1.0 / (width * width)),
        "Wconv": nrm(ks[4], (n_layers, width, width), 1.0 / math.sqrt(width)),
        "bconv": nrm(ks[5], (n_layers, width), 0.1),
    }
    for i, name in enumerate(_DEC_NAMES):
        k = jax.random.split(ks[6 + i], 6)
        p[name] = dict(
            W_a=nrm(k[0], (width, width), 1.0 / math.sqrt(width)),
            b_a=nrm(k[1], (width,), 0.1),
            W_b=nrm(k[2], (hidden_mlp, width), 1.0 / math.sqrt(width)),
            b_b=nrm(k[3], (hidden_mlp,), 0.1),
            W_c=nrm(k[4], (1, hidden_mlp), 1.0 / math.sqrt(hidden_mlp)),
            b_c=nrm(k[5], (1,), 0.1),
        )
    return p


def _block_diag(mats):
    rows = sum(m.shape[0] for m in mats)
    cols = sum(m.shape[1] for m in mats)
    out = jnp.zeros((rows, cols), dtype=mats[0].dtype)
    r = c = 0
    for m in mats:
        out = out.at[r:r + m.shape[0], c:c + m.shape[1]].set(m)
        r += m.shape[0]
        c += m.shape[1]
    return out


def _mode_block_diag(Wk):
    """(m, w_in, w_out) per-mode blocks -> (m*w_in, m*w_out) block-diagonal."""
    m, win, wout = Wk.shape
    eye = jnp.eye(m, dtype=Wk.dtype)
    return jnp.einsum('kio,kl->kilo', Wk, eye).reshape(m * win, m * wout)


def pack_for_kernel(p, compute_dtype):
    """Re-layout torch-style params for the kernel.  Matmul operands use the
    compute dtype (bf16 or f32); biases stay f32."""
    cdt = compute_dtype
    f32 = jnp.float32
    L = p["wr"].shape[0]

    W1 = p["W1"].T.astype(cdt)                                    # (5, w)
    b1 = p["b1"][None, :].astype(f32)                             # (1, w)

    # Per-mode complex mixing packed as one block-structured matrix:
    #   [xr | xi]_flat @ [[BD(wr), BD(wi)], [-BD(wi), BD(wr)]]
    Wmix_layers = []
    for l in range(L):
        wr_k = jnp.transpose(p["wr"][l], (2, 0, 1))               # (m, in, out)
        wi_k = jnp.transpose(p["wi"][l], (2, 0, 1))
        BDr = _mode_block_diag(wr_k)
        BDi = _mode_block_diag(wi_k)
        top = jnp.concatenate([BDr, BDi], axis=1)
        bot = jnp.concatenate([-BDi, BDr], axis=1)
        Wmix_layers.append(jnp.concatenate([top, bot], axis=0))   # (2mw, 2mw)
    Wmix = jnp.stack(Wmix_layers, axis=0).astype(cdt)             # (L, 2mw, 2mw)

    WcT = jnp.transpose(p["Wconv"], (0, 2, 1)).astype(cdt)        # (L, in, out)
    bconv = p["bconv"][:, None, :].astype(f32)                    # (L, 1, w)

    # fused decoders: concat first layer, block-diagonal later layers
    Wd1 = jnp.concatenate([p[n]["W_a"].T for n in _DEC_NAMES], axis=1).astype(cdt)
    bd1 = jnp.concatenate([p[n]["b_a"] for n in _DEC_NAMES])[None, :].astype(f32)
    Wd2 = _block_diag([p[n]["W_b"].T for n in _DEC_NAMES]).astype(cdt)
    bd2 = jnp.concatenate([p[n]["b_b"] for n in _DEC_NAMES])[None, :].astype(f32)
    Wd3 = _block_diag([p[n]["W_c"].T for n in _DEC_NAMES]).astype(cdt)
    bd3 = jnp.concatenate([p[n]["b_c"] for n in _DEC_NAMES])[None, :].astype(f32)
    return W1, b1, Wmix, WcT, bconv, Wd1, bd1, Wd2, bd2, Wd3, bd3


def _num_tensorcores_per_chip():
    """1 on v5e/v6e (grid is a sequential loop), 2 on megacore-style chips."""
    try:
        kind = jax.devices()[0].device_kind.lower()
    except Exception:
        return 1
    return 2 if any(t in kind for t in ("v7", "v4", "v5p")) else 1


def _choose_block_batch(B, n_tc, bt_cap=16):
    """Largest divisor of B <= bt_cap; on multi-core chips prefer a step count
    that is a multiple of n_tc so the 'parallel' grid splits evenly.  The cap
    keeps the kron(I_Bt, DFT) operators small in VMEM."""
    cap = max(1, min(B, bt_cap))
    best_balanced, best_any = None, 1
    for bt in range(1, cap + 1):
        if B % bt:
            continue
        best_any = bt
        if (B // bt) % n_tc == 0:
            best_balanced = bt
    return best_balanced if best_balanced is not None else best_any


def fno1d_forward(bc, x, y, params, *, modes, N_x, block_batch=None,
                  use_bf16=True, bt_cap=16):
    B = bc.shape[0]
    n_tc = _num_tensorcores_per_chip()
    Bt = _choose_block_batch(B, n_tc, bt_cap) if block_batch is None else block_batch
    assert B % Bt == 0, (B, Bt)
    cdt = jnp.bfloat16 if use_bf16 else jnp.float32
    f32 = jnp.float32

    # Pre-flattened input (B*N_x, 5): no relayout needed inside the kernel.
    inp = jnp.concatenate(
        [jnp.broadcast_to(bc[:, None, :], (B, N_x, 3)),
         x[:, :, None], y[:, :, None]], axis=-1).astype(f32)
    inp_flat = inp.reshape(B * N_x, 5)

    # DFT operators, block-diagonal over the Bt batch elements of one step so
    # the forward / inverse transforms are single 2D MXU matmuls.
    # NOTE: for very large N_x keep these in f32 (accuracy); bf16 is fine here.
    Fhat, Ghat = make_dft_mats(N_x, modes)
    eyeBt = jnp.eye(Bt, dtype=f32)
    Fblk = jnp.kron(eyeBt, Fhat).astype(cdt)        # (Bt*2m, Bt*N_x)
    Gblk = jnp.kron(eyeBt, Ghat).astype(cdt)        # (Bt*N_x, Bt*2m)

    (W1, b1, Wmix, WcT, bconv,
     Wd1, bd1, Wd2, bd2, Wd3, bd3) = pack_for_kernel(params, cdt)

    kargs = (inp_flat, W1, b1, Fblk, Gblk, Wmix, WcT, bconv,
             Wd1, bd1, Wd2, bd2, Wd3, bd3)

    in_specs = [pl.BlockSpec((Bt * N_x, 5), lambda i: (i, 0))]
    for a in kargs[1:]:
        in_specs.append(pl.BlockSpec(a.shape, lambda i, nd=a.ndim: (0,) * nd))
    # TODO(synk): mark the grid-invariant weight specs with
    # pipeline_mode=pl.Buffered(1) to halve their VMEM footprint on v7x once
    # single-buffered pipeline_mode is reliable across jax versions.

    # VMEM budget: all weight blocks + input/output block, double-buffered,
    # plus activation headroom; capped well under v7x's 64 MiB physical VMEM.
    blk_bytes = sum(int(a.size) * a.dtype.itemsize for a in kargs[1:])
    blk_bytes += Bt * N_x * 5 * 4 + Bt * N_x * 3 * 4
    vmem_limit = int(min(max(2 * blk_bytes + 8 * 2**20, 32 * 2**20), 48 * 2**20))

    return pl.pallas_call(
        fno1d_kernel,
        out_shape=jax.ShapeDtypeStruct((B, N_x, 3), f32),
        grid=(B // Bt,),
        in_specs=in_specs,
        out_specs=pl.BlockSpec((Bt, N_x, 3), lambda i: (i, 0, 0)),
        compiler_params=pltpu.CompilerParams(
            dimension_semantics=("parallel",),
            vmem_limit_bytes=vmem_limit),
    )(*kargs)


# --------------------------------------------------------------------------
# Pure-JAX reference (mirrors the PyTorch module) for sanity checks.
# --------------------------------------------------------------------------
def fno1d_reference(bc, x, y, p, *, modes, N_x):
    B = bc.shape[0]
    inp = jnp.concatenate(
        [jnp.broadcast_to(bc[:, None, :], (B, N_x, 3)),
         x[:, :, None], y[:, :, None]], axis=-1).astype(jnp.float32)
    h = inp @ p["W1"].T + p["b1"]                      # (B, N_x, width)
    hT = jnp.transpose(h, (0, 2, 1))                   # (B, width, N_x)
    L = p["wr"].shape[0]
    width = p["W1"].shape[0]
    for l in range(L):
        x_ft = jnp.fft.rfft(hT, norm="ortho")
        w = p["wr"][l] + 1j * p["wi"][l]               # (in, out, modes)
        o = jnp.einsum("bik,iok->bok", x_ft[:, :, :modes], w)
        out_ft = jnp.zeros((B, width, N_x // 2 + 1), dtype=jnp.complex64)
        out_ft = out_ft.at[:, :, :modes].set(o)
        spec = jnp.fft.irfft(out_ft, n=N_x, norm="ortho")
        pw = jnp.einsum("oi,bin->bon", p["Wconv"][l], hT) + p["bconv"][l][None, :, None]
        hT = hT + jax.nn.gelu(spec + pw, approximate=False)
    h = jnp.transpose(hT, (0, 2, 1))
    outs = []
    for name in _DEC_NAMES:
        d = p[name]
        t = jax.nn.gelu(h @ d["W_a"].T + d["b_a"], approximate=False)
        t = jax.nn.gelu(t @ d["W_b"].T + d["b_b"], approximate=False)
        t = t @ d["W_c"].T + d["b_c"]
        outs.append(t)
    return jnp.concatenate(outs, axis=-1)


if __name__ == "__main__":
    key = jax.random.PRNGKey(0)
    B, N_x, width, modes, hidden_mlp, n_layers = 8, 64, 32, 8, 32, 2

    k_bc, k_x, k_y, k_p = jax.random.split(key, 4)
    bc = jax.random.normal(k_bc, (B, 3), dtype=jnp.float32)
    x = jax.random.normal(k_x, (B, N_x), dtype=jnp.float32)
    y = jax.random.normal(k_y, (B, N_x), dtype=jnp.float32)
    params = init_params(k_p, width=width, modes=modes,
                         hidden_mlp=hidden_mlp, n_layers=n_layers)

    ref = jax.block_until_ready(
        fno1d_reference(bc, x, y, params, modes=modes, N_x=N_x))
    scale = float(jnp.max(jnp.abs(ref))) + 1.0

    # f32 matmul path: tight check of the kernel math.
    out32 = jax.block_until_ready(
        fno1d_forward(bc, x, y, params, modes=modes, N_x=N_x, use_bf16=False))
    assert out32.shape == (B, N_x, 3) and out32.dtype == jnp.float32
    err32 = float(jnp.max(jnp.abs(out32 - ref)))
    assert err32 < 1e-2 * scale, f"f32 mismatch vs reference: {err32}"

    # bf16-operand fast path (default): looser tolerance.
    out16 = jax.block_until_ready(
        fno1d_forward(bc, x, y, params, modes=modes, N_x=N_x, use_bf16=True))
    assert out16.shape == (B, N_x, 3) and out16.dtype == jnp.float32
    err16 = float(jnp.max(jnp.abs(out16 - ref)))
    assert err16 < 5e-2 * scale, f"bf16 mismatch vs reference: {err16}"

    print("KERNEL_OK")
</pallas_src>

<mosaic_0001>
module attributes {stable_mosaic.version = 11 : i64} {
  func.func @fno1d_kernel(%arg0: i32, %arg1: memref<512x5xf32, #tpu.memory_space<vmem>>, %arg2: memref<5x32xf32, #tpu.memory_space<vmem>>, %arg3: memref<1x32xf32, #tpu.memory_space<vmem>>, %arg4: memref<128x512xf32, #tpu.memory_space<vmem>>, %arg5: memref<512x128xf32, #tpu.memory_space<vmem>>, %arg6: memref<2x512x512xf32, #tpu.memory_space<vmem>>, %arg7: memref<2x32x32xf32, #tpu.memory_space<vmem>>, %arg8: memref<2x1x32xf32, #tpu.memory_space<vmem>>, %arg9: memref<32x96xf32, #tpu.memory_space<vmem>>, %arg10: memref<1x96xf32, #tpu.memory_space<vmem>>, %arg11: memref<96x96xf32, #tpu.memory_space<vmem>>, %arg12: memref<1x96xf32, #tpu.memory_space<vmem>>, %arg13: memref<96x3xf32, #tpu.memory_space<vmem>>, %arg14: memref<1x3xf32, #tpu.memory_space<vmem>>, %arg15: memref<8x64x3xf32, #tpu.memory_space<vmem>>) attributes {dimension_semantics = [#tpu.dimension_semantics<parallel>], iteration_bounds = array<i64: 1>, scalar_prefetch = 0 : i64, scratch_operands = 0 : i64, tpu.core_type = #tpu.core_type<tc>, window_params = [{transform_indices = @transform_0, window_bounds = array<i64: 512, 5>}, {pipeline_mode = #tpu.pipeline_mode<synchronous>, transform_indices = @transform_1, window_bounds = array<i64: 5, 32>}, {pipeline_mode = #tpu.pipeline_mode<synchronous>, transform_indices = @transform_2, window_bounds = array<i64: 1, 32>}, {pipeline_mode = #tpu.pipeline_mode<synchronous>, transform_indices = @transform_3, window_bounds = array<i64: 128, 512>}, {pipeline_mode = #tpu.pipeline_mode<synchronous>, transform_indices = @transform_4, window_bounds = array<i64: 512, 128>}, {pipeline_mode = #tpu.pipeline_mode<synchronous>, transform_indices = @transform_5, window_bounds = array<i64: 2, 512, 512>}, {pipeline_mode = #tpu.pipeline_mode<synchronous>, transform_indices = @transform_6, window_bounds = array<i64: 2, 32, 32>}, {pipeline_mode = #tpu.pipeline_mode<synchronous>, transform_indices = @transform_7, window_bounds = array<i64: 2, 1, 32>}, {pipeline_mode = #tpu.pipeline_mode<synchronous>, transform_indices = @transform_8, window_bounds = array<i64: 32, 96>}, {pipeline_mode = #tpu.pipeline_mode<synchronous>, transform_indices = @transform_9, window_bounds = array<i64: 1, 96>}, {pipeline_mode = #tpu.pipeline_mode<synchronous>, transform_indices = @transform_10, window_bounds = array<i64: 96, 96>}, {pipeline_mode = #tpu.pipeline_mode<synchronous>, transform_indices = @transform_11, window_bounds = array<i64: 1, 96>}, {pipeline_mode = #tpu.pipeline_mode<synchronous>, transform_indices = @transform_12, window_bounds = array<i64: 96, 3>}, {pipeline_mode = #tpu.pipeline_mode<synchronous>, transform_indices = @transform_13, window_bounds = array<i64: 1, 3>}, {transform_indices = @transform_14, window_bounds = array<i64: 8, 64, 3>}]} {
    %c0 = arith.constant 0 : index
    %c0_0 = arith.constant 0 : index
    %0 = vector.load %arg4[%c0, %c0_0] : memref<128x512xf32, #tpu.memory_space<vmem>>, vector<128x512xf32>
    %c0_1 = arith.constant 0 : index
    %c0_2 = arith.constant 0 : index
    %1 = vector.load %arg5[%c0_1, %c0_2] : memref<512x128xf32, #tpu.memory_space<vmem>>, vector<512x128xf32>
    %c0_3 = arith.constant 0 : index
    %c0_4 = arith.constant 0 : index
    %2 = vector.load %arg1[%c0_3, %c0_4] : memref<512x5xf32, #tpu.memory_space<vmem>>, vector<512x5xf32>
    %c0_5 = arith.constant 0 : index
    %c0_6 = arith.constant 0 : index
    %3 = vector.load %arg2[%c0_5, %c0_6] : memref<5x32xf32, #tpu.memory_space<vmem>>, vector<5x32xf32>
    %cst = arith.constant dense<0.000000e+00> : vector<512x32xf32>
    %4 = tpu.matmul %2, %3, %cst {dimension_numbers = #tpu.dot_dimension_numbers<[1], [0], [0], [1], [0, 0, 1, 1], [], []>} : vector<512x5xf32>, vector<5x32xf32>, vector<512x32xf32> -> vector<512x32xf32>
    %c0_7 = arith.constant 0 : index
    %c0_8 = arith.constant 0 : index
    %5 = vector.load %arg3[%c0_7, %c0_8] : memref<1x32xf32, #tpu.memory_space<vmem>>, vector<1x32xf32>
    %6 = vector.broadcast %5 : vector<1x32xf32> to vector<512x32xf32>
    %7 = arith.addf %4, %6 : vector<512x32xf32>
    %c0_9 = arith.constant 0 : index
    %c0_10 = arith.constant 0 : index
    %c0_11 = arith.constant 0 : index
    %8 = vector.load %arg6[%c0_9, %c0_10, %c0_11] : memref<2x512x512xf32, #tpu.memory_space<vmem>>, vector<1x512x512xf32>
    %9 = vector.shape_cast %8 : vector<1x512x512xf32> to vector<512x512xf32>
    %c0_12 = arith.constant 0 : index
    %c0_13 = arith.constant 0 : index
    %c0_14 = arith.constant 0 : index
    %10 = vector.load %arg7[%c0_12, %c0_13, %c0_14] : memref<2x32x32xf32, #tpu.memory_space<vmem>>, vector<1x32x32xf32>
    %11 = vector.shape_cast %10 : vector<1x32x32xf32> to vector<32x32xf32>
    %c0_15 = arith.constant 0 : index
    %c0_16 = arith.constant 0 : index
    %c0_17 = arith.constant 0 : index
    %12 = vector.load %arg8[%c0_15, %c0_16, %c0_17] : memref<2x1x32xf32, #tpu.memory_space<vmem>>, vector<1x1x32xf32>
    %13 = vector.shape_cast %12 : vector<1x1x32xf32> to vector<1x32xf32>
    %cst_18 = arith.constant dense<0.000000e+00> : vector<512x32xf32>
    %14 = tpu.matmul %7, %11, %cst_18 {dimension_numbers = #tpu.dot_dimension_numbers<[1], [0], [0], [1], [0, 0, 1, 1], [], []>} : vector<512x32xf32>, vector<32x32xf32>, vector<512x32xf32> -> vector<512x32xf32>
    %15 = vector.broadcast %13 : vector<1x32xf32> to vector<512x32xf32>
    %16 = arith.addf %14, %15 : vector<512x32xf32>
    %cst_19 = arith.constant dense<0.000000e+00> : vector<128x32xf32>
    %17 = tpu.matmul %0, %7, %cst_19 {dimension_numbers = #tpu.dot_dimension_numbers<[1], [0], [0], [1], [0, 0, 1, 1], [], []>} : vector<128x512xf32>, vector<512x32xf32>, vector<128x32xf32> -> vector<128x32xf32>
    %18 = vector.shape_cast %17 : vector<128x32xf32> to vector<8x16x32xf32>
    %19 = vector.extract_strided_slice %18 {offsets = [0, 0, 0], sizes = [8, 1, 32], strides = [1, 1, 1]} : vector<8x16x32xf32> to vector<8x1x32xf32>
    %20 = vector.shape_cast %19 : vector<8x1x32xf32> to vector<8x32xf32>
    %21 = vector.extract_strided_slice %18 {offsets = [0, 1, 0], sizes = [8, 1, 32], strides = [1, 1, 1]} : vector<8x16x32xf32> to vector<8x1x32xf32>
    %22 = vector.shape_cast %21 : vector<8x1x32xf32> to vector<8x32xf32>
    %23 = vector.extract_strided_slice %18 {offsets = [0, 2, 0], sizes = [8, 1, 32], strides = [1, 1, 1]} : vector<8x16x32xf32> to vector<8x1x32xf32>
    %24 = vector.shape_cast %23 : vector<8x1x32xf32> to vector<8x32xf32>
    %25 = vector.extract_strided_slice %18 {offsets = [0, 3, 0], sizes = [8, 1, 32], strides = [1, 1, 1]} : vector<8x16x32xf32> to vector<8x1x32xf32>
    %26 = vector.shape_cast %25 : vector<8x1x32xf32> to vector<8x32xf32>
    %27 = vector.extract_strided_slice %18 {offsets = [0, 4, 0], sizes = [8, 1, 32], strides = [1, 1, 1]} : vector<8x16x32xf32> to vector<8x1x32xf32>
    %28 = vector.shape_cast %27 : vector<8x1x32xf32> to vector<8x32xf32>
    %29 = vector.extract_strided_slice %18 {offsets = [0, 5, 0], sizes = [8, 1, 32], strides = [1, 1, 1]} : vector<8x16x32xf32> to vector<8x1x32xf32>
    %30 = vector.shape_cast %29 : vector<8x1x32xf32> to vector<8x32xf32>
    %31 = vector.extract_strided_slice %18 {offsets = [0, 6, 0], sizes = [8, 1, 32], strides = [1, 1, 1]} : vector<8x16x32xf32> to vector<8x1x32xf32>
    %32 = vector.shape_cast %31 : vector<8x1x32xf32> to vector<8x32xf32>
    %33 = vector.extract_strided_slice %18 {offsets = [0, 7, 0], sizes = [8, 1, 32], strides = [1, 1, 1]} : vector<8x16x32xf32> to vector<8x1x32xf32>
    %34 = vector.shape_cast %33 : vector<8x1x32xf32> to vector<8x32xf32>
    %35 = vector.extract_strided_slice %18 {offsets = [0, 8, 0], sizes = [8, 1, 32], strides = [1, 1, 1]} : vector<8x16x32xf32> to vector<8x1x32xf32>
    %36 = vector.shape_cast %35 : vector<8x1x32xf32> to vector<8x32xf32>
    %37 = vector.extract_strided_slice %18 {offsets = [0, 9, 0], sizes = [8, 1, 32], strides = [1, 1, 1]} : vector<8x16x32xf32> to vector<8x1x32xf32>
    %38 = vector.shape_cast %37 : vector<8x1x32xf32> to vector<8x32xf32>
    %39 = vector.extract_strided_slice %18 {offsets = [0, 10, 0], sizes = [8, 1, 32], strides = [1, 1, 1]} : vector<8x16x32xf32> to vector<8x1x32xf32>
    %40 = vector.shape_cast %39 : vector<8x1x32xf32> to vector<8x32xf32>
    %41 = vector.extract_strided_slice %18 {offsets = [0, 11, 0], sizes = [8, 1, 32], strides = [1, 1, 1]} : vector<8x16x32xf32> to vector<8x1x32xf32>
    %42 = vector.shape_cast %41 : vector<8x1x32xf32> to vector<8x32xf32>
    %43 = vector.extract_strided_slice %18 {offsets = [0, 12, 0], sizes = [8, 1, 32], strides = [1, 1, 1]} : vector<8x16x32xf32> to vector<8x1x32xf32>
    %44 = vector.shape_cast %43 : vector<8x1x32xf32> to vector<8x32xf32>
    %45 = vector.extract_strided_slice %18 {offsets = [0, 13, 0], sizes = [8, 1, 32], strides = [1, 1, 1]} : vector<8x16x32xf32> to vector<8x1x32xf32>
    %46 = vector.shape_cast %45 : vector<8x1x32xf32> to vector<8x32xf32>
    %47 = vector.extract_strided_slice %18 {offsets = [0, 14, 0], sizes = [8, 1, 32], strides = [1, 1, 1]} : vector<8x16x32xf32> to vector<8x1x32xf32>
    %48 = vector.shape_cast %47 : vector<8x1x32xf32> to vector<8x32xf32>
    %49 = vector.extract_strided_slice %18 {offsets = [0, 15, 0], sizes = [8, 1, 32], strides = [1, 1, 1]} : vector<8x16x32xf32> to vector<8x1x32xf32>
    %50 = vector.shape_cast %49 : vector<8x1x32xf32> to vector<8x32xf32>
    %51 = tpu.concatenate %20, %22, %24, %26, %28, %30, %32, %34, %36, %38, %40, %42, %44, %46, %48, %50 in 1 : vector<8x32xf32>, vector<8x32xf32>, vector<8x32xf32>, vector<8x32xf32>, vector<8x32xf32>, vector<8x32xf32>, vector<8x32xf32>, vector<8x32xf32>, vector<8x32xf32>, vector<8x32xf32>, vector<8x32xf32>, vector<8x32xf32>, vector<8x32xf32>, vector<8x32xf32>, vector<8x32xf32>, vector<8x32xf32> -> vector<8x512xf32>
    %cst_20 = arith.constant dense<0.000000e+00> : vector<8x512xf32>
    %52 = tpu.matmul %51, %9, %cst_20 {dimension_numbers = #tpu.dot_dimension_numbers<[1], [0], [0], [1], [0, 0, 1, 1], [], []>} : vector<8x512xf32>, vector<512x512xf32>, vector<8x512xf32> -> vector<8x512xf32>
    %53 = vector.extract_strided_slice %52 {offsets = [0, 0], sizes = [8, 32], strides = [1, 1]} : vector<8x512xf32> to vector<8x32xf32>
    %54 = vector.shape_cast %53 : vector<8x32xf32> to vector<8x1x32xf32>
    %55 = vector.extract_strided_slice %52 {offsets = [0, 32], sizes = [8, 32], strides = [1, 1]} : vector<8x512xf32> to vector<8x32xf32>
    %56 = vector.shape_cast %55 : vector<8x32xf32> to vector<8x1x32xf32>
    %57 = vector.extract_strided_slice %52 {offsets = [0, 64], sizes = [8, 32], strides = [1, 1]} : vector<8x512xf32> to vector<8x32xf32>
    %58 = vector.shape_cast %57 : vector<8x32xf32> to vector<8x1x32xf32>
    %59 = vector.extract_strided_slice %52 {offsets = [0, 96], sizes = [8, 32], strides = [1, 1]} : vector<8x512xf32> to vector<8x32xf32>
    %60 = vector.shape_cast %59 : vector<8x32xf32> to vector<8x1x32xf32>
    %61 = vector.extract_strided_slice %52 {offsets = [0, 128], sizes = [8, 32], strides = [1, 1]} : vector<8x512xf32> to vector<8x32xf32>
    %62 = vector.shape_cast %61 : vector<8x32xf32> to vector<8x1x32xf32>
    %63 = vector.extract_strided_slice %52 {offsets = [0, 160], sizes = [8, 32], strides = [1, 1]} : vector<8x512xf32> to vector<8x32xf32>
    %64 = vector.shape_cast %63 : vector<8x32xf32> to vector<8x1x32xf32>
    %65 = vector.extract_strided_slice %52 {offsets = [0, 192], sizes = [8, 32], strides = [1, 1]} : vector<8x512xf32> to vector<8x32xf32>
    %66 = vector.shape_cast %65 : vector<8x32xf32> to vector<8x1x32xf32>
    %67 = vector.extract_strided_slice %52 {offsets = [0, 224], sizes = [8, 32], strides = [1, 1]} : vector<8x512xf32> to vector<8x32xf32>
    %68 = vector.shape_cast %67 : vector<8x32xf32> to vector<8x1x32xf32>
    %69 = vector.extract_strided_slice %52 {offsets = [0, 256], sizes = [8, 32], strides = [1, 1]} : vector<8x512xf32> to vector<8x32xf32>
    %70 = vector.shape_cast %69 : vector<8x32xf32> to vector<8x1x32xf32>
    %71 = vector.extract_strided_slice %52 {offsets = [0, 288], sizes = [8, 32], strides = [1, 1]} : vector<8x512xf32> to vector<8x32xf32>
    %72 = vector.shape_cast %71 : vector<8x32xf32> to vector<8x1x32xf32>
    %73 = vector.extract_strided_slice %52 {offsets = [0, 320], sizes = [8, 32], strides = [1, 1]} : vector<8x512xf32> to vector<8x32xf32>
    %74 = vector.shape_cast %73 : vector<8x32xf32> to vector<8x1x32xf32>
    %75 = vector.extract_strided_slice %52 {offsets = [0, 352], sizes = [8, 32], strides = [1, 1]} : vector<8x512xf32> to vector<8x32xf32>
    %76 = vector.shape_cast %75 : vector<8x32xf32> to vector<8x1x32xf32>
    %77 = vector.extract_strided_slice %52 {offsets = [0, 384], sizes = [8, 32], strides = [1, 1]} : vector<8x512xf32> to vector<8x32xf32>
    %78 = vector.shape_cast %77 : vector<8x32xf32> to vector<8x1x32xf32>
    %79 = vector.extract_strided_slice %52 {offsets = [0, 416], sizes = [8, 32], strides = [1, 1]} : vector<8x512xf32> to vector<8x32xf32>
    %80 = vector.shape_cast %79 : vector<8x32xf32> to vector<8x1x32xf32>
    %81 = vector.extract_strided_slice %52 {offsets = [0, 448], sizes = [8, 32], strides = [1, 1]} : vector<8x512xf32> to vector<8x32xf32>
    %82 = vector.shape_cast %81 : vector<8x32xf32> to vector<8x1x32xf32>
    %83 = vector.extract_strided_slice %52 {offsets = [0, 480], sizes = [8, 32], strides = [1, 1]} : vector<8x512xf32> to vector<8x32xf32>
    %84 = vector.shape_cast %83 : vector<8x32xf32> to vector<8x1x32xf32>
    %85 = tpu.concatenate %54, %56, %58, %60, %62, %64, %66, %68, %70, %72, %74, %76, %78, %80, %82, %84 in 1 : vector<8x1x32xf32>, vector<8x1x32xf32>, vector<8x1x32xf32>, vector<8x1x32xf32>, vector<8x1x32xf32>, vector<8x1x32xf32>, vector<8x1x32xf32>, vector<8x1x32xf32>, vector<8x1x32xf32>, vector<8x1x32xf32>, vector<8x1x32xf32>, vector<8x1x32xf32>, vector<8x1x32xf32>, vector<8x1x32xf32>, vector<8x1x32xf32>, vector<8x1x32xf32> -> vector<8x16x32xf32>
    %86 = vector.shape_cast %85 : vector<8x16x32xf32> to vector<128x32xf32>
    %cst_21 = arith.constant dense<0.000000e+00> : vector<512x32xf32>
    %87 = tpu.matmul %1, %86, %cst_21 {dimension_numbers = #tpu.dot_dimension_numbers<[1], [0], [0], [1], [0, 0, 1, 1], [], []>} : vector<512x128xf32>, vector<128x32xf32>, vector<512x32xf32> -> vector<512x32xf32>
    %88 = arith.addf %87, %16 : vector<512x32xf32>
    %cst_22 = arith.constant 5.000000e-01 : f32
    %89 = vector.broadcast %cst_22 : f32 to vector<512x32xf32>
    %90 = arith.mulf %89, %88 : vector<512x32xf32>
    %cst_23 = arith.constant 0.707106769 : f32
    %91 = vector.broadcast %cst_23 : f32 to vector<512x32xf32>
    %92 = arith.mulf %88, %91 : vector<512x32xf32>
    %93 = math.erf %92 : vector<512x32xf32>
    %cst_24 = arith.constant 1.000000e+00 : f32
    %94 = vector.broadcast %cst_24 : f32 to vector<512x32xf32>
    %95 = arith.addf %94, %93 : vector<512x32xf32>
    %96 = arith.mulf %90, %95 : vector<512x32xf32>
    %97 = arith.addf %7, %96 : vector<512x32xf32>
    %c1 = arith.constant 1 : index
    %c0_25 = arith.constant 0 : index
    %c0_26 = arith.constant 0 : index
    %98 = vector.load %arg6[%c1, %c0_25, %c0_26] : memref<2x512x512xf32, #tpu.memory_space<vmem>>, vector<1x512x512xf32>
    %99 = vector.shape_cast %98 : vector<1x512x512xf32> to vector<512x512xf32>
    %c1_27 = arith.constant 1 : index
    %c0_28 = arith.constant 0 : index
    %c0_29 = arith.constant 0 : index
    %100 = vector.load %arg7[%c1_27, %c0_28, %c0_29] : memref<2x32x32xf32, #tpu.memory_space<vmem>>, vector<1x32x32xf32>
    %101 = vector.shape_cast %100 : vector<1x32x32xf32> to vector<32x32xf32>
    %c1_30 = arith.constant 1 : index
    %c0_31 = arith.constant 0 : index
    %c0_32 = arith.constant 0 : index
    %102 = vector.load %arg8[%c1_30, %c0_31, %c0_32] : memref<2x1x32xf32, #tpu.memory_space<vmem>>, vector<1x1x32xf32>
    %103 = vector.shape_cast %102 : vector<1x1x32xf32> to vector<1x32xf32>
    %cst_33 = arith.constant dense<0.000000e+00> : vector<512x32xf32>
    %104 = tpu.matmul %97, %101, %cst_33 {dimension_numbers = #tpu.dot_dimension_numbers<[1], [0], [0], [1], [0, 0, 1, 1], [], []>} : vector<512x32xf32>, vector<32x32xf32>, vector<512x32xf32> -> vector<512x32xf32>
    %105 = vector.broadcast %103 : vector<1x32xf32> to vector<512x32xf32>
    %106 = arith.addf %104, %105 : vector<512x32xf32>
    %cst_34 = arith.constant dense<0.000000e+00> : vector<128x32xf32>
    %107 = tpu.matmul %0, %97, %cst_34 {dimension_numbers = #tpu.dot_dimension_numbers<[1], [0], [0], [1], [0, 0, 1, 1], [], []>} : vector<128x512xf32>, vector<512x32xf32>, vector<128x32xf32> -> vector<128x32xf32>
    %108 = vector.shape_cast %107 : vector<128x32xf32> to vector<8x16x32xf32>
    %109 = vector.extract_strided_slice %108 {offsets = [0, 0, 0], sizes = [8, 1, 32], strides = [1, 1, 1]} : vector<8x16x32xf32> to vector<8x1x32xf32>
    %110 = vector.shape_cast %109 : vector<8x1x32xf32> to vector<8x32xf32>
    %111 = vector.extract_strided_slice %108 {offsets = [0, 1, 0], sizes = [8, 1, 32], strides = [1, 1, 1]} : vector<8x16x32xf32> to vector<8x1x32xf32>
    %112 = vector.shape_cast %111 : vector<8x1x32xf32> to vector<8x32xf32>
    %113 = vector.extract_strided_slice %108 {offsets = [0, 2, 0], sizes = [8, 1, 32], strides = [1, 1, 1]} : vector<8x16x32xf32> to vector<8x1x32xf32>
    %114 = vector.shape_cast %113 : vector<8x1x32xf32> to vector<8x32xf32>
    %115 = vector.extract_strided_slice %108 {offsets = [0, 3, 0], sizes = [8, 1, 32], strides = [1, 1, 1]} : vector<8x16x32xf32> to vector<8x1x32xf32>
    %116 = vector.shape_cast %115 : vector<8x1x32xf32> to vector<8x32xf32>
    %117 = vector.extract_strided_slice %108 {offsets = [0, 4, 0], sizes = [8, 1, 32], strides = [1, 1, 1]} : vector<8x16x32xf32> to vector<8x1x32xf32>
    %118 = vector.shape_cast %117 : vector<8x1x32xf32> to vector<8x32xf32>
    %119 = vector.extract_strided_slice %108 {offsets = [0, 5, 0], sizes = [8, 1, 32], strides = [1, 1, 1]} : vector<8x16x32xf32> to vector<8x1x32xf32>
    %120 = vector.shape_cast %119 : vector<8x1x32xf32> to vector<8x32xf32>
    %121 = vector.extract_strided_slice %108 {offsets = [0, 6, 0], sizes = [8, 1, 32], strides = [1, 1, 1]} : vector<8x16x32xf32> to vector<8x1x32xf32>
    %122 = vector.shape_cast %121 : vector<8x1x32xf32> to vector<8x32xf32>
    %123 = vector.extract_strided_slice %108 {offsets = [0, 7, 0], sizes = [8, 1, 32], strides = [1, 1, 1]} : vector<8x16x32xf32> to vector<8x1x32xf32>
    %124 = vector.shape_cast %123 : vector<8x1x32xf32> to vector<8x32xf32>
    %125 = vector.extract_strided_slice %108 {offsets = [0, 8, 0], sizes = [8, 1, 32], strides = [1, 1, 1]} : vector<8x16x32xf32> to vector<8x1x32xf32>
    %126 = vector.shape_cast %125 : vector<8x1x32xf32> to vector<8x32xf32>
    %127 = vector.extract_strided_slice %108 {offsets = [0, 9, 0], sizes = [8, 1, 32], strides = [1, 1, 1]} : vector<8x16x32xf32> to vector<8x1x32xf32>
    %128 = vector.shape_cast %127 : vector<8x1x32xf32> to vector<8x32xf32>
    %129 = vector.extract_strided_slice %108 {offsets = [0, 10, 0], sizes = [8, 1, 32], strides = [1, 1, 1]} : vector<8x16x32xf32> to vector<8x1x32xf32>
    %130 = vector.shape_cast %129 : vector<8x1x32xf32> to vector<8x32xf32>
    %131 = vector.extract_strided_slice %108 {offsets = [0, 11, 0], sizes = [8, 1, 32], strides = [1, 1, 1]} : vector<8x16x32xf32> to vector<8x1x32xf32>
    %132 = vector.shape_cast %131 : vector<8x1x32xf32> to vector<8x32xf32>
    %133 = vector.extract_strided_slice %108 {offsets = [0, 12, 0], sizes = [8, 1, 32], strides = [1, 1, 1]} : vector<8x16x32xf32> to vector<8x1x32xf32>
    %134 = vector.shape_cast %133 : vector<8x1x32xf32> to vector<8x32xf32>
    %135 = vector.extract_strided_slice %108 {offsets = [0, 13, 0], sizes = [8, 1, 32], strides = [1, 1, 1]} : vector<8x16x32xf32> to vector<8x1x32xf32>
    %136 = vector.shape_cast %135 : vector<8x1x32xf32> to vector<8x32xf32>
    %137 = vector.extract_strided_slice %108 {offsets = [0, 14, 0], sizes = [8, 1, 32], strides = [1, 1, 1]} : vector<8x16x32xf32> to vector<8x1x32xf32>
    %138 = vector.shape_cast %137 : vector<8x1x32xf32> to vector<8x32xf32>
    %139 = vector.extract_strided_slice %108 {offsets = [0, 15, 0], sizes = [8, 1, 32], strides = [1, 1, 1]} : vector<8x16x32xf32> to vector<8x1x32xf32>
    %140 = vector.shape_cast %139 : vector<8x1x32xf32> to vector<8x32xf32>
    %141 = tpu.concatenate %110, %112, %114, %116, %118, %120, %122, %124, %126, %128, %130, %132, %134, %136, %138, %140 in 1 : vector<8x32xf32>, vector<8x32xf32>, vector<8x32xf32>, vector<8x32xf32>, vector<8x32xf32>, vector<8x32xf32>, vector<8x32xf32>, vector<8x32xf32>, vector<8x32xf32>, vector<8x32xf32>, vector<8x32xf32>, vector<8x32xf32>, vector<8x32xf32>, vector<8x32xf32>, vector<8x32xf32>, vector<8x32xf32> -> vector<8x512xf32>
    %cst_35 = arith.constant dense<0.000000e+00> : vector<8x512xf32>
    %142 = tpu.matmul %141, %99, %cst_35 {dimension_numbers = #tpu.dot_dimension_numbers<[1], [0], [0], [1], [0, 0, 1, 1], [], []>} : vector<8x512xf32>, vector<512x512xf32>, vector<8x512xf32> -> vector<8x512xf32>
    %143 = vector.extract_strided_slice %142 {offsets = [0, 0], sizes = [8, 32], strides = [1, 1]} : vector<8x512xf32> to vector<8x32xf32>
    %144 = vector.shape_cast %143 : vector<8x32xf32> to vector<8x1x32xf32>
    %145 = vector.extract_strided_slice %142 {offsets = [0, 32], sizes = [8, 32], strides = [1, 1]} : vector<8x512xf32> to vector<8x32xf32>
    %146 = vector.shape_cast %145 : vector<8x32xf32> to vector<8x1x32xf32>
    %147 = vector.extract_strided_slice %142 {offsets = [0, 64], sizes = [8, 32], strides = [1, 1]} : vector<8x512xf32> to vector<8x32xf32>
    %148 = vector.shape_cast %147 : vector<8x32xf32> to vector<8x1x32xf32>
    %149 = vector.extract_strided_slice %142 {offsets = [0, 96], sizes = [8, 32], strides = [1, 1]} : vector<8x512xf32> to vector<8x32xf32>
    %150 = vector.shape_cast %149 : vector<8x32xf32> to vector<8x1x32xf32>
    %151 = vector.extract_strided_slice %142 {offsets = [0, 128], sizes = [8, 32], strides = [1, 1]} : vector<8x512xf32> to vector<8x32xf32>
    %152 = vector.shape_cast %151 : vector<8x32xf32> to vector<8x1x32xf32>
    %153 = vector.extract_strided_slice %142 {offsets = [0, 160], sizes = [8, 32], strides = [1, 1]} : vector<8x512xf32> to vector<8x32xf32>
    %154 = vector.shape_cast %153 : vector<8x32xf32> to vector<8x1x32xf32>
    %155 = vector.extract_strided_slice %142 {offsets = [0, 192], sizes = [8, 32], strides = [1, 1]} : vector<8x512xf32> to vector<8x32xf32>
    %156 = vector.shape_cast %155 : vector<8x32xf32> to vector<8x1x32xf32>
    %157 = vector.extract_strided_slice %142 {offsets = [0, 224], sizes = [8, 32], strides = [1, 1]} : vector<8x512xf32> to vector<8x32xf32>
    %158 = vector.shape_cast %157 : vector<8x32xf32> to vector<8x1x32xf32>
    %159 = vector.extract_strided_slice %142 {offsets = [0, 256], sizes = [8, 32], strides = [1, 1]} : vector<8x512xf32> to vector<8x32xf32>
    %160 = vector.shape_cast %159 : vector<8x32xf32> to vector<8x1x32xf32>
    %161 = vector.extract_strided_slice %142 {offsets = [0, 288], sizes = [8, 32], strides = [1, 1]} : vector<8x512xf32> to vector<8x32xf32>
    %162 = vector.shape_cast %161 : vector<8x32xf32> to vector<8x1x32xf32>
    %163 = vector.extract_strided_slice %142 {offsets = [0, 320], sizes = [8, 32], strides = [1, 1]} : vector<8x512xf32> to vector<8x32xf32>
    %164 = vector.shape_cast %163 : vector<8x32xf32> to vector<8x1x32xf32>
    %165 = vector.extract_strided_slice %142 {offsets = [0, 352], sizes = [8, 32], strides = [1, 1]} : vector<8x512xf32> to vector<8x32xf32>
    %166 = vector.shape_cast %165 : vector<8x32xf32> to vector<8x1x32xf32>
    %167 = vector.extract_strided_slice %142 {offsets = [0, 384], sizes = [8, 32], strides = [1, 1]} : vector<8x512xf32> to vector<8x32xf32>
    %168 = vector.shape_cast %167 : vector<8x32xf32> to vector<8x1x32xf32>
    %169 = vector.extract_strided_slice %142 {offsets = [0, 416], sizes = [8, 32], strides = [1, 1]} : vector<8x512xf32> to vector<8x32xf32>
    %170 = vector.shape_cast %169 : vector<8x32xf32> to vector<8x1x32xf32>
    %171 = vector.extract_strided_slice %142 {offsets = [0, 448], sizes = [8, 32], strides = [1, 1]} : vector<8x512xf32> to vector<8x32xf32>
    %172 = vector.shape_cast %171 : vector<8x32xf32> to vector<8x1x32xf32>
    %173 = vector.extract_strided_slice %142 {offsets = [0, 480], sizes = [8, 32], strides = [1, 1]} : vector<8x512xf32> to vector<8x32xf32>
    %174 = vector.shape_cast %173 : vector<8x32xf32> to vector<8x1x32xf32>
    %175 = tpu.concatenate %144, %146, %148, %150, %152, %154, %156, %158, %160, %162, %164, %166, %168, %170, %172, %174 in 1 : vector<8x1x32xf32>, vector<8x1x32xf32>, vector<8x1x32xf32>, vector<8x1x32xf32>, vector<8x1x32xf32>, vector<8x1x32xf32>, vector<8x1x32xf32>, vector<8x1x32xf32>, vector<8x1x32xf32>, vector<8x1x32xf32>, vector<8x1x32xf32>, vector<8x1x32xf32>, vector<8x1x32xf32>, vector<8x1x32xf32>, vector<8x1x32xf32>, vector<8x1x32xf32> -> vector<8x16x32xf32>
    %176 = vector.shape_cast %175 : vector<8x16x32xf32> to vector<128x32xf32>
    %cst_36 = arith.constant dense<0.000000e+00> : vector<512x32xf32>
    %177 = tpu.matmul %1, %176, %cst_36 {dimension_numbers = #tpu.dot_dimension_numbers<[1], [0], [0], [1], [0, 0, 1, 1], [], []>} : vector<512x128xf32>, vector<128x32xf32>, vector<512x32xf32> -> vector<512x32xf32>
    %178 = arith.addf %177, %106 : vector<512x32xf32>
    %cst_37 = arith.constant 5.000000e-01 : f32
    %179 = vector.broadcast %cst_37 : f32 to vector<512x32xf32>
    %180 = arith.mulf %179, %178 : vector<512x32xf32>
    %cst_38 = arith.constant 0.707106769 : f32
    %181 = vector.broadcast %cst_38 : f32 to vector<512x32xf32>
    %182 = arith.mulf %178, %181 : vector<512x32xf32>
    %183 = math.erf %182 : vector<512x32xf32>
    %cst_39 = arith.constant 1.000000e+00 : f32
    %184 = vector.broadcast %cst_39 : f32 to vector<512x32xf32>
    %185 = arith.addf %184, %183 : vector<512x32xf32>
    %186 = arith.mulf %180, %185 : vector<512x32xf32>
    %187 = arith.addf %97, %186 : vector<512x32xf32>
    %c0_40 = arith.constant 0 : index
    %c0_41 = arith.constant 0 : index
    %188 = vector.load %arg9[%c0_40, %c0_41] : memref<32x96xf32, #tpu.memory_space<vmem>>, vector<32x96xf32>
    %cst_42 = arith.constant dense<0.000000e+00> : vector<512x96xf32>
    %189 = tpu.matmul %187, %188, %cst_42 {dimension_numbers = #tpu.dot_dimension_numbers<[1], [0], [0], [1], [0, 0, 1, 1], [], []>} : vector<512x32xf32>, vector<32x96xf32>, vector<512x96xf32> -> vector<512x96xf32>
    %c0_43 = arith.constant 0 : index
    %c0_44 = arith.constant 0 : index
    %190 = vector.load %arg10[%c0_43, %c0_44] : memref<1x96xf32, #tpu.memory_space<vmem>>, vector<1x96xf32>
    %191 = vector.broadcast %190 : vector<1x96xf32> to vector<512x96xf32>
    %192 = arith.addf %189, %191 : vector<512x96xf32>
    %cst_45 = arith.constant 5.000000e-01 : f32
    %193 = vector.broadcast %cst_45 : f32 to vector<512x96xf32>
    %194 = arith.mulf %193, %192 : vector<512x96xf32>
    %cst_46 = arith.constant 0.707106769 : f32
    %195 = vector.broadcast %cst_46 : f32 to vector<512x96xf32>
    %196 = arith.mulf %192, %195 : vector<512x96xf32>
    %197 = math.erf %196 : vector<512x96xf32>
    %cst_47 = arith.constant 1.000000e+00 : f32
    %198 = vector.broadcast %cst_47 : f32 to vector<512x96xf32>
    %199 = arith.addf %198, %197 : vector<512x96xf32>
    %200 = arith.mulf %194, %199 : vector<512x96xf32>
    %c0_48 = arith.constant 0 : index
    %c0_49 = arith.constant 0 : index
    %201 = vector.load %arg11[%c0_48, %c0_49] : memref<96x96xf32, #tpu.memory_space<vmem>>, vector<96x96xf32>
    %cst_50 = arith.constant dense<0.000000e+00> : vector<512x96xf32>
    %202 = tpu.matmul %200, %201, %cst_50 {dimension_numbers = #tpu.dot_dimension_numbers<[1], [0], [0], [1], [0, 0, 1, 1], [], []>} : vector<512x96xf32>, vector<96x96xf32>, vector<512x96xf32> -> vector<512x96xf32>
    %c0_51 = arith.constant 0 : index
    %c0_52 = arith.constant 0 : index
    %203 = vector.load %arg12[%c0_51, %c0_52] : memref<1x96xf32, #tpu.memory_space<vmem>>, vector<1x96xf32>
    %204 = vector.broadcast %203 : vector<1x96xf32> to vector<512x96xf32>
    %205 = arith.addf %202, %204 : vector<512x96xf32>
    %cst_53 = arith.constant 5.000000e-01 : f32
    %206 = vector.broadcast %cst_53 : f32 to vector<512x96xf32>
    %207 = arith.mulf %206, %205 : vector<512x96xf32>
    %cst_54 = arith.constant 0.707106769 : f32
    %208 = vector.broadcast %cst_54 : f32 to vector<512x96xf32>
    %209 = arith.mulf %205, %208 : vector<512x96xf32>
    %210 = math.erf %209 : vector<512x96xf32>
    %cst_55 = arith.constant 1.000000e+00 : f32
    %211 = vector.broadcast %cst_55 : f32 to vector<512x96xf32>
    %212 = arith.addf %211, %210 : vector<512x96xf32>
    %213 = arith.mulf %207, %212 : vector<512x96xf32>
    %c0_56 = arith.constant 0 : index
    %c0_57 = arith.constant 0 : index
    %214 = vector.load %arg13[%c0_56, %c0_57] : memref<96x3xf32, #tpu.memory_space<vmem>>, vector<96x3xf32>
    %cst_58 = arith.constant dense<0.000000e+00> : vector<512x3xf32>
    %215 = tpu.matmul %213, %214, %cst_58 {dimension_numbers = #tpu.dot_dimension_numbers<[1], [0], [0], [1], [0, 0, 1, 1], [], []>} : vector<512x96xf32>, vector<96x3xf32>, vector<512x3xf32> -> vector<512x3xf32>
    %c0_59 = arith.constant 0 : index
    %c0_60 = arith.constant 0 : index
    %216 = vector.load %arg14[%c0_59, %c0_60] : memref<1x3xf32, #tpu.memory_space<vmem>>, vector<1x3xf32>
    %217 = vector.broadcast %216 : vector<1x3xf32> to vector<512x3xf32>
    %218 = arith.addf %215, %217 : vector<512x3xf32>
    %219 = vector.shape_cast %218 : vector<512x3xf32> to vector<8x64x3xf32>
    %c0_61 = arith.constant 0 : index
    %c0_62 = arith.constant 0 : index
    %c0_63 = arith.constant 0 : index
    %220 = vector.load %arg15[%c0_61, %c0_62, %c0_63] : memref<8x64x3xf32, #tpu.memory_space<vmem>>, vector<8x64x3xf32>
    tpu.vector_store %arg15[%c0_61, %c0_62, %c0_63], %219 {strides = array<i32>} : memref<8x64x3xf32, #tpu.memory_space<vmem>>, vector<8x64x3xf32>,
    return
  }
  func.func @transform_0(%arg0: i32) -> (i32, i32) {
    %c0_i32 = arith.constant 0 : i32
    %c0_i32_0 = arith.constant 0 : i32
    return %arg0, %c0_i32 : i32, i32
  }
  func.func @transform_1(%arg0: i32) -> (i32, i32) {
    %c0_i32 = arith.constant 0 : i32
    %c0_i32_0 = arith.constant 0 : i32
    %c0_i32_1 = arith.constant 0 : i32
    return %c0_i32, %c0_i32_0 : i32, i32
  }
  func.func @transform_2(%arg0: i32) -> (i32, i32) {
    %c0_i32 = arith.constant 0 : i32
    %c0_i32_0 = arith.constant 0 : i32
    %c0_i32_1 = arith.constant 0 : i32
    return %c0_i32, %c0_i32_0 : i32, i32
  }
  func.func @transform_3(%arg0: i32) -> (i32, i32) {
    %c0_i32 = arith.constant 0 : i32
    %c0_i32_0 = arith.constant 0 : i32
    %c0_i32_1 = arith.constant 0 : i32
    return %c0_i32, %c0_i32_0 : i32, i32
  }
  func.func @transform_4(%arg0: i32) -> (i32, i32) {
    %c0_i32 = arith.constant 0 : i32
    %c0_i32_0 = arith.constant 0 : i32
    %c0_i32_1 = arith.constant 0 : i32
    return %c0_i32, %c0_i32_0 : i32, i32
  }
  func.func @transform_5(%arg0: i32) -> (i32, i32, i32) {
    %c0_i32 = arith.constant 0 : i32
    %c0_i32_0 = arith.constant 0 : i32
    %c0_i32_1 = arith.constant 0 : i32
    %c0_i32_2 = arith.constant 0 : i32
    return %c0_i32, %c0_i32_0, %c0_i32_1 : i32, i32, i32
  }
  func.func @transform_6(%arg0: i32) -> (i32, i32, i32) {
    %c0_i32 = arith.constant 0 : i32
    %c0_i32_0 = arith.constant 0 : i32
    %c0_i32_1 = arith.constant 0 : i32
    %c0_i32_2 = arith.constant 0 : i32
    return %c0_i32, %c0_i32_0, %c0_i32_1 : i32, i32, i32
  }
  func.func @transform_7(%arg0: i32) -> (i32, i32, i32) {
    %c0_i32 = arith.constant 0 : i32
    %c0_i32_0 = arith.constant 0 : i32
    %c0_i32_1 = arith.constant 0 : i32
    %c0_i32_2 = arith.constant 0 : i32
    return %c0_i32, %c0_i32_0, %c0_i32_1 : i32, i32, i32
  }
  func.func @transform_8(%arg0: i32) -> (i32, i32) {
    %c0_i32 = arith.constant 0 : i32
    %c0_i32_0 = arith.constant 0 : i32
    %c0_i32_1 = arith.constant 0 : i32
    return %c0_i32, %c0_i32_0 : i32, i32
  }
  func.func @transform_9(%arg0: i32) -> (i32, i32) {
    %c0_i32 = arith.constant 0 : i32
    %c0_i32_0 = arith.constant 0 : i32
    %c0_i32_1 = arith.constant 0 : i32
    return %c0_i32, %c0_i32_0 : i32, i32
  }
  func.func @transform_10(%arg0: i32) -> (i32, i32) {
    %c0_i32 = arith.constant 0 : i32
    %c0_i32_0 = arith.constant 0 : i32
    %c0_i32_1 = arith.constant 0 : i32
    return %c0_i32, %c0_i32_0 : i32, i32
  }
  func.func @transform_11(%arg0: i32) -> (i32, i32) {
    %c0_i32 = arith.constant 0 : i32
    %c0_i32_0 = arith.constant 0 : i32
    %c0_i32_1 = arith.constant 0 : i32
    return %c0_i32, %c0_i32_0 : i32, i32
  }
  func.func @transform_12(%arg0: i32) -> (i32, i32) {
    %c0_i32 = arith.constant 0 : i32
    %c0_i32_0 = arith.constant 0 : i32
    %c0_i32_1 = arith.constant 0 : i32
    return %c0_i32, %c0_i32_0 : i32, i32
  }
  func.func @transform_13(%arg0: i32) -> (i32, i32) {
    %c0_i32 = arith.constant 0 : i32
    %c0_i32_0 = arith.constant 0 : i32
    %c0_i32_1 = arith.constant 0 : i32
    return %c0_i32, %c0_i32_0 : i32, i32
  }
  func.func @transform_14(%arg0: i32) -> (i32, i32, i32) {
    %c0_i32 = arith.constant 0 : i32
    %c0_i32_0 = arith.constant 0 : i32
    %c0_i32_1 = arith.constant 0 : i32
    return %arg0, %c0_i32, %c0_i32_0 : i32, i32, i32
  }
}

</mosaic_0001>

<llo_original>
// kernel: tpu_custom_call.1
$region0: #{tpu_custom_call.1}
  #allocation0 [shape = 'u32[]', space=smem, size = 0x4, offset = 0x4, fixed_abs, tag = 'smem constant byte address 0x4 - core index']
  #allocation1 [shape = 'u32[144,128]{1,0:T(1,128)}', space=vmem, size = 0x12000, scoped, tag = 'internal scratch']
  %s0 = inlined_call_operand.vmem [shape: f32[512,5], index: 0, kind: input, shape index: {}]
  %s1 = inlined_call_operand.hbm [shape: f32[5,32], index: 1, kind: input, shape index: {}]
  %s2 = inlined_call_operand.hbm [shape: f32[1,32], index: 2, kind: input, shape index: {}]
  %s3 = inlined_call_operand.hbm [shape: f32[128,512], index: 3, kind: input, shape index: {}]
  %s4 = inlined_call_operand.hbm [shape: f32[512,128], index: 4, kind: input, shape index: {}]
  %s5 = inlined_call_operand.hbm [shape: f32[2,512,512], index: 5, kind: input, shape index: {}]
  %s6 = inlined_call_operand.hbm [shape: f32[2,32,32], index: 6, kind: input, shape index: {}]
  %s7 = inlined_call_operand.hbm [shape: f32[2,1,32], index: 7, kind: input, shape index: {}]
  %s8 = inlined_call_operand.hbm [shape: f32[32,96], index: 8, kind: input, shape index: {}]
  %s9 = inlined_call_operand.hbm [shape: f32[1,96], index: 9, kind: input, shape index: {}]
  %s10 = inlined_call_operand.hbm [shape: f32[96,96], index: 10, kind: input, shape index: {}]
  %s11 = inlined_call_operand.hbm [shape: f32[1,96], index: 11, kind: input, shape index: {}]
  %s12 = inlined_call_operand.vmem [shape: f32[96,3], index: 12, kind: input, shape index: {}]
  %s13 = inlined_call_operand.hbm [shape: f32[1,3], index: 13, kind: input, shape index: {}]
  %s14 = inlined_call_operand.vmem [shape: f32[8,64,3], index: 14, kind: output, shape index: {}]
  %s15 = sld [smem:[#allocation0]]
  $region114: #{tpu_custom_call.1} parent=0
    _
  %s17 = ssub.s32 1, %s15
  %s18 = scalar_select 0, %s17, %s15
  $region1: #{tpu_custom_call.1} parent=0
    #allocation2 [shape = 'u8[4096]{0}', space=vmem, size = 0x1000, scoped, tag = 'input window, operand 1, single buffered']
    #allocation3 [shape = 's32[1]{0}', space=sflag, size = 0x4, scoped, tag = 'scoped memory for tpu_custom_call.1']
    #allocation4 [shape = 'u8[512]{0}', space=vmem, size = 0x400, scoped, tag = 'input window, operand 2, single buffered']
    #allocation5 [shape = 's32[1]{0}', space=sflag, size = 0x4, scoped, tag = 'scoped memory for tpu_custom_call.1']
    #allocation6 [shape = 'u8[262144]{0}', space=vmem, size = 0x40000, scoped, tag = 'input window, operand 3, single buffered']
    #allocation7 [shape = 'u8[262144]{0}', space=vmem, size = 0x40000, scoped, tag = 'input window, operand 4, single buffered']
    #allocation8 [shape = 's32[1]{0}', space=sflag, size = 0x4, scoped, tag = 'scoped memory for tpu_custom_call.1']
    #allocation9 [shape = 'u8[2097152]{0}', space=vmem, size = 0x200000, scoped, tag = 'input window, operand 5, single buffered']
    #allocation10 [shape = 'u8[32768]{0}', space=vmem, size = 0x8000, scoped, tag = 'input window, operand 6, single buffered']
    #allocation11 [shape = 's32[1]{0}', space=sflag, size = 0x4, scoped, tag = 'scoped memory for tpu_custom_call.1']
    #allocation12 [shape = 'u8[1024]{0}', space=vmem, size = 0x400, scoped, tag = 'input window, operand 7, single buffered']
    #allocation13 [shape = 'u8[16384]{0}', space=vmem, size = 0x4000, scoped, tag = 'input window, operand 8, single buffered']
    #allocation14 [shape = 's32[1]{0}', space=sflag, size = 0x4, scoped, tag = 'scoped memory for tpu_custom_call.1']
    #allocation15 [shape = 'u8[512]{0}', space=vmem, size = 0x400, scoped, tag = 'input window, operand 9, single buffered']
    #allocation16 [shape = 'u8[49152]{0}', space=vmem, size = 0xc000, scoped, tag = 'input window, operand 10, single buffered']
    #allocation17 [shape = 's32[1]{0}', space=sflag, size = 0x4, scoped, tag = 'scoped memory for tpu_custom_call.1']
    #allocation18 [shape = 'u8[512]{0}', space=vmem, size = 0x400, scoped, tag = 'input window, operand 11, single buffered']
    #allocation19 [shape = 'u8[512]{0}', space=vmem, size = 0x400, scoped, tag = 'input window, operand 13, single buffered']
    #allocation20 [shape = 's32[1]{0}', space=sflag, size = 0x4, scoped, tag = 'scoped memory for tpu_custom_call.1']
    %19 = vsyncpa [#allocation3], 0
    %20 = vsyncpa [#allocation5], 0
    %21 = vsyncpa [#allocation8], 0
    %22 = vsyncpa [#allocation11], 0
    %23 = vsyncpa [#allocation14], 0
    %24 = vsyncpa [#allocation17], 0
    %25 = vsyncpa [#allocation20], 0
    // Predicated region
    $region2: #{tpu_custom_call.1} parent=1 // pred_check
      _
    $region3: #{tpu_custom_call.1} parent=1 // pred_check_branch
      %27 = sbr.rel (0) target = $region5
    $region4: #{tpu_custom_call.1} parent=1 // pred_region
      _
    $region5: #{tpu_custom_call.1} parent=1 // pred_fallthru
      _
    // Predicated region
    $region6: #{tpu_custom_call.1} parent=1 // pred_check
      _
    $region7: #{tpu_custom_call.1} parent=1 // pred_check_branch
      %29 = sbr.rel (0) target = $region9
    $region8: #{tpu_custom_call.1} parent=1 // pred_region
      %s31 = ssub.s32 128, 128
      %32 = vsyncadd [#allocation3], %s31
      %s34 = sshll.u32 [#allocation2], 4
      %s35 = int_to_ptr.vmem [resolvable:$true] %s34
      %37 = dma.hbm_to_vmem [thread:$0]  %s1, 128, %s35, [#allocation3]
    $region9: #{tpu_custom_call.1} parent=1 // pred_fallthru
      _
    // Predicated region
    $region10: #{tpu_custom_call.1} parent=1 // pred_check
      _
    $region11: #{tpu_custom_call.1} parent=1 // pred_check_branch
      %39 = sbr.rel (0) target = $region13
    $region12: #{tpu_custom_call.1} parent=1 // pred_region
      %s41 = ssub.s32 16, 16
      %42 = vsyncadd [#allocation5], %s41
      %s44 = sshll.u32 [#allocation4], 4
      %s45 = int_to_ptr.vmem [resolvable:$true] %s44
      %47 = dma.hbm_to_vmem [thread:$0]  %s2, 16, %s45, [#allocation5]
    $region13: #{tpu_custom_call.1} parent=1 // pred_fallthru
      _
    // Predicated region
    $region14: #{tpu_custom_call.1} parent=1 // pred_check
      _
    $region15: #{tpu_custom_call.1} parent=1 // pred_check_branch
      %49 = sbr.rel (0) target = $region17
    $region16: #{tpu_custom_call.1} parent=1 // pred_region
      %s51 = ssub.s32 8192, 8192
      %52 = vsyncadd [#allocation5], %s51
      %s53 = sshll.u32 [#allocation6], 4
      %s54 = int_to_ptr.vmem [resolvable:$true] %s53
      %59 = dma.hbm_to_vmem [thread:$0]  %s3, 8192, %s54, [#allocation5], 512, 512, 32
    $region17: #{tpu_custom_call.1} parent=1 // pred_fallthru
      _
    // Predicated region
    $region18: #{tpu_custom_call.1} parent=1 // pred_check
      _
    $region19: #{tpu_custom_call.1} parent=1 // pred_check_branch
      %61 = sbr.rel (0) target = $region21
    $region20: #{tpu_custom_call.1} parent=1 // pred_region
      %s63 = ssub.s32 8192, 8192
      %64 = vsyncadd [#allocation8], %s63
      %s65 = sshll.u32 [#allocation7], 4
      %s66 = int_to_ptr.vmem [resolvable:$true] %s65
      %71 = dma.hbm_to_vmem [thread:$0]  %s4, 8192, %s66, [#allocation8], 128, 128, 8
    $region21: #{tpu_custom_call.1} parent=1 // pred_fallthru
      _
    // Predicated region
    $region22: #{tpu_custom_call.1} parent=1 // pred_check
      _
    $region23: #{tpu_custom_call.1} parent=1 // pred_check_branch
      %73 = sbr.rel (0) target = $region25
    $region24: #{tpu_custom_call.1} parent=1 // pred_region
      %s75 = ssub.s32 65536, 65536
      %76 = vsyncadd [#allocation8], %s75
      %s77 = sshll.u32 [#allocation9], 4
      %s78 = int_to_ptr.vmem [resolvable:$true] %s77
      %83 = dma.hbm_to_vmem [thread:$0]  %s5, 65536, %s78, [#allocation8], 512, 512, 32
    $region25: #{tpu_custom_call.1} parent=1 // pred_fallthru
      _
    // Predicated region
    $region26: #{tpu_custom_call.1} parent=1 // pred_check
      _
    $region27: #{tpu_custom_call.1} parent=1 // pred_check_branch
      %85 = sbr.rel (0) target = $region29
    $region28: #{tpu_custom_call.1} parent=1 // pred_region
      %s87 = ssub.s32 1024, 1024
      %88 = vsyncadd [#allocation11], %s87
      %s89 = sshll.u32 [#allocation10], 4
      %s90 = int_to_ptr.vmem [resolvable:$true] %s89
      %95 = dma.hbm_to_vmem [thread:$0]  %s6, 1024, %s90, [#allocation11], 128, 128, 8
    $region29: #{tpu_custom_call.1} parent=1 // pred_fallthru
      _
    // Predicated region
    $region30: #{tpu_custom_call.1} parent=1 // pred_check
      _
    $region31: #{tpu_custom_call.1} parent=1 // pred_check_branch
      %97 = sbr.rel (0) target = $region33
    $region32: #{tpu_custom_call.1} parent=1 // pred_region
      %s99 = ssub.s32 32, 32
      %100 = vsyncadd [#allocation11], %s99
      %s101 = sshll.u32 [#allocation12], 4
      %s102 = int_to_ptr.vmem [resolvable:$true] %s101
      %107 = dma.hbm_to_vmem [thread:$0]  %s7, 32, %s102, [#allocation11], 16, 16, 1
    $region33: #{tpu_custom_call.1} parent=1 // pred_fallthru
      _
    // Predicated region
    $region34: #{tpu_custom_call.1} parent=1 // pred_check
      _
    $region35: #{tpu_custom_call.1} parent=1 // pred_check_branch
      %109 = sbr.rel (0) target = $region37
    $region36: #{tpu_custom_call.1} parent=1 // pred_region
      %s111 = ssub.s32 512, 512
      %112 = vsyncadd [#allocation14], %s111
      %s113 = sshll.u32 [#allocation13], 4
      %s114 = int_to_ptr.vmem [resolvable:$true] %s113
      %119 = dma.hbm_to_vmem [thread:$0]  %s8, 512, %s114, [#allocation14], 128, 128, 8
    $region37: #{tpu_custom_call.1} parent=1 // pred_fallthru
      _
    // Predicated region
    $region38: #{tpu_custom_call.1} parent=1 // pred_check
      _
    $region39: #{tpu_custom_call.1} parent=1 // pred_check_branch
      %121 = sbr.rel (0) target = $region41
    $region40: #{tpu_custom_call.1} parent=1 // pred_region
      %s123 = ssub.s32 16, 16
      %124 = vsyncadd [#allocation14], %s123
      %s126 = sshll.u32 [#allocation15], 4
      %s127 = int_to_ptr.vmem [resolvable:$true] %s126
      %129 = dma.hbm_to_vmem [thread:$0]  %s9, 16, %s127, [#allocation14]
    $region41: #{tpu_custom_call.1} parent=1 // pred_fallthru
      _
    // Predicated region
    $region42: #{tpu_custom_call.1} parent=1 // pred_check
      _
    $region43: #{tpu_custom_call.1} parent=1 // pred_check_branch
      %131 = sbr.rel (0) target = $region45
    $region44: #{tpu_custom_call.1} parent=1 // pred_region
      %s133 = ssub.s32 1536, 1536
      %134 = vsyncadd [#allocation17], %s133
      %s135 = sshll.u32 [#allocation16], 4
      %s136 = int_to_ptr.vmem [resolvable:$true] %s135
      %141 = dma.hbm_to_vmem [thread:$0]  %s10, 1536, %s136, [#allocation17], 128, 128, 8
    $region45: #{tpu_custom_call.1} parent=1 // pred_fallthru
      _
    // Predicated region
    $region46: #{tpu_custom_call.1} parent=1 // pred_check
      _
    $region47: #{tpu_custom_call.1} parent=1 // pred_check_branch
      %143 = sbr.rel (0) target = $region49
    $region48: #{tpu_custom_call.1} parent=1 // pred_region
      %s145 = ssub.s32 16, 16
      %146 = vsyncadd [#allocation17], %s145
      %s148 = sshll.u32 [#allocation18], 4
      %s149 = int_to_ptr.vmem [resolvable:$true] %s148
      %151 = dma.hbm_to_vmem [thread:$0]  %s11, 16, %s149, [#allocation17]
    $region49: #{tpu_custom_call.1} parent=1 // pred_fallthru
      _
    // Predicated region
    $region50: #{tpu_custom_call.1} parent=1 // pred_check
      _
    $region51: #{tpu_custom_call.1} parent=1 // pred_check_branch
      %153 = sbr.rel (0) target = $region53
    $region52: #{tpu_custom_call.1} parent=1 // pred_region
      _
    $region53: #{tpu_custom_call.1} parent=1 // pred_fallthru
      _
    // Predicated region
    $region54: #{tpu_custom_call.1} parent=1 // pred_check
      _
    $region55: #{tpu_custom_call.1} parent=1 // pred_check_branch
      %155 = sbr.rel (0) target = $region57
    $region56: #{tpu_custom_call.1} parent=1 // pred_region
      %s157 = ssub.s32 16, 16
      %158 = vsyncadd [#allocation20], %s157
      %s160 = sshll.u32 [#allocation19], 4
      %s161 = int_to_ptr.vmem [resolvable:$true] %s160
      %163 = dma.hbm_to_vmem [thread:$0]  %s13, 16, %s161, [#allocation20]
    $region57: #{tpu_custom_call.1} parent=1 // pred_fallthru
      _
    // Predicated region
    $region58: #{tpu_custom_call.1} parent=1 // pred_check
      _
    $region59: #{tpu_custom_call.1} parent=1 // pred_check_branch
      %165 = sbr.rel (0) target = $region61
    $region60: #{tpu_custom_call.1} parent=1 // pred_region
      %166 = dma.done [#allocation3], 128
    $region61: #{tpu_custom_call.1} parent=1 // pred_fallthru
      _
    // Predicated region
    $region62: #{tpu_custom_call.1} parent=1 // pred_check
      _
    $region63: #{tpu_custom_call.1} parent=1 // pred_check_branch
      %168 = sbr.rel (0) target = $region65
    $region64: #{tpu_custom_call.1} parent=1 // pred_region
      %169 = dma.done [#allocation5], 16
    $region65: #{tpu_custom_call.1} parent=1 // pred_fallthru
      _
    // Predicated region
    $region66: #{tpu_custom_call.1} parent=1 // pred_check
      _
    $region67: #{tpu_custom_call.1} parent=1 // pred_check_branch
      %171 = sbr.rel (0) target = $region69
    $region68: #{tpu_custom_call.1} parent=1 // pred_region
      %172 = dma.done [#allocation5], 8192
    $region69: #{tpu_custom_call.1} parent=1 // pred_fallthru
      _
    // Predicated region
    $region70: #{tpu_custom_call.1} parent=1 // pred_check
      _
    $region71: #{tpu_custom_call.1} parent=1 // pred_check_branch
      %174 = sbr.rel (0) target = $region73
    $region72: #{tpu_custom_call.1} parent=1 // pred_region
      %175 = dma.done [#allocation8], 8192
    $region73: #{tpu_custom_call.1} parent=1 // pred_fallthru
      _
    // Predicated region
    $region74: #{tpu_custom_call.1} parent=1 // pred_check
      _
    $region75: #{tpu_custom_call.1} parent=1 // pred_check_branch
      %177 = sbr.rel (0) target = $region77
    $region76: #{tpu_custom_call.1} parent=1 // pred_region
      %178 = dma.done [#allocation8], 65536
    $region77: #{tpu_custom_call.1} parent=1 // pred_fallthru
      _
    // Predicated region
    $region78: #{tpu_custom_call.1} parent=1 // pred_check
      _
    $region79: #{tpu_custom_call.1} parent=1 // pred_check_branch
      %180 = sbr.rel (0) target = $region81
    $region80: #{tpu_custom_call.1} parent=1 // pred_region
      %181 = dma.done [#allocation11], 1024
    $region81: #{tpu_custom_call.1} parent=1 // pred_fallthru
      _
    // Predicated region
    $region82: #{tpu_custom_call.1} parent=1 // pred_check
      _
    $region83: #{tpu_custom_call.1} parent=1 // pred_check_branch
      %183 = sbr.rel (0) target = $region85
    $region84: #{tpu_custom_call.1} parent=1 // pred_region
      %184 = dma.done [#allocation11], 32
    $region85: #{tpu_custom_call.1} parent=1 // pred_fallthru
      _
    // Predicated region
    $region86: #{tpu_custom_call.1} parent=1 // pred_check
      _
    $region87: #{tpu_custom_call.1} parent=1 // pred_check_branch
      %186 = sbr.rel (0) target = $region89
    $region88: #{tpu_custom_call.1} parent=1 // pred_region
      %187 = dma.done [#allocation14], 512
    $region89: #{tpu_custom_call.1} parent=1 // pred_fallthru
      _
    // Predicated region
    $region90: #{tpu_custom_call.1} parent=1 // pred_check
      _
    $region91: #{tpu_custom_call.1} parent=1 // pred_check_branch
      %189 = sbr.rel (0) target = $region93
    $region92: #{tpu_custom_call.1} parent=1 // pred_region
      %190 = dma.done [#allocation14], 16
    $region93: #{tpu_custom_call.1} parent=1 // pred_fallthru
      _
    // Predicated region
    $region94: #{tpu_custom_call.1} parent=1 // pred_check
      _
    $region95: #{tpu_custom_call.1} parent=1 // pred_check_branch
      %192 = sbr.rel (0) target = $region97
    $region96: #{tpu_custom_call.1} parent=1 // pred_region
      %193 = dma.done [#allocation17], 1536
    $region97: #{tpu_custom_call.1} parent=1 // pred_fallthru
      _
    // Predicated region
    $region98: #{tpu_custom_call.1} parent=1 // pred_check
      _
    $region99: #{tpu_custom_call.1} parent=1 // pred_check_branch
      %195 = sbr.rel (0) target = $region101
    $region100: #{tpu_custom_call.1} parent=1 // pred_region
      %196 = dma.done [#allocation17], 16
    $region101: #{tpu_custom_call.1} parent=1 // pred_fallthru
      _
    // Predicated region
    $region102: #{tpu_custom_call.1} parent=1 // pred_check
      _
    $region103: #{tpu_custom_call.1} parent=1 // pred_check_branch
      %198 = sbr.rel (0) target = $region105
    $region104: #{tpu_custom_call.1} parent=1 // pred_region
      %199 = dma.done [#allocation20], 16
    $region105: #{tpu_custom_call.1} parent=1 // pred_fallthru
      _
    %v200 = vld [vmem:[#allocation6] sm:$0xff]
    %v201 = vld [vmem:[#allocation6 + $0x8] sm:$0xff]
    %v202 = vld [vmem:[#allocation6 + $0x10] sm:$0xff]
    %v203 = vld [vmem:[#allocation6 + $0x18] sm:$0xff]
    %v204 = vld [vmem:[#allocation6 + $0x20] sm:$0xff]
    %v205 = vld [vmem:[#allocation6 + $0x28] sm:$0xff]
    %v206 = vld [vmem:[#allocation6 + $0x30] sm:$0xff]
    %v207 = vld [vmem:[#allocation6 + $0x38] sm:$0xff]
    %v208 = vld [vmem:[#allocation6 + $0x40] sm:$0xff]
    %v209 = vld [vmem:[#allocation6 + $0x48] sm:$0xff]
    %v210 = vld [vmem:[#allocation6 + $0x50] sm:$0xff]
    %v211 = vld [vmem:[#allocation6 + $0x58] sm:$0xff]
    %v212 = vld [vmem:[#allocation6 + $0x60] sm:$0xff]
    %v213 = vld [vmem:[#allocation6 + $0x68] sm:$0xff]
    %v214 = vld [vmem:[#allocation6 + $0x70] sm:$0xff]
    %v215 = vld [vmem:[#allocation6 + $0x78] sm:$0xff]
    %v216 = vld [vmem:[#allocation6 + $0x80] sm:$0xff]
    %v217 = vld [vmem:[#allocation6 + $0x88] sm:$0xff]
    %v218 = vld [vmem:[#allocation6 + $0x90] sm:$0xff]
    %v219 = vld [vmem:[#allocation6 + $0x98] sm:$0xff]
    %v220 = vld [vmem:[#allocation6 + $0xa0] sm:$0xff]
    %v221 = vld [vmem:[#allocation6 + $0xa8] sm:$0xff]
    %v222 = vld [vmem:[#allocation6 + $0xb0] sm:$0xff]
    %v223 = vld [vmem:[#allocation6 + $0xb8] sm:$0xff]
    %v224 = vld [vmem:[#allocation6 + $0xc0] sm:$0xff]
    %v225 = vld [vmem:[#allocation6 + $0xc8] sm:$0xff]
    %v226 = vld [vmem:[#allocation6 + $0xd0] sm:$0xff]
    %v227 = vld [vmem:[#allocation6 + $0xd8] sm:$0xff]
    %v228 = vld [vmem:[#allocation6 + $0xe0] sm:$0xff]
    %v229 = vld [vmem:[#allocation6 + $0xe8] sm:$0xff]
    %v230 = vld [vmem:[#allocation6 + $0xf0] sm:$0xff]
    %v231 = vld [vmem:[#allocation6 + $0xf8] sm:$0xff]
    %v232 = vld [vmem:[#allocation6 + $0x100] sm:$0xff]
    %v233 = vld [vmem:[#allocation6 + $0x108] sm:$0xff]
    %v234 = vld [vmem:[#allocation6 + $0x110] sm:$0xff]
    %v235 = vld [vmem:[#allocation6 + $0x118] sm:$0xff]
    %v236 = vld [vmem:[#allocation6 + $0x120] sm:$0xff]
    %v237 = vld [vmem:[#allocation6 + $0x128] sm:$0xff]
    %v238 = vld [vmem:[#allocation6 + $0x130] sm:$0xff]
    %v239 = vld [vmem:[#allocation6 + $0x138] sm:$0xff]
    %v240 = vld [vmem:[#allocation6 + $0x140] sm:$0xff]
    %v241 = vld [vmem:[#allocation6 + $0x148] sm:$0xff]
    %v242 = vld [vmem:[#allocation6 + $0x150] sm:$0xff]
    %v243 = vld [vmem:[#allocation6 + $0x158] sm:$0xff]
    %v244 = vld [vmem:[#allocation6 + $0x160] sm:$0xff]
    %v245 = vld [vmem:[#allocation6 + $0x168] sm:$0xff]
    %v246 = vld [vmem:[#allocation6 + $0x170] sm:$0xff]
    %v247 = vld [vmem:[#allocation6 + $0x178] sm:$0xff]
    %v248 = vld [vmem:[#allocation6 + $0x180] sm:$0xff]
    %v249 = vld [vmem:[#allocation6 + $0x188] sm:$0xff]
    %v250 = vld [vmem:[#allocation6 + $0x190] sm:$0xff]
    %v251 = vld [vmem:[#allocation6 + $0x198] sm:$0xff]
    %v252 = vld [vmem:[#allocation6 + $0x1a0] sm:$0xff]
    %v253 = vld [vmem:[#allocation6 + $0x1a8] sm:$0xff]
    %v254 = vld [vmem:[#allocation6 + $0x1b0] sm:$0xff]
    %v255 = vld [vmem:[#allocation6 + $0x1b8] sm:$0xff]
    %v256 = vld [vmem:[#allocation6 + $0x1c0] sm:$0xff]
    %v257 = vld [vmem:[#allocation6 + $0x1c8] sm:$0xff]
    %v258 = vld [vmem:[#allocation6 + $0x1d0] sm:$0xff]
    %v259 = vld [vmem:[#allocation6 + $0x1d8] sm:$0xff]
    %v260 = vld [vmem:[#allocation6 + $0x1e0] sm:$0xff]
    %v261 = vld [vmem:[#allocation6 + $0x1e8] sm:$0xff]
    %v262 = vld [vmem:[#allocation6 + $0x1f0] sm:$0xff]
    %v263 = vld [vmem:[#allocation6 + $0x1f8] sm:$0xff]
    %v264 = vld [vmem:[#allocation7] sm:$0xff]
    %v265 = vld [vmem:[#allocation7 + $0x8] sm:$0xff]
    %v266 = vld [vmem:[#allocation7 + $0x10] sm:$0xff]
    %v267 = vld [vmem:[#allocation7 + $0x18] sm:$0xff]
    %v268 = vld [vmem:[#allocation7 + $0x20] sm:$0xff]
    %v269 = vld [vmem:[#allocation7 + $0x28] sm:$0xff]
    %v270 = vld [vmem:[#allocation7 + $0x30] sm:$0xff]
    %v271 = vld [vmem:[#allocation7 + $0x38] sm:$0xff]
    %v272 = vld [vmem:[#allocation7 + $0x40] sm:$0xff]
    %v273 = vld [vmem:[#allocation7 + $0x48] sm:$0xff]
    %v274 = vld [vmem:[#allocation7 + $0x50] sm:$0xff]
    %v275 = vld [vmem:[#allocation7 + $0x58] sm:$0xff]
    %v276 = vld [vmem:[#allocation7 + $0x60] sm:$0xff]
    %v277 = vld [vmem:[#allocation7 + $0x68] sm:$0xff]
    %v278 = vld [vmem:[#allocation7 + $0x70] sm:$0xff]
    %v279 = vld [vmem:[#allocation7 + $0x78] sm:$0xff]
    %v280 = vld [vmem:[#allocation7 + $0x80] sm:$0xff]
    %v281 = vld [vmem:[#allocation7 + $0x88] sm:$0xff]
    %v282 = vld [vmem:[#allocation7 + $0x90] sm:$0xff]
    %v283 = vld [vmem:[#allocation7 + $0x98] sm:$0xff]
    %v284 = vld [vmem:[#allocation7 + $0xa0] sm:$0xff]
    %v285 = vld [vmem:[#allocation7 + $0xa8] sm:$0xff]
    %v286 = vld [vmem:[#allocation7 + $0xb0] sm:$0xff]
    %v287 = vld [vmem:[#allocation7 + $0xb8] sm:$0xff]
    %v288 = vld [vmem:[#allocation7 + $0xc0] sm:$0xff]
    %v289 = vld [vmem:[#allocation7 + $0xc8] sm:$0xff]
    %v290 = vld [vmem:[#allocation7 + $0xd0] sm:$0xff]
    %v291 = vld [vmem:[#allocation7 + $0xd8] sm:$0xff]
    %v292 = vld [vmem:[#allocation7 + $0xe0] sm:$0xff]
    %v293 = vld [vmem:[#allocation7 + $0xe8] sm:$0xff]
    %v294 = vld [vmem:[#allocation7 + $0xf0] sm:$0xff]
    %v295 = vld [vmem:[#allocation7 + $0xf8] sm:$0xff]
    %v296 = vld [vmem:[#allocation7 + $0x100] sm:$0xff]
    %v297 = vld [vmem:[#allocation7 + $0x108] sm:$0xff]
    %v298 = vld [vmem:[#allocation7 + $0x110] sm:$0xff]
    %v299 = vld [vmem:[#allocation7 + $0x118] sm:$0xff]
    %v300 = vld [vmem:[#allocation7 + $0x120] sm:$0xff]
    %v301 = vld [vmem:[#allocation7 + $0x128] sm:$0xff]
    %v302 = vld [vmem:[#allocation7 + $0x130] sm:$0xff]
    %v303 = vld [vmem:[#allocation7 + $0x138] sm:$0xff]
    %v304 = vld [vmem:[#allocation7 + $0x140] sm:$0xff]
    %v305 = vld [vmem:[#allocation7 + $0x148] sm:$0xff]
    %v306 = vld [vmem:[#allocation7 + $0x150] sm:$0xff]
    %v307 = vld [vmem:[#allocation7 + $0x158] sm:$0xff]
    %v308 = vld [vmem:[#allocation7 + $0x160] sm:$0xff]
    %v309 = vld [vmem:[#allocation7 + $0x168] sm:$0xff]
    %v310 = vld [vmem:[#allocation7 + $0x170] sm:$0xff]
    %v311 = vld [vmem:[#allocation7 + $0x178] sm:$0xff]
    %v312 = vld [vmem:[#allocation7 + $0x180] sm:$0xff]
    %v313 = vld [vmem:[#allocation7 + $0x188] sm:$0xff]
    %v314 = vld [vmem:[#allocation7 + $0x190] sm:$0xff]
    %v315 = vld [vmem:[#allocation7 + $0x198] sm:$0xff]
    %v316 = vld [vmem:[#allocation7 + $0x1a0] sm:$0xff]
    %v317 = vld [vmem:[#allocation7 + $0x1a8] sm:$0xff]
    %v318 = vld [vmem:[#allocation7 + $0x1b0] sm:$0xff]
    %v319 = vld [vmem:[#allocation7 + $0x1b8] sm:$0xff]
    %v320 = vld [vmem:[#allocation7 + $0x1c0] sm:$0xff]
    %v321 = vld [vmem:[#allocation7 + $0x1c8] sm:$0xff]
    %v322 = vld [vmem:[#allocation7 + $0x1d0] sm:$0xff]
    %v323 = vld [vmem:[#allocation7 + $0x1d8] sm:$0xff]
    %v324 = vld [vmem:[#allocation7 + $0x1e0] sm:$0xff]
    %v325 = vld [vmem:[#allocation7 + $0x1e8] sm:$0xff]
    %v326 = vld [vmem:[#allocation7 + $0x1f0] sm:$0xff]
    %v327 = vld [vmem:[#allocation7 + $0x1f8] sm:$0xff]
    %v328 = vld [vmem:[%s0] sm:$0xff]
    %v329 = vld [vmem:[%s0 + $0x8] sm:$0xff]
    %v330 = vld [vmem:[%s0 + $0x10] sm:$0xff]
    %v331 = vld [vmem:[%s0 + $0x18] sm:$0xff]
    %v332 = vld [vmem:[%s0 + $0x20] sm:$0xff]
    %v333 = vld [vmem:[%s0 + $0x28] sm:$0xff]
    %v334 = vld [vmem:[%s0 + $0x30] sm:$0xff]
    %v335 = vld [vmem:[%s0 + $0x38] sm:$0xff]
    %v336 = vld [vmem:[%s0 + $0x40] sm:$0xff]
    %v337 = vld [vmem:[%s0 + $0x48] sm:$0xff]
    %v338 = vld [vmem:[%s0 + $0x50] sm:$0xff]
    %v339 = vld [vmem:[%s0 + $0x58] sm:$0xff]
    %v340 = vld [vmem:[%s0 + $0x60] sm:$0xff]
    %v341 = vld [vmem:[%s0 + $0x68] sm:$0xff]
    %v342 = vld [vmem:[%s0 + $0x70] sm:$0xff]
    %v343 = vld [vmem:[%s0 + $0x78] sm:$0xff]
    %v344 = vld [vmem:[%s0 + $0x80] sm:$0xff]
    %v345 = vld [vmem:[%s0 + $0x88] sm:$0xff]
    %v346 = vld [vmem:[%s0 + $0x90] sm:$0xff]
    %v347 = vld [vmem:[%s0 + $0x98] sm:$0xff]
    %v348 = vld [vmem:[%s0 + $0xa0] sm:$0xff]
    %v349 = vld [vmem:[%s0 + $0xa8] sm:$0xff]
    %v350 = vld [vmem:[%s0 + $0xb0] sm:$0xff]
    %v351 = vld [vmem:[%s0 + $0xb8] sm:$0xff]
    %v352 = vld [vmem:[%s0 + $0xc0] sm:$0xff]
    %v353 = vld [vmem:[%s0 + $0xc8] sm:$0xff]
    %v354 = vld [vmem:[%s0 + $0xd0] sm:$0xff]
    %v355 = vld [vmem:[%s0 + $0xd8] sm:$0xff]
    %v356 = vld [vmem:[%s0 + $0xe0] sm:$0xff]
    %v357 = vld [vmem:[%s0 + $0xe8] sm:$0xff]
    %v358 = vld [vmem:[%s0 + $0xf0] sm:$0xff]
    %v359 = vld [vmem:[%s0 + $0xf8] sm:$0xff]
    %v360 = vld [vmem:[%s0 + $0x100] sm:$0xff]
    %v361 = vld [vmem:[%s0 + $0x108] sm:$0xff]
    %v362 = vld [vmem:[%s0 + $0x110] sm:$0xff]
    %v363 = vld [vmem:[%s0 + $0x118] sm:$0xff]
    %v364 = vld [vmem:[%s0 + $0x120] sm:$0xff]
    %v365 = vld [vmem:[%s0 + $0x128] sm:$0xff]
    %v366 = vld [vmem:[%s0 + $0x130] sm:$0xff]
    %v367 = vld [vmem:[%s0 + $0x138] sm:$0xff]
    %v368 = vld [vmem:[%s0 + $0x140] sm:$0xff]
    %v369 = vld [vmem:[%s0 + $0x148] sm:$0xff]
    %v370 = vld [vmem:[%s0 + $0x150] sm:$0xff]
    %v371 = vld [vmem:[%s0 + $0x158] sm:$0xff]
    %v372 = vld [vmem:[%s0 + $0x160] sm:$0xff]
    %v373 = vld [vmem:[%s0 + $0x168] sm:$0xff]
    %v374 = vld [vmem:[%s0 + $0x170] sm:$0xff]
    %v375 = vld [vmem:[%s0 + $0x178] sm:$0xff]
    %v376 = vld [vmem:[%s0 + $0x180] sm:$0xff]
    %v377 = vld [vmem:[%s0 + $0x188] sm:$0xff]
    %v378 = vld [vmem:[%s0 + $0x190] sm:$0xff]
    %v379 = vld [vmem:[%s0 + $0x198] sm:$0xff]
    %v380 = vld [vmem:[%s0 + $0x1a0] sm:$0xff]
    %v381 = vld [vmem:[%s0 + $0x1a8] sm:$0xff]
    %v382 = vld [vmem:[%s0 + $0x1b0] sm:$0xff]
    %v383 = vld [vmem:[%s0 + $0x1b8] sm:$0xff]
    %v384 = vld [vmem:[%s0 + $0x1c0] sm:$0xff]
    %v385 = vld [vmem:[%s0 + $0x1c8] sm:$0xff]
    %v386 = vld [vmem:[%s0 + $0x1d0] sm:$0xff]
    %v387 = vld [vmem:[%s0 + $0x1d8] sm:$0xff]
    %v388 = vld [vmem:[%s0 + $0x1e0] sm:$0xff]
    %v389 = vld [vmem:[%s0 + $0x1e8] sm:$0xff]
    %v390 = vld [vmem:[%s0 + $0x1f0] sm:$0xff]
    %v391 = vld [vmem:[%s0 + $0x1f8] sm:$0xff]
    %v392 = vld [vmem:[#allocation2] sm:$0x1f]
    %v393 = vld [vmem:[#allocation4] sm:$0x1]
    %v395 = vlaneseq
    %v396 = vshrl.u32 %v395, 7
    %v397 = vsub.s32 0, %v396
    %v398 = vrot.slane %v393, %v397
    %vm400 = vcmask 39936
    %v402 = vsel %vm400, %v328, 0
    %v405 = vsel %vm400, %v329, 0
    %v408 = vsel %vm400, %v330, 0
    %v411 = vsel %vm400, %v331, 0
    %v414 = vsel %vm400, %v332, 0
    %v417 = vsel %vm400, %v333, 0
    %v420 = vsel %vm400, %v334, 0
    %v423 = vsel %vm400, %v335, 0
    %v426 = vsel %vm400, %v336, 0
    %v429 = vsel %vm400, %v337, 0
    %v432 = vsel %vm400, %v338, 0
    %v435 = vsel %vm400, %v339, 0
    %v438 = vsel %vm400, %v340, 0
    %v441 = vsel %vm400, %v341, 0
    %v444 = vsel %vm400, %v342, 0
    %v447 = vsel %vm400, %v343, 0
    %v450 = vsel %vm400, %v344, 0
    %v453 = vsel %vm400, %v345, 0
    %v456 = vsel %vm400, %v346, 0
    %v459 = vsel %vm400, %v347, 0
    %v462 = vsel %vm400, %v348, 0
    %v465 = vsel %vm400, %v349, 0
    %v468 = vsel %vm400, %v350, 0
    %v471 = vsel %vm400, %v351, 0
    %v474 = vsel %vm400, %v352, 0
    %v477 = vsel %vm400, %v353, 0
    %v480 = vsel %vm400, %v354, 0
    %v483 = vsel %vm400, %v355, 0
    %v486 = vsel %vm400, %v356, 0
    %v489 = vsel %vm400, %v357, 0
    %v492 = vsel %vm400, %v358, 0
    %v495 = vsel %vm400, %v359, 0
    %v498 = vsel %vm400, %v360, 0
    %v501 = vsel %vm400, %v361, 0
    %v504 = vsel %vm400, %v362, 0
    %v507 = vsel %vm400, %v363, 0
    %v510 = vsel %vm400, %v364, 0
    %v513 = vsel %vm400, %v365, 0
    %v516 = vsel %vm400, %v366, 0
    %v519 = vsel %vm400, %v367, 0
    %v522 = vsel %vm400, %v368, 0
    %v525 = vsel %vm400, %v369, 0
    %v528 = vsel %vm400, %v370, 0
    %v531 = vsel %vm400, %v371, 0
    %v534 = vsel %vm400, %v372, 0
    %v537 = vsel %vm400, %v373, 0
    %v540 = vsel %vm400, %v374, 0
    %v543 = vsel %vm400, %v375, 0
    %v546 = vsel %vm400, %v376, 0
    %v549 = vsel %vm400, %v377, 0
    %v552 = vsel %vm400, %v378, 0
    %v555 = vsel %vm400, %v379, 0
    %v558 = vsel %vm400, %v380, 0
    %v561 = vsel %vm400, %v381, 0
    %v564 = vsel %vm400, %v382, 0
    %v567 = vsel %vm400, %v383, 0
    %v570 = vsel %vm400, %v384, 0
    %v573 = vsel %vm400, %v385, 0
    %v576 = vsel %vm400, %v386, 0
    %v579 = vsel %vm400, %v387, 0
    %v582 = vsel %vm400, %v388, 0
    %v585 = vsel %vm400, %v389, 0
    %v588 = vsel %vm400, %v390, 0
    %v591 = vsel %vm400, %v391, 0
    %vm593 = vcmask 1044480
    %v595 = vsel %vm593, %v392, 0
    %597 = vmatprep.subr.mxu0 0.0
    %598 = vmatpush1.msra.mxu0 %v595
    %599 = vmatprep.subr.mxu0 0.0
    %600 = vmatpush1.msra.mxu0 0.0
    %601 = vmatprep.subr.mxu0 0.0
    %602 = vmatpush1.msra.mxu0 0.0
    %603 = vmatprep.subr.mxu0 0.0
    %604 = vmatpush1.msra.mxu0 0.0
    %605 = vmatprep.subr.mxu0 0.0
    %606 = vmatpush1.msra.mxu0 0.0
    %607 = vmatprep.subr.mxu0 0.0
    %608 = vmatpush1.msra.mxu0 0.0
    %609 = vmatprep.subr.mxu0 0.0
    %610 = vmatpush1.msra.mxu0 0.0
    %611 = vmatprep.subr.mxu0 0.0
    %612 = vmatpush1.msra.mxu0 0.0
    %613 = vmatprep.subr.mxu0 0.0
    %614 = vmatpush1.msra.mxu0 0.0
    %615 = vmatprep.subr.mxu0 0.0
    %616 = vmatpush1.msra.mxu0 0.0
    %617 = vmatprep.subr.mxu0 0.0
    %618 = vmatpush1.msra.mxu0 0.0
    %619 = vmatprep.subr.mxu0 0.0
    %620 = vmatpush1.msra.mxu0 0.0
    %621 = vmatprep.subr.mxu0 0.0
    %622 = vmatpush1.msra.mxu0 0.0
    %623 = vmatprep.subr.mxu0 0.0
    %624 = vmatpush1.msra.mxu0 0.0
    %625 = vmatprep.subr.mxu0 0.0
    %626 = vmatpush1.msra.mxu0 0.0
    %627 = vmatprep.subr.mxu0 0.0
    %628 = vmatpush1.msra.mxu0 0.0
    %629 = vmatprep.subr.mxu0 0.0
    %630 = vmatpush1.msra.mxu0 0.0
    %631 = vmatprep.subr.mxu0 0.0
    %632 = vmatpush1.msra.mxu0 0.0
    %633 = vmatprep.subr.mxu0 0.0
    %634 = vmatpush1.msra.mxu0 0.0
    %635 = vmatprep.subr.mxu0 0.0
    %636 = vmatpush1.msra.mxu0 0.0
    %637 = vmatprep.subr.mxu0 0.0
    %638 = vmatpush1.msra.mxu0 0.0
    %639 = vmatprep.subr.mxu0 0.0
    %640 = vmatpush1.msra.mxu0 0.0
    %641 = vmatprep.subr.mxu0 0.0
    %642 = vmatpush1.msra.mxu0 0.0
    %643 = vmatprep.subr.mxu0 0.0
    %644 = vmatpush1.msra.mxu0 0.0
    %645 = vmatprep.subr.mxu0 0.0
    %646 = vmatpush1.msra.mxu0 0.0
    %647 = vmatprep.subr.mxu0 0.0
    %648 = vmatpush1.msra.mxu0 0.0
    %649 = vmatprep.subr.mxu0 0.0
    %650 = vmatpush1.msra.mxu0 0.0
    %651 = vmatprep.subr.mxu0 0.0
    %652 = vmatpush1.msra.mxu0 0.0
    %653 = vmatprep.subr.mxu0 0.0
    %654 = vmatpush1.msra.mxu0 0.0
    %655 = vmatprep.subr.mxu0 0.0
    %656 = vmatpush1.msra.mxu0 0.0
    %657 = vmatprep.subr.mxu0 0.0
    %658 = vmatpush1.msra.mxu0 0.0
    %659 = vmatprep.subr.mxu0 0.0
    %660 = vmatpush1.msra.mxu0 0.0
    %661 = vmatprep.mubr.f32.mxu0 0.0
    %662 = vmatmul.mubr.f32.gmra.mrb[0].mxu0 %v402
    %v663 = vpop.f32.mrb[0].mxu0
    %v664 = vadd.f32 %v398, %v663
    %v665 = vpop.f32.mrb[0].mxu0
    %666 = vmatprep.mubr.f32.mxu0 0.0
    %667 = vmatmul.mubr.f32.gmra.mrb[0].mxu0 %v405
    %v668 = vpop.f32.mrb[0].mxu0
    %v669 = vadd.f32 %v398, %v668
    %v670 = vpop.f32.mrb[0].mxu0
    %671 = vmatprep.mubr.f32.mxu0 0.0
    %672 = vmatmul.mubr.f32.gmra.mrb[0].mxu0 %v408
    %v673 = vpop.f32.mrb[0].mxu0
    %v674 = vadd.f32 %v398, %v673
    %v675 = vpop.f32.mrb[0].mxu0
    %676 = vmatprep.mubr.f32.mxu0 0.0
    %677 = vmatmul.mubr.f32.gmra.mrb[0].mxu0 %v411
    %v678 = vpop.f32.mrb[0].mxu0
    %v679 = vadd.f32 %v398, %v678
    %v680 = vpop.f32.mrb[0].mxu0
    %681 = vmatprep.mubr.f32.mxu0 0.0
    %682 = vmatmul.mubr.f32.gmra.mrb[0].mxu0 %v414
    %v683 = vpop.f32.mrb[0].mxu0
    %v684 = vadd.f32 %v398, %v683
    %v685 = vpop.f32.mrb[0].mxu0
    %686 = vmatprep.mubr.f32.mxu0 0.0
    %687 = vmatmul.mubr.f32.gmra.mrb[0].mxu0 %v417
    %v688 = vpop.f32.mrb[0].mxu0
    %v689 = vadd.f32 %v398, %v688
    %v690 = vpop.f32.mrb[0].mxu0
    %691 = vmatprep.mubr.f32.mxu0 0.0
    %692 = vmatmul.mubr.f32.gmra.mrb[0].mxu0 %v420
    %v693 = vpop.f32.mrb[0].mxu0
    %v694 = vadd.f32 %v398, %v693
    %v695 = vpop.f32.mrb[0].mxu0
    %696 = vmatprep.mubr.f32.mxu0 0.0
    %697 = vmatmul.mubr.f32.gmra.mrb[0].mxu0 %v423
    %v698 = vpop.f32.mrb[0].mxu0
    %v699 = vadd.f32 %v398, %v698
    %v700 = vpop.f32.mrb[0].mxu0
    %701 = vmatprep.mubr.f32.mxu0 0.0
    %702 = vmatmul.mubr.f32.gmra.mrb[0].mxu0 %v426
    %v703 = vpop.f32.mrb[0].mxu0
    %v704 = vadd.f32 %v398, %v703
    %v705 = vpop.f32.mrb[0].mxu0
    %706 = vmatprep.mubr.f32.mxu0 0.0
    %707 = vmatmul.mubr.f32.gmra.mrb[0].mxu0 %v429
    %v708 = vpop.f32.mrb[0].mxu0
    %v709 = vadd.f32 %v398, %v708
    %v710 = vpop.f32.mrb[0].mxu0
    %711 = vmatprep.mubr.f32.mxu0 0.0
    %712 = vmatmul.mubr.f32.gmra.mrb[0].mxu0 %v432
    %v713 = vpop.f32.mrb[0].mxu0
    %v714 = vadd.f32 %v398, %v713
    %v715 = vpop.f32.mrb[0].mxu0
    %716 = vmatprep.mubr.f32.mxu0 0.0
    %717 = vmatmul.mubr.f32.gmra.mrb[0].mxu0 %v435
    %v718 = vpop.f32.mrb[0].mxu0
    %v719 = vadd.f32 %v398, %v718
    %v720 = vpop.f32.mrb[0].mxu0
    %721 = vmatprep.mubr.f32.mxu0 0.0
    %722 = vmatmul.mubr.f32.gmra.mrb[0].mxu0 %v438
    %v723 = vpop.f32.mrb[0].mxu0
    %v724 = vadd.f32 %v398, %v723
    %v725 = vpop.f32.mrb[0].mxu0
    %726 = vmatprep.mubr.f32.mxu0 0.0
    %727 = vmatmul.mubr.f32.gmra.mrb[0].mxu0 %v441
    %v728 = vpop.f32.mrb[0].mxu0
    %v729 = vadd.f32 %v398, %v728
    %v730 = vpop.f32.mrb[0].mxu0
    %731 = vmatprep.mubr.f32.mxu0 0.0
    %732 = vmatmul.mubr.f32.gmra.mrb[0].mxu0 %v444
    %v733 = vpop.f32.mrb[0].mxu0
    %v734 = vadd.f32 %v398, %v733
    %v735 = vpop.f32.mrb[0].mxu0
    %736 = vmatprep.mubr.f32.mxu0 0.0
    %737 = vmatmul.mubr.f32.gmra.mrb[0].mxu0 %v447
    %v738 = vpop.f32.mrb[0].mxu0
    %v739 = vadd.f32 %v398, %v738
    %v740 = vpop.f32.mrb[0].mxu0
    %741 = vmatprep.mubr.f32.mxu0 0.0
    %742 = vmatmul.mubr.f32.gmra.mrb[0].mxu0 %v450
    %v743 = vpop.f32.mrb[0].mxu0
    %v744 = vadd.f32 %v398, %v743
    %v745 = vpop.f32.mrb[0].mxu0
    %746 = vmatprep.mubr.f32.mxu0 0.0
    %747 = vmatmul.mubr.f32.gmra.mrb[0].mxu0 %v453
    %v748 = vpop.f32.mrb[0].mxu0
    %v749 = vadd.f32 %v398, %v748
    %v750 = vpop.f32.mrb[0].mxu0
    %751 = vmatprep.mubr.f32.mxu0 0.0
    %752 = vmatmul.mubr.f32.gmra.mrb[0].mxu0 %v456
    %v753 = vpop.f32.mrb[0].mxu0
    %v754 = vadd.f32 %v398, %v753
    %v755 = vpop.f32.mrb[0].mxu0
    %756 = vmatprep.mubr.f32.mxu0 0.0
    %757 = vmatmul.mubr.f32.gmra.mrb[0].mxu0 %v459
    %v758 = vpop.f32.mrb[0].mxu0
    %v759 = vadd.f32 %v398, %v758
    %v760 = vpop.f32.mrb[0].mxu0
    %761 = vmatprep.mubr.f32.mxu0 0.0
    %762 = vmatmul.mubr.f32.gmra.mrb[0].mxu0 %v462
    %v763 = vpop.f32.mrb[0].mxu0
    %v764 = vadd.f32 %v398, %v763
    %v765 = vpop.f32.mrb[0].mxu0
    %766 = vmatprep.mubr.f32.mxu0 0.0
    %767 = vmatmul.mubr.f32.gmra.mrb[0].mxu0 %v465
    %v768 = vpop.f32.mrb[0].mxu0
    %v769 = vadd.f32 %v398, %v768
    %v770 = vpop.f32.mrb[0].mxu0
    %771 = vmatprep.mubr.f32.mxu0 0.0
    %772 = vmatmul.mubr.f32.gmra.mrb[0].mxu0 %v468
    %v773 = vpop.f32.mrb[0].mxu0
    %v774 = vadd.f32 %v398, %v773
    %v775 = vpop.f32.mrb[0].mxu0
    %776 = vmatprep.mubr.f32.mxu0 0.0
    %777 = vmatmul.mubr.f32.gmra.mrb[0].mxu0 %v471
    %v778 = vpop.f32.mrb[0].mxu0
    %v779 = vadd.f32 %v398, %v778
    %v780 = vpop.f32.mrb[0].mxu0
    %781 = vmatprep.mubr.f32.mxu0 0.0
    %782 = vmatmul.mubr.f32.gmra.mrb[0].mxu0 %v474
    %v783 = vpop.f32.mrb[0].mxu0
    %v784 = vadd.f32 %v398, %v783
    %v785 = vpop.f32.mrb[0].mxu0
    %786 = vmatprep.mubr.f32.mxu0 0.0
    %787 = vmatmul.mubr.f32.gmra.mrb[0].mxu0 %v477
    %v788 = vpop.f32.mrb[0].mxu0
    %v789 = vadd.f32 %v398, %v788
    %v790 = vpop.f32.mrb[0].mxu0
    %791 = vmatprep.mubr.f32.mxu0 0.0
    %792 = vmatmul.mubr.f32.gmra.mrb[0].mxu0 %v480
    %v793 = vpop.f32.mrb[0].mxu0
    %v794 = vadd.f32 %v398, %v793
    %v795 = vpop.f32.mrb[0].mxu0
    %796 = vmatprep.mubr.f32.mxu0 0.0
    %797 = vmatmul.mubr.f32.gmra.mrb[0].mxu0 %v483
    %v798 = vpop.f32.mrb[0].mxu0
    %v799 = vadd.f32 %v398, %v798
    %v800 = vpop.f32.mrb[0].mxu0
    %801 = vmatprep.mubr.f32.mxu0 0.0
    %802 = vmatmul.mubr.f32.gmra.mrb[0].mxu0 %v486
    %v803 = vpop.f32.mrb[0].mxu0
    %v804 = vadd.f32 %v398, %v803
    %v805 = vpop.f32.mrb[0].mxu0
    %806 = vmatprep.mubr.f32.mxu0 0.0
    %807 = vmatmul.mubr.f32.gmra.mrb[0].mxu0 %v489
    %v808 = vpop.f32.mrb[0].mxu0
    %v809 = vadd.f32 %v398, %v808
    %v810 = vpop.f32.mrb[0].mxu0
    %811 = vmatprep.mubr.f32.mxu0 0.0
    %812 = vmatmul.mubr.f32.gmra.mrb[0].mxu0 %v492
    %v813 = vpop.f32.mrb[0].mxu0
    %v814 = vadd.f32 %v398, %v813
    %v815 = vpop.f32.mrb[0].mxu0
    %816 = vmatprep.mubr.f32.mxu0 0.0
    %817 = vmatmul.mubr.f32.gmra.mrb[0].mxu0 %v495
    %v818 = vpop.f32.mrb[0].mxu0
    %v819 = vadd.f32 %v398, %v818
    %v820 = vpop.f32.mrb[0].mxu0
    %821 = vmatprep.mubr.f32.mxu0 0.0
    %822 = vmatmul.mubr.f32.gmra.mrb[0].mxu0 %v498
    %v823 = vpop.f32.mrb[0].mxu0
    %v824 = vadd.f32 %v398, %v823
    %v825 = vpop.f32.mrb[0].mxu0
    %826 = vmatprep.mubr.f32.mxu0 0.0
    %827 = vmatmul.mubr.f32.gmra.mrb[0].mxu0 %v501
    %v828 = vpop.f32.mrb[0].mxu0
    %v829 = vadd.f32 %v398, %v828
    %v830 = vpop.f32.mrb[0].mxu0
    %831 = vmatprep.mubr.f32.mxu0 0.0
    %832 = vmatmul.mubr.f32.gmra.mrb[0].mxu0 %v504
    %v833 = vpop.f32.mrb[0].mxu0
    %v834 = vadd.f32 %v398, %v833
    %v835 = vpop.f32.mrb[0].mxu0
    %836 = vmatprep.mubr.f32.mxu0 0.0
    %837 = vmatmul.mubr.f32.gmra.mrb[0].mxu0 %v507
    %v838 = vpop.f32.mrb[0].mxu0
    %v839 = vadd.f32 %v398, %v838
    %v840 = vpop.f32.mrb[0].mxu0
    %841 = vmatprep.mubr.f32.mxu0 0.0
    %842 = vmatmul.mubr.f32.gmra.mrb[0].mxu0 %v510
    %v843 = vpop.f32.mrb[0].mxu0
    %v844 = vadd.f32 %v398, %v843
    %v845 = vpop.f32.mrb[0].mxu0
    %846 = vmatprep.mubr.f32.mxu0 0.0
    %847 = vmatmul.mubr.f32.gmra.mrb[0].mxu0 %v513
    %v848 = vpop.f32.mrb[0].mxu0
    %v849 = vadd.f32 %v398, %v848
    %v850 = vpop.f32.mrb[0].mxu0
    %851 = vmatprep.mubr.f32.mxu0 0.0
    %852 = vmatmul.mubr.f32.gmra.mrb[0].mxu0 %v516
    %v853 = vpop.f32.mrb[0].mxu0
    %v854 = vadd.f32 %v398, %v853
    %v855 = vpop.f32.mrb[0].mxu0
    %856 = vmatprep.mubr.f32.mxu0 0.0
    %857 = vmatmul.mubr.f32.gmra.mrb[0].mxu0 %v519
    %v858 = vpop.f32.mrb[0].mxu0
    %v859 = vadd.f32 %v398, %v858
    %v860 = vpop.f32.mrb[0].mxu0
    %861 = vmatprep.mubr.f32.mxu0 0.0
    %862 = vmatmul.mubr.f32.gmra.mrb[0].mxu0 %v522
    %v863 = vpop.f32.mrb[0].mxu0
    %v864 = vadd.f32 %v398, %v863
    %v865 = vpop.f32.mrb[0].mxu0
    %866 = vmatprep.mubr.f32.mxu0 0.0
    %867 = vmatmul.mubr.f32.gmra.mrb[0].mxu0 %v525
    %v868 = vpop.f32.mrb[0].mxu0
    %v869 = vadd.f32 %v398, %v868
    %v870 = vpop.f32.mrb[0].mxu0
    %871 = vmatprep.mubr.f32.mxu0 0.0
    %872 = vmatmul.mubr.f32.gmra.mrb[0].mxu0 %v528
    %v873 = vpop.f32.mrb[0].mxu0
    %v874 = vadd.f32 %v398, %v873
    %v875 = vpop.f32.mrb[0].mxu0
    %876 = vmatprep.mubr.f32.mxu0 0.0
    %877 = vmatmul.mubr.f32.gmra.mrb[0].mxu0 %v531
    %v878 = vpop.f32.mrb[0].mxu0
    %v879 = vadd.f32 %v398, %v878
    %v880 = vpop.f32.mrb[0].mxu0
    %881 = vmatprep.mubr.f32.mxu0 0.0
    %882 = vmatmul.mubr.f32.gmra.mrb[0].mxu0 %v534
    %v883 = vpop.f32.mrb[0].mxu0
    %v884 = vadd.f32 %v398, %v883
    %v885 = vpop.f32.mrb[0].mxu0
    %886 = vmatprep.mubr.f32.mxu0 0.0
    %887 = vmatmul.mubr.f32.gmra.mrb[0].mxu0 %v537
    %v888 = vpop.f32.mrb[0].mxu0
    %v889 = vadd.f32 %v398, %v888
    %v890 = vpop.f32.mrb[0].mxu0
    %891 = vmatprep.mubr.f32.mxu0 0.0
    %892 = vmatmul.mubr.f32.gmra.mrb[0].mxu0 %v540
    %v893 = vpop.f32.mrb[0].mxu0
    %v894 = vadd.f32 %v398, %v893
    %v895 = vpop.f32.mrb[0].mxu0
    %896 = vmatprep.mubr.f32.mxu0 0.0
    %897 = vmatmul.mubr.f32.gmra.mrb[0].mxu0 %v543
    %v898 = vpop.f32.mrb[0].mxu0
    %v899 = vadd.f32 %v398, %v898
    %v900 = vpop.f32.mrb[0].mxu0
    %901 = vmatprep.mubr.f32.mxu0 0.0
    %902 = vmatmul.mubr.f32.gmra.mrb[0].mxu0 %v546
    %v903 = vpop.f32.mrb[0].mxu0
    %v904 = vadd.f32 %v398, %v903
    %v905 = vpop.f32.mrb[0].mxu0
    %906 = vmatprep.mubr.f32.mxu0 0.0
    %907 = vmatmul.mubr.f32.gmra.mrb[0].mxu0 %v549
    %v908 = vpop.f32.mrb[0].mxu0
    %v909 = vadd.f32 %v398, %v908
    %v910 = vpop.f32.mrb[0].mxu0
    %911 = vmatprep.mubr.f32.mxu0 0.0
    %912 = vmatmul.mubr.f32.gmra.mrb[0].mxu0 %v552
    %v913 = vpop.f32.mrb[0].mxu0
    %v914 = vadd.f32 %v398, %v913
    %v915 = vpop.f32.mrb[0].mxu0
    %916 = vmatprep.mubr.f32.mxu0 0.0
    %917 = vmatmul.mubr.f32.gmra.mrb[0].mxu0 %v555
    %v918 = vpop.f32.mrb[0].mxu0
    %v919 = vadd.f32 %v398, %v918
    %v920 = vpop.f32.mrb[0].mxu0
    %921 = vmatprep.mubr.f32.mxu0 0.0
    %922 = vmatmul.mubr.f32.gmra.mrb[0].mxu0 %v558
    %v923 = vpop.f32.mrb[0].mxu0
    %v924 = vadd.f32 %v398, %v923
    %v925 = vpop.f32.mrb[0].mxu0
    %926 = vmatprep.mubr.f32.mxu0 0.0
    %927 = vmatmul.mubr.f32.gmra.mrb[0].mxu0 %v561
    %v928 = vpop.f32.mrb[0].mxu0
    %v929 = vadd.f32 %v398, %v928
    %v930 = vpop.f32.mrb[0].mxu0
    %931 = vmatprep.mubr.f32.mxu0 0.0
    %932 = vmatmul.mubr.f32.gmra.mrb[0].mxu0 %v564
    %v933 = vpop.f32.mrb[0].mxu0
    %v934 = vadd.f32 %v398, %v933
    %v935 = vpop.f32.mrb[0].mxu0
    %936 = vmatprep.mubr.f32.mxu0 0.0
    %937 = vmatmul.mubr.f32.gmra.mrb[0].mxu0 %v567
    %v938 = vpop.f32.mrb[0].mxu0
    %v939 = vadd.f32 %v398, %v938
    %v940 = vpop.f32.mrb[0].mxu0
    %941 = vmatprep.mubr.f32.mxu0 0.0
    %942 = vmatmul.mubr.f32.gmra.mrb[0].mxu0 %v570
    %v943 = vpop.f32.mrb[0].mxu0
    %v944 = vadd.f32 %v398, %v943
    %v945 = vpop.f32.mrb[0].mxu0
    %946 = vmatprep.mubr.f32.mxu0 0.0
    %947 = vmatmul.mubr.f32.gmra.mrb[0].mxu0 %v573
    %v948 = vpop.f32.mrb[0].mxu0
    %v949 = vadd.f32 %v398, %v948
    %v950 = vpop.f32.mrb[0].mxu0
    %951 = vmatprep.mubr.f32.mxu0 0.0
    %952 = vmatmul.mubr.f32.gmra.mrb[0].mxu0 %v576
    %v953 = vpop.f32.mrb[0].mxu0
    %v954 = vadd.f32 %v398, %v953
    %v955 = vpop.f32.mrb[0].mxu0
    %956 = vmatprep.mubr.f32.mxu0 0.0
    %957 = vmatmul.mubr.f32.gmra.mrb[0].mxu0 %v579
    %v958 = vpop.f32.mrb[0].mxu0
    %v959 = vadd.f32 %v398, %v958
    %v960 = vpop.f32.mrb[0].mxu0
    %961 = vmatprep.mubr.f32.mxu0 0.0
    %962 = vmatmul.mubr.f32.gmra.mrb[0].mxu0 %v582
    %v963 = vpop.f32.mrb[0].mxu0
    %v964 = vadd.f32 %v398, %v963
    %v965 = vpop.f32.mrb[0].mxu0
    %966 = vmatprep.mubr.f32.mxu0 0.0
    %967 = vmatmul.mubr.f32.gmra.mrb[0].mxu0 %v585
    %v968 = vpop.f32.mrb[0].mxu0
    %v969 = vadd.f32 %v398, %v968
    %v970 = vpop.f32.mrb[0].mxu0
    %971 = vmatprep.mubr.f32.mxu0 0.0
    %972 = vmatmul.mubr.f32.gmra.mrb[0].mxu0 %v588
    %v973 = vpop.f32.mrb[0].mxu0
    %v974 = vadd.f32 %v398, %v973
    %v975 = vpop.f32.mrb[0].mxu0
    %976 = vmatprep.mubr.f32.mxu0 0.0
    %977 = vmatmul.mubr.f32.gmra.mrb[0].mxu0 %v591
    %v978 = vpop.f32.mrb[0].mxu0
    %v979 = vadd.f32 %v398, %v978
    %v980 = vpop.f32.mrb[0].mxu0
    %981 = vdwg.mxu0
    %v982 = vld [vmem:[#allocation9] sm:$0xff]
    %v983 = vld [vmem:[#allocation9 + $0x8] sm:$0xff]
    %v984 = vld [vmem:[#allocation9 + $0x10] sm:$0xff]
    %v985 = vld [vmem:[#allocation9 + $0x18] sm:$0xff]
    %v986 = vld [vmem:[#allocation9 + $0x20] sm:$0xff]
    %v987 = vld [vmem:[#allocation9 + $0x28] sm:$0xff]
    %v988 = vld [vmem:[#allocation9 + $0x30] sm:$0xff]
    %v989 = vld [vmem:[#allocation9 + $0x38] sm:$0xff]
    %v990 = vld [vmem:[#allocation9 + $0x40] sm:$0xff]
    %v991 = vld [vmem:[#allocation9 + $0x48] sm:$0xff]
    %v992 = vld [vmem:[#allocation9 + $0x50] sm:$0xff]
    %v993 = vld [vmem:[#allocation9 + $0x58] sm:$0xff]
    %v994 = vld [vmem:[#allocation9 + $0x60] sm:$0xff]
    %v995 = vld [vmem:[#allocation9 + $0x68] sm:$0xff]
    %v996 = vld [vmem:[#allocation9 + $0x70] sm:$0xff]
    %v997 = vld [vmem:[#allocation9 + $0x78] sm:$0xff]
    %v998 = vld [vmem:[#allocation9 + $0x80] sm:$0xff]
    %v999 = vld [vmem:[#allocation9 + $0x88] sm:$0xff]
    %v1000 = vld [vmem:[#allocation9 + $0x90] sm:$0xff]
    %v1001 = vld [vmem:[#allocation9 + $0x98] sm:$0xff]
    %v1002 = vld [vmem:[#allocation9 + $0xa0] sm:$0xff]
    %v1003 = vld [vmem:[#allocation9 + $0xa8] sm:$0xff]
    %v1004 = vld [vmem:[#allocation9 + $0xb0] sm:$0xff]
    %v1005 = vld [vmem:[#allocation9 + $0xb8] sm:$0xff]
    %v1006 = vld [vmem:[#allocation9 + $0xc0] sm:$0xff]
    %v1007 = vld [vmem:[#allocation9 + $0xc8] sm:$0xff]
    %v1008 = vld [vmem:[#allocation9 + $0xd0] sm:$0xff]
    %v1009 = vld [vmem:[#allocation9 + $0xd8] sm:$0xff]
    %v1010 = vld [vmem:[#allocation9 + $0xe0] sm:$0xff]
    %v1011 = vld [vmem:[#allocation9 + $0xe8] sm:$0xff]
    %v1012 = vld [vmem:[#allocation9 + $0xf0] sm:$0xff]
    %v1013 = vld [vmem:[#allocation9 + $0xf8] sm:$0xff]
    %v1014 = vld [vmem:[#allocation9 + $0x100] sm:$0xff]
    %v1015 = vld [vmem:[#allocation9 + $0x108] sm:$0xff]
    %v1016 = vld [vmem:[#allocation9 + $0x110] sm:$0xff]
    %v1017 = vld [vmem:[#allocation9 + $0x118] sm:$0xff]
    %v1018 = vld [vmem:[#allocation9 + $0x120] sm:$0xff]
    %v1019 = vld [vmem:[#allocation9 + $0x128] sm:$0xff]
    %v1020 = vld [vmem:[#allocation9 + $0x130] sm:$0xff]
    %v1021 = vld [vmem:[#allocation9 + $0x138] sm:$0xff]
    %v1022 = vld [vmem:[#allocation9 + $0x140] sm:$0xff]
    %v1023 = vld [vmem:[#allocation9 + $0x148] sm:$0xff]
    %v1024 = vld [vmem:[#allocation9 + $0x150] sm:$0xff]
    %v1025 = vld [vmem:[#allocation9 + $0x158] sm:$0xff]
    %v1026 = vld [vmem:[#allocation9 + $0x160] sm:$0xff]
    %v1027 = vld [vmem:[#allocation9 + $0x168] sm:$0xff]
    %v1028 = vld [vmem:[#allocation9 + $0x170] sm:$0xff]
    %v1029 = vld [vmem:[#allocation9 + $0x178] sm:$0xff]
    %v1030 = vld [vmem:[#allocation9 + $0x180] sm:$0xff]
    %v1031 = vld [vmem:[#allocation9 + $0x188] sm:$0xff]
    %v1032 = vld [vmem:[#allocation9 + $0x190] sm:$0xff]
    %v1033 = vld [vmem:[#allocation9 + $0x198] sm:$0xff]
    %v1034 = vld [vmem:[#allocation9 + $0x1a0] sm:$0xff]
    %v1035 = vld [vmem:[#allocation9 + $0x1a8] sm:$0xff]
    %v1036 = vld [vmem:[#allocation9 + $0x1b0] sm:$0xff]
    %v1037 = vld [vmem:[#allocation9 + $0x1b8] sm:$0xff]
    %v1038 = vld [vmem:[#allocation9 + $0x1c0] sm:$0xff]
    %v1039 = vld [vmem:[#allocation9 + $0x1c8] sm:$0xff]
    %v1040 = vld [vmem:[#allocation9 + $0x1d0] sm:$0xff]
    %v1041 = vld [vmem:[#allocation9 + $0x1d8] sm:$0xff]
    %v1042 = vld [vmem:[#allocation9 + $0x1e0] sm:$0xff]
    %v1043 = vld [vmem:[#allocation9 + $0x1e8] sm:$0xff]
    %v1044 = vld [vmem:[#allocation9 + $0x1f0] sm:$0xff]
    %v1045 = vld [vmem:[#allocation9 + $0x1f8] sm:$0xff]
    %v1046 = vld [vmem:[#allocation9 + $0x200] sm:$0xff]
    %v1047 = vld [vmem:[#allocation9 + $0x208] sm:$0xff]
    %v1048 = vld [vmem:[#allocation9 + $0x210] sm:$0xff]
    %v1049 = vld [vmem:[#allocation9 + $0x218] sm:$0xff]
    %v1050 = vld [vmem:[#allocation9 + $0x220] sm:$0xff]
    %v1051 = vld [vmem:[#allocation9 + $0x228] sm:$0xff]
    %v1052 = vld [vmem:[#allocation9 + $0x230] sm:$0xff]
    %v1053 = vld [vmem:[#allocation9 + $0x238] sm:$0xff]
    %v1054 = vld [vmem:[#allocation9 + $0x240] sm:$0xff]
    %v1055 = vld [vmem:[#allocation9 + $0x248] sm:$0xff]
    %v1056 = vld [vmem:[#allocation9 + $0x250] sm:$0xff]
    %v1057 = vld [vmem:[#allocation9 + $0x258] sm:$0xff]
    %v1058 = vld [vmem:[#allocation9 + $0x260] sm:$0xff]
    %v1059 = vld [vmem:[#allocation9 + $0x268] sm:$0xff]
    %v1060 = vld [vmem:[#allocation9 + $0x270] sm:$0xff]
    %v1061 = vld [vmem:[#allocation9 + $0x278] sm:$0xff]
    %v1062 = vld [vmem:[#allocation9 + $0x280] sm:$0xff]
    %v1063 = vld [vmem:[#allocation9 + $0x288] sm:$0xff]
    %v1064 = vld [vmem:[#allocation9 + $0x290] sm:$0xff]
    %v1065 = vld [vmem:[#allocation9 + $0x298] sm:$0xff]
    %v1066 = vld [vmem:[#allocation9 + $0x2a0] sm:$0xff]
    %v1067 = vld [vmem:[#allocation9 + $0x2a8] sm:$0xff]
    %v1068 = vld [vmem:[#allocation9 + $0x2b0] sm:$0xff]
    %v1069 = vld [vmem:[#allocation9 + $0x2b8] sm:$0xff]
    %v1070 = vld [vmem:[#allocation9 + $0x2c0] sm:$0xff]
    %v1071 = vld [vmem:[#allocation9 + $0x2c8] sm:$0xff]
    %v1072 = vld [vmem:[#allocation9 + $0x2d0] sm:$0xff]
    %v1073 = vld [vmem:[#allocation9 + $0x2d8] sm:$0xff]
    %v1074 = vld [vmem:[#allocation9 + $0x2e0] sm:$0xff]
    %v1075 = vld [vmem:[#allocation9 + $0x2e8] sm:$0xff]
    %v1076 = vld [vmem:[#allocation9 + $0x2f0] sm:$0xff]
    %v1077 = vld [vmem:[#allocation9 + $0x2f8] sm:$0xff]
    %v1078 = vld [vmem:[#allocation9 + $0x300] sm:$0xff]
    %v1079 = vld [vmem:[#allocation9 + $0x308] sm:$0xff]
    %v1080 = vld [vmem:[#allocation9 + $0x310] sm:$0xff]
    %v1081 = vld [vmem:[#allocation9 + $0x318] sm:$0xff]
    %v1082 = vld [vmem:[#allocation9 + $0x320] sm:$0xff]
    %v1083 = vld [vmem:[#allocation9 + $0x328] sm:$0xff]
    %v1084 = vld [vmem:[#allocation9 + $0x330] sm:$0xff]
    %v1085 = vld [vmem:[#allocation9 + $0x338] sm:$0xff]
    %v1086 = vld [vmem:[#allocation9 + $0x340] sm:$0xff]
    %v1087 = vld [vmem:[#allocation9 + $0x348] sm:$0xff]
    %v1088 = vld [vmem:[#allocation9 + $0x350] sm:$0xff]
    %v1089 = vld [vmem:[#allocation9 + $0x358] sm:$0xff]
    %v1090 = vld [vmem:[#allocation9 + $0x360] sm:$0xff]
    %v1091 = vld [vmem:[#allocation9 + $0x368] sm:$0xff]
    %v1092 = vld [vmem:[#allocation9 + $0x370] sm:$0xff]
    %v1093 = vld [vmem:[#allocation9 + $0x378] sm:$0xff]
    %v1094 = vld [vmem:[#allocation9 + $0x380] sm:$0xff]
    %v1095 = vld [vmem:[#allocation9 + $0x388] sm:$0xff]
    %v1096 = vld [vmem:[#allocation9 + $0x390] sm:$0xff]
    %v1097 = vld [vmem:[#allocation9 + $0x398] sm:$0xff]
    %v1098 = vld [vmem:[#allocation9 + $0x3a0] sm:$0xff]
    %v1099 = vld [vmem:[#allocation9 + $0x3a8] sm:$0xff]
    %v1100 = vld [vmem:[#allocation9 + $0x3b0] sm:$0xff]
    %v1101 = vld [vmem:[#allocation9 + $0x3b8] sm:$0xff]
    %v1102 = vld [vmem:[#allocation9 + $0x3c0] sm:$0xff]
    %v1103 = vld [vmem:[#allocation9 + $0x3c8] sm:$0xff]
    %v1104 = vld [vmem:[#allocation9 + $0x3d0] sm:$0xff]
    %v1105 = vld [vmem:[#allocation9 + $0x3d8] sm:$0xff]
    %v1106 = vld [vmem:[#allocation9 + $0x3e0] sm:$0xff]
    %v1107 = vld [vmem:[#allocation9 + $0x3e8] sm:$0xff]
    %v1108 = vld [vmem:[#allocation9 + $0x3f0] sm:$0xff]
    %v1109 = vld [vmem:[#allocation9 + $0x3f8] sm:$0xff]
    %v1110 = vld [vmem:[#allocation9 + $0x400] sm:$0xff]
    %v1111 = vld [vmem:[#allocation9 + $0x408] sm:$0xff]
    %v1112 = vld [vmem:[#allocation9 + $0x410] sm:$0xff]
    %v1113 = vld [vmem:[#allocation9 + $0x418] sm:$0xff]
    %v1114 = vld [vmem:[#allocation9 + $0x420] sm:$0xff]
    %v1115 = vld [vmem:[#allocation9 + $0x428] sm:$0xff]
    %v1116 = vld [vmem:[#allocation9 + $0x430] sm:$0xff]
    %v1117 = vld [vmem:[#allocation9 + $0x438] sm:$0xff]
    %v1118 = vld [vmem:[#allocation9 + $0x440] sm:$0xff]
    %v1119 = vld [vmem:[#allocation9 + $0x448] sm:$0xff]
    %v1120 = vld [vmem:[#allocation9 + $0x450] sm:$0xff]
    %v1121 = vld [vmem:[#allocation9 + $0x458] sm:$0xff]
    %v1122 = vld [vmem:[#allocation9 + $0x460] sm:$0xff]
    %v1123 = vld [vmem:[#allocation9 + $0x468] sm:$0xff]
    %v1124 = vld [vmem:[#allocation9 + $0x470] sm:$0xff]
    %v1125 = vld [vmem:[#allocation9 + $0x478] sm:$0xff]
    %v1126 = vld [vmem:[#allocation9 + $0x480] sm:$0xff]
    %v1127 = vld [vmem:[#allocation9 + $0x488] sm:$0xff]
    %v1128 = vld [vmem:[#allocation9 + $0x490] sm:$0xff]
    %v1129 = vld [vmem:[#allocation9 + $0x498] sm:$0xff]
    %v1130 = vld [vmem:[#allocation9 + $0x4a0] sm:$0xff]
    %v1131 = vld [vmem:[#allocation9 + $0x4a8] sm:$0xff]
    %v1132 = vld [vmem:[#allocation9 + $0x4b0] sm:$0xff]
    %v1133 = vld [vmem:[#allocation9 + $0x4b8] sm:$0xff]
    %v1134 = vld [vmem:[#allocation9 + $0x4c0] sm:$0xff]
    %v1135 = vld [vmem:[#allocation9 + $0x4c8] sm:$0xff]
    %v1136 = vld [vmem:[#allocation9 + $0x4d0] sm:$0xff]
    %v1137 = vld [vmem:[#allocation9 + $0x4d8] sm:$0xff]
    %v1138 = vld [vmem:[#allocation9 + $0x4e0] sm:$0xff]
    %v1139 = vld [vmem:[#allocation9 + $0x4e8] sm:$0xff]
    %v1140 = vld [vmem:[#allocation9 + $0x4f0] sm:$0xff]
    %v1141 = vld [vmem:[#allocation9 + $0x4f8] sm:$0xff]
    %v1142 = vld [vmem:[#allocation9 + $0x500] sm:$0xff]
    %v1143 = vld [vmem:[#allocation9 + $0x508] sm:$0xff]
    %v1144 = vld [vmem:[#allocation9 + $0x510] sm:$0xff]
    %v1145 = vld [vmem:[#allocation9 + $0x518] sm:$0xff]
    %v1146 = vld [vmem:[#allocation9 + $0x520] sm:$0xff]
    %v1147 = vld [vmem:[#allocation9 + $0x528] sm:$0xff]
    %v1148 = vld [vmem:[#allocation9 + $0x530] sm:$0xff]
    %v1149 = vld [vmem:[#allocation9 + $0x538] sm:$0xff]
    %v1150 = vld [vmem:[#allocation9 + $0x540] sm:$0xff]
    %v1151 = vld [vmem:[#allocation9 + $0x548] sm:$0xff]
    %v1152 = vld [vmem:[#allocation9 + $0x550] sm:$0xff]
    %v1153 = vld [vmem:[#allocation9 + $0x558] sm:$0xff]
    %v1154 = vld [vmem:[#allocation9 + $0x560] sm:$0xff]
    %v1155 = vld [vmem:[#allocation9 + $0x568] sm:$0xff]
    %v1156 = vld [vmem:[#allocation9 + $0x570] sm:$0xff]
    %v1157 = vld [vmem:[#allocation9 + $0x578] sm:$0xff]
    %v1158 = vld [vmem:[#allocation9 + $0x580] sm:$0xff]
    %v1159 = vld [vmem:[#allocation9 + $0x588] sm:$0xff]
    %v1160 = vld [vmem:[#allocation9 + $0x590] sm:$0xff]
    %v1161 = vld [vmem:[#allocation9 + $0x598] sm:$0xff]
    %v1162 = vld [vmem:[#allocation9 + $0x5a0] sm:$0xff]
    %v1163 = vld [vmem:[#allocation9 + $0x5a8] sm:$0xff]
    %v1164 = vld [vmem:[#allocation9 + $0x5b0] sm:$0xff]
    %v1165 = vld [vmem:[#allocation9 + $0x5b8] sm:$0xff]
    %v1166 = vld [vmem:[#allocation9 + $0x5c0] sm:$0xff]
    %v1167 = vld [vmem:[#allocation9 + $0x5c8] sm:$0xff]
    %v1168 = vld [vmem:[#allocation9 + $0x5d0] sm:$0xff]
    %v1169 = vld [vmem:[#allocation9 + $0x5d8] sm:$0xff]
    %v1170 = vld [vmem:[#allocation9 + $0x5e0] sm:$0xff]
    %v1171 = vld [vmem:[#allocation9 + $0x5e8] sm:$0xff]
    %v1172 = vld [vmem:[#allocation9 + $0x5f0] sm:$0xff]
    %v1173 = vld [vmem:[#allocation9 + $0x5f8] sm:$0xff]
    %v1174 = vld [vmem:[#allocation9 + $0x600] sm:$0xff]
    %v1175 = vld [vmem:[#allocation9 + $0x608] sm:$0xff]
    %v1176 = vld [vmem:[#allocation9 + $0x610] sm:$0xff]
    %v1177 = vld [vmem:[#allocation9 + $0x618] sm:$0xff]
    %v1178 = vld [vmem:[#allocation9 + $0x620] sm:$0xff]
    %v1179 = vld [vmem:[#allocation9 + $0x628] sm:$0xff]
    %v1180 = vld [vmem:[#allocation9 + $0x630] sm:$0xff]
    %v1181 = vld [vmem:[#allocation9 + $0x638] sm:$0xff]
    %v1182 = vld [vmem:[#allocation9 + $0x640] sm:$0xff]
    %v1183 = vld [vmem:[#allocation9 + $0x648] sm:$0xff]
    %v1184 = vld [vmem:[#allocation9 + $0x650] sm:$0xff]
    %v1185 = vld [vmem:[#allocation9 + $0x658] sm:$0xff]
    %v1186 = vld [vmem:[#allocation9 + $0x660] sm:$0xff]
    %v1187 = vld [vmem:[#allocation9 + $0x668] sm:$0xff]
    %v1188 = vld [vmem:[#allocation9 + $0x670] sm:$0xff]
    %v1189 = vld [vmem:[#allocation9 + $0x678] sm:$0xff]
    %v1190 = vld [vmem:[#allocation9 + $0x680] sm:$0xff]
    %v1191 = vld [vmem:[#allocation9 + $0x688] sm:$0xff]
    %v1192 = vld [vmem:[#allocation9 + $0x690] sm:$0xff]
    %v1193 = vld [vmem:[#allocation9 + $0x698] sm:$0xff]
    %v1194 = vld [vmem:[#allocation9 + $0x6a0] sm:$0xff]
    %v1195 = vld [vmem:[#allocation9 + $0x6a8] sm:$0xff]
    %v1196 = vld [vmem:[#allocation9 + $0x6b0] sm:$0xff]
    %v1197 = vld [vmem:[#allocation9 + $0x6b8] sm:$0xff]
    %v1198 = vld [vmem:[#allocation9 + $0x6c0] sm:$0xff]
    %v1199 = vld [vmem:[#allocation9 + $0x6c8] sm:$0xff]
    %v1200 = vld [vmem:[#allocation9 + $0x6d0] sm:$0xff]
    %v1201 = vld [vmem:[#allocation9 + $0x6d8] sm:$0xff]
    %v1202 = vld [vmem:[#allocation9 + $0x6e0] sm:$0xff]
    %v1203 = vld [vmem:[#allocation9 + $0x6e8] sm:$0xff]
    %v1204 = vld [vmem:[#allocation9 + $0x6f0] sm:$0xff]
    %v1205 = vld [vmem:[#allocation9 + $0x6f8] sm:$0xff]
    %v1206 = vld [vmem:[#allocation9 + $0x700] sm:$0xff]
    %v1207 = vld [vmem:[#allocation9 + $0x708] sm:$0xff]
    %v1208 = vld [vmem:[#allocation9 + $0x710] sm:$0xff]
    %v1209 = vld [vmem:[#allocation9 + $0x718] sm:$0xff]
    %v1210 = vld [vmem:[#allocation9 + $0x720] sm:$0xff]
    %v1211 = vld [vmem:[#allocation9 + $0x728] sm:$0xff]
    %v1212 = vld [vmem:[#allocation9 + $0x730] sm:$0xff]
    %v1213 = vld [vmem:[#allocation9 + $0x738] sm:$0xff]
    %v1214 = vld [vmem:[#allocation9 + $0x740] sm:$0xff]
    %v1215 = vld [vmem:[#allocation9 + $0x748] sm:$0xff]
    %v1216 = vld [vmem:[#allocation9 + $0x750] sm:$0xff]
    %v1217 = vld [vmem:[#allocation9 + $0x758] sm:$0xff]
    %v1218 = vld [vmem:[#allocation9 + $0x760] sm:$0xff]
    %v1219 = vld [vmem:[#allocation9 + $0x768] sm:$0xff]
    %v1220 = vld [vmem:[#allocation9 + $0x770] sm:$0xff]
    %v1221 = vld [vmem:[#allocation9 + $0x778] sm:$0xff]
    %v1222 = vld [vmem:[#allocation9 + $0x780] sm:$0xff]
    %v1223 = vld [vmem:[#allocation9 + $0x788] sm:$0xff]
    %v1224 = vld [vmem:[#allocation9 + $0x790] sm:$0xff]
    %v1225 = vld [vmem:[#allocation9 + $0x798] sm:$0xff]
    %v1226 = vld [vmem:[#allocation9 + $0x7a0] sm:$0xff]
    %v1227 = vld [vmem:[#allocation9 + $0x7a8] sm:$0xff]
    %v1228 = vld [vmem:[#allocation9 + $0x7b0] sm:$0xff]
    %v1229 = vld [vmem:[#allocation9 + $0x7b8] sm:$0xff]
    %v1230 = vld [vmem:[#allocation9 + $0x7c0] sm:$0xff]
    %v1231 = vld [vmem:[#allocation9 + $0x7c8] sm:$0xff]
    %v1232 = vld [vmem:[#allocation9 + $0x7d0] sm:$0xff]
    %v1233 = vld [vmem:[#allocation9 + $0x7d8] sm:$0xff]
    %v1234 = vld [vmem:[#allocation9 + $0x7e0] sm:$0xff]
    %v1235 = vld [vmem:[#allocation9 + $0x7e8] sm:$0xff]
    %v1236 = vld [vmem:[#allocation9 + $0x7f0] sm:$0xff]
    %v1237 = vld [vmem:[#allocation9 + $0x7f8] sm:$0xff]
    %v1238 = vld [vmem:[#allocation10] sm:$0xff]
    %v1239 = vld [vmem:[#allocation10 + $0x8] sm:$0xff]
    %v1240 = vld [vmem:[#allocation10 + $0x10] sm:$0xff]
    %v1241 = vld [vmem:[#allocation10 + $0x18] sm:$0xff]
    %v1242 = vld [vmem:[#allocation12] sm:$0x1]
    %v1244 = vlaneseq
    %v1245 = vshrl.u32 %v1244, 7
    %v1246 = vsub.s32 0, %v1245
    %v1247 = vrot.slane %v1242, %v1246
    %vm1249 = vcmask 261120
    %v1251 = vsel %vm1249, %v664, 0
    %v1254 = vsel %vm1249, %v669, 0
    %v1257 = vsel %vm1249, %v674, 0
    %v1260 = vsel %vm1249, %v679, 0
    %v1263 = vsel %vm1249, %v684, 0
    %v1266 = vsel %vm1249, %v689, 0
    %v1269 = vsel %vm1249, %v694, 0
    %v1272 = vsel %vm1249, %v699, 0
    %v1275 = vsel %vm1249, %v704, 0
    %v1278 = vsel %vm1249, %v709, 0
    %v1281 = vsel %vm1249, %v714, 0
    %v1284 = vsel %vm1249, %v719, 0
    %v1287 = vsel %vm1249, %v724, 0
    %v1290 = vsel %vm1249, %v729, 0
    %v1293 = vsel %vm1249, %v734, 0
    %v1296 = vsel %vm1249, %v739, 0
    %v1299 = vsel %vm1249, %v744, 0
    %v1302 = vsel %vm1249, %v749, 0
    %v1305 = vsel %vm1249, %v754, 0
    %v1308 = vsel %vm1249, %v759, 0
    %v1311 = vsel %vm1249, %v764, 0
    %v1314 = vsel %vm1249, %v769, 0
    %v1317 = vsel %vm1249, %v774, 0
    %v1320 = vsel %vm1249, %v779, 0
    %v1323 = vsel %vm1249, %v784, 0
    %v1326 = vsel %vm1249, %v789, 0
    %v1329 = vsel %vm1249, %v794, 0
    %v1332 = vsel %vm1249, %v799, 0
    %v1335 = vsel %vm1249, %v804, 0
    %v1338 = vsel %vm1249, %v809, 0
    %v1341 = vsel %vm1249, %v814, 0
    %v1344 = vsel %vm1249, %v819, 0
    %v1347 = vsel %vm1249, %v824, 0
    %v1350 = vsel %vm1249, %v829, 0
    %v1353 = vsel %vm1249, %v834, 0
    %v1356 = vsel %vm1249, %v839, 0
    %v1359 = vsel %vm1249, %v844, 0
    %v1362 = vsel %vm1249, %v849, 0
    %v1365 = vsel %vm1249, %v854, 0
    %v1368 = vsel %vm1249, %v859, 0
    %v1371 = vsel %vm1249, %v864, 0
    %v1374 = vsel %vm1249, %v869, 0
    %v1377 = vsel %vm1249, %v874, 0
    %v1380 = vsel %vm1249, %v879, 0
    %v1383 = vsel %vm1249, %v884, 0
    %v1386 = vsel %vm1249, %v889, 0
    %v1389 = vsel %vm1249, %v894, 0
    %v1392 = vsel %vm1249, %v899, 0
    %v1395 = vsel %vm1249, %v904, 0
    %v1398 = vsel %vm1249, %v909, 0
    %v1401 = vsel %vm1249, %v914, 0
    %v1404 = vsel %vm1249, %v919, 0
    %v1407 = vsel %vm1249, %v924, 0
    %v1410 = vsel %vm1249, %v929, 0
    %v1413 = vsel %vm1249, %v934, 0
    %v1416 = vsel %vm1249, %v939, 0
    %v1419 = vsel %vm1249, %v944, 0
    %v1422 = vsel %vm1249, %v949, 0
    %v1425 = vsel %vm1249, %v954, 0
    %v1428 = vsel %vm1249, %v959, 0
    %v1431 = vsel %vm1249, %v964, 0
    %v1434 = vsel %vm1249, %v969, 0
    %v1437 = vsel %vm1249, %v974, 0
    %v1440 = vsel %vm1249, %v979, 0
    %1442 = vmatprep.subr.mxu0 0.0
    %1443 = vmatpush1.msra.mxu0 %v1238
    %1444 = vmatprep.subr.mxu0 0.0
    %1445 = vmatpush1.msra.mxu0 %v1239
    %1446 = vmatprep.subr.mxu0 0.0
    %1447 = vmatpush1.msra.mxu0 %v1240
    %1448 = vmatprep.subr.mxu0 0.0
    %1449 = vmatpush1.msra.mxu0 %v1241
    %1450 = vmatprep.subr.mxu0 0.0
    %1451 = vmatpush1.msra.mxu0 0.0
    %1452 = vmatprep.subr.mxu0 0.0
    %1453 = vmatpush1.msra.mxu0 0.0
    %1454 = vmatprep.subr.mxu0 0.0
    %1455 = vmatpush1.msra.mxu0 0.0
    %1456 = vmatprep.subr.mxu0 0.0
    %1457 = vmatpush1.msra.mxu0 0.0
    %1458 = vmatprep.subr.mxu0 0.0
    %1459 = vmatpush1.msra.mxu0 0.0
    %1460 = vmatprep.subr.mxu0 0.0
    %1461 = vmatpush1.msra.mxu0 0.0
    %1462 = vmatprep.subr.mxu0 0.0
    %1463 = vmatpush1.msra.mxu0 0.0
    %1464 = vmatprep.subr.mxu0 0.0
    %1465 = vmatpush1.msra.mxu0 0.0
    %1466 = vmatprep.subr.mxu0 0.0
    %1467 = vmatpush1.msra.mxu0 0.0
    %1468 = vmatprep.subr.mxu0 0.0
    %1469 = vmatpush1.msra.mxu0 0.0
    %1470 = vmatprep.subr.mxu0 0.0
    %1471 = vmatpush1.msra.mxu0 0.0
    %1472 = vmatprep.subr.mxu0 0.0
    %1473 = vmatpush1.msra.mxu0 0.0
    %1474 = vmatprep.subr.mxu0 0.0
    %1475 = vmatpush1.msra.mxu0 0.0
    %1476 = vmatprep.subr.mxu0 0.0
    %1477 = vmatpush1.msra.mxu0 0.0
    %1478 = vmatprep.subr.mxu0 0.0
    %1479 = vmatpush1.msra.mxu0 0.0
    %1480 = vmatprep.subr.mxu0 0.0
    %1481 = vmatpush1.msra.mxu0 0.0
    %1482 = vmatprep.subr.mxu0 0.0
    %1483 = vmatpush1.msra.mxu0 0.0
    %1484 = vmatprep.subr.mxu0 0.0
    %1485 = vmatpush1.msra.mxu0 0.0
    %1486 = vmatprep.subr.mxu0 0.0
    %1487 = vmatpush1.msra.mxu0 0.0
    %1488 = vmatprep.subr.mxu0 0.0
    %1489 = vmatpush1.msra.mxu0 0.0
    %1490 = vmatprep.subr.mxu0 0.0
    %1491 = vmatpush1.msra.mxu0 0.0
    %1492 = vmatprep.subr.mxu0 0.0
    %1493 = vmatpush1.msra.mxu0 0.0
    %1494 = vmatprep.subr.mxu0 0.0
    %1495 = vmatpush1.msra.mxu0 0.0
    %1496 = vmatprep.subr.mxu0 0.0
    %1497 = vmatpush1.msra.mxu0 0.0
    %1498 = vmatprep.subr.mxu0 0.0
    %1499 = vmatpush1.msra.mxu0 0.0
    %1500 = vmatprep.subr.mxu0 0.0
    %1501 = vmatpush1.msra.mxu0 0.0
    %1502 = vmatprep.subr.mxu0 0.0
    %1503 = vmatpush1.msra.mxu0 0.0
    %1504 = vmatprep.subr.mxu0 0.0
    %1505 = vmatpush1.msra.mxu0 0.0
    %1506 = vmatprep.mubr.f32.mxu0 0.0
    %1507 = vmatmul.mubr.f32.gmra.mrb[0].mxu0 %v1251
    %v1508 = vpop.f32.mrb[0].mxu0
    %v1509 = vadd.f32 %v1247, %v1508
    %v1510 = vpop.f32.mrb[0].mxu0
    %1511 = vmatprep.mubr.f32.mxu0 0.0
    %1512 = vmatmul.mubr.f32.gmra.mrb[0].mxu0 %v1254
    %v1513 = vpop.f32.mrb[0].mxu0
    %v1514 = vadd.f32 %v1247, %v1513
    %v1515 = vpop.f32.mrb[0].mxu0
    %1516 = vmatprep.mubr.f32.mxu0 0.0
    %1517 = vmatmul.mubr.f32.gmra.mrb[0].mxu0 %v1257
    %v1518 = vpop.f32.mrb[0].mxu0
    %v1519 = vadd.f32 %v1247, %v1518
    %v1520 = vpop.f32.mrb[0].mxu0
    %1521 = vmatprep.mubr.f32.mxu0 0.0
    %1522 = vmatmul.mubr.f32.gmra.mrb[0].mxu0 %v1260
    %v1523 = vpop.f32.mrb[0].mxu0
    %v1524 = vadd.f32 %v1247, %v1523
    %v1525 = vpop.f32.mrb[0].mxu0
    %1526 = vmatprep.mubr.f32.mxu0 0.0
    %1527 = vmatmul.mubr.f32.gmra.mrb[0].mxu0 %v1263
    %v1528 = vpop.f32.mrb[0].mxu0
    %v1529 = vadd.f32 %v1247, %v1528
    %v1530 = vpop.f32.mrb[0].mxu0
    %1531 = vmatprep.mubr.f32.mxu0 0.0
    %1532 = vmatmul.mubr.f32.gmra.mrb[0].mxu0 %v1266
    %v1533 = vpop.f32.mrb[0].mxu0
    %v1534 = vadd.f32 %v1247, %v1533
    %v1535 = vpop.f32.mrb[0].mxu0
    %1536 = vmatprep.mubr.f32.mxu0 0.0
    %1537 = vmatmul.mubr.f32.gmra.mrb[0].mxu0 %v1269
    %v1538 = vpop.f32.mrb[0].mxu0
    %v1539 = vadd.f32 %v1247, %v1538
    %v1540 = vpop.f32.mrb[0].mxu0
    %1541 = vmatprep.mubr.f32.mxu0 0.0
    %1542 = vmatmul.mubr.f32.gmra.mrb[0].mxu0 %v1272
    %v1543 = vpop.f32.mrb[0].mxu0
    %v1544 = vadd.f32 %v1247, %v1543
    %v1545 = vpop.f32.mrb[0].mxu0
    %1546 = vmatprep.mubr.f32.mxu0 0.0
    %1547 = vmatmul.mubr.f32.gmra.mrb[0].mxu0 %v1275
    %v1548 = vpop.f32.mrb[0].mxu0
    %v1549 = vadd.f32 %v1247, %v1548
    %v1550 = vpop.f32.mrb[0].mxu0
    %1551 = vmatprep.mubr.f32.mxu0 0.0
    %1552 = vmatmul.mubr.f32.gmra.mrb[0].mxu0 %v1278
    %v1553 = vpop.f32.mrb[0].mxu0
    %v1554 = vadd.f32 %v1247, %v1553
    %v1555 = vpop.f32.mrb[0].mxu0
    %1556 = vmatprep.mubr.f32.mxu0 0.0
    %1557 = vmatmul.mubr.f32.gmra.mrb[0].mxu0 %v1281
    %v1558 = vpop.f32.mrb[0].mxu0
    %v1559 = vadd.f32 %v1247, %v1558
    %v1560 = vpop.f32.mrb[0].mxu0
    %1561 = vmatprep.mubr.f32.mxu0 0.0
    %1562 = vmatmul.mubr.f32.gmra.mrb[0].mxu0 %v1284
    %v1563 = vpop.f32.mrb[0].mxu0
    %v1564 = vadd.f32 %v1247, %v1563
    %v1565 = vpop.f32.mrb[0].mxu0
    %1566 = vmatprep.mubr.f32.mxu0 0.0
    %1567 = vmatmul.mubr.f32.gmra.mrb[0].mxu0 %v1287
    %v1568 = vpop.f32.mrb[0].mxu0
    %v1569 = vadd.f32 %v1247, %v1568
    %v1570 = vpop.f32.mrb[0].mxu0
    %1571 = vmatprep.mubr.f32.mxu0 0.0
    %1572 = vmatmul.mubr.f32.gmra.mrb[0].mxu0 %v1290
    %v1573 = vpop.f32.mrb[0].mxu0
    %v1574 = vadd.f32 %v1247, %v1573
    %v1575 = vpop.f32.mrb[0].mxu0
    %1576 = vmatprep.mubr.f32.mxu0 0.0
    %1577 = vmatmul.mubr.f32.gmra.mrb[0].mxu0 %v1293
    %v1578 = vpop.f32.mrb[0].mxu0
    %v1579 = vadd.f32 %v1247, %v1578
    %v1580 = vpop.f32.mrb[0].mxu0
    %1581 = vmatprep.mubr.f32.mxu0 0.0
    %1582 = vmatmul.mubr.f32.gmra.mrb[0].mxu0 %v1296
    %v1583 = vpop.f32.mrb[0].mxu0
    %v1584 = vadd.f32 %v1247, %v1583
    %v1585 = vpop.f32.mrb[0].mxu0
    %1586 = vmatprep.mubr.f32.mxu0 0.0
    %1587 = vmatmul.mubr.f32.gmra.mrb[0].mxu0 %v1299
    %v1588 = vpop.f32.mrb[0].mxu0
    %v1589 = vadd.f32 %v1247, %v1588
    %v1590 = vpop.f32.mrb[0].mxu0
    %1591 = vmatprep.mubr.f32.mxu0 0.0
    %1592 = vmatmul.mubr.f32.gmra.mrb[0].mxu0 %v1302
    %v1593 = vpop.f32.mrb[0].mxu0
    %v1594 = vadd.f32 %v1247, %v1593
    %v1595 = vpop.f32.mrb[0].mxu0
    %1596 = vmatprep.mubr.f32.mxu0 0.0
    %1597 = vmatmul.mubr.f32.gmra.mrb[0].mxu0 %v1305
    %v1598 = vpop.f32.mrb[0].mxu0
    %v1599 = vadd.f32 %v1247, %v1598
    %v1600 = vpop.f32.mrb[0].mxu0
    %1601 = vmatprep.mubr.f32.mxu0 0.0
    %1602 = vmatmul.mubr.f32.gmra.mrb[0].mxu0 %v1308
    %v1603 = vpop.f32.mrb[0].mxu0
    %v1604 = vadd.f32 %v1247, %v1603
    %v1605 = vpop.f32.mrb[0].mxu0
    %1606 = vmatprep.mubr.f32.mxu0 0.0
    %1607 = vmatmul.mubr.f32.gmra.mrb[0].mxu0 %v1311
    %v1608 = vpop.f32.mrb[0].mxu0
    %v1609 = vadd.f32 %v1247, %v1608
    %v1610 = vpop.f32.mrb[0].mxu0
    %1611 = vmatprep.mubr.f32.mxu0 0.0
    %1612 = vmatmul.mubr.f32.gmra.mrb[0].mxu0 %v1314
    %v1613 = vpop.f32.mrb[0].mxu0
    %v1614 = vadd.f32 %v1247, %v1613
    %v1615 = vpop.f32.mrb[0].mxu0
    %1616 = vmatprep.mubr.f32.mxu0 0.0
    %1617 = vmatmul.mubr.f32.gmra.mrb[0].mxu0 %v1317
    %v1618 = vpop.f32.mrb[0].mxu0
    %v1619 = vadd.f32 %v1247, %v1618
    %v1620 = vpop.f32.mrb[0].mxu0
    %1621 = vmatprep.mubr.f32.mxu0 0.0
    %1622 = vmatmul.mubr.f32.gmra.mrb[0].mxu0 %v1320
    %v1623 = vpop.f32.mrb[0].mxu0
    %v1624 = vadd.f32 %v1247, %v1623
    %v1625 = vpop.f32.mrb[0].mxu0
    %1626 = vmatprep.mubr.f32.mxu0 0.0
    %1627 = vmatmul.mubr.f32.gmra.mrb[0].mxu0 %v1323
    %v1628 = vpop.f32.mrb[0].mxu0
    %v1629 = vadd.f32 %v1247, %v1628
    %v1630 = vpop.f32.mrb[0].mxu0
    %1631 = vmatprep.mubr.f32.mxu0 0.0
    %1632 = vmatmul.mubr.f32.gmra.mrb[0].mxu0 %v1326
    %v1633 = vpop.f32.mrb[0].mxu0
    %v1634 = vadd.f32 %v1247, %v1633
    %v1635 = vpop.f32.mrb[0].mxu0
    %1636 = vmatprep.mubr.f32.mxu0 0.0
    %1637 = vmatmul.mubr.f32.gmra.mrb[0].mxu0 %v1329
    %v1638 = vpop.f32.mrb[0].mxu0
    %v1639 = vadd.f32 %v1247, %v1638
    %v1640 = vpop.f32.mrb[0].mxu0
    %1641 = vmatprep.mubr.f32.mxu0 0.0
    %1642 = vmatmul.mubr.f32.gmra.mrb[0].mxu0 %v1332
    %v1643 = vpop.f32.mrb[0].mxu0
    %v1644 = vadd.f32 %v1247, %v1643
    %v1645 = vpop.f32.mrb[0].mxu0
    %1646 = vmatprep.mubr.f32.mxu0 0.0
    %1647 = vmatmul.mubr.f32.gmra.mrb[0].mxu0 %v1335
    %v1648 = vpop.f32.mrb[0].mxu0
    %v1649 = vadd.f32 %v1247, %v1648
    %v1650 = vpop.f32.mrb[0].mxu0
    %1651 = vmatprep.mubr.f32.mxu0 0.0
    %1652 = vmatmul.mubr.f32.gmra.mrb[0].mxu0 %v1338
    %v1653 = vpop.f32.mrb[0].mxu0
    %v1654 = vadd.f32 %v1247, %v1653
    %v1655 = vpop.f32.mrb[0].mxu0
    %1656 = vmatprep.mubr.f32.mxu0 0.0
    %1657 = vmatmul.mubr.f32.gmra.mrb[0].mxu0 %v1341
    %v1658 = vpop.f32.mrb[0].mxu0
    %v1659 = vadd.f32 %v1247, %v1658
    %v1660 = vpop.f32.mrb[0].mxu0
    %1661 = vmatprep.mubr.f32.mxu0 0.0
    %1662 = vmatmul.mubr.f32.gmra.mrb[0].mxu0 %v1344
    %v1663 = vpop.f32.mrb[0].mxu0
    %v1664 = vadd.f32 %v1247, %v1663
    %v1665 = vpop.f32.mrb[0].mxu0
    %1666 = vmatprep.mubr.f32.mxu0 0.0
    %1667 = vmatmul.mubr.f32.gmra.mrb[0].mxu0 %v1347
    %v1668 = vpop.f32.mrb[0].mxu0
    %v1669 = vadd.f32 %v1247, %v1668
    %v1670 = vpop.f32.mrb[0].mxu0
    %1671 = vmatprep.mubr.f32.mxu0 0.0
    %1672 = vmatmul.mubr.f32.gmra.mrb[0].mxu0 %v1350
    %v1673 = vpop.f32.mrb[0].mxu0
    %v1674 = vadd.f32 %v1247, %v1673
    %v1675 = vpop.f32.mrb[0].mxu0
    %1676 = vmatprep.mubr.f32.mxu0 0.0
    %1677 = vmatmul.mubr.f32.gmra.mrb[0].mxu0 %v1353
    %v1678 = vpop.f32.mrb[0].mxu0
    %v1679 = vadd.f32 %v1247, %v1678
    %v1680 = vpop.f32.mrb[0].mxu0
    %1681 = vmatprep.mubr.f32.mxu0 0.0
    %1682 = vmatmul.mubr.f32.gmra.mrb[0].mxu0 %v1356
    %v1683 = vpop.f32.mrb[0].mxu0
    %v1684 = vadd.f32 %v1247, %v1683
    %v1685 = vpop.f32.mrb[0].mxu0
    %1686 = vmatprep.mubr.f32.mxu0 0.0
    %1687 = vmatmul.mubr.f32.gmra.mrb[0].mxu0 %v1359
    %v1688 = vpop.f32.mrb[0].mxu0
    %v1689 = vadd.f32 %v1247, %v1688
    %v1690 = vpop.f32.mrb[0].mxu0
    %1691 = vmatprep.mubr.f32.mxu0 0.0
    %1692 = vmatmul.mubr.f32.gmra.mrb[0].mxu0 %v1362
    %v1693 = vpop.f32.mrb[0].mxu0
    %v1694 = vadd.f32 %v1247, %v1693
    %v1695 = vpop.f32.mrb[0].mxu0
    %1696 = vmatprep.mubr.f32.mxu0 0.0
    %1697 = vmatmul.mubr.f32.gmra.mrb[0].mxu0 %v1365
    %v1698 = vpop.f32.mrb[0].mxu0
    %v1699 = vadd.f32 %v1247, %v1698
    %v1700 = vpop.f32.mrb[0].mxu0
    %1701 = vmatprep.mubr.f32.mxu0 0.0
    %1702 = vmatmul.mubr.f32.gmra.mrb[0].mxu0 %v1368
    %v1703 = vpop.f32.mrb[0].mxu0
    %v1704 = vadd.f32 %v1247, %v1703
    %v1705 = vpop.f32.mrb[0].mxu0
    %1706 = vmatprep.mubr.f32.mxu0 0.0
    %1707 = vmatmul.mubr.f32.gmra.mrb[0].mxu0 %v1371
    %v1708 = vpop.f32.mrb[0].mxu0
    %v1709 = vadd.f32 %v1247, %v1708
    %v1710 = vpop.f32.mrb[0].mxu0
    %1711 = vmatprep.mubr.f32.mxu0 0.0
    %1712 = vmatmul.mubr.f32.gmra.mrb[0].mxu0 %v1374
    %v1713 = vpop.f32.mrb[0].mxu0
    %v1714 = vadd.f32 %v1247, %v1713
    %v1715 = vpop.f32.mrb[0].mxu0
    %1716 = vmatprep.mubr.f32.mxu0 0.0
    %1717 = vmatmul.mubr.f32.gmra.mrb[0].mxu0 %v1377
    %v1718 = vpop.f32.mrb[0].mxu0
    %v1719 = vadd.f32 %v1247, %v1718
    %v1720 = vpop.f32.mrb[0].mxu0
    %1721 = vmatprep.mubr.f32.mxu0 0.0
    %1722 = vmatmul.mubr.f32.gmra.mrb[0].mxu0 %v1380
    %v1723 = vpop.f32.mrb[0].mxu0
    %v1724 = vadd.f32 %v1247, %v1723
    %v1725 = vpop.f32.mrb[0].mxu0
    %1726 = vmatprep.mubr.f32.mxu0 0.0
    %1727 = vmatmul.mubr.f32.gmra.mrb[0].mxu0 %v1383
    %v1728 = vpop.f32.mrb[0].mxu0
    %v1729 = vadd.f32 %v1247, %v1728
    %v1730 = vpop.f32.mrb[0].mxu0
    %1731 = vmatprep.mubr.f32.mxu0 0.0
    %1732 = vmatmul.mubr.f32.gmra.mrb[0].mxu0 %v1386
    %v1733 = vpop.f32.mrb[0].mxu0
    %v1734 = vadd.f32 %v1247, %v1733
    %v1735 = vpop.f32.mrb[0].mxu0
    %1736 = vmatprep.mubr.f32.mxu0 0.0
    %1737 = vmatmul.mubr.f32.gmra.mrb[0].mxu0 %v1389
    %v1738 = vpop.f32.mrb[0].mxu0
    %v1739 = vadd.f32 %v1247, %v1738
    %v1740 = vpop.f32.mrb[0].mxu0
    %1741 = vmatprep.mubr.f32.mxu0 0.0
    %1742 = vmatmul.mubr.f32.gmra.mrb[0].mxu0 %v1392
    %v1743 = vpop.f32.mrb[0].mxu0
    %v1744 = vadd.f32 %v1247, %v1743
    %v1745 = vpop.f32.mrb[0].mxu0
    %1746 = vmatprep.mubr.f32.mxu0 0.0
    %1747 = vmatmul.mubr.f32.gmra.mrb[0].mxu0 %v1395
    %v1748 = vpop.f32.mrb[0].mxu0
    %v1749 = vadd.f32 %v1247, %v1748
    %v1750 = vpop.f32.mrb[0].mxu0
    %1751 = vmatprep.mubr.f32.mxu0 0.0
    %1752 = vmatmul.mubr.f32.gmra.mrb[0].mxu0 %v1398
    %v1753 = vpop.f32.mrb[0].mxu0
    %v1754 = vadd.f32 %v1247, %v1753
    %v1755 = vpop.f32.mrb[0].mxu0
    %1756 = vmatprep.mubr.f32.mxu0 0.0
    %1757 = vmatmul.mubr.f32.gmra.mrb[0].mxu0 %v1401
    %v1758 = vpop.f32.mrb[0].mxu0
    %v1759 = vadd.f32 %v1247, %v1758
    %v1760 = vpop.f32.mrb[0].mxu0
    %1761 = vmatprep.mubr.f32.mxu0 0.0
    %1762 = vmatmul.mubr.f32.gmra.mrb[0].mxu0 %v1404
    %v1763 = vpop.f32.mrb[0].mxu0
    %v1764 = vadd.f32 %v1247, %v1763
    %v1765 = vpop.f32.mrb[0].mxu0
    %1766 = vmatprep.mubr.f32.mxu0 0.0
    %1767 = vmatmul.mubr.f32.gmra.mrb[0].mxu0 %v1407
    %v1768 = vpop.f32.mrb[0].mxu0
    %v1769 = vadd.f32 %v1247, %v1768
    %v1770 = vpop.f32.mrb[0].mxu0
    %1771 = vmatprep.mubr.f32.mxu0 0.0
    %1772 = vmatmul.mubr.f32.gmra.mrb[0].mxu0 %v1410
    %v1773 = vpop.f32.mrb[0].mxu0
    %v1774 = vadd.f32 %v1247, %v1773
    %v1775 = vpop.f32.mrb[0].mxu0
    %1776 = vmatprep.mubr.f32.mxu0 0.0
    %1777 = vmatmul.mubr.f32.gmra.mrb[0].mxu0 %v1413
    %v1778 = vpop.f32.mrb[0].mxu0
    %v1779 = vadd.f32 %v1247, %v1778
    %v1780 = vpop.f32.mrb[0].mxu0
    %1781 = vmatprep.mubr.f32.mxu0 0.0
    %1782 = vmatmul.mubr.f32.gmra.mrb[0].mxu0 %v1416
    %v1783 = vpop.f32.mrb[0].mxu0
    %v1784 = vadd.f32 %v1247, %v1783
    %v1785 = vpop.f32.mrb[0].mxu0
    %1786 = vmatprep.mubr.f32.mxu0 0.0
    %1787 = vmatmul.mubr.f32.gmra.mrb[0].mxu0 %v1419
    %v1788 = vpop.f32.mrb[0].mxu0
    %v1789 = vadd.f32 %v1247, %v1788
    %v1790 = vpop.f32.mrb[0].mxu0
    %1791 = vmatprep.mubr.f32.mxu0 0.0
    %1792 = vmatmul.mubr.f32.gmra.mrb[0].mxu0 %v1422
    %v1793 = vpop.f32.mrb[0].mxu0
    %v1794 = vadd.f32 %v1247, %v1793
    %v1795 = vpop.f32.mrb[0].mxu0
    %1796 = vmatprep.mubr.f32.mxu0 0.0
    %1797 = vmatmul.mubr.f32.gmra.mrb[0].mxu0 %v1425
    %v1798 = vpop.f32.mrb[0].mxu0
    %v1799 = vadd.f32 %v1247, %v1798
    %v1800 = vpop.f32.mrb[0].mxu0
    %1801 = vmatprep.mubr.f32.mxu0 0.0
    %1802 = vmatmul.mubr.f32.gmra.mrb[0].mxu0 %v1428
    %v1803 = vpop.f32.mrb[0].mxu0
    %v1804 = vadd.f32 %v1247, %v1803
    %v1805 = vpop.f32.mrb[0].mxu0
    %1806 = vmatprep.mubr.f32.mxu0 0.0
    %1807 = vmatmul.mubr.f32.gmra.mrb[0].mxu0 %v1431
    %v1808 = vpop.f32.mrb[0].mxu0
    %v1809 = vadd.f32 %v1247, %v1808
    %v1810 = vpop.f32.mrb[0].mxu0
    %1811 = vmatprep.mubr.f32.mxu0 0.0
    %1812 = vmatmul.mubr.f32.gmra.mrb[0].mxu0 %v1434
    %v1813 = vpop.f32.mrb[0].mxu0
    %v1814 = vadd.f32 %v1247, %v1813
    %v1815 = vpop.f32.mrb[0].mxu0
    %1816 = vmatprep.mubr.f32.mxu0 0.0
    %1817 = vmatmul.mubr.f32.gmra.mrb[0].mxu0 %v1437
    %v1818 = vpop.f32.mrb[0].mxu0
    %v1819 = vadd.f32 %v1247, %v1818
    %v1820 = vpop.f32.mrb[0].mxu0
    %1821 = vmatprep.mubr.f32.mxu0 0.0
    %1822 = vmatmul.mubr.f32.gmra.mrb[0].mxu0 %v1440
    %v1823 = vpop.f32.mrb[0].mxu0
    %v1824 = vadd.f32 %v1247, %v1823
    %v1825 = vpop.f32.mrb[0].mxu0
    %1826 = vdwg.mxu0
    %1827 = vmatprep.subr.mxu0 0.0
    %1828 = vmatpush1.msra.mxu0 %v664
    %1829 = vmatprep.subr.mxu0 0.0
    %1830 = vmatpush1.msra.mxu0 %v669
    %1831 = vmatprep.subr.mxu0 0.0
    %1832 = vmatpush1.msra.mxu0 %v674
    %1833 = vmatprep.subr.mxu0 0.0
    %1834 = vmatpush1.msra.mxu0 %v679
    %1835 = vmatprep.subr.mxu0 0.0
    %1836 = vmatpush1.msra.mxu0 %v684
    %1837 = vmatprep.subr.mxu0 0.0
    %1838 = vmatpush1.msra.mxu0 %v689
    %1839 = vmatprep.subr.mxu0 0.0
    %1840 = vmatpush1.msra.mxu0 %v694
    %1841 = vmatprep.subr.mxu0 0.0
    %1842 = vmatpush1.msra.mxu0 %v699
    %1843 = vmatprep.subr.mxu0 0.0
    %1844 = vmatpush1.msra.mxu0 %v704
    %1845 = vmatprep.subr.mxu0 0.0
    %1846 = vmatpush1.msra.mxu0 %v709
    %1847 = vmatprep.subr.mxu0 0.0
    %1848 = vmatpush1.msra.mxu0 %v714
    %1849 = vmatprep.subr.mxu0 0.0
    %1850 = vmatpush1.msra.mxu0 %v719
    %1851 = vmatprep.subr.mxu0 0.0
    %1852 = vmatpush1.msra.mxu0 %v724
    %1853 = vmatprep.subr.mxu0 0.0
    %1854 = vmatpush1.msra.mxu0 %v729
    %1855 = vmatprep.subr.mxu0 0.0
    %1856 = vmatpush1.msra.mxu0 %v734
    %1857 = vmatprep.subr.mxu0 0.0
    %1858 = vmatpush1.msra.mxu0 %v739
    %1859 = vmatprep.subr.mxu0 0.0
    %1860 = vmatpush1.msra.mxu0 %v744
    %1861 = vmatprep.subr.mxu0 0.0
    %1862 = vmatpush1.msra.mxu0 %v749
    %1863 = vmatprep.subr.mxu0 0.0
    %1864 = vmatpush1.msra.mxu0 %v754
    %1865 = vmatprep.subr.mxu0 0.0
    %1866 = vmatpush1.msra.mxu0 %v759
    %1867 = vmatprep.subr.mxu0 0.0
    %1868 = vmatpush1.msra.mxu0 %v764
    %1869 = vmatprep.subr.mxu0 0.0
    %1870 = vmatpush1.msra.mxu0 %v769
    %1871 = vmatprep.subr.mxu0 0.0
    %1872 = vmatpush1.msra.mxu0 %v774
    %1873 = vmatprep.subr.mxu0 0.0
    %1874 = vmatpush1.msra.mxu0 %v779
    %1875 = vmatprep.subr.mxu0 0.0
    %1876 = vmatpush1.msra.mxu0 %v784
    %1877 = vmatprep.subr.mxu0 0.0
    %1878 = vmatpush1.msra.mxu0 %v789
    %1879 = vmatprep.subr.mxu0 0.0
    %1880 = vmatpush1.msra.mxu0 %v794
    %1881 = vmatprep.subr.mxu0 0.0
    %1882 = vmatpush1.msra.mxu0 %v799
    %1883 = vmatprep.subr.mxu0 0.0
    %1884 = vmatpush1.msra.mxu0 %v804
    %1885 = vmatprep.subr.mxu0 0.0
    %1886 = vmatpush1.msra.mxu0 %v809
    %1887 = vmatprep.subr.mxu0 0.0
    %1888 = vmatpush1.msra.mxu0 %v814
    %1889 = vmatprep.subr.mxu0 0.0
    %1890 = vmatpush1.msra.mxu0 %v819
    %1891 = vmatprep.mubr.f32.mxu0 %v201
    %1892 = vmatmul.mubr.f32.gmra.mrb[0].mxu0 %v200
    %v1893 = vpop.f32.mrb[0].mxu0
    %v1894 = vadd.f32 0.0, %v1893
    %v1895 = vpop.f32.mrb[0].mxu0
    %1896 = vmatprep.mubr.f32.mxu0 %v205
    %1897 = vmatmul.mubr.f32.gmra.mrb[0].mxu0 %v204
    %v1898 = vpop.f32.mrb[0].mxu0
    %v1899 = vadd.f32 0.0, %v1898
    %v1900 = vpop.f32.mrb[0].mxu0
    %1901 = vmatprep.mubr.f32.mxu0 %v209
    %1902 = vmatmul.mubr.f32.gmra.mrb[0].mxu0 %v208
    %v1903 = vpop.f32.mrb[0].mxu0
    %v1904 = vadd.f32 0.0, %v1903
    %v1905 = vpop.f32.mrb[0].mxu0
    %1906 = vmatprep.mubr.f32.mxu0 %v213
    %1907 = vmatmul.mubr.f32.gmra.mrb[0].mxu0 %v212
    %v1908 = vpop.f32.mrb[0].mxu0
    %v1909 = vadd.f32 0.0, %v1908
    %v1910 = vpop.f32.mrb[0].mxu0
    %1911 = vmatprep.mubr.f32.mxu0 %v217
    %1912 = vmatmul.mubr.f32.gmra.mrb[0].mxu0 %v216
    %v1913 = vpop.f32.mrb[0].mxu0
    %v1914 = vadd.f32 0.0, %v1913
    %v1915 = vpop.f32.mrb[0].mxu0
    %1916 = vmatprep.mubr.f32.mxu0 %v221
    %1917 = vmatmul.mubr.f32.gmra.mrb[0].mxu0 %v220
    %v1918 = vpop.f32.mrb[0].mxu0
    %v1919 = vadd.f32 0.0, %v1918
    %v1920 = vpop.f32.mrb[0].mxu0
    %1921 = vmatprep.mubr.f32.mxu0 %v225
    %1922 = vmatmul.mubr.f32.gmra.mrb[0].mxu0 %v224
    %v1923 = vpop.f32.mrb[0].mxu0
    %v1924 = vadd.f32 0.0, %v1923
    %v1925 = vpop.f32.mrb[0].mxu0
    %1926 = vmatprep.mubr.f32.mxu0 %v229
    %1927 = vmatmul.mubr.f32.gmra.mrb[0].mxu0 %v228
    %v1928 = vpop.f32.mrb[0].mxu0
    %v1929 = vadd.f32 0.0, %v1928
    %v1930 = vpop.f32.mrb[0].mxu0
    %1931 = vmatprep.mubr.f32.mxu0 %v233
    %1932 = vmatmul.mubr.f32.gmra.mrb[0].mxu0 %v232
    %v1933 = vpop.f32.mrb[0].mxu0
    %v1934 = vadd.f32 0.0, %v1933
    %v1935 = vpop.f32.mrb[0].mxu0
    %1936 = vmatprep.mubr.f32.mxu0 %v237
    %1937 = vmatmul.mubr.f32.gmra.mrb[0].mxu0 %v236
    %v1938 = vpop.f32.mrb[0].mxu0
    %v1939 = vadd.f32 0.0, %v1938
    %v1940 = vpop.f32.mrb[0].mxu0
    %1941 = vmatprep.mubr.f32.mxu0 %v241
    %1942 = vmatmul.mubr.f32.gmra.mrb[0].mxu0 %v240
    %v1943 = vpop.f32.mrb[0].mxu0
    %v1944 = vadd.f32 0.0, %v1943
    %v1945 = vpop.f32.mrb[0].mxu0
    %1946 = vmatprep.mubr.f32.mxu0 %v245
    %1947 = vmatmul.mubr.f32.gmra.mrb[0].mxu0 %v244
    %v1948 = vpop.f32.mrb[0].mxu0
    %v1949 = vadd.f32 0.0, %v1948
    %v1950 = vpop.f32.mrb[0].mxu0
    %1951 = vmatprep.mubr.f32.mxu0 %v249
    %1952 = vmatmul.mubr.f32.gmra.mrb[0].mxu0 %v248
    %v1953 = vpop.f32.mrb[0].mxu0
    %v1954 = vadd.f32 0.0, %v1953
    %v1955 = vpop.f32.mrb[0].mxu0
    %1956 = vmatprep.mubr.f32.mxu0 %v253
    %1957 = vmatmul.mubr.f32.gmra.mrb[0].mxu0 %v252
    %v1958 = vpop.f32.mrb[0].mxu0
    %v1959 = vadd.f32 0.0, %v1958
    %v1960 = vpop.f32.mrb[0].mxu0
    %1961 = vmatprep.mubr.f32.mxu0 %v257
    %1962 = vmatmul.mubr.f32.gmra.mrb[0].mxu0 %v256
    %v1963 = vpop.f32.mrb[0].mxu0
    %v1964 = vadd.f32 0.0, %v1963
    %v1965 = vpop.f32.mrb[0].mxu0
    %1966 = vmatprep.mubr.f32.mxu0 %v261
    %1967 = vmatmul.mubr.f32.gmra.mrb[0].mxu0 %v260
    %v1968 = vpop.f32.mrb[0].mxu0
    %v1969 = vadd.f32 0.0, %v1968
    %v1970 = vpop.f32.mrb[0].mxu0
    %1971 = vdwg.mxu0
    %1972 = vmatprep.subr.mxu0 0.0
    %1973 = vmatpush1.msra.mxu0 %v824
    %1974 = vmatprep.subr.mxu0 0.0
    %1975 = vmatpush1.msra.mxu0 %v829
    %1976 = vmatprep.subr.mxu0 0.0
    %1977 = vmatpush1.msra.mxu0 %v834
    %1978 = vmatprep.subr.mxu0 0.0
    %1979 = vmatpush1.msra.mxu0 %v839
    %1980 = vmatprep.subr.mxu0 0.0
    %1981 = vmatpush1.msra.mxu0 %v844
    %1982 = vmatprep.subr.mxu0 0.0
    %1983 = vmatpush1.msra.mxu0 %v849
    %1984 = vmatprep.subr.mxu0 0.0
    %1985 = vmatpush1.msra.mxu0 %v854
    %1986 = vmatprep.subr.mxu0 0.0
    %1987 = vmatpush1.msra.mxu0 %v859
    %1988 = vmatprep.subr.mxu0 0.0
    %1989 = vmatpush1.msra.mxu0 %v864
    %1990 = vmatprep.subr.mxu0 0.0
    %1991 = vmatpush1.msra.mxu0 %v869
    %1992 = vmatprep.subr.mxu0 0.0
    %1993 = vmatpush1.msra.mxu0 %v874
    %1994 = vmatprep.subr.mxu0 0.0
    %1995 = vmatpush1.msra.mxu0 %v879
    %1996 = vmatprep.subr.mxu0 0.0
    %1997 = vmatpush1.msra.mxu0 %v884
    %1998 = vmatprep.subr.mxu0 0.0
    %1999 = vmatpush1.msra.mxu0 %v889
    %2000 = vmatprep.subr.mxu0 0.0
    %2001 = vmatpush1.msra.mxu0 %v894
    %2002 = vmatprep.subr.mxu0 0.0
    %2003 = vmatpush1.msra.mxu0 %v899
    %2004 = vmatprep.subr.mxu0 0.0
    %2005 = vmatpush1.msra.mxu0 %v904
    %2006 = vmatprep.subr.mxu0 0.0
    %2007 = vmatpush1.msra.mxu0 %v909
    %2008 = vmatprep.subr.mxu0 0.0
    %2009 = vmatpush1.msra.mxu0 %v914
    %2010 = vmatprep.subr.mxu0 0.0
    %2011 = vmatpush1.msra.mxu0 %v919
    %2012 = vmatprep.subr.mxu0 0.0
    %2013 = vmatpush1.msra.mxu0 %v924
    %2014 = vmatprep.subr.mxu0 0.0
    %2015 = vmatpush1.msra.mxu0 %v929
    %2016 = vmatprep.subr.mxu0 0.0
    %2017 = vmatpush1.msra.mxu0 %v934
    %2018 = vmatprep.subr.mxu0 0.0
    %2019 = vmatpush1.msra.mxu0 %v939
    %2020 = vmatprep.subr.mxu0 0.0
    %2021 = vmatpush1.msra.mxu0 %v944
    %2022 = vmatprep.subr.mxu0 0.0
    %2023 = vmatpush1.msra.mxu0 %v949
    %2024 = vmatprep.subr.mxu0 0.0
    %2025 = vmatpush1.msra.mxu0 %v954
    %2026 = vmatprep.subr.mxu0 0.0
    %2027 = vmatpush1.msra.mxu0 %v959
    %2028 = vmatprep.subr.mxu0 0.0
    %2029 = vmatpush1.msra.mxu0 %v964
    %2030 = vmatprep.subr.mxu0 0.0
    %2031 = vmatpush1.msra.mxu0 %v969
    %2032 = vmatprep.subr.mxu0 0.0
    %2033 = vmatpush1.msra.mxu0 %v974
    %2034 = vmatprep.subr.mxu0 0.0
    %2035 = vmatpush1.msra.mxu0 %v979
    %2036 = vmatprep.mubr.f32.mxu0 %v203
    %2037 = vmatmul.mubr.f32.gmra.mrb[0].mxu0 %v202
    %v2038 = vpop.f32.mrb[0].mxu0
    %v2039 = vadd.f32 %v1894, %v2038
    %v2040 = vpop.f32.mrb[0].mxu0
    %2041 = vmatprep.mubr.f32.mxu0 %v207
    %2042 = vmatmul.mubr.f32.gmra.mrb[0].mxu0 %v206
    %v2043 = vpop.f32.mrb[0].mxu0
    %v2044 = vadd.f32 %v1899, %v2043
    %v2045 = vpop.f32.mrb[0].mxu0
    %2046 = vmatprep.mubr.f32.mxu0 %v211
    %2047 = vmatmul.mubr.f32.gmra.mrb[0].mxu0 %v210
    %v2048 = vpop.f32.mrb[0].mxu0
    %v2049 = vadd.f32 %v1904, %v2048
    %v2050 = vpop.f32.mrb[0].mxu0
    %2051 = vmatprep.mubr.f32.mxu0 %v215
    %2052 = vmatmul.mubr.f32.gmra.mrb[0].mxu0 %v214
    %v2053 = vpop.f32.mrb[0].mxu0
    %v2054 = vadd.f32 %v1909, %v2053
    %v2055 = vpop.f32.mrb[0].mxu0
    %2056 = vmatprep.mubr.f32.mxu0 %v219
    %2057 = vmatmul.mubr.f32.gmra.mrb[0].mxu0 %v218
    %v2058 = vpop.f32.mrb[0].mxu0
    %v2059 = vadd.f32 %v1914, %v2058
    %v2060 = vpop.f32.mrb[0].mxu0
    %2061 = vmatprep.mubr.f32.mxu0 %v223
    %2062 = vmatmul.mubr.f32.gmra.mrb[0].mxu0 %v222
    %v2063 = vpop.f32.mrb[0].mxu0
    %v2064 = vadd.f32 %v1919, %v2063
    %v2065 = vpop.f32.mrb[0].mxu0
    %2066 = vmatprep.mubr.f32.mxu0 %v227
    %2067 = vmatmul.mubr.f32.gmra.mrb[0].mxu0 %v226
    %v2068 = vpop.f32.mrb[0].mxu0
    %v2069 = vadd.f32 %v1924, %v2068
    %v2070 = vpop.f32.mrb[0].mxu0
    %2071 = vmatprep.mubr.f32.mxu0 %v231
    %2072 = vmatmul.mubr.f32.gmra.mrb[0].mxu0 %v230
    %v2073 = vpop.f32.mrb[0].mxu0
    %v2074 = vadd.f32 %v1929, %v2073
    %v2075 = vpop.f32.mrb[0].mxu0
    %2076 = vmatprep.mubr.f32.mxu0 %v235
    %2077 = vmatmul.mubr.f32.gmra.mrb[0].mxu0 %v234
    %v2078 = vpop.f32.mrb[0].mxu0
    %v2079 = vadd.f32 %v1934, %v2078
    %v2080 = vpop.f32.mrb[0].mxu0
    %2081 = vmatprep.mubr.f32.mxu0 %v239
    %2082 = vmatmul.mubr.f32.gmra.mrb[0].mxu0 %v238
    %v2083 = vpop.f32.mrb[0].mxu0
    %v2084 = vadd.f32 %v1939, %v2083
    %v2085 = vpop.f32.mrb[0].mxu0
    %2086 = vmatprep.mubr.f32.mxu0 %v243
    %2087 = vmatmul.mubr.f32.gmra.mrb[0].mxu0 %v242
    %v2088 = vpop.f32.mrb[0].mxu0
    %v2089 = vadd.f32 %v1944, %v2088
    %v2090 = vpop.f32.mrb[0].mxu0
    %2091 = vmatprep.mubr.f32.mxu0 %v247
    %2092 = vmatmul.mubr.f32.gmra.mrb[0].mxu0 %v246
    %v2093 = vpop.f32.mrb[0].mxu0
    %v2094 = vadd.f32 %v1949, %v2093
    %v2095 = vpop.f32.mrb[0].mxu0
    %2096 = vmatprep.mubr.f32.mxu0 %v251
    %2097 = vmatmul.mubr.f32.gmra.mrb[0].mxu0 %v250
    %v2098 = vpop.f32.mrb[0].mxu0
    %v2099 = vadd.f32 %v1954, %v2098
    %v2100 = vpop.f32.mrb[0].mxu0
    %2101 = vmatprep.mubr.f32.mxu0 %v255
    %2102 = vmatmul.mubr.f32.gmra.mrb[0].mxu0 %v254
    %v2103 = vpop.f32.mrb[0].mxu0
    %v2104 = vadd.f32 %v1959, %v2103
    %v2105 = vpop.f32.mrb[0].mxu0
    %2106 = vmatprep.mubr.f32.mxu0 %v259
    %2107 = vmatmul.mubr.f32.gmra.mrb[0].mxu0 %v258
    %v2108 = vpop.f32.mrb[0].mxu0
    %v2109 = vadd.f32 %v1964, %v2108
    %v2110 = vpop.f32.mrb[0].mxu0
    %2111 = vmatprep.mubr.f32.mxu0 %v263
    %2112 = vmatmul.mubr.f32.gmra.mrb[0].mxu0 %v262
    %v2113 = vpop.f32.mrb[0].mxu0
    %v2114 = vadd.f32 %v1969, %v2113
    %v2115 = vpop.f32.mrb[0].mxu0
    %2116 = vdwg.mxu0
    %v2125 = vrot.slane %v2049, 7
    %vm2126 = vcmask 1041409
    %v2127 = vsel %vm2126, %v2125, %v2039
    %v2128 = vrot.slane %v2059, 6
    %vm2129 = vcmask 1042434
    %v2130 = vsel %vm2129, %v2128, %v2127
    %v2131 = vrot.slane %v2069, 5
    %vm2132 = vcmask 1043459
    %v2133 = vsel %vm2132, %v2131, %v2130
    %v2134 = vrot.slane %v2079, 4
    %vm2135 = vcmask 1044484
    %v2136 = vsel %vm2135, %v2134, %v2133
    %v2137 = vrot.slane %v2089, 3
    %vm2138 = vcmask 1045509
    %v2139 = vsel %vm2138, %v2137, %v2136
    %v2140 = vrot.slane %v2099, 2
    %vm2141 = vcmask 1046534
    %v2142 = vsel %vm2141, %v2140, %v2139
    %v2143 = vrot.slane %v2109, 1
    %vm2144 = vcmask 1047559
    %v2145 = vsel %vm2144, %v2143, %v2142
    %v2147 = vrot.slane %v2039, 1
    %v2148 = vsel %vm2126, %v2049, %v2147
    %v2149 = vrot.slane %v2059, 7
    %v2150 = vsel %vm2129, %v2149, %v2148
    %v2151 = vrot.slane %v2069, 6
    %v2152 = vsel %vm2132, %v2151, %v2150
    %v2153 = vrot.slane %v2079, 5
    %v2154 = vsel %vm2135, %v2153, %v2152
    %v2155 = vrot.slane %v2089, 4
    %v2156 = vsel %vm2138, %v2155, %v2154
    %v2157 = vrot.slane %v2099, 3
    %v2158 = vsel %vm2141, %v2157, %v2156
    %v2159 = vrot.slane %v2109, 2
    %v2160 = vsel %vm2144, %v2159, %v2158
    %2161 = vrot.lane.b32.xlu0 %v2160, 32
    %v2162 = vpop.permute.xlu0 %2161
    %v2164 = vrot.slane %v2039, 2
    %v2165 = vrot.slane %v2049, 1
    %v2166 = vsel %vm2126, %v2165, %v2164
    %v2167 = vsel %vm2129, %v2059, %v2166
    %v2168 = vrot.slane %v2069, 7
    %v2169 = vsel %vm2132, %v2168, %v2167
    %v2170 = vrot.slane %v2079, 6
    %v2171 = vsel %vm2135, %v2170, %v2169
    %v2172 = vrot.slane %v2089, 5
    %v2173 = vsel %vm2138, %v2172, %v2171
    %v2174 = vrot.slane %v2099, 4
    %v2175 = vsel %vm2141, %v2174, %v2173
    %v2176 = vrot.slane %v2109, 3
    %v2177 = vsel %vm2144, %v2176, %v2175
    %2178 = vrot.lane.b32.xlu0 %v2177, 64
    %v2179 = vpop.permute.xlu0 %2178
    %v2181 = vrot.slane %v2039, 3
    %v2182 = vrot.slane %v2049, 2
    %v2183 = vsel %vm2126, %v2182, %v2181
    %v2184 = vrot.slane %v2059, 1
    %v2185 = vsel %vm2129, %v2184, %v2183
    %v2186 = vsel %vm2132, %v2069, %v2185
    %v2187 = vrot.slane %v2079, 7
    %v2188 = vsel %vm2135, %v2187, %v2186
    %v2189 = vrot.slane %v2089, 6
    %v2190 = vsel %vm2138, %v2189, %v2188
    %v2191 = vrot.slane %v2099, 5
    %v2192 = vsel %vm2141, %v2191, %v2190
    %v2193 = vrot.slane %v2109, 4
    %v2194 = vsel %vm2144, %v2193, %v2192
    %2195 = vrot.lane.b32.xlu0 %v2194, 96
    %v2196 = vpop.permute.xlu0 %2195
    %v2198 = vrot.slane %v2039, 4
    %v2199 = vrot.slane %v2049, 3
    %v2200 = vsel %vm2126, %v2199, %v2198
    %v2201 = vrot.slane %v2059, 2
    %v2202 = vsel %vm2129, %v2201, %v2200
    %v2203 = vrot.slane %v2069, 1
    %v2204 = vsel %vm2132, %v2203, %v2202
    %v2205 = vsel %vm2135, %v2079, %v2204
    %v2206 = vrot.slane %v2089, 7
    %v2207 = vsel %vm2138, %v2206, %v2205
    %v2208 = vrot.slane %v2099, 6
    %v2209 = vsel %vm2141, %v2208, %v2207
    %v2210 = vrot.slane %v2109, 5
    %v2211 = vsel %vm2144, %v2210, %v2209
    %v2213 = vrot.slane %v2039, 5
    %v2214 = vrot.slane %v2049, 4
    %v2215 = vsel %vm2126, %v2214, %v2213
    %v2216 = vrot.slane %v2059, 3
    %v2217 = vsel %vm2129, %v2216, %v2215
    %v2218 = vrot.slane %v2069, 2
    %v2219 = vsel %vm2132, %v2218, %v2217
    %v2220 = vrot.slane %v2079, 1
    %v2221 = vsel %vm2135, %v2220, %v2219
    %v2222 = vsel %vm2138, %v2089, %v2221
    %v2223 = vrot.slane %v2099, 7
    %v2224 = vsel %vm2141, %v2223, %v2222
    %v2225 = vrot.slane %v2109, 6
    %v2226 = vsel %vm2144, %v2225, %v2224
    %2227 = vrot.lane.b32.xlu0 %v2226, 32
    %v2228 = vpop.permute.xlu0 %2227
    %v2230 = vrot.slane %v2039, 6
    %v2231 = vrot.slane %v2049, 5
    %v2232 = vsel %vm2126, %v2231, %v2230
    %v2233 = vrot.slane %v2059, 4
    %v2234 = vsel %vm2129, %v2233, %v2232
    %v2235 = vrot.slane %v2069, 3
    %v2236 = vsel %vm2132, %v2235, %v2234
    %v2237 = vrot.slane %v2079, 2
    %v2238 = vsel %vm2135, %v2237, %v2236
    %v2239 = vrot.slane %v2089, 1
    %v2240 = vsel %vm2138, %v2239, %v2238
    %v2241 = vsel %vm2141, %v2099, %v2240
    %v2242 = vrot.slane %v2109, 7
    %v2243 = vsel %vm2144, %v2242, %v2241
    %2244 = vrot.lane.b32.xlu0 %v2243, 64
    %v2245 = vpop.permute.xlu0 %2244
    %v2247 = vrot.slane %v2039, 7
    %v2248 = vrot.slane %v2049, 6
    %v2249 = vsel %vm2126, %v2248, %v2247
    %v2250 = vrot.slane %v2059, 5
    %v2251 = vsel %vm2129, %v2250, %v2249
    %v2252 = vrot.slane %v2069, 4
    %v2253 = vsel %vm2132, %v2252, %v2251
    %v2254 = vrot.slane %v2079, 3
    %v2255 = vsel %vm2135, %v2254, %v2253
    %v2256 = vrot.slane %v2089, 2
    %v2257 = vsel %vm2138, %v2256, %v2255
    %v2258 = vrot.slane %v2099, 1
    %v2259 = vsel %vm2141, %v2258, %v2257
    %v2260 = vsel %vm2144, %v2109, %v2259
    %2261 = vrot.lane.b32.xlu0 %v2260, 96
    %v2262 = vpop.permute.xlu0 %2261
    %v2272 = vrot.slane %v2054, 7
    %v2273 = vsel %vm2126, %v2272, %v2044
    %v2274 = vrot.slane %v2064, 6
    %v2275 = vsel %vm2129, %v2274, %v2273
    %v2276 = vrot.slane %v2074, 5
    %v2277 = vsel %vm2132, %v2276, %v2275
    %v2278 = vrot.slane %v2084, 4
    %v2279 = vsel %vm2135, %v2278, %v2277
    %v2280 = vrot.slane %v2094, 3
    %v2281 = vsel %vm2138, %v2280, %v2279
    %v2282 = vrot.slane %v2104, 2
    %v2283 = vsel %vm2141, %v2282, %v2281
    %v2284 = vrot.slane %v2114, 1
    %v2285 = vsel %vm2144, %v2284, %v2283
    %v2287 = vrot.slane %v2044, 1
    %v2288 = vsel %vm2126, %v2054, %v2287
    %v2289 = vrot.slane %v2064, 7
    %v2290 = vsel %vm2129, %v2289, %v2288
    %v2291 = vrot.slane %v2074, 6
    %v2292 = vsel %vm2132, %v2291, %v2290
    %v2293 = vrot.slane %v2084, 5
    %v2294 = vsel %vm2135, %v2293, %v2292
    %v2295 = vrot.slane %v2094, 4
    %v2296 = vsel %vm2138, %v2295, %v2294
    %v2297 = vrot.slane %v2104, 3
    %v2298 = vsel %vm2141, %v2297, %v2296
    %v2299 = vrot.slane %v2114, 2
    %v2300 = vsel %vm2144, %v2299, %v2298
    %2301 = vrot.lane.b32.xlu0 %v2300, 32
    %v2302 = vpop.permute.xlu0 %2301
    %v2304 = vrot.slane %v2044, 2
    %v2305 = vrot.slane %v2054, 1
    %v2306 = vsel %vm2126, %v2305, %v2304
    %v2307 = vsel %vm2129, %v2064, %v2306
    %v2308 = vrot.slane %v2074, 7
    %v2309 = vsel %vm2132, %v2308, %v2307
    %v2310 = vrot.slane %v2084, 6
    %v2311 = vsel %vm2135, %v2310, %v2309
    %v2312 = vrot.slane %v2094, 5
    %v2313 = vsel %vm2138, %v2312, %v2311
    %v2314 = vrot.slane %v2104, 4
    %v2315 = vsel %vm2141, %v2314, %v2313
    %v2316 = vrot.slane %v2114, 3
    %v2317 = vsel %vm2144, %v2316, %v2315
    %2318 = vrot.lane.b32.xlu0 %v2317, 64
    %v2319 = vpop.permute.xlu0 %2318
    %v2321 = vrot.slane %v2044, 3
    %v2322 = vrot.slane %v2054, 2
    %v2323 = vsel %vm2126, %v2322, %v2321
    %v2324 = vrot.slane %v2064, 1
    %v2325 = vsel %vm2129, %v2324, %v2323
    %v2326 = vsel %vm2132, %v2074, %v2325
    %v2327 = vrot.slane %v2084, 7
    %v2328 = vsel %vm2135, %v2327, %v2326
    %v2329 = vrot.slane %v2094, 6
    %v2330 = vsel %vm2138, %v2329, %v2328
    %v2331 = vrot.slane %v2104, 5
    %v2332 = vsel %vm2141, %v2331, %v2330
    %v2333 = vrot.slane %v2114, 4
    %v2334 = vsel %vm2144, %v2333, %v2332
    %2335 = vrot.lane.b32.xlu0 %v2334, 96
    %v2336 = vpop.permute.xlu0 %2335
    %v2338 = vrot.slane %v2044, 4
    %v2339 = vrot.slane %v2054, 3
    %v2340 = vsel %vm2126, %v2339, %v2338
    %v2341 = vrot.slane %v2064, 2
    %v2342 = vsel %vm2129, %v2341, %v2340
    %v2343 = vrot.slane %v2074, 1
    %v2344 = vsel %vm2132, %v2343, %v2342
    %v2345 = vsel %vm2135, %v2084, %v2344
    %v2346 = vrot.slane %v2094, 7
    %v2347 = vsel %vm2138, %v2346, %v2345
    %v2348 = vrot.slane %v2104, 6
    %v2349 = vsel %vm2141, %v2348, %v2347
    %v2350 = vrot.slane %v2114, 5
    %v2351 = vsel %vm2144, %v2350, %v2349
    %v2353 = vrot.slane %v2044, 5
    %v2354 = vrot.slane %v2054, 4
    %v2355 = vsel %vm2126, %v2354, %v2353
    %v2356 = vrot.slane %v2064, 3
    %v2357 = vsel %vm2129, %v2356, %v2355
    %v2358 = vrot.slane %v2074, 2
    %v2359 = vsel %vm2132, %v2358, %v2357
    %v2360 = vrot.slane %v2084, 1
    %v2361 = vsel %vm2135, %v2360, %v2359
    %v2362 = vsel %vm2138, %v2094, %v2361
    %v2363 = vrot.slane %v2104, 7
    %v2364 = vsel %vm2141, %v2363, %v2362
    %v2365 = vrot.slane %v2114, 6
    %v2366 = vsel %vm2144, %v2365, %v2364
    %2367 = vrot.lane.b32.xlu0 %v2366, 32
    %v2368 = vpop.permute.xlu0 %2367
    %v2370 = vrot.slane %v2044, 6
    %v2371 = vrot.slane %v2054, 5
    %v2372 = vsel %vm2126, %v2371, %v2370
    %v2373 = vrot.slane %v2064, 4
    %v2374 = vsel %vm2129, %v2373, %v2372
    %v2375 = vrot.slane %v2074, 3
    %v2376 = vsel %vm2132, %v2375, %v2374
    %v2377 = vrot.slane %v2084, 2
    %v2378 = vsel %vm2135, %v2377, %v2376
    %v2379 = vrot.slane %v2094, 1
    %v2380 = vsel %vm2138, %v2379, %v2378
    %v2381 = vsel %vm2141, %v2104, %v2380
    %v2382 = vrot.slane %v2114, 7
    %v2383 = vsel %vm2144, %v2382, %v2381
    %2384 = vrot.lane.b32.xlu0 %v2383, 64
    %v2385 = vpop.permute.xlu0 %2384
    %v2387 = vrot.slane %v2044, 7
    %v2388 = vrot.slane %v2054, 6
    %v2389 = vsel %vm2126, %v2388, %v2387
    %v2390 = vrot.slane %v2064, 5
    %v2391 = vsel %vm2129, %v2390, %v2389
    %v2392 = vrot.slane %v2074, 4
    %v2393 = vsel %vm2132, %v2392, %v2391
    %v2394 = vrot.slane %v2084, 3
    %v2395 = vsel %vm2135, %v2394, %v2393
    %v2396 = vrot.slane %v2094, 2
    %v2397 = vsel %vm2138, %v2396, %v2395
    %v2398 = vrot.slane %v2104, 1
    %v2399 = vsel %vm2141, %v2398, %v2397
    %v2400 = vsel %vm2144, %v2114, %v2399
    %2401 = vrot.lane.b32.xlu0 %v2400, 96
    %v2402 = vpop.permute.xlu0 %2401
    %v2404 = vsel %vm1249, %v2145, %v2162
    %vm2405 = vcmask 523264
    %v2406 = vsel %vm2405, %v2404, %v2179
    %vm2407 = vcmask 785408
    %v2408 = vsel %vm2407, %v2406, %v2196
    %v2409 = vsel %vm1249, %v2211, %v2228
    %v2410 = vsel %vm2405, %v2409, %v2245
    %v2411 = vsel %vm2407, %v2410, %v2262
    %v2412 = vsel %vm1249, %v2285, %v2302
    %v2413 = vsel %vm2405, %v2412, %v2319
    %v2414 = vsel %vm2407, %v2413, %v2336
    %v2415 = vsel %vm1249, %v2351, %v2368
    %v2416 = vsel %vm2405, %v2415, %v2385
    %v2417 = vsel %vm2407, %v2416, %v2402
    %2418 = vmatprep.subr.mxu0 %v983
    %2419 = vmatpush1.msra.mxu0 %v982
    %2420 = vmatprep.subr.mxu0 %v987
    %2421 = vmatpush1.msra.mxu0 %v986
    %2422 = vmatprep.subr.mxu0 %v991
    %2423 = vmatpush1.msra.mxu0 %v990
    %2424 = vmatprep.subr.mxu0 %v995
    %2425 = vmatpush1.msra.mxu0 %v994
    %2426 = vmatprep.subr.mxu0 %v999
    %2427 = vmatpush1.msra.mxu0 %v998
    %2428 = vmatprep.subr.mxu0 %v1003
    %2429 = vmatpush1.msra.mxu0 %v1002
    %2430 = vmatprep.subr.mxu0 %v1007
    %2431 = vmatpush1.msra.mxu0 %v1006
    %2432 = vmatprep.subr.mxu0 %v1011
    %2433 = vmatpush1.msra.mxu0 %v1010
    %2434 = vmatprep.subr.mxu0 %v1015
    %2435 = vmatpush1.msra.mxu0 %v1014
    %2436 = vmatprep.subr.mxu0 %v1019
    %2437 = vmatpush1.msra.mxu0 %v1018
    %2438 = vmatprep.subr.mxu0 %v1023
    %2439 = vmatpush1.msra.mxu0 %v1022
    %2440 = vmatprep.subr.mxu0 %v1027
    %2441 = vmatpush1.msra.mxu0 %v1026
    %2442 = vmatprep.subr.mxu0 %v1031
    %2443 = vmatpush1.msra.mxu0 %v1030
    %2444 = vmatprep.subr.mxu0 %v1035
    %2445 = vmatpush1.msra.mxu0 %v1034
    %2446 = vmatprep.subr.mxu0 %v1039
    %2447 = vmatpush1.msra.mxu0 %v1038
    %2448 = vmatprep.subr.mxu0 %v1043
    %2449 = vmatpush1.msra.mxu0 %v1042
    %2450 = vmatprep.subr.mxu0 %v1047
    %2451 = vmatpush1.msra.mxu0 %v1046
    %2452 = vmatprep.subr.mxu0 %v1051
    %2453 = vmatpush1.msra.mxu0 %v1050
    %2454 = vmatprep.subr.mxu0 %v1055
    %2455 = vmatpush1.msra.mxu0 %v1054
    %2456 = vmatprep.subr.mxu0 %v1059
    %2457 = vmatpush1.msra.mxu0 %v1058
    %2458 = vmatprep.subr.mxu0 %v1063
    %2459 = vmatpush1.msra.mxu0 %v1062
    %2460 = vmatprep.subr.mxu0 %v1067
    %2461 = vmatpush1.msra.mxu0 %v1066
    %2462 = vmatprep.subr.mxu0 %v1071
    %2463 = vmatpush1.msra.mxu0 %v1070
    %2464 = vmatprep.subr.mxu0 %v1075
    %2465 = vmatpush1.msra.mxu0 %v1074
    %2466 = vmatprep.subr.mxu0 %v1079
    %2467 = vmatpush1.msra.mxu0 %v1078
    %2468 = vmatprep.subr.mxu0 %v1083
    %2469 = vmatpush1.msra.mxu0 %v1082
    %2470 = vmatprep.subr.mxu0 %v1087
    %2471 = vmatpush1.msra.mxu0 %v1086
    %2472 = vmatprep.subr.mxu0 %v1091
    %2473 = vmatpush1.msra.mxu0 %v1090
    %2474 = vmatprep.subr.mxu0 %v1095
    %2475 = vmatpush1.msra.mxu0 %v1094
    %2476 = vmatprep.subr.mxu0 %v1099
    %2477 = vmatpush1.msra.mxu0 %v1098
    %2478 = vmatprep.subr.mxu0 %v1103
    %2479 = vmatpush1.msra.mxu0 %v1102
    %2480 = vmatprep.subr.mxu0 %v1107
    %2481 = vmatpush1.msra.mxu0 %v1106
    %2482 = vmatprep.mubr.f32.mxu0 %v2411
    %2483 = vmatmul.mubr.f32.gmra.mrb[0].mxu0 %v2408
    %v2484 = vpop.f32.mrb[0].mxu0
    %v2485 = vadd.f32 0.0, %v2484
    %v2486 = vpop.f32.mrb[0].mxu0
    %v2487 = vadd.f32 0.0, %v2486
    %2488 = vdwg.mxu0
    %2489 = vmatprep.subr.mxu0 %v1111
    %2490 = vmatpush1.msra.mxu0 %v1110
    %2491 = vmatprep.subr.mxu0 %v1115
    %2492 = vmatpush1.msra.mxu0 %v1114
    %2493 = vmatprep.subr.mxu0 %v1119
    %2494 = vmatpush1.msra.mxu0 %v1118
    %2495 = vmatprep.subr.mxu0 %v1123
    %2496 = vmatpush1.msra.mxu0 %v1122
    %2497 = vmatprep.subr.mxu0 %v1127
    %2498 = vmatpush1.msra.mxu0 %v1126
    %2499 = vmatprep.subr.mxu0 %v1131
    %2500 = vmatpush1.msra.mxu0 %v1130
    %2501 = vmatprep.subr.mxu0 %v1135
    %2502 = vmatpush1.msra.mxu0 %v1134
    %2503 = vmatprep.subr.mxu0 %v1139
    %2504 = vmatpush1.msra.mxu0 %v1138
    %2505 = vmatprep.subr.mxu0 %v1143
    %2506 = vmatpush1.msra.mxu0 %v1142
    %2507 = vmatprep.subr.mxu0 %v1147
    %2508 = vmatpush1.msra.mxu0 %v1146
    %2509 = vmatprep.subr.mxu0 %v1151
    %2510 = vmatpush1.msra.mxu0 %v1150
    %2511 = vmatprep.subr.mxu0 %v1155
    %2512 = vmatpush1.msra.mxu0 %v1154
    %2513 = vmatprep.subr.mxu0 %v1159
    %2514 = vmatpush1.msra.mxu0 %v1158
    %2515 = vmatprep.subr.mxu0 %v1163
    %2516 = vmatpush1.msra.mxu0 %v1162
    %2517 = vmatprep.subr.mxu0 %v1167
    %2518 = vmatpush1.msra.mxu0 %v1166
    %2519 = vmatprep.subr.mxu0 %v1171
    %2520 = vmatpush1.msra.mxu0 %v1170
    %2521 = vmatprep.subr.mxu0 %v1175
    %2522 = vmatpush1.msra.mxu0 %v1174
    %2523 = vmatprep.subr.mxu0 %v1179
    %2524 = vmatpush1.msra.mxu0 %v1178
    %2525 = vmatprep.subr.mxu0 %v1183
    %2526 = vmatpush1.msra.mxu0 %v1182
    %2527 = vmatprep.subr.mxu0 %v1187
    %2528 = vmatpush1.msra.mxu0 %v1186
    %2529 = vmatprep.subr.mxu0 %v1191
    %2530 = vmatpush1.msra.mxu0 %v1190
    %2531 = vmatprep.subr.mxu0 %v1195
    %2532 = vmatpush1.msra.mxu0 %v1194
    %2533 = vmatprep.subr.mxu0 %v1199
    %2534 = vmatpush1.msra.mxu0 %v1198
    %2535 = vmatprep.subr.mxu0 %v1203
    %2536 = vmatpush1.msra.mxu0 %v1202
    %2537 = vmatprep.subr.mxu0 %v1207
    %2538 = vmatpush1.msra.mxu0 %v1206
    %2539 = vmatprep.subr.mxu0 %v1211
    %2540 = vmatpush1.msra.mxu0 %v1210
    %2541 = vmatprep.subr.mxu0 %v1215
    %2542 = vmatpush1.msra.mxu0 %v1214
    %2543 = vmatprep.subr.mxu0 %v1219
    %2544 = vmatpush1.msra.mxu0 %v1218
    %2545 = vmatprep.subr.mxu0 %v1223
    %2546 = vmatpush1.msra.mxu0 %v1222
    %2547 = vmatprep.subr.mxu0 %v1227
    %2548 = vmatpush1.msra.mxu0 %v1226
    %2549 = vmatprep.subr.mxu0 %v1231
    %2550 = vmatpush1.msra.mxu0 %v1230
    %2551 = vmatprep.subr.mxu0 %v1235
    %2552 = vmatpush1.msra.mxu0 %v1234
    %2553 = vmatprep.mubr.f32.mxu0 %v2417
    %2554 = vmatmul.mubr.f32.gmra.mrb[0].mxu0 %v2414
    %v2555 = vpop.f32.mrb[0].mxu0
    %v2556 = vadd.f32 %v2485, %v2555
    %v2557 = vpop.f32.mrb[0].mxu0
    %v2558 = vadd.f32 %v2487, %v2557
    %2559 = vdwg.mxu0
    %2560 = vmatprep.subr.mxu0 %v985
    %2561 = vmatpush1.msra.mxu0 %v984
    %2562 = vmatprep.subr.mxu0 %v989
    %2563 = vmatpush1.msra.mxu0 %v988
    %2564 = vmatprep.subr.mxu0 %v993
    %2565 = vmatpush1.msra.mxu0 %v992
    %2566 = vmatprep.subr.mxu0 %v997
    %2567 = vmatpush1.msra.mxu0 %v996
    %2568 = vmatprep.subr.mxu0 %v1001
    %2569 = vmatpush1.msra.mxu0 %v1000
    %2570 = vmatprep.subr.mxu0 %v1005
    %2571 = vmatpush1.msra.mxu0 %v1004
    %2572 = vmatprep.subr.mxu0 %v1009
    %2573 = vmatpush1.msra.mxu0 %v1008
    %2574 = vmatprep.subr.mxu0 %v1013
    %2575 = vmatpush1.msra.mxu0 %v1012
    %2576 = vmatprep.subr.mxu0 %v1017
    %2577 = vmatpush1.msra.mxu0 %v1016
    %2578 = vmatprep.subr.mxu0 %v1021
    %2579 = vmatpush1.msra.mxu0 %v1020
    %2580 = vmatprep.subr.mxu0 %v1025
    %2581 = vmatpush1.msra.mxu0 %v1024
    %2582 = vmatprep.subr.mxu0 %v1029
    %2583 = vmatpush1.msra.mxu0 %v1028
    %2584 = vmatprep.subr.mxu0 %v1033
    %2585 = vmatpush1.msra.mxu0 %v1032
    %2586 = vmatprep.subr.mxu0 %v1037
    %2587 = vmatpush1.msra.mxu0 %v1036
    %2588 = vmatprep.subr.mxu0 %v1041
    %2589 = vmatpush1.msra.mxu0 %v1040
    %2590 = vmatprep.subr.mxu0 %v1045
    %2591 = vmatpush1.msra.mxu0 %v1044
    %2592 = vmatprep.subr.mxu0 %v1049
    %2593 = vmatpush1.msra.mxu0 %v1048
    %2594 = vmatprep.subr.mxu0 %v1053
    %2595 = vmatpush1.msra.mxu0 %v1052
    %2596 = vmatprep.subr.mxu0 %v1057
    %2597 = vmatpush1.msra.mxu0 %v1056
    %2598 = vmatprep.subr.mxu0 %v1061
    %2599 = vmatpush1.msra.mxu0 %v1060
    %2600 = vmatprep.subr.mxu0 %v1065
    %2601 = vmatpush1.msra.mxu0 %v1064
    %2602 = vmatprep.subr.mxu0 %v1069
    %2603 = vmatpush1.msra.mxu0 %v1068
    %2604 = vmatprep.subr.mxu0 %v1073
    %2605 = vmatpush1.msra.mxu0 %v1072
    %2606 = vmatprep.subr.mxu0 %v1077
    %2607 = vmatpush1.msra.mxu0 %v1076
    %2608 = vmatprep.subr.mxu0 %v1081
    %2609 = vmatpush1.msra.mxu0 %v1080
    %2610 = vmatprep.subr.mxu0 %v1085
    %2611 = vmatpush1.msra.mxu0 %v1084
    %2612 = vmatprep.subr.mxu0 %v1089
    %2613 = vmatpush1.msra.mxu0 %v1088
    %2614 = vmatprep.subr.mxu0 %v1093
    %2615 = vmatpush1.msra.mxu0 %v1092
    %2616 = vmatprep.subr.mxu0 %v1097
    %2617 = vmatpush1.msra.mxu0 %v1096
    %2618 = vmatprep.subr.mxu0 %v1101
    %2619 = vmatpush1.msra.mxu0 %v1100
    %2620 = vmatprep.subr.mxu0 %v1105
    %2621 = vmatpush1.msra.mxu0 %v1104
    %2622 = vmatprep.subr.mxu0 %v1109
    %2623 = vmatpush1.msra.mxu0 %v1108
    %2624 = vmatprep.mubr.f32.mxu0 %v2411
    %2625 = vmatmul.mubr.f32.gmra.mrb[0].mxu0 %v2408
    %v2626 = vpop.f32.mrb[0].mxu0
    %v2627 = vadd.f32 0.0, %v2626
    %v2628 = vpop.f32.mrb[0].mxu0
    %v2629 = vadd.f32 0.0, %v2628
    %2630 = vdwg.mxu0
    %2631 = vmatprep.subr.mxu0 %v1113
    %2632 = vmatpush1.msra.mxu0 %v1112
    %2633 = vmatprep.subr.mxu0 %v1117
    %2634 = vmatpush1.msra.mxu0 %v1116
    %2635 = vmatprep.subr.mxu0 %v1121
    %2636 = vmatpush1.msra.mxu0 %v1120
    %2637 = vmatprep.subr.mxu0 %v1125
    %2638 = vmatpush1.msra.mxu0 %v1124
    %2639 = vmatprep.subr.mxu0 %v1129
    %2640 = vmatpush1.msra.mxu0 %v1128
    %2641 = vmatprep.subr.mxu0 %v1133
    %2642 = vmatpush1.msra.mxu0 %v1132
    %2643 = vmatprep.subr.mxu0 %v1137
    %2644 = vmatpush1.msra.mxu0 %v1136
    %2645 = vmatprep.subr.mxu0 %v1141
    %2646 = vmatpush1.msra.mxu0 %v1140
    %2647 = vmatprep.subr.mxu0 %v1145
    %2648 = vmatpush1.msra.mxu0 %v1144
    %2649 = vmatprep.subr.mxu0 %v1149
    %2650 = vmatpush1.msra.mxu0 %v1148
    %2651 = vmatprep.subr.mxu0 %v1153
    %2652 = vmatpush1.msra.mxu0 %v1152
    %2653 = vmatprep.subr.mxu0 %v1157
    %2654 = vmatpush1.msra.mxu0 %v1156
    %2655 = vmatprep.subr.mxu0 %v1161
    %2656 = vmatpush1.msra.mxu0 %v1160
    %2657 = vmatprep.subr.mxu0 %v1165
    %2658 = vmatpush1.msra.mxu0 %v1164
    %2659 = vmatprep.subr.mxu0 %v1169
    %2660 = vmatpush1.msra.mxu0 %v1168
    %2661 = vmatprep.subr.mxu0 %v1173
    %2662 = vmatpush1.msra.mxu0 %v1172
    %2663 = vmatprep.subr.mxu0 %v1177
    %2664 = vmatpush1.msra.mxu0 %v1176
    %2665 = vmatprep.subr.mxu0 %v1181
    %2666 = vmatpush1.msra.mxu0 %v1180
    %2667 = vmatprep.subr.mxu0 %v1185
    %2668 = vmatpush1.msra.mxu0 %v1184
    %2669 = vmatprep.subr.mxu0 %v1189
    %2670 = vmatpush1.msra.mxu0 %v1188
    %2671 = vmatprep.subr.mxu0 %v1193
    %2672 = vmatpush1.msra.mxu0 %v1192
    %2673 = vmatprep.subr.mxu0 %v1197
    %2674 = vmatpush1.msra.mxu0 %v1196
    %2675 = vmatprep.subr.mxu0 %v1201
    %2676 = vmatpush1.msra.mxu0 %v1200
    %2677 = vmatprep.subr.mxu0 %v1205
    %2678 = vmatpush1.msra.mxu0 %v1204
    %2679 = vmatprep.subr.mxu0 %v1209
    %2680 = vmatpush1.msra.mxu0 %v1208
    %2681 = vmatprep.subr.mxu0 %v1213
    %2682 = vmatpush1.msra.mxu0 %v1212
    %2683 = vmatprep.subr.mxu0 %v1217
    %2684 = vmatpush1.msra.mxu0 %v1216
    %2685 = vmatprep.subr.mxu0 %v1221
    %2686 = vmatpush1.msra.mxu0 %v1220
    %2687 = vmatprep.subr.mxu0 %v1225
    %2688 = vmatpush1.msra.mxu0 %v1224
    %2689 = vmatprep.subr.mxu0 %v1229
    %2690 = vmatpush1.msra.mxu0 %v1228
    %2691 = vmatprep.subr.mxu0 %v1233
    %2692 = vmatpush1.msra.mxu0 %v1232
    %2693 = vmatprep.subr.mxu0 %v1237
    %2694 = vmatpush1.msra.mxu0 %v1236
    %2695 = vmatprep.mubr.f32.mxu0 %v2417
    %2696 = vmatmul.mubr.f32.gmra.mrb[0].mxu0 %v2414
    %v2697 = vpop.f32.mrb[0].mxu0
    %v2698 = vadd.f32 %v2627, %v2697
    %v2699 = vpop.f32.mrb[0].mxu0
    %v2700 = vadd.f32 %v2629, %v2699
    %2701 = vdwg.mxu0
    %v2703 = vcombine.high %v2556, %v2556
    %v2705 = vunpack.c.l.s4 1966171168
    %v2706 = vunpack.c.0.s8 %v2705
    %v2707 = vlaneseq
    %v2708 = vshrl.u32 %v2707, 7
    %v2709 = vsub.s32 %v2706, %v2708
    %v2710 = vrot.slane %v2556, %v2709
    %v2712 = vunpack.c.l.s4 1966171168
    %v2713 = vunpack.c.0.s8 %v2712
    %v2714 = vlaneseq
    %v2715 = vshrl.u32 %v2714, 7
    %v2716 = vsub.s32 %v2713, %v2715
    %v2717 = vrot.slane %v2703, %v2716
    %v2718 = vcombine.high %v2710, %v2710
    %v2719 = vcombine.high %v2717, %v2717
    %v2721 = vunpack.c.l.s4 1966171168
    %v2722 = vunpack.c.0.s8 %v2721
    %v2723 = vlaneseq
    %v2724 = vshrl.u32 %v2723, 7
    %v2725 = vsub.s32 %v2722, %v2724
    %v2726 = vrot.slane %v2710, %v2725
    %v2728 = vunpack.c.l.s4 1966171168
    %v2729 = vunpack.c.0.s8 %v2728
    %v2730 = vlaneseq
    %v2731 = vshrl.u32 %v2730, 7
    %v2732 = vsub.s32 %v2729, %v2731
    %v2733 = vrot.slane %v2717, %v2732
    %v2735 = vunpack.c.l.s4 1966171168
    %v2736 = vunpack.c.0.s8 %v2735
    %v2737 = vlaneseq
    %v2738 = vshrl.u32 %v2737, 7
    %v2739 = vsub.s32 %v2736, %v2738
    %v2740 = vrot.slane %v2718, %v2739
    %v2742 = vunpack.c.l.s4 1966171168
    %v2743 = vunpack.c.0.s8 %v2742
    %v2744 = vlaneseq
    %v2745 = vshrl.u32 %v2744, 7
    %v2746 = vsub.s32 %v2743, %v2745
    %v2747 = vrot.slane %v2719, %v2746
    %v2748 = vcombine.high %v2726, %v2726
    %v2749 = vcombine.high %v2733, %v2733
    %v2750 = vcombine.high %v2740, %v2740
    %v2751 = vcombine.high %v2747, %v2747
    %v2761 = vcombine.high %v2558, %v2558
    %v2763 = vunpack.c.l.s4 1966171168
    %v2764 = vunpack.c.0.s8 %v2763
    %v2765 = vlaneseq
    %v2766 = vshrl.u32 %v2765, 7
    %v2767 = vsub.s32 %v2764, %v2766
    %v2768 = vrot.slane %v2558, %v2767
    %v2770 = vunpack.c.l.s4 1966171168
    %v2771 = vunpack.c.0.s8 %v2770
    %v2772 = vlaneseq
    %v2773 = vshrl.u32 %v2772, 7
    %v2774 = vsub.s32 %v2771, %v2773
    %v2775 = vrot.slane %v2761, %v2774
    %v2776 = vcombine.high %v2768, %v2768
    %v2777 = vcombine.high %v2775, %v2775
    %v2779 = vunpack.c.l.s4 1966171168
    %v2780 = vunpack.c.0.s8 %v2779
    %v2781 = vlaneseq
    %v2782 = vshrl.u32 %v2781, 7
    %v2783 = vsub.s32 %v2780, %v2782
    %v2784 = vrot.slane %v2768, %v2783
    %v2786 = vunpack.c.l.s4 1966171168
    %v2787 = vunpack.c.0.s8 %v2786
    %v2788 = vlaneseq
    %v2789 = vshrl.u32 %v2788, 7
    %v2790 = vsub.s32 %v2787, %v2789
    %v2791 = vrot.slane %v2775, %v2790
    %v2793 = vunpack.c.l.s4 1966171168
    %v2794 = vunpack.c.0.s8 %v2793
    %v2795 = vlaneseq
    %v2796 = vshrl.u32 %v2795, 7
    %v2797 = vsub.s32 %v2794, %v2796
    %v2798 = vrot.slane %v2776, %v2797
    %v2800 = vunpack.c.l.s4 1966171168
    %v2801 = vunpack.c.0.s8 %v2800
    %v2802 = vlaneseq
    %v2803 = vshrl.u32 %v2802, 7
    %v2804 = vsub.s32 %v2801, %v2803
    %v2805 = vrot.slane %v2777, %v2804
    %v2806 = vcombine.high %v2784, %v2784
    %v2807 = vcombine.high %v2791, %v2791
    %v2808 = vcombine.high %v2798, %v2798
    %v2809 = vcombine.high %v2805, %v2805
    %v2811 = vcombine.high %v2698, %v2698
    %v2813 = vunpack.c.l.s4 1966171168
    %v2814 = vunpack.c.0.s8 %v2813
    %v2815 = vlaneseq
    %v2816 = vshrl.u32 %v2815, 7
    %v2817 = vsub.s32 %v2814, %v2816
    %v2818 = vrot.slane %v2698, %v2817
    %v2820 = vunpack.c.l.s4 1966171168
    %v2821 = vunpack.c.0.s8 %v2820
    %v2822 = vlaneseq
    %v2823 = vshrl.u32 %v2822, 7
    %v2824 = vsub.s32 %v2821, %v2823
    %v2825 = vrot.slane %v2811, %v2824
    %v2826 = vcombine.high %v2818, %v2818
    %v2827 = vcombine.high %v2825, %v2825
    %v2829 = vunpack.c.l.s4 1966171168
    %v2830 = vunpack.c.0.s8 %v2829
    %v2831 = vlaneseq
    %v2832 = vshrl.u32 %v2831, 7
    %v2833 = vsub.s32 %v2830, %v2832
    %v2834 = vrot.slane %v2818, %v2833
    %v2836 = vunpack.c.l.s4 1966171168
    %v2837 = vunpack.c.0.s8 %v2836
    %v2838 = vlaneseq
    %v2839 = vshrl.u32 %v2838, 7
    %v2840 = vsub.s32 %v2837, %v2839
    %v2841 = vrot.slane %v2825, %v2840
    %v2843 = vunpack.c.l.s4 1966171168
    %v2844 = vunpack.c.0.s8 %v2843
    %v2845 = vlaneseq
    %v2846 = vshrl.u32 %v2845, 7
    %v2847 = vsub.s32 %v2844, %v2846
    %v2848 = vrot.slane %v2826, %v2847
    %v2850 = vunpack.c.l.s4 1966171168
    %v2851 = vunpack.c.0.s8 %v2850
    %v2852 = vlaneseq
    %v2853 = vshrl.u32 %v2852, 7
    %v2854 = vsub.s32 %v2851, %v2853
    %v2855 = vrot.slane %v2827, %v2854
    %v2856 = vcombine.high %v2834, %v2834
    %v2857 = vcombine.high %v2841, %v2841
    %v2858 = vcombine.high %v2848, %v2848
    %v2859 = vcombine.high %v2855, %v2855
    %v2869 = vcombine.high %v2700, %v2700
    %v2871 = vunpack.c.l.s4 1966171168
    %v2872 = vunpack.c.0.s8 %v2871
    %v2873 = vlaneseq
    %v2874 = vshrl.u32 %v2873, 7
    %v2875 = vsub.s32 %v2872, %v2874
    %v2876 = vrot.slane %v2700, %v2875
    %v2878 = vunpack.c.l.s4 1966171168
    %v2879 = vunpack.c.0.s8 %v2878
    %v2880 = vlaneseq
    %v2881 = vshrl.u32 %v2880, 7
    %v2882 = vsub.s32 %v2879, %v2881
    %v2883 = vrot.slane %v2869, %v2882
    %v2884 = vcombine.high %v2876, %v2876
    %v2885 = vcombine.high %v2883, %v2883
    %v2887 = vunpack.c.l.s4 1966171168
    %v2888 = vunpack.c.0.s8 %v2887
    %v2889 = vlaneseq
    %v2890 = vshrl.u32 %v2889, 7
    %v2891 = vsub.s32 %v2888, %v2890
    %v2892 = vrot.slane %v2876, %v2891
    %v2894 = vunpack.c.l.s4 1966171168
    %v2895 = vunpack.c.0.s8 %v2894
    %v2896 = vlaneseq
    %v2897 = vshrl.u32 %v2896, 7
    %v2898 = vsub.s32 %v2895, %v2897
    %v2899 = vrot.slane %v2883, %v2898
    %v2901 = vunpack.c.l.s4 1966171168
    %v2902 = vunpack.c.0.s8 %v2901
    %v2903 = vlaneseq
    %v2904 = vshrl.u32 %v2903, 7
    %v2905 = vsub.s32 %v2902, %v2904
    %v2906 = vrot.slane %v2884, %v2905
    %v2908 = vunpack.c.l.s4 1966171168
    %v2909 = vunpack.c.0.s8 %v2908
    %v2910 = vlaneseq
    %v2911 = vshrl.u32 %v2910, 7
    %v2912 = vsub.s32 %v2909, %v2911
    %v2913 = vrot.slane %v2885, %v2912
    %v2914 = vcombine.high %v2892, %v2892
    %v2915 = vcombine.high %v2899, %v2899
    %v2916 = vcombine.high %v2906, %v2906
    %v2917 = vcombine.high %v2913, %v2913
    %v2918 = vlaneseq
    %v2919 = vshrl.u32 %v2918, 7
    %v2920 = vsub.s32 0, %v2919
    %v2921 = vrot.slane %v2726, %v2920
    %v2922 = vlaneseq
    %v2923 = vshrl.u32 %v2922, 7
    %v2924 = vsub.s32 0, %v2923
    %v2925 = vrot.slane %v2740, %v2924
    %v2926 = vlaneseq
    %v2927 = vshrl.u32 %v2926, 7
    %v2928 = vsub.s32 0, %v2927
    %v2929 = vrot.slane %v2748, %v2928
    %v2930 = vlaneseq
    %v2931 = vshrl.u32 %v2930, 7
    %v2932 = vsub.s32 0, %v2931
    %v2933 = vrot.slane %v2750, %v2932
    %v2934 = vlaneseq
    %v2935 = vshrl.u32 %v2934, 7
    %v2936 = vsub.s32 0, %v2935
    %v2937 = vrot.slane %v2733, %v2936
    %v2938 = vlaneseq
    %v2939 = vshrl.u32 %v2938, 7
    %v2940 = vsub.s32 0, %v2939
    %v2941 = vrot.slane %v2747, %v2940
    %v2942 = vlaneseq
    %v2943 = vshrl.u32 %v2942, 7
    %v2944 = vsub.s32 0, %v2943
    %v2945 = vrot.slane %v2749, %v2944
    %v2946 = vlaneseq
    %v2947 = vshrl.u32 %v2946, 7
    %v2948 = vsub.s32 0, %v2947
    %v2949 = vrot.slane %v2751, %v2948
    %2950 = vrot.lane.b32.xlu0 %v2921, 96
    %v2951 = vpop.permute.xlu0 %2950
    %2952 = vrot.lane.b32.xlu0 %v2925, 96
    %v2953 = vpop.permute.xlu0 %2952
    %2954 = vrot.lane.b32.xlu0 %v2929, 96
    %v2955 = vpop.permute.xlu0 %2954
    %2956 = vrot.lane.b32.xlu0 %v2933, 96
    %v2957 = vpop.permute.xlu0 %2956
    %2958 = vrot.lane.b32.xlu0 %v2937, 96
    %v2959 = vpop.permute.xlu0 %2958
    %2960 = vrot.lane.b32.xlu0 %v2941, 96
    %v2961 = vpop.permute.xlu0 %2960
    %2962 = vrot.lane.b32.xlu0 %v2945, 96
    %v2963 = vpop.permute.xlu0 %2962
    %2964 = vrot.lane.b32.xlu0 %v2949, 96
    %v2965 = vpop.permute.xlu0 %2964
    %2974 = vrot.lane.b32.xlu0 %v2921, 64
    %v2975 = vpop.permute.xlu0 %2974
    %2976 = vrot.lane.b32.xlu0 %v2925, 64
    %v2977 = vpop.permute.xlu0 %2976
    %2978 = vrot.lane.b32.xlu0 %v2929, 64
    %v2979 = vpop.permute.xlu0 %2978
    %2980 = vrot.lane.b32.xlu0 %v2933, 64
    %v2981 = vpop.permute.xlu0 %2980
    %2982 = vrot.lane.b32.xlu0 %v2937, 64
    %v2983 = vpop.permute.xlu0 %2982
    %2984 = vrot.lane.b32.xlu0 %v2941, 64
    %v2985 = vpop.permute.xlu0 %2984
    %2986 = vrot.lane.b32.xlu0 %v2945, 64
    %v2987 = vpop.permute.xlu0 %2986
    %2988 = vrot.lane.b32.xlu0 %v2949, 64
    %v2989 = vpop.permute.xlu0 %2988
    %2998 = vrot.lane.b32.xlu0 %v2921, 32
    %v2999 = vpop.permute.xlu0 %2998
    %3000 = vrot.lane.b32.xlu0 %v2925, 32
    %v3001 = vpop.permute.xlu0 %3000
    %3002 = vrot.lane.b32.xlu0 %v2929, 32
    %v3003 = vpop.permute.xlu0 %3002
    %3004 = vrot.lane.b32.xlu0 %v2933, 32
    %v3005 = vpop.permute.xlu0 %3004
    %3006 = vrot.lane.b32.xlu0 %v2937, 32
    %v3007 = vpop.permute.xlu0 %3006
    %3008 = vrot.lane.b32.xlu0 %v2941, 32
    %v3009 = vpop.permute.xlu0 %3008
    %3010 = vrot.lane.b32.xlu0 %v2945, 32
    %v3011 = vpop.permute.xlu0 %3010
    %3012 = vrot.lane.b32.xlu0 %v2949, 32
    %v3013 = vpop.permute.xlu0 %3012
    %v3022 = vlaneseq
    %v3023 = vshrl.u32 %v3022, 7
    %v3024 = vsub.s32 0, %v3023
    %v3025 = vrot.slane %v2784, %v3024
    %v3026 = vlaneseq
    %v3027 = vshrl.u32 %v3026, 7
    %v3028 = vsub.s32 0, %v3027
    %v3029 = vrot.slane %v2798, %v3028
    %v3030 = vlaneseq
    %v3031 = vshrl.u32 %v3030, 7
    %v3032 = vsub.s32 0, %v3031
    %v3033 = vrot.slane %v2806, %v3032
    %v3034 = vlaneseq
    %v3035 = vshrl.u32 %v3034, 7
    %v3036 = vsub.s32 0, %v3035
    %v3037 = vrot.slane %v2808, %v3036
    %v3038 = vlaneseq
    %v3039 = vshrl.u32 %v3038, 7
    %v3040 = vsub.s32 0, %v3039
    %v3041 = vrot.slane %v2791, %v3040
    %v3042 = vlaneseq
    %v3043 = vshrl.u32 %v3042, 7
    %v3044 = vsub.s32 0, %v3043
    %v3045 = vrot.slane %v2805, %v3044
    %v3046 = vlaneseq
    %v3047 = vshrl.u32 %v3046, 7
    %v3048 = vsub.s32 0, %v3047
    %v3049 = vrot.slane %v2807, %v3048
    %v3050 = vlaneseq
    %v3051 = vshrl.u32 %v3050, 7
    %v3052 = vsub.s32 0, %v3051
    %v3053 = vrot.slane %v2809, %v3052
    %3062 = vrot.lane.b32.xlu0 %v3025, 96
    %v3063 = vpop.permute.xlu0 %3062
    %3064 = vrot.lane.b32.xlu0 %v3029, 96
    %v3065 = vpop.permute.xlu0 %3064
    %3066 = vrot.lane.b32.xlu0 %v3033, 96
    %v3067 = vpop.permute.xlu0 %3066
    %3068 = vrot.lane.b32.xlu0 %v3037, 96
    %v3069 = vpop.permute.xlu0 %3068
    %3070 = vrot.lane.b32.xlu0 %v3041, 96
    %v3071 = vpop.permute.xlu0 %3070
    %3072 = vrot.lane.b32.xlu0 %v3045, 96
    %v3073 = vpop.permute.xlu0 %3072
    %3074 = vrot.lane.b32.xlu0 %v3049, 96
    %v3075 = vpop.permute.xlu0 %3074
    %3076 = vrot.lane.b32.xlu0 %v3053, 96
    %v3077 = vpop.permute.xlu0 %3076
    %3086 = vrot.lane.b32.xlu0 %v3025, 64
    %v3087 = vpop.permute.xlu0 %3086
    %3088 = vrot.lane.b32.xlu0 %v3029, 64
    %v3089 = vpop.permute.xlu0 %3088
    %3090 = vrot.lane.b32.xlu0 %v3033, 64
    %v3091 = vpop.permute.xlu0 %3090
    %3092 = vrot.lane.b32.xlu0 %v3037, 64
    %v3093 = vpop.permute.xlu0 %3092
    %3094 = vrot.lane.b32.xlu0 %v3041, 64
    %v3095 = vpop.permute.xlu0 %3094
    %3096 = vrot.lane.b32.xlu0 %v3045, 64
    %v3097 = vpop.permute.xlu0 %3096
    %3098 = vrot.lane.b32.xlu0 %v3049, 64
    %v3099 = vpop.permute.xlu0 %3098
    %3100 = vrot.lane.b32.xlu0 %v3053, 64
    %v3101 = vpop.permute.xlu0 %3100
    %3110 = vrot.lane.b32.xlu0 %v3025, 32
    %v3111 = vpop.permute.xlu0 %3110
    %3112 = vrot.lane.b32.xlu0 %v3029, 32
    %v3113 = vpop.permute.xlu0 %3112
    %3114 = vrot.lane.b32.xlu0 %v3033, 32
    %v3115 = vpop.permute.xlu0 %3114
    %3116 = vrot.lane.b32.xlu0 %v3037, 32
    %v3117 = vpop.permute.xlu0 %3116
    %3118 = vrot.lane.b32.xlu0 %v3041, 32
    %v3119 = vpop.permute.xlu0 %3118
    %3120 = vrot.lane.b32.xlu0 %v3045, 32
    %v3121 = vpop.permute.xlu0 %3120
    %3122 = vrot.lane.b32.xlu0 %v3049, 32
    %v3123 = vpop.permute.xlu0 %3122
    %3124 = vrot.lane.b32.xlu0 %v3053, 32
    %v3125 = vpop.permute.xlu0 %3124
    %v3134 = vlaneseq
    %v3135 = vshrl.u32 %v3134, 7
    %v3136 = vsub.s32 0, %v3135
    %v3137 = vrot.slane %v2834, %v3136
    %v3138 = vlaneseq
    %v3139 = vshrl.u32 %v3138, 7
    %v3140 = vsub.s32 0, %v3139
    %v3141 = vrot.slane %v2848, %v3140
    %v3142 = vlaneseq
    %v3143 = vshrl.u32 %v3142, 7
    %v3144 = vsub.s32 0, %v3143
    %v3145 = vrot.slane %v2856, %v3144
    %v3146 = vlaneseq
    %v3147 = vshrl.u32 %v3146, 7
    %v3148 = vsub.s32 0, %v3147
    %v3149 = vrot.slane %v2858, %v3148
    %v3150 = vlaneseq
    %v3151 = vshrl.u32 %v3150, 7
    %v3152 = vsub.s32 0, %v3151
    %v3153 = vrot.slane %v2841, %v3152
    %v3154 = vlaneseq
    %v3155 = vshrl.u32 %v3154, 7
    %v3156 = vsub.s32 0, %v3155
    %v3157 = vrot.slane %v2855, %v3156
    %v3158 = vlaneseq
    %v3159 = vshrl.u32 %v3158, 7
    %v3160 = vsub.s32 0, %v3159
    %v3161 = vrot.slane %v2857, %v3160
    %v3162 = vlaneseq
    %v3163 = vshrl.u32 %v3162, 7
    %v3164 = vsub.s32 0, %v3163
    %v3165 = vrot.slane %v2859, %v3164
    %3166 = vrot.lane.b32.xlu0 %v3137, 96
    %v3167 = vpop.permute.xlu0 %3166
    %3168 = vrot.lane.b32.xlu0 %v3141, 96
    %v3169 = vpop.permute.xlu0 %3168
    %3170 = vrot.lane.b32.xlu0 %v3145, 96
    %v3171 = vpop.permute.xlu0 %3170
    %3172 = vrot.lane.b32.xlu0 %v3149, 96
    %v3173 = vpop.permute.xlu0 %3172
    %3174 = vrot.lane.b32.xlu0 %v3153, 96
    %v3175 = vpop.permute.xlu0 %3174
    %3176 = vrot.lane.b32.xlu0 %v3157, 96
    %v3177 = vpop.permute.xlu0 %3176
    %3178 = vrot.lane.b32.xlu0 %v3161, 96
    %v3179 = vpop.permute.xlu0 %3178
    %3180 = vrot.lane.b32.xlu0 %v3165, 96
    %v3181 = vpop.permute.xlu0 %3180
    %3190 = vrot.lane.b32.xlu0 %v3137, 64
    %v3191 = vpop.permute.xlu0 %3190
    %3192 = vrot.lane.b32.xlu0 %v3141, 64
    %v3193 = vpop.permute.xlu0 %3192
    %3194 = vrot.lane.b32.xlu0 %v3145, 64
    %v3195 = vpop.permute.xlu0 %3194
    %3196 = vrot.lane.b32.xlu0 %v3149, 64
    %v3197 = vpop.permute.xlu0 %3196
    %3198 = vrot.lane.b32.xlu0 %v3153, 64
    %v3199 = vpop.permute.xlu0 %3198
    %3200 = vrot.lane.b32.xlu0 %v3157, 64
    %v3201 = vpop.permute.xlu0 %3200
    %3202 = vrot.lane.b32.xlu0 %v3161, 64
    %v3203 = vpop.permute.xlu0 %3202
    %3204 = vrot.lane.b32.xlu0 %v3165, 64
    %v3205 = vpop.permute.xlu0 %3204
    %3214 = vrot.lane.b32.xlu0 %v3137, 32
    %v3215 = vpop.permute.xlu0 %3214
    %3216 = vrot.lane.b32.xlu0 %v3141, 32
    %v3217 = vpop.permute.xlu0 %3216
    %3218 = vrot.lane.b32.xlu0 %v3145, 32
    %v3219 = vpop.permute.xlu0 %3218
    %3220 = vrot.lane.b32.xlu0 %v3149, 32
    %v3221 = vpop.permute.xlu0 %3220
    %3222 = vrot.lane.b32.xlu0 %v3153, 32
    %v3223 = vpop.permute.xlu0 %3222
    %3224 = vrot.lane.b32.xlu0 %v3157, 32
    %v3225 = vpop.permute.xlu0 %3224
    %3226 = vrot.lane.b32.xlu0 %v3161, 32
    %v3227 = vpop.permute.xlu0 %3226
    %3228 = vrot.lane.b32.xlu0 %v3165, 32
    %v3229 = vpop.permute.xlu0 %3228
    %v3238 = vlaneseq
    %v3239 = vshrl.u32 %v3238, 7
    %v3240 = vsub.s32 0, %v3239
    %v3241 = vrot.slane %v2892, %v3240
    %v3242 = vlaneseq
    %v3243 = vshrl.u32 %v3242, 7
    %v3244 = vsub.s32 0, %v3243
    %v3245 = vrot.slane %v2906, %v3244
    %v3246 = vlaneseq
    %v3247 = vshrl.u32 %v3246, 7
    %v3248 = vsub.s32 0, %v3247
    %v3249 = vrot.slane %v2914, %v3248
    %v3250 = vlaneseq
    %v3251 = vshrl.u32 %v3250, 7
    %v3252 = vsub.s32 0, %v3251
    %v3253 = vrot.slane %v2916, %v3252
    %v3254 = vlaneseq
    %v3255 = vshrl.u32 %v3254, 7
    %v3256 = vsub.s32 0, %v3255
    %v3257 = vrot.slane %v2899, %v3256
    %v3258 = vlaneseq
    %v3259 = vshrl.u32 %v3258, 7
    %v3260 = vsub.s32 0, %v3259
    %v3261 = vrot.slane %v2913, %v3260
    %v3262 = vlaneseq
    %v3263 = vshrl.u32 %v3262, 7
    %v3264 = vsub.s32 0, %v3263
    %v3265 = vrot.slane %v2915, %v3264
    %v3266 = vlaneseq
    %v3267 = vshrl.u32 %v3266, 7
    %v3268 = vsub.s32 0, %v3267
    %v3269 = vrot.slane %v2917, %v3268
    %3278 = vrot.lane.b32.xlu0 %v3241, 96
    %v3279 = vpop.permute.xlu0 %3278
    %3280 = vrot.lane.b32.xlu0 %v3245, 96
    %v3281 = vpop.permute.xlu0 %3280
    %3282 = vrot.lane.b32.xlu0 %v3249, 96
    %v3283 = vpop.permute.xlu0 %3282
    %3284 = vrot.lane.b32.xlu0 %v3253, 96
    %v3285 = vpop.permute.xlu0 %3284
    %3286 = vrot.lane.b32.xlu0 %v3257, 96
    %v3287 = vpop.permute.xlu0 %3286
    %3288 = vrot.lane.b32.xlu0 %v3261, 96
    %v3289 = vpop.permute.xlu0 %3288
    %3290 = vrot.lane.b32.xlu0 %v3265, 96
    %v3291 = vpop.permute.xlu0 %3290
    %3292 = vrot.lane.b32.xlu0 %v3269, 96
    %v3293 = vpop.permute.xlu0 %3292
    %3302 = vrot.lane.b32.xlu0 %v3241, 64
    %v3303 = vpop.permute.xlu0 %3302
    %3304 = vrot.lane.b32.xlu0 %v3245, 64
    %v3305 = vpop.permute.xlu0 %3304
    %3306 = vrot.lane.b32.xlu0 %v3249, 64
    %v3307 = vpop.permute.xlu0 %3306
    %3308 = vrot.lane.b32.xlu0 %v3253, 64
    %v3309 = vpop.permute.xlu0 %3308
    %3310 = vrot.lane.b32.xlu0 %v3257, 64
    %v3311 = vpop.permute.xlu0 %3310
    %3312 = vrot.lane.b32.xlu0 %v3261, 64
    %v3313 = vpop.permute.xlu0 %3312
    %3314 = vrot.lane.b32.xlu0 %v3265, 64
    %v3315 = vpop.permute.xlu0 %3314
    %3316 = vrot.lane.b32.xlu0 %v3269, 64
    %v3317 = vpop.permute.xlu0 %3316
    %3326 = vrot.lane.b32.xlu0 %v3241, 32
    %v3327 = vpop.permute.xlu0 %3326
    %3328 = vrot.lane.b32.xlu0 %v3245, 32
    %v3329 = vpop.permute.xlu0 %3328
    %3330 = vrot.lane.b32.xlu0 %v3249, 32
    %v3331 = vpop.permute.xlu0 %3330
    %3332 = vrot.lane.b32.xlu0 %v3253, 32
    %v3333 = vpop.permute.xlu0 %3332
    %3334 = vrot.lane.b32.xlu0 %v3257, 32
    %v3335 = vpop.permute.xlu0 %3334
    %3336 = vrot.lane.b32.xlu0 %v3261, 32
    %v3337 = vpop.permute.xlu0 %3336
    %3338 = vrot.lane.b32.xlu0 %v3265, 32
    %v3339 = vpop.permute.xlu0 %3338
    %3340 = vrot.lane.b32.xlu0 %v3269, 32
    %v3341 = vpop.permute.xlu0 %3340
    %vm3350 = vcmask 1040384
    %v3351 = vsel %vm3350, %v2726, %v2951
    %v3352 = vsel %vm3350, %v2740, %v2953
    %v3353 = vsel %vm3350, %v2748, %v2955
    %v3354 = vsel %vm3350, %v2750, %v2957
    %v3355 = vsel %vm3350, %v2733, %v2959
    %v3356 = vsel %vm3350, %v2747, %v2961
    %v3357 = vsel %vm3350, %v2749, %v2963
    %v3358 = vsel %vm3350, %v2751, %v2965
    %vm3359 = vcmask 1041408
    %v3360 = vsel %vm3359, %v3351, %v2975
    %v3361 = vsel %vm3359, %v3352, %v2977
    %v3362 = vsel %vm3359, %v3353, %v2979
    %v3363 = vsel %vm3359, %v3354, %v2981
    %v3364 = vsel %vm3359, %v3355, %v2983
    %v3365 = vsel %vm3359, %v3356, %v2985
    %v3366 = vsel %vm3359, %v3357, %v2987
    %v3367 = vsel %vm3359, %v3358, %v2989
    %vm3368 = vcmask 1042432
    %v3369 = vsel %vm3368, %v3360, %v2999
    %v3370 = vsel %vm3368, %v3361, %v3001
    %v3371 = vsel %vm3368, %v3362, %v3003
    %v3372 = vsel %vm3368, %v3363, %v3005
    %v3373 = vsel %vm3368, %v3364, %v3007
    %v3374 = vsel %vm3368, %v3365, %v3009
    %v3375 = vsel %vm3368, %v3366, %v3011
    %v3376 = vsel %vm3368, %v3367, %v3013
    %vm3377 = vcmask 1043456
    %v3378 = vsel %vm3377, %v3369, %v3025
    %v3379 = vsel %vm3377, %v3370, %v3029
    %v3380 = vsel %vm3377, %v3371, %v3033
    %v3381 = vsel %vm3377, %v3372, %v3037
    %v3382 = vsel %vm3377, %v3373, %v3041
    %v3383 = vsel %vm3377, %v3374, %v3045
    %v3384 = vsel %vm3377, %v3375, %v3049
    %v3385 = vsel %vm3377, %v3376, %v3053
    %v3386 = vsel %vm593, %v3378, %v3063
    %v3387 = vsel %vm593, %v3379, %v3065
    %v3388 = vsel %vm593, %v3380, %v3067
    %v3389 = vsel %vm593, %v3381, %v3069
    %v3390 = vsel %vm593, %v3382, %v3071
    %v3391 = vsel %vm593, %v3383, %v3073
    %v3392 = vsel %vm593, %v3384, %v3075
    %v3393 = vsel %vm593, %v3385, %v3077
    %vm3394 = vcmask 1045504
    %v3395 = vsel %vm3394, %v3386, %v3087
    %v3396 = vsel %vm3394, %v3387, %v3089
    %v3397 = vsel %vm3394, %v3388, %v3091
    %v3398 = vsel %vm3394, %v3389, %v3093
    %v3399 = vsel %vm3394, %v3390, %v3095
    %v3400 = vsel %vm3394, %v3391, %v3097
    %v3401 = vsel %vm3394, %v3392, %v3099
    %v3402 = vsel %vm3394, %v3393, %v3101
    %vm3403 = vcmask 1046528
    %v3404 = vsel %vm3403, %v3395, %v3111
    %v3405 = vsel %vm3403, %v3396, %v3113
    %v3406 = vsel %vm3403, %v3397, %v3115
    %v3407 = vsel %vm3403, %v3398, %v3117
    %v3408 = vsel %vm3403, %v3399, %v3119
    %v3409 = vsel %vm3403, %v3400, %v3121
    %v3410 = vsel %vm3403, %v3401, %v3123
    %v3411 = vsel %vm3403, %v3402, %v3125
    %v3412 = vsel %vm3350, %v2834, %v3167
    %v3413 = vsel %vm3350, %v2848, %v3169
    %v3414 = vsel %vm3350, %v2856, %v3171
    %v3415 = vsel %vm3350, %v2858, %v3173
    %v3416 = vsel %vm3350, %v2841, %v3175
    %v3417 = vsel %vm3350, %v2855, %v3177
    %v3418 = vsel %vm3350, %v2857, %v3179
    %v3419 = vsel %vm3350, %v2859, %v3181
    %v3420 = vsel %vm3359, %v3412, %v3191
    %v3421 = vsel %vm3359, %v3413, %v3193
    %v3422 = vsel %vm3359, %v3414, %v3195
    %v3423 = vsel %vm3359, %v3415, %v3197
    %v3424 = vsel %vm3359, %v3416, %v3199
    %v3425 = vsel %vm3359, %v3417, %v3201
    %v3426 = vsel %vm3359, %v3418, %v3203
    %v3427 = vsel %vm3359, %v3419, %v3205
    %v3428 = vsel %vm3368, %v3420, %v3215
    %v3429 = vsel %vm3368, %v3421, %v3217
    %v3430 = vsel %vm3368, %v3422, %v3219
    %v3431 = vsel %vm3368, %v3423, %v3221
    %v3432 = vsel %vm3368, %v3424, %v3223
    %v3433 = vsel %vm3368, %v3425, %v3225
    %v3434 = vsel %vm3368, %v3426, %v3227
    %v3435 = vsel %vm3368, %v3427, %v3229
    %v3436 = vsel %vm3377, %v3428, %v3241
    %v3437 = vsel %vm3377, %v3429, %v3245
    %v3438 = vsel %vm3377, %v3430, %v3249
    %v3439 = vsel %vm3377, %v3431, %v3253
    %v3440 = vsel %vm3377, %v3432, %v3257
    %v3441 = vsel %vm3377, %v3433, %v3261
    %v3442 = vsel %vm3377, %v3434, %v3265
    %v3443 = vsel %vm3377, %v3435, %v3269
    %v3444 = vsel %vm593, %v3436, %v3279
    %v3445 = vsel %vm593, %v3437, %v3281
    %v3446 = vsel %vm593, %v3438, %v3283
    %v3447 = vsel %vm593, %v3439, %v3285
    %v3448 = vsel %vm593, %v3440, %v3287
    %v3449 = vsel %vm593, %v3441, %v3289
    %v3450 = vsel %vm593, %v3442, %v3291
    %v3451 = vsel %vm593, %v3443, %v3293
    %v3452 = vsel %vm3394, %v3444, %v3303
    %v3453 = vsel %vm3394, %v3445, %v3305
    %v3454 = vsel %vm3394, %v3446, %v3307
    %v3455 = vsel %vm3394, %v3447, %v3309
    %v3456 = vsel %vm3394, %v3448, %v3311
    %v3457 = vsel %vm3394, %v3449, %v3313
    %v3458 = vsel %vm3394, %v3450, %v3315
    %v3459 = vsel %vm3394, %v3451, %v3317
    %v3460 = vsel %vm3403, %v3452, %v3327
    %v3461 = vsel %vm3403, %v3453, %v3329
    %v3462 = vsel %vm3403, %v3454, %v3331
    %v3463 = vsel %vm3403, %v3455, %v3333
    %v3464 = vsel %vm3403, %v3456, %v3335
    %v3465 = vsel %vm3403, %v3457, %v3337
    %v3466 = vsel %vm3403, %v3458, %v3339
    %v3467 = vsel %vm3403, %v3459, %v3341
    %3468 = vmatprep.subr.mxu0 0.0
    %3469 = vmatpush1.msra.mxu0 %v3404
    %3470 = vmatprep.subr.mxu0 0.0
    %3471 = vmatpush1.msra.mxu0 %v3460
    %3472 = vmatprep.subr.mxu0 0.0
    %3473 = vmatpush1.msra.mxu0 %v3405
    %3474 = vmatprep.subr.mxu0 0.0
    %3475 = vmatpush1.msra.mxu0 %v3461
    %3476 = vmatprep.subr.mxu0 0.0
    %3477 = vmatpush1.msra.mxu0 %v3406
    %3478 = vmatprep.subr.mxu0 0.0
    %3479 = vmatpush1.msra.mxu0 %v3462
    %3480 = vmatprep.subr.mxu0 0.0
    %3481 = vmatpush1.msra.mxu0 %v3407
    %3482 = vmatprep.subr.mxu0 0.0
    %3483 = vmatpush1.msra.mxu0 %v3463
    %3484 = vmatprep.subr.mxu0 0.0
    %3485 = vmatpush1.msra.mxu0 %v3408
    %3486 = vmatprep.subr.mxu0 0.0
    %3487 = vmatpush1.msra.mxu0 %v3464
    %3488 = vmatprep.subr.mxu0 0.0
    %3489 = vmatpush1.msra.mxu0 %v3409
    %3490 = vmatprep.subr.mxu0 0.0
    %3491 = vmatpush1.msra.mxu0 %v3465
    %3492 = vmatprep.subr.mxu0 0.0
    %3493 = vmatpush1.msra.mxu0 %v3410
    %3494 = vmatprep.subr.mxu0 0.0
    %3495 = vmatpush1.msra.mxu0 %v3466
    %3496 = vmatprep.subr.mxu0 0.0
    %3497 = vmatpush1.msra.mxu0 %v3411
    %3498 = vmatprep.subr.mxu0 0.0
    %3499 = vmatpush1.msra.mxu0 %v3467
    %3500 = vmatprep.subr.mxu0 0.0
    %3501 = vmatpush1.msra.mxu0 0.0
    %3502 = vmatprep.subr.mxu0 0.0
    %3503 = vmatpush1.msra.mxu0 0.0
    %3504 = vmatprep.subr.mxu0 0.0
    %3505 = vmatpush1.msra.mxu0 0.0
    %3506 = vmatprep.subr.mxu0 0.0
    %3507 = vmatpush1.msra.mxu0 0.0
    %3508 = vmatprep.subr.mxu0 0.0
    %3509 = vmatpush1.msra.mxu0 0.0
    %3510 = vmatprep.subr.mxu0 0.0
    %3511 = vmatpush1.msra.mxu0 0.0
    %3512 = vmatprep.subr.mxu0 0.0
    %3513 = vmatpush1.msra.mxu0 0.0
    %3514 = vmatprep.subr.mxu0 0.0
    %3515 = vmatpush1.msra.mxu0 0.0
    %3516 = vmatprep.subr.mxu0 0.0
    %3517 = vmatpush1.msra.mxu0 0.0
    %3518 = vmatprep.subr.mxu0 0.0
    %3519 = vmatpush1.msra.mxu0 0.0
    %3520 = vmatprep.subr.mxu0 0.0
    %3521 = vmatpush1.msra.mxu0 0.0
    %3522 = vmatprep.subr.mxu0 0.0
    %3523 = vmatpush1.msra.mxu0 0.0
    %3524 = vmatprep.subr.mxu0 0.0
    %3525 = vmatpush1.msra.mxu0 0.0
    %3526 = vmatprep.subr.mxu0 0.0
    %3527 = vmatpush1.msra.mxu0 0.0
    %3528 = vmatprep.subr.mxu0 0.0
    %3529 = vmatpush1.msra.mxu0 0.0
    %3530 = vmatprep.subr.mxu0 0.0
    %3531 = vmatpush1.msra.mxu0 0.0
    %3532 = vmatprep.mubr.f32.mxu0 0.0
    %3533 = vmatmul.mubr.f32.gmra.mrb[0].mxu0 %v264
    %v3534 = vpop.f32.mrb[0].mxu0
    %v3535 = vadd.f32 %v1509, %v3534
    %v3536 = vpop.f32.mrb[0].mxu0
    %3537 = vmatprep.mubr.f32.mxu0 0.0
    %3538 = vmatmul.mubr.f32.gmra.mrb[0].mxu0 %v265
    %v3539 = vpop.f32.mrb[0].mxu0
    %v3540 = vadd.f32 %v1514, %v3539
    %v3541 = vpop.f32.mrb[0].mxu0
    %3542 = vmatprep.mubr.f32.mxu0 0.0
    %3543 = vmatmul.mubr.f32.gmra.mrb[0].mxu0 %v266
    %v3544 = vpop.f32.mrb[0].mxu0
    %v3545 = vadd.f32 %v1519, %v3544
    %v3546 = vpop.f32.mrb[0].mxu0
    %3547 = vmatprep.mubr.f32.mxu0 0.0
    %3548 = vmatmul.mubr.f32.gmra.mrb[0].mxu0 %v267
    %v3549 = vpop.f32.mrb[0].mxu0
    %v3550 = vadd.f32 %v1524, %v3549
    %v3551 = vpop.f32.mrb[0].mxu0
    %3552 = vmatprep.mubr.f32.mxu0 0.0
    %3553 = vmatmul.mubr.f32.gmra.mrb[0].mxu0 %v268
    %v3554 = vpop.f32.mrb[0].mxu0
    %v3555 = vadd.f32 %v1529, %v3554
    %v3556 = vpop.f32.mrb[0].mxu0
    %3557 = vmatprep.mubr.f32.mxu0 0.0
    %3558 = vmatmul.mubr.f32.gmra.mrb[0].mxu0 %v269
    %v3559 = vpop.f32.mrb[0].mxu0
    %v3560 = vadd.f32 %v1534, %v3559
    %v3561 = vpop.f32.mrb[0].mxu0
    %3562 = vmatprep.mubr.f32.mxu0 0.0
    %3563 = vmatmul.mubr.f32.gmra.mrb[0].mxu0 %v270
    %v3564 = vpop.f32.mrb[0].mxu0
    %v3565 = vadd.f32 %v1539, %v3564
    %v3566 = vpop.f32.mrb[0].mxu0
    %3567 = vmatprep.mubr.f32.mxu0 0.0
    %3568 = vmatmul.mubr.f32.gmra.mrb[0].mxu0 %v271
    %v3569 = vpop.f32.mrb[0].mxu0
    %v3570 = vadd.f32 %v1544, %v3569
    %v3571 = vpop.f32.mrb[0].mxu0
    %3572 = vmatprep.mubr.f32.mxu0 0.0
    %3573 = vmatmul.mubr.f32.gmra.mrb[0].mxu0 %v272
    %v3574 = vpop.f32.mrb[0].mxu0
    %v3575 = vadd.f32 %v1549, %v3574
    %v3576 = vpop.f32.mrb[0].mxu0
    %3577 = vmatprep.mubr.f32.mxu0 0.0
    %3578 = vmatmul.mubr.f32.gmra.mrb[0].mxu0 %v273
    %v3579 = vpop.f32.mrb[0].mxu0
    %v3580 = vadd.f32 %v1554, %v3579
    %v3581 = vpop.f32.mrb[0].mxu0
    %3582 = vmatprep.mubr.f32.mxu0 0.0
    %3583 = vmatmul.mubr.f32.gmra.mrb[0].mxu0 %v274
    %v3584 = vpop.f32.mrb[0].mxu0
    %v3585 = vadd.f32 %v1559, %v3584
    %v3586 = vpop.f32.mrb[0].mxu0
    %3587 = vmatprep.mubr.f32.mxu0 0.0
    %3588 = vmatmul.mubr.f32.gmra.mrb[0].mxu0 %v275
    %v3589 = vpop.f32.mrb[0].mxu0
    %v3590 = vadd.f32 %v1564, %v3589
    %v3591 = vpop.f32.mrb[0].mxu0
    %3592 = vmatprep.mubr.f32.mxu0 0.0
    %3593 = vmatmul.mubr.f32.gmra.mrb[0].mxu0 %v276
    %v3594 = vpop.f32.mrb[0].mxu0
    %v3595 = vadd.f32 %v1569, %v3594
    %v3596 = vpop.f32.mrb[0].mxu0
    %3597 = vmatprep.mubr.f32.mxu0 0.0
    %3598 = vmatmul.mubr.f32.gmra.mrb[0].mxu0 %v277
    %v3599 = vpop.f32.mrb[0].mxu0
    %v3600 = vadd.f32 %v1574, %v3599
    %v3601 = vpop.f32.mrb[0].mxu0
    %3602 = vmatprep.mubr.f32.mxu0 0.0
    %3603 = vmatmul.mubr.f32.gmra.mrb[0].mxu0 %v278
    %v3604 = vpop.f32.mrb[0].mxu0
    %v3605 = vadd.f32 %v1579, %v3604
    %v3606 = vpop.f32.mrb[0].mxu0
    %3607 = vmatprep.mubr.f32.mxu0 0.0
    %3608 = vmatmul.mubr.f32.gmra.mrb[0].mxu0 %v279
    %v3609 = vpop.f32.mrb[0].mxu0
    %v3610 = vadd.f32 %v1584, %v3609
    %v3611 = vpop.f32.mrb[0].mxu0
    %3612 = vmatprep.mubr.f32.mxu0 0.0
    %3613 = vmatmul.mubr.f32.gmra.mrb[0].mxu0 %v280
    %v3614 = vpop.f32.mrb[0].mxu0
    %v3615 = vadd.f32 %v1589, %v3614
    %v3616 = vpop.f32.mrb[0].mxu0
    %3617 = vmatprep.mubr.f32.mxu0 0.0
    %3618 = vmatmul.mubr.f32.gmra.mrb[0].mxu0 %v281
    %v3619 = vpop.f32.mrb[0].mxu0
    %v3620 = vadd.f32 %v1594, %v3619
    %v3621 = vpop.f32.mrb[0].mxu0
    %3622 = vmatprep.mubr.f32.mxu0 0.0
    %3623 = vmatmul.mubr.f32.gmra.mrb[0].mxu0 %v282
    %v3624 = vpop.f32.mrb[0].mxu0
    %v3625 = vadd.f32 %v1599, %v3624
    %v3626 = vpop.f32.mrb[0].mxu0
    %3627 = vmatprep.mubr.f32.mxu0 0.0
    %3628 = vmatmul.mubr.f32.gmra.mrb[0].mxu0 %v283
    %v3629 = vpop.f32.mrb[0].mxu0
    %v3630 = vadd.f32 %v1604, %v3629
    %v3631 = vpop.f32.mrb[0].mxu0
    %3632 = vmatprep.mubr.f32.mxu0 0.0
    %3633 = vmatmul.mubr.f32.gmra.mrb[0].mxu0 %v284
    %v3634 = vpop.f32.mrb[0].mxu0
    %v3635 = vadd.f32 %v1609, %v3634
    %v3636 = vpop.f32.mrb[0].mxu0
    %3637 = vmatprep.mubr.f32.mxu0 0.0
    %3638 = vmatmul.mubr.f32.gmra.mrb[0].mxu0 %v285
    %v3639 = vpop.f32.mrb[0].mxu0
    %v3640 = vadd.f32 %v1614, %v3639
    %v3641 = vpop.f32.mrb[0].mxu0
    %3642 = vmatprep.mubr.f32.mxu0 0.0
    %3643 = vmatmul.mubr.f32.gmra.mrb[0].mxu0 %v286
    %v3644 = vpop.f32.mrb[0].mxu0
    %v3645 = vadd.f32 %v1619, %v3644
    %v3646 = vpop.f32.mrb[0].mxu0
    %3647 = vmatprep.mubr.f32.mxu0 0.0
    %3648 = vmatmul.mubr.f32.gmra.mrb[0].mxu0 %v287
    %v3649 = vpop.f32.mrb[0].mxu0
    %v3650 = vadd.f32 %v1624, %v3649
    %v3651 = vpop.f32.mrb[0].mxu0
    %3652 = vmatprep.mubr.f32.mxu0 0.0
    %3653 = vmatmul.mubr.f32.gmra.mrb[0].mxu0 %v288
    %v3654 = vpop.f32.mrb[0].mxu0
    %v3655 = vadd.f32 %v1629, %v3654
    %v3656 = vpop.f32.mrb[0].mxu0
    %3657 = vmatprep.mubr.f32.mxu0 0.0
    %3658 = vmatmul.mubr.f32.gmra.mrb[0].mxu0 %v289
    %v3659 = vpop.f32.mrb[0].mxu0
    %v3660 = vadd.f32 %v1634, %v3659
    %v3661 = vpop.f32.mrb[0].mxu0
    %3662 = vmatprep.mubr.f32.mxu0 0.0
    %3663 = vmatmul.mubr.f32.gmra.mrb[0].mxu0 %v290
    %v3664 = vpop.f32.mrb[0].mxu0
    %v3665 = vadd.f32 %v1639, %v3664
    %v3666 = vpop.f32.mrb[0].mxu0
    %3667 = vmatprep.mubr.f32.mxu0 0.0
    %3668 = vmatmul.mubr.f32.gmra.mrb[0].mxu0 %v291
    %v3669 = vpop.f32.mrb[0].mxu0
    %v3670 = vadd.f32 %v1644, %v3669
    %v3671 = vpop.f32.mrb[0].mxu0
    %3672 = vmatprep.mubr.f32.mxu0 0.0
    %3673 = vmatmul.mubr.f32.gmra.mrb[0].mxu0 %v292
    %v3674 = vpop.f32.mrb[0].mxu0
    %v3675 = vadd.f32 %v1649, %v3674
    %v3676 = vpop.f32.mrb[0].mxu0
    %3677 = vmatprep.mubr.f32.mxu0 0.0
    %3678 = vmatmul.mubr.f32.gmra.mrb[0].mxu0 %v293
    %v3679 = vpop.f32.mrb[0].mxu0
    %v3680 = vadd.f32 %v1654, %v3679
    %v3681 = vpop.f32.mrb[0].mxu0
    %3682 = vmatprep.mubr.f32.mxu0 0.0
    %3683 = vmatmul.mubr.f32.gmra.mrb[0].mxu0 %v294
    %v3684 = vpop.f32.mrb[0].mxu0
    %v3685 = vadd.f32 %v1659, %v3684
    %v3686 = vpop.f32.mrb[0].mxu0
    %3687 = vmatprep.mubr.f32.mxu0 0.0
    %3688 = vmatmul.mubr.f32.gmra.mrb[0].mxu0 %v295
    %v3689 = vpop.f32.mrb[0].mxu0
    %v3690 = vadd.f32 %v1664, %v3689
    %v3691 = vpop.f32.mrb[0].mxu0
    %3692 = vmatprep.mubr.f32.mxu0 0.0
    %3693 = vmatmul.mubr.f32.gmra.mrb[0].mxu0 %v296
    %v3694 = vpop.f32.mrb[0].mxu0
    %v3695 = vadd.f32 %v1669, %v3694
    %v3696 = vpop.f32.mrb[0].mxu0
    %3697 = vmatprep.mubr.f32.mxu0 0.0
    %3698 = vmatmul.mubr.f32.gmra.mrb[0].mxu0 %v297
    %v3699 = vpop.f32.mrb[0].mxu0
    %v3700 = vadd.f32 %v1674, %v3699
    %v3701 = vpop.f32.mrb[0].mxu0
    %3702 = vmatprep.mubr.f32.mxu0 0.0
    %3703 = vmatmul.mubr.f32.gmra.mrb[0].mxu0 %v298
    %v3704 = vpop.f32.mrb[0].mxu0
    %v3705 = vadd.f32 %v1679, %v3704
    %v3706 = vpop.f32.mrb[0].mxu0
    %3707 = vmatprep.mubr.f32.mxu0 0.0
    %3708 = vmatmul.mubr.f32.gmra.mrb[0].mxu0 %v299
    %v3709 = vpop.f32.mrb[0].mxu0
    %v3710 = vadd.f32 %v1684, %v3709
    %v3711 = vpop.f32.mrb[0].mxu0
    %3712 = vmatprep.mubr.f32.mxu0 0.0
    %3713 = vmatmul.mubr.f32.gmra.mrb[0].mxu0 %v300
    %v3714 = vpop.f32.mrb[0].mxu0
    %v3715 = vadd.f32 %v1689, %v3714
    %v3716 = vpop.f32.mrb[0].mxu0
    %3717 = vmatprep.mubr.f32.mxu0 0.0
    %3718 = vmatmul.mubr.f32.gmra.mrb[0].mxu0 %v301
    %v3719 = vpop.f32.mrb[0].mxu0
    %v3720 = vadd.f32 %v1694, %v3719
    %v3721 = vpop.f32.mrb[0].mxu0
    %3722 = vmatprep.mubr.f32.mxu0 0.0
    %3723 = vmatmul.mubr.f32.gmra.mrb[0].mxu0 %v302
    %v3724 = vpop.f32.mrb[0].mxu0
    %v3725 = vadd.f32 %v1699, %v3724
    %v3726 = vpop.f32.mrb[0].mxu0
    %3727 = vmatprep.mubr.f32.mxu0 0.0
    %3728 = vmatmul.mubr.f32.gmra.mrb[0].mxu0 %v303
    %v3729 = vpop.f32.mrb[0].mxu0
    %v3730 = vadd.f32 %v1704, %v3729
    %v3731 = vpop.f32.mrb[0].mxu0
    %3732 = vmatprep.mubr.f32.mxu0 0.0
    %3733 = vmatmul.mubr.f32.gmra.mrb[0].mxu0 %v304
    %v3734 = vpop.f32.mrb[0].mxu0
    %v3735 = vadd.f32 %v1709, %v3734
    %v3736 = vpop.f32.mrb[0].mxu0
    %3737 = vmatprep.mubr.f32.mxu0 0.0
    %3738 = vmatmul.mubr.f32.gmra.mrb[0].mxu0 %v305
    %v3739 = vpop.f32.mrb[0].mxu0
    %v3740 = vadd.f32 %v1714, %v3739
    %v3741 = vpop.f32.mrb[0].mxu0
    %3742 = vmatprep.mubr.f32.mxu0 0.0
    %3743 = vmatmul.mubr.f32.gmra.mrb[0].mxu0 %v306
    %v3744 = vpop.f32.mrb[0].mxu0
    %v3745 = vadd.f32 %v1719, %v3744
    %v3746 = vpop.f32.mrb[0].mxu0
    %3747 = vmatprep.mubr.f32.mxu0 0.0
    %3748 = vmatmul.mubr.f32.gmra.mrb[0].mxu0 %v307
    %v3749 = vpop.f32.mrb[0].mxu0
    %v3750 = vadd.f32 %v1724, %v3749
    %v3751 = vpop.f32.mrb[0].mxu0
    %3752 = vmatprep.mubr.f32.mxu0 0.0
    %3753 = vmatmul.mubr.f32.gmra.mrb[0].mxu0 %v308
    %v3754 = vpop.f32.mrb[0].mxu0
    %v3755 = vadd.f32 %v1729, %v3754
    %v3756 = vpop.f32.mrb[0].mxu0
    %3757 = vmatprep.mubr.f32.mxu0 0.0
    %3758 = vmatmul.mubr.f32.gmra.mrb[0].mxu0 %v309
    %v3759 = vpop.f32.mrb[0].mxu0
    %v3760 = vadd.f32 %v1734, %v3759
    %v3761 = vpop.f32.mrb[0].mxu0
    %3762 = vmatprep.mubr.f32.mxu0 0.0
    %3763 = vmatmul.mubr.f32.gmra.mrb[0].mxu0 %v310
    %v3764 = vpop.f32.mrb[0].mxu0
    %v3765 = vadd.f32 %v1739, %v3764
    %v3766 = vpop.f32.mrb[0].mxu0
    %3767 = vmatprep.mubr.f32.mxu0 0.0
    %3768 = vmatmul.mubr.f32.gmra.mrb[0].mxu0 %v311
    %v3769 = vpop.f32.mrb[0].mxu0
    %v3770 = vadd.f32 %v1744, %v3769
    %v3771 = vpop.f32.mrb[0].mxu0
    %3772 = vmatprep.mubr.f32.mxu0 0.0
    %3773 = vmatmul.mubr.f32.gmra.mrb[0].mxu0 %v312
    %v3774 = vpop.f32.mrb[0].mxu0
    %v3775 = vadd.f32 %v1749, %v3774
    %v3776 = vpop.f32.mrb[0].mxu0
    %3777 = vmatprep.mubr.f32.mxu0 0.0
    %3778 = vmatmul.mubr.f32.gmra.mrb[0].mxu0 %v313
    %v3779 = vpop.f32.mrb[0].mxu0
    %v3780 = vadd.f32 %v1754, %v3779
    %v3781 = vpop.f32.mrb[0].mxu0
    %3782 = vmatprep.mubr.f32.mxu0 0.0
    %3783 = vmatmul.mubr.f32.gmra.mrb[0].mxu0 %v314
    %v3784 = vpop.f32.mrb[0].mxu0
    %v3785 = vadd.f32 %v1759, %v3784
    %v3786 = vpop.f32.mrb[0].mxu0
    %3787 = vmatprep.mubr.f32.mxu0 0.0
    %3788 = vmatmul.mubr.f32.gmra.mrb[0].mxu0 %v315
    %v3789 = vpop.f32.mrb[0].mxu0
    %v3790 = vadd.f32 %v1764, %v3789
    %v3791 = vpop.f32.mrb[0].mxu0
    %3792 = vmatprep.mubr.f32.mxu0 0.0
    %3793 = vmatmul.mubr.f32.gmra.mrb[0].mxu0 %v316
    %v3794 = vpop.f32.mrb[0].mxu0
    %v3795 = vadd.f32 %v1769, %v3794
    %v3796 = vpop.f32.mrb[0].mxu0
    %3797 = vmatprep.mubr.f32.mxu0 0.0
    %3798 = vmatmul.mubr.f32.gmra.mrb[0].mxu0 %v317
    %v3799 = vpop.f32.mrb[0].mxu0
    %v3800 = vadd.f32 %v1774, %v3799
    %v3801 = vpop.f32.mrb[0].mxu0
    %3802 = vmatprep.mubr.f32.mxu0 0.0
    %3803 = vmatmul.mubr.f32.gmra.mrb[0].mxu0 %v318
    %v3804 = vpop.f32.mrb[0].mxu0
    %v3805 = vadd.f32 %v1779, %v3804
    %v3806 = vpop.f32.mrb[0].mxu0
    %3807 = vmatprep.mubr.f32.mxu0 0.0
    %3808 = vmatmul.mubr.f32.gmra.mrb[0].mxu0 %v319
    %v3809 = vpop.f32.mrb[0].mxu0
    %v3810 = vadd.f32 %v1784, %v3809
    %v3811 = vpop.f32.mrb[0].mxu0
    %3812 = vmatprep.mubr.f32.mxu0 0.0
    %3813 = vmatmul.mubr.f32.gmra.mrb[0].mxu0 %v320
    %v3814 = vpop.f32.mrb[0].mxu0
    %v3815 = vadd.f32 %v1789, %v3814
    %v3816 = vpop.f32.mrb[0].mxu0
    %3817 = vmatprep.mubr.f32.mxu0 0.0
    %3818 = vmatmul.mubr.f32.gmra.mrb[0].mxu0 %v321
    %v3819 = vpop.f32.mrb[0].mxu0
    %v3820 = vadd.f32 %v1794, %v3819
    %v3821 = vpop.f32.mrb[0].mxu0
    %3822 = vmatprep.mubr.f32.mxu0 0.0
    %3823 = vmatmul.mubr.f32.gmra.mrb[0].mxu0 %v322
    %v3824 = vpop.f32.mrb[0].mxu0
    %v3825 = vadd.f32 %v1799, %v3824
    %v3826 = vpop.f32.mrb[0].mxu0
    %3827 = vmatprep.mubr.f32.mxu0 0.0
    %3828 = vmatmul.mubr.f32.gmra.mrb[0].mxu0 %v323
    %v3829 = vpop.f32.mrb[0].mxu0
    %v3830 = vadd.f32 %v1804, %v3829
    %v3831 = vpop.f32.mrb[0].mxu0
    %3832 = vmatprep.mubr.f32.mxu0 0.0
    %3833 = vmatmul.mubr.f32.gmra.mrb[0].mxu0 %v324
    %v3834 = vpop.f32.mrb[0].mxu0
    %v3835 = vadd.f32 %v1809, %v3834
    %v3836 = vpop.f32.mrb[0].mxu0
    %3837 = vmatprep.mubr.f32.mxu0 0.0
    %3838 = vmatmul.mubr.f32.gmra.mrb[0].mxu0 %v325
    %v3839 = vpop.f32.mrb[0].mxu0
    %v3840 = vadd.f32 %v1814, %v3839
    %v3841 = vpop.f32.mrb[0].mxu0
    %3842 = vmatprep.mubr.f32.mxu0 0.0
    %3843 = vmatmul.mubr.f32.gmra.mrb[0].mxu0 %v326
    %v3844 = vpop.f32.mrb[0].mxu0
    %v3845 = vadd.f32 %v1819, %v3844
    %v3846 = vpop.f32.mrb[0].mxu0
    %3847 = vmatprep.mubr.f32.mxu0 0.0
    %3848 = vmatmul.mubr.f32.gmra.mrb[0].mxu0 %v327
    %v3849 = vpop.f32.mrb[0].mxu0
    %v3850 = vadd.f32 %v1824, %v3849
    %v3851 = vpop.f32.mrb[0].mxu0
    %3852 = vdwg.mxu0
    %v3853 = vmul.f32 %v3535, 0.5
    %v3854 = vmul.f32 %v3540, 0.5
    %v3855 = vmul.f32 %v3545, 0.5
    %v3856 = vmul.f32 %v3550, 0.5
    %v3857 = vmul.f32 %v3555, 0.5
    %v3858 = vmul.f32 %v3560, 0.5
    %v3859 = vmul.f32 %v3565, 0.5
    %v3860 = vmul.f32 %v3570, 0.5
    %v3861 = vmul.f32 %v3575, 0.5
    %v3862 = vmul.f32 %v3580, 0.5
    %v3863 = vmul.f32 %v3585, 0.5
    %v3864 = vmul.f32 %v3590, 0.5
    %v3865 = vmul.f32 %v3595, 0.5
    %v3866 = vmul.f32 %v3600, 0.5
    %v3867 = vmul.f32 %v3605, 0.5
    %v3868 = vmul.f32 %v3610, 0.5
    %v3869 = vmul.f32 %v3615, 0.5
    %v3870 = vmul.f32 %v3620, 0.5
    %v3871 = vmul.f32 %v3625, 0.5
    %v3872 = vmul.f32 %v3630, 0.5
    %v3873 = vmul.f32 %v3635, 0.5
    %v3874 = vmul.f32 %v3640, 0.5
    %v3875 = vmul.f32 %v3645, 0.5
    %v3876 = vmul.f32 %v3650, 0.5
    %v3877 = vmul.f32 %v3655, 0.5
    %v3878 = vmul.f32 %v3660, 0.5
    %v3879 = vmul.f32 %v3665, 0.5
    %v3880 = vmul.f32 %v3670, 0.5
    %v3881 = vmul.f32 %v3675, 0.5
    %v3882 = vmul.f32 %v3680, 0.5
    %v3883 = vmul.f32 %v3685, 0.5
    %v3884 = vmul.f32 %v3690, 0.5
    %v3885 = vmul.f32 %v3695, 0.5
    %v3886 = vmul.f32 %v3700, 0.5
    %v3887 = vmul.f32 %v3705, 0.5
    %v3888 = vmul.f32 %v3710, 0.5
    %v3889 = vmul.f32 %v3715, 0.5
    %v3890 = vmul.f32 %v3720, 0.5
    %v3891 = vmul.f32 %v3725, 0.5
    %v3892 = vmul.f32 %v3730, 0.5
    %v3893 = vmul.f32 %v3735, 0.5
    %v3894 = vmul.f32 %v3740, 0.5
    %v3895 = vmul.f32 %v3745, 0.5
    %v3896 = vmul.f32 %v3750, 0.5
    %v3897 = vmul.f32 %v3755, 0.5
    %v3898 = vmul.f32 %v3760, 0.5
    %v3899 = vmul.f32 %v3765, 0.5
    %v3900 = vmul.f32 %v3770, 0.5
    %v3901 = vmul.f32 %v3775, 0.5
    %v3902 = vmul.f32 %v3780, 0.5
    %v3903 = vmul.f32 %v3785, 0.5
    %v3904 = vmul.f32 %v3790, 0.5
    %v3905 = vmul.f32 %v3795, 0.5
    %v3906 = vmul.f32 %v3800, 0.5
    %v3907 = vmul.f32 %v3805, 0.5
    %v3908 = vmul.f32 %v3810, 0.5
    %v3909 = vmul.f32 %v3815, 0.5
    %v3910 = vmul.f32 %v3820, 0.5
    %v3911 = vmul.f32 %v3825, 0.5
    %v3912 = vmul.f32 %v3830, 0.5
    %v3913 = vmul.f32 %v3835, 0.5
    %v3914 = vmul.f32 %v3840, 0.5
    %v3915 = vmul.f32 %v3845, 0.5
    %v3916 = vmul.f32 %v3850, 0.5
    %v3917 = vmul.f32 %v3535, 0.70710677
    %v3918 = vmul.f32 %v3540, 0.70710677
    %v3919 = vmul.f32 %v3545, 0.70710677
    %v3920 = vmul.f32 %v3550, 0.70710677
    %v3921 = vmul.f32 %v3555, 0.70710677
    %v3922 = vmul.f32 %v3560, 0.70710677
    %v3923 = vmul.f32 %v3565, 0.70710677
    %v3924 = vmul.f32 %v3570, 0.70710677
    %v3925 = vmul.f32 %v3575, 0.70710677
    %v3926 = vmul.f32 %v3580, 0.70710677
    %v3927 = vmul.f32 %v3585, 0.70710677
    %v3928 = vmul.f32 %v3590, 0.70710677
    %v3929 = vmul.f32 %v3595, 0.70710677
    %v3930 = vmul.f32 %v3600, 0.70710677
    %v3931 = vmul.f32 %v3605, 0.70710677
    %v3932 = vmul.f32 %v3610, 0.70710677
    %v3933 = vmul.f32 %v3615, 0.70710677
    %v3934 = vmul.f32 %v3620, 0.70710677
    %v3935 = vmul.f32 %v3625, 0.70710677
    %v3936 = vmul.f32 %v3630, 0.70710677
    %v3937 = vmul.f32 %v3635, 0.70710677
    %v3938 = vmul.f32 %v3640, 0.70710677
    %v3939 = vmul.f32 %v3645, 0.70710677
    %v3940 = vmul.f32 %v3650, 0.70710677
    %v3941 = vmul.f32 %v3655, 0.70710677
    %v3942 = vmul.f32 %v3660, 0.70710677
    %v3943 = vmul.f32 %v3665, 0.70710677
    %v3944 = vmul.f32 %v3670, 0.70710677
    %v3945 = vmul.f32 %v3675, 0.70710677
    %v3946 = vmul.f32 %v3680, 0.70710677
    %v3947 = vmul.f32 %v3685, 0.70710677
    %v3948 = vmul.f32 %v3690, 0.70710677
    %v3949 = vmul.f32 %v3695, 0.70710677
    %v3950 = vmul.f32 %v3700, 0.70710677
    %v3951 = vmul.f32 %v3705, 0.70710677
    %v3952 = vmul.f32 %v3710, 0.70710677
    %v3953 = vmul.f32 %v3715, 0.70710677
    %v3954 = vmul.f32 %v3720, 0.70710677
    %v3955 = vmul.f32 %v3725, 0.70710677
    %v3956 = vmul.f32 %v3730, 0.70710677
    %v3957 = vmul.f32 %v3735, 0.70710677
    %v3958 = vmul.f32 %v3740, 0.70710677
    %v3959 = vmul.f32 %v3745, 0.70710677
    %v3960 = vmul.f32 %v3750, 0.70710677
    %v3961 = vmul.f32 %v3755, 0.70710677
    %v3962 = vmul.f32 %v3760, 0.70710677
    %v3963 = vmul.f32 %v3765, 0.70710677
    %v3964 = vmul.f32 %v3770, 0.70710677
    %v3965 = vmul.f32 %v3775, 0.70710677
    %v3966 = vmul.f32 %v3780, 0.70710677
    %v3967 = vmul.f32 %v3785, 0.70710677
    %v3968 = vmul.f32 %v3790, 0.70710677
    %v3969 = vmul.f32 %v3795, 0.70710677
    %v3970 = vmul.f32 %v3800, 0.70710677
    %v3971 = vmul.f32 %v3805, 0.70710677
    %v3972 = vmul.f32 %v3810, 0.70710677
    %v3973 = vmul.f32 %v3815, 0.70710677
    %v3974 = vmul.f32 %v3820, 0.70710677
    %v3975 = vmul.f32 %v3825, 0.70710677
    %v3976 = vmul.f32 %v3830, 0.70710677
    %v3977 = vmul.f32 %v3835, 0.70710677
    %v3978 = vmul.f32 %v3840, 0.70710677
    %v3979 = vmul.f32 %v3845, 0.70710677
    %v3980 = vmul.f32 %v3850, 0.70710677
    %v3981 = verf.f32.pop %v3917
    %v3982 = verf.f32.pop %v3918
    %v3983 = verf.f32.pop %v3919
    %v3984 = verf.f32.pop %v3920
    %v3985 = verf.f32.pop %v3921
    %v3986 = verf.f32.pop %v3922
    %v3987 = verf.f32.pop %v3923
    %v3988 = verf.f32.pop %v3924
    %v3989 = verf.f32.pop %v3925
    %v3990 = verf.f32.pop %v3926
    %v3991 = verf.f32.pop %v3927
    %v3992 = verf.f32.pop %v3928
    %v3993 = verf.f32.pop %v3929
    %v3994 = verf.f32.pop %v3930
    %v3995 = verf.f32.pop %v3931
    %v3996 = verf.f32.pop %v3932
    %v3997 = verf.f32.pop %v3933
    %v3998 = verf.f32.pop %v3934
    %v3999 = verf.f32.pop %v3935
    %v4000 = verf.f32.pop %v3936
    %v4001 = verf.f32.pop %v3937
    %v4002 = verf.f32.pop %v3938
    %v4003 = verf.f32.pop %v3939
    %v4004 = verf.f32.pop %v3940
    %v4005 = verf.f32.pop %v3941
    %v4006 = verf.f32.pop %v3942
    %v4007 = verf.f32.pop %v3943
    %v4008 = verf.f32.pop %v3944
    %v4009 = verf.f32.pop %v3945
    %v4010 = verf.f32.pop %v3946
    %v4011 = verf.f32.pop %v3947
    %v4012 = verf.f32.pop %v3948
    %v4013 = verf.f32.pop %v3949
    %v4014 = verf.f32.pop %v3950
    %v4015 = verf.f32.pop %v3951
    %v4016 = verf.f32.pop %v3952
    %v4017 = verf.f32.pop %v3953
    %v4018 = verf.f32.pop %v3954
    %v4019 = verf.f32.pop %v3955
    %v4020 = verf.f32.pop %v3956
    %v4021 = verf.f32.pop %v3957
    %v4022 = verf.f32.pop %v3958
    %v4023 = verf.f32.pop %v3959
    %v4024 = verf.f32.pop %v3960
    %v4025 = verf.f32.pop %v3961
    %v4026 = verf.f32.pop %v3962
    %v4027 = verf.f32.pop %v3963
    %v4028 = verf.f32.pop %v3964
    %v4029 = verf.f32.pop %v3965
    %v4030 = verf.f32.pop %v3966
    %v4031 = verf.f32.pop %v3967
    %v4032 = verf.f32.pop %v3968
    %v4033 = verf.f32.pop %v3969
    %v4034 = verf.f32.pop %v3970
    %v4035 = verf.f32.pop %v3971
    %v4036 = verf.f32.pop %v3972
    %v4037 = verf.f32.pop %v3973
    %v4038 = verf.f32.pop %v3974
    %v4039 = verf.f32.pop %v3975
    %v4040 = verf.f32.pop %v3976
    %v4041 = verf.f32.pop %v3977
    %v4042 = verf.f32.pop %v3978
    %v4043 = verf.f32.pop %v3979
    %v4044 = verf.f32.pop %v3980
    %v4045 = vadd.f32 %v3981, 1.0
    %v4046 = vadd.f32 %v3982, 1.0
    %v4047 = vadd.f32 %v3983, 1.0
    %v4048 = vadd.f32 %v3984, 1.0
    %v4049 = vadd.f32 %v3985, 1.0
    %v4050 = vadd.f32 %v3986, 1.0
    %v4051 = vadd.f32 %v3987, 1.0
    %v4052 = vadd.f32 %v3988, 1.0
    %v4053 = vadd.f32 %v3989, 1.0
    %v4054 = vadd.f32 %v3990, 1.0
    %v4055 = vadd.f32 %v3991, 1.0
    %v4056 = vadd.f32 %v3992, 1.0
    %v4057 = vadd.f32 %v3993, 1.0
    %v4058 = vadd.f32 %v3994, 1.0
    %v4059 = vadd.f32 %v3995, 1.0
    %v4060 = vadd.f32 %v3996, 1.0
    %v4061 = vadd.f32 %v3997, 1.0
    %v4062 = vadd.f32 %v3998, 1.0
    %v4063 = vadd.f32 %v3999, 1.0
    %v4064 = vadd.f32 %v4000, 1.0
    %v4065 = vadd.f32 %v4001, 1.0
    %v4066 = vadd.f32 %v4002, 1.0
    %v4067 = vadd.f32 %v4003, 1.0
    %v4068 = vadd.f32 %v4004, 1.0
    %v4069 = vadd.f32 %v4005, 1.0
    %v4070 = vadd.f32 %v4006, 1.0
    %v4071 = vadd.f32 %v4007, 1.0
    %v4072 = vadd.f32 %v4008, 1.0
    %v4073 = vadd.f32 %v4009, 1.0
    %v4074 = vadd.f32 %v4010, 1.0
    %v4075 = vadd.f32 %v4011, 1.0
    %v4076 = vadd.f32 %v4012, 1.0
    %v4077 = vadd.f32 %v4013, 1.0
    %v4078 = vadd.f32 %v4014, 1.0
    %v4079 = vadd.f32 %v4015, 1.0
    %v4080 = vadd.f32 %v4016, 1.0
    %v4081 = vadd.f32 %v4017, 1.0
    %v4082 = vadd.f32 %v4018, 1.0
    %v4083 = vadd.f32 %v4019, 1.0
    %v4084 = vadd.f32 %v4020, 1.0
    %v4085 = vadd.f32 %v4021, 1.0
    %v4086 = vadd.f32 %v4022, 1.0
    %v4087 = vadd.f32 %v4023, 1.0
    %v4088 = vadd.f32 %v4024, 1.0
    %v4089 = vadd.f32 %v4025, 1.0
    %v4090 = vadd.f32 %v4026, 1.0
    %v4091 = vadd.f32 %v4027, 1.0
    %v4092 = vadd.f32 %v4028, 1.0
    %v4093 = vadd.f32 %v4029, 1.0
    %v4094 = vadd.f32 %v4030, 1.0
    %v4095 = vadd.f32 %v4031, 1.0
    %v4096 = vadd.f32 %v4032, 1.0
    %v4097 = vadd.f32 %v4033, 1.0
    %v4098 = vadd.f32 %v4034, 1.0
    %v4099 = vadd.f32 %v4035, 1.0
    %v4100 = vadd.f32 %v4036, 1.0
    %v4101 = vadd.f32 %v4037, 1.0
    %v4102 = vadd.f32 %v4038, 1.0
    %v4103 = vadd.f32 %v4039, 1.0
    %v4104 = vadd.f32 %v4040, 1.0
    %v4105 = vadd.f32 %v4041, 1.0
    %v4106 = vadd.f32 %v4042, 1.0
    %v4107 = vadd.f32 %v4043, 1.0
    %v4108 = vadd.f32 %v4044, 1.0
    %v4109 = vmul.f32 %v3853, %v4045
    %v4110 = vmul.f32 %v3854, %v4046
    %v4111 = vmul.f32 %v3855, %v4047
    %v4112 = vmul.f32 %v3856, %v4048
    %v4113 = vmul.f32 %v3857, %v4049
    %v4114 = vmul.f32 %v3858, %v4050
    %v4115 = vmul.f32 %v3859, %v4051
    %v4116 = vmul.f32 %v3860, %v4052
    %v4117 = vmul.f32 %v3861, %v4053
    %v4118 = vmul.f32 %v3862, %v4054
    %v4119 = vmul.f32 %v3863, %v4055
    %v4120 = vmul.f32 %v3864, %v4056
    %v4121 = vmul.f32 %v3865, %v4057
    %v4122 = vmul.f32 %v3866, %v4058
    %v4123 = vmul.f32 %v3867, %v4059
    %v4124 = vmul.f32 %v3868, %v4060
    %v4125 = vmul.f32 %v3869, %v4061
    %v4126 = vmul.f32 %v3870, %v4062
    %v4127 = vmul.f32 %v3871, %v4063
    %v4128 = vmul.f32 %v3872, %v4064
    %v4129 = vmul.f32 %v3873, %v4065
    %v4130 = vmul.f32 %v3874, %v4066
    %v4131 = vmul.f32 %v3875, %v4067
    %v4132 = vmul.f32 %v3876, %v4068
    %v4133 = vmul.f32 %v3877, %v4069
    %v4134 = vmul.f32 %v3878, %v4070
    %v4135 = vmul.f32 %v3879, %v4071
    %v4136 = vmul.f32 %v3880, %v4072
    %v4137 = vmul.f32 %v3881, %v4073
    %v4138 = vmul.f32 %v3882, %v4074
    %v4139 = vmul.f32 %v3883, %v4075
    %v4140 = vmul.f32 %v3884, %v4076
    %v4141 = vmul.f32 %v3885, %v4077
    %v4142 = vmul.f32 %v3886, %v4078
    %v4143 = vmul.f32 %v3887, %v4079
    %v4144 = vmul.f32 %v3888, %v4080
    %v4145 = vmul.f32 %v3889, %v4081
    %v4146 = vmul.f32 %v3890, %v4082
    %v4147 = vmul.f32 %v3891, %v4083
    %v4148 = vmul.f32 %v3892, %v4084
    %v4149 = vmul.f32 %v3893, %v4085
    %v4150 = vmul.f32 %v3894, %v4086
    %v4151 = vmul.f32 %v3895, %v4087
    %v4152 = vmul.f32 %v3896, %v4088
    %v4153 = vmul.f32 %v3897, %v4089
    %v4154 = vmul.f32 %v3898, %v4090
    %v4155 = vmul.f32 %v3899, %v4091
    %v4156 = vmul.f32 %v3900, %v4092
    %v4157 = vmul.f32 %v3901, %v4093
    %v4158 = vmul.f32 %v3902, %v4094
    %v4159 = vmul.f32 %v3903, %v4095
    %v4160 = vmul.f32 %v3904, %v4096
    %v4161 = vmul.f32 %v3905, %v4097
    %v4162 = vmul.f32 %v3906, %v4098
    %v4163 = vmul.f32 %v3907, %v4099
    %v4164 = vmul.f32 %v3908, %v4100
    %v4165 = vmul.f32 %v3909, %v4101
    %v4166 = vmul.f32 %v3910, %v4102
    %v4167 = vmul.f32 %v3911, %v4103
    %v4168 = vmul.f32 %v3912, %v4104
    %v4169 = vmul.f32 %v3913, %v4105
    %v4170 = vmul.f32 %v3914, %v4106
    %v4171 = vmul.f32 %v3915, %v4107
    %v4172 = vmul.f32 %v3916, %v4108
    %v4173 = vadd.f32 %v664, %v4109
    %v4174 = vadd.f32 %v669, %v4110
    %v4175 = vadd.f32 %v674, %v4111
    %v4176 = vadd.f32 %v679, %v4112
    %v4177 = vadd.f32 %v684, %v4113
    %v4178 = vadd.f32 %v689, %v4114
    %v4179 = vadd.f32 %v694, %v4115
    %v4180 = vadd.f32 %v699, %v4116
    %v4181 = vadd.f32 %v704, %v4117
    %v4182 = vadd.f32 %v709, %v4118
    %v4183 = vadd.f32 %v714, %v4119
    %v4184 = vadd.f32 %v719, %v4120
    %v4185 = vadd.f32 %v724, %v4121
    %v4186 = vadd.f32 %v729, %v4122
    %v4187 = vadd.f32 %v734, %v4123
    %v4188 = vadd.f32 %v739, %v4124
    %v4189 = vadd.f32 %v744, %v4125
    %v4190 = vadd.f32 %v749, %v4126
    %v4191 = vadd.f32 %v754, %v4127
    %v4192 = vadd.f32 %v759, %v4128
    %v4193 = vadd.f32 %v764, %v4129
    %v4194 = vadd.f32 %v769, %v4130
    %v4195 = vadd.f32 %v774, %v4131
    %v4196 = vadd.f32 %v779, %v4132
    %v4197 = vadd.f32 %v784, %v4133
    %v4198 = vadd.f32 %v789, %v4134
    %v4199 = vadd.f32 %v794, %v4135
    %v4200 = vadd.f32 %v799, %v4136
    %v4201 = vadd.f32 %v804, %v4137
    %v4202 = vadd.f32 %v809, %v4138
    %v4203 = vadd.f32 %v814, %v4139
    %v4204 = vadd.f32 %v819, %v4140
    %v4205 = vadd.f32 %v824, %v4141
    %v4206 = vadd.f32 %v829, %v4142
    %v4207 = vadd.f32 %v834, %v4143
    %v4208 = vadd.f32 %v839, %v4144
    %v4209 = vadd.f32 %v844, %v4145
    %v4210 = vadd.f32 %v849, %v4146
    %v4211 = vadd.f32 %v854, %v4147
    %v4212 = vadd.f32 %v859, %v4148
    %v4213 = vadd.f32 %v864, %v4149
    %v4214 = vadd.f32 %v869, %v4150
    %v4215 = vadd.f32 %v874, %v4151
    %v4216 = vadd.f32 %v879, %v4152
    %v4217 = vadd.f32 %v884, %v4153
    %v4218 = vadd.f32 %v889, %v4154
    %v4219 = vadd.f32 %v894, %v4155
    %v4220 = vadd.f32 %v899, %v4156
    %v4221 = vadd.f32 %v904, %v4157
    %v4222 = vadd.f32 %v909, %v4158
    %v4223 = vadd.f32 %v914, %v4159
    %v4224 = vadd.f32 %v919, %v4160
    %v4225 = vadd.f32 %v924, %v4161
    %v4226 = vadd.f32 %v929, %v4162
    %v4227 = vadd.f32 %v934, %v4163
    %v4228 = vadd.f32 %v939, %v4164
    %v4229 = vadd.f32 %v944, %v4165
    %v4230 = vadd.f32 %v949, %v4166
    %v4231 = vadd.f32 %v954, %v4167
    %v4232 = vadd.f32 %v959, %v4168
    %v4233 = vadd.f32 %v964, %v4169
    %v4234 = vadd.f32 %v969, %v4170
    %v4235 = vadd.f32 %v974, %v4171
    %v4236 = vadd.f32 %v979, %v4172
    %s4237 = scalar_lea.vmem [#allocation9], 2048
    %v4238 = vld [vmem:[%s4237] sm:$0xff]
    %v4239 = vld [vmem:[%s4237 + $0x8] sm:$0xff]
    %v4240 = vld [vmem:[%s4237 + $0x10] sm:$0xff]
    %v4241 = vld [vmem:[%s4237 + $0x18] sm:$0xff]
    %v4242 = vld [vmem:[%s4237 + $0x20] sm:$0xff]
    %v4243 = vld [vmem:[%s4237 + $0x28] sm:$0xff]
    %v4244 = vld [vmem:[%s4237 + $0x30] sm:$0xff]
    %v4245 = vld [vmem:[%s4237 + $0x38] sm:$0xff]
    %v4246 = vld [vmem:[%s4237 + $0x40] sm:$0xff]
    %v4247 = vld [vmem:[%s4237 + $0x48] sm:$0xff]
    %v4248 = vld [vmem:[%s4237 + $0x50] sm:$0xff]
    %v4249 = vld [vmem:[%s4237 + $0x58] sm:$0xff]
    %v4250 = vld [vmem:[%s4237 + $0x60] sm:$0xff]
    %v4251 = vld [vmem:[%s4237 + $0x68] sm:$0xff]
    %v4252 = vld [vmem:[%s4237 + $0x70] sm:$0xff]
    %v4253 = vld [vmem:[%s4237 + $0x78] sm:$0xff]
    %v4254 = vld [vmem:[%s4237 + $0x80] sm:$0xff]
    %v4255 = vld [vmem:[%s4237 + $0x88] sm:$0xff]
    %v4256 = vld [vmem:[%s4237 + $0x90] sm:$0xff]
    %v4257 = vld [vmem:[%s4237 + $0x98] sm:$0xff]
    %v4258 = vld [vmem:[%s4237 + $0xa0] sm:$0xff]
    %v4259 = vld [vmem:[%s4237 + $0xa8] sm:$0xff]
    %v4260 = vld [vmem:[%s4237 + $0xb0] sm:$0xff]
    %v4261 = vld [vmem:[%s4237 + $0xb8] sm:$0xff]
    %v4262 = vld [vmem:[%s4237 + $0xc0] sm:$0xff]
    %v4263 = vld [vmem:[%s4237 + $0xc8] sm:$0xff]
    %v4264 = vld [vmem:[%s4237 + $0xd0] sm:$0xff]
    %v4265 = vld [vmem:[%s4237 + $0xd8] sm:$0xff]
    %v4266 = vld [vmem:[%s4237 + $0xe0] sm:$0xff]
    %v4267 = vld [vmem:[%s4237 + $0xe8] sm:$0xff]
    %v4268 = vld [vmem:[%s4237 + $0xf0] sm:$0xff]
    %v4269 = vld [vmem:[%s4237 + $0xf8] sm:$0xff]
    %v4270 = vld [vmem:[%s4237 + $0x100] sm:$0xff]
    %v4271 = vld [vmem:[%s4237 + $0x108] sm:$0xff]
    %v4272 = vld [vmem:[%s4237 + $0x110] sm:$0xff]
    %v4273 = vld [vmem:[%s4237 + $0x118] sm:$0xff]
    %v4274 = vld [vmem:[%s4237 + $0x120] sm:$0xff]
    %v4275 = vld [vmem:[%s4237 + $0x128] sm:$0xff]
    %v4276 = vld [vmem:[%s4237 + $0x130] sm:$0xff]
    %v4277 = vld [vmem:[%s4237 + $0x138] sm:$0xff]
    %v4278 = vld [vmem:[%s4237 + $0x140] sm:$0xff]
    %v4279 = vld [vmem:[%s4237 + $0x148] sm:$0xff]
    %v4280 = vld [vmem:[%s4237 + $0x150] sm:$0xff]
    %v4281 = vld [vmem:[%s4237 + $0x158] sm:$0xff]
    %v4282 = vld [vmem:[%s4237 + $0x160] sm:$0xff]
    %v4283 = vld [vmem:[%s4237 + $0x168] sm:$0xff]
    %v4284 = vld [vmem:[%s4237 + $0x170] sm:$0xff]
    %v4285 = vld [vmem:[%s4237 + $0x178] sm:$0xff]
    %v4286 = vld [vmem:[%s4237 + $0x180] sm:$0xff]
    %v4287 = vld [vmem:[%s4237 + $0x188] sm:$0xff]
    %v4288 = vld [vmem:[%s4237 + $0x190] sm:$0xff]
    %v4289 = vld [vmem:[%s4237 + $0x198] sm:$0xff]
    %v4290 = vld [vmem:[%s4237 + $0x1a0] sm:$0xff]
    %v4291 = vld [vmem:[%s4237 + $0x1a8] sm:$0xff]
    %v4292 = vld [vmem:[%s4237 + $0x1b0] sm:$0xff]
    %v4293 = vld [vmem:[%s4237 + $0x1b8] sm:$0xff]
    %v4294 = vld [vmem:[%s4237 + $0x1c0] sm:$0xff]
    %v4295 = vld [vmem:[%s4237 + $0x1c8] sm:$0xff]
    %v4296 = vld [vmem:[%s4237 + $0x1d0] sm:$0xff]
    %v4297 = vld [vmem:[%s4237 + $0x1d8] sm:$0xff]
    %v4298 = vld [vmem:[%s4237 + $0x1e0] sm:$0xff]
    %v4299 = vld [vmem:[%s4237 + $0x1e8] sm:$0xff]
    %v4300 = vld [vmem:[%s4237 + $0x1f0] sm:$0xff]
    %v4301 = vld [vmem:[%s4237 + $0x1f8] sm:$0xff]
    %v4302 = vld [vmem:[%s4237 + $0x200] sm:$0xff]
    %v4303 = vld [vmem:[%s4237 + $0x208] sm:$0xff]
    %v4304 = vld [vmem:[%s4237 + $0x210] sm:$0xff]
    %v4305 = vld [vmem:[%s4237 + $0x218] sm:$0xff]
    %v4306 = vld [vmem:[%s4237 + $0x220] sm:$0xff]
    %v4307 = vld [vmem:[%s4237 + $0x228] sm:$0xff]
    %v4308 = vld [vmem:[%s4237 + $0x230] sm:$0xff]
    %v4309 = vld [vmem:[%s4237 + $0x238] sm:$0xff]
    %v4310 = vld [vmem:[%s4237 + $0x240] sm:$0xff]
    %v4311 = vld [vmem:[%s4237 + $0x248] sm:$0xff]
    %v4312 = vld [vmem:[%s4237 + $0x250] sm:$0xff]
    %v4313 = vld [vmem:[%s4237 + $0x258] sm:$0xff]
    %v4314 = vld [vmem:[%s4237 + $0x260] sm:$0xff]
    %v4315 = vld [vmem:[%s4237 + $0x268] sm:$0xff]
    %v4316 = vld [vmem:[%s4237 + $0x270] sm:$0xff]
    %v4317 = vld [vmem:[%s4237 + $0x278] sm:$0xff]
    %v4318 = vld [vmem:[%s4237 + $0x280] sm:$0xff]
    %v4319 = vld [vmem:[%s4237 + $0x288] sm:$0xff]
    %v4320 = vld [vmem:[%s4237 + $0x290] sm:$0xff]
    %v4321 = vld [vmem:[%s4237 + $0x298] sm:$0xff]
    %v4322 = vld [vmem:[%s4237 + $0x2a0] sm:$0xff]
    %v4323 = vld [vmem:[%s4237 + $0x2a8] sm:$0xff]
    %v4324 = vld [vmem:[%s4237 + $0x2b0] sm:$0xff]
    %v4325 = vld [vmem:[%s4237 + $0x2b8] sm:$0xff]
    %v4326 = vld [vmem:[%s4237 + $0x2c0] sm:$0xff]
    %v4327 = vld [vmem:[%s4237 + $0x2c8] sm:$0xff]
    %v4328 = vld [vmem:[%s4237 + $0x2d0] sm:$0xff]
    %v4329 = vld [vmem:[%s4237 + $0x2d8] sm:$0xff]
    %v4330 = vld [vmem:[%s4237 + $0x2e0] sm:$0xff]
    %v4331 = vld [vmem:[%s4237 + $0x2e8] sm:$0xff]
    %v4332 = vld [vmem:[%s4237 + $0x2f0] sm:$0xff]
    %v4333 = vld [vmem:[%s4237 + $0x2f8] sm:$0xff]
    %v4334 = vld [vmem:[%s4237 + $0x300] sm:$0xff]
    %v4335 = vld [vmem:[%s4237 + $0x308] sm:$0xff]
    %v4336 = vld [vmem:[%s4237 + $0x310] sm:$0xff]
    %v4337 = vld [vmem:[%s4237 + $0x318] sm:$0xff]
    %v4338 = vld [vmem:[%s4237 + $0x320] sm:$0xff]
    %v4339 = vld [vmem:[%s4237 + $0x328] sm:$0xff]
    %v4340 = vld [vmem:[%s4237 + $0x330] sm:$0xff]
    %v4341 = vld [vmem:[%s4237 + $0x338] sm:$0xff]
    %v4342 = vld [vmem:[%s4237 + $0x340] sm:$0xff]
    %v4343 = vld [vmem:[%s4237 + $0x348] sm:$0xff]
    %v4344 = vld [vmem:[%s4237 + $0x350] sm:$0xff]
    %v4345 = vld [vmem:[%s4237 + $0x358] sm:$0xff]
    %v4346 = vld [vmem:[%s4237 + $0x360] sm:$0xff]
    %v4347 = vld [vmem:[%s4237 + $0x368] sm:$0xff]
    %v4348 = vld [vmem:[%s4237 + $0x370] sm:$0xff]
    %v4349 = vld [vmem:[%s4237 + $0x378] sm:$0xff]
    %v4350 = vld [vmem:[%s4237 + $0x380] sm:$0xff]
    %v4351 = vld [vmem:[%s4237 + $0x388] sm:$0xff]
    %v4352 = vld [vmem:[%s4237 + $0x390] sm:$0xff]
    %v4353 = vld [vmem:[%s4237 + $0x398] sm:$0xff]
    %v4354 = vld [vmem:[%s4237 + $0x3a0] sm:$0xff]
    %v4355 = vld [vmem:[%s4237 + $0x3a8] sm:$0xff]
    %v4356 = vld [vmem:[%s4237 + $0x3b0] sm:$0xff]
    %v4357 = vld [vmem:[%s4237 + $0x3b8] sm:$0xff]
    %v4358 = vld [vmem:[%s4237 + $0x3c0] sm:$0xff]
    %v4359 = vld [vmem:[%s4237 + $0x3c8] sm:$0xff]
    %v4360 = vld [vmem:[%s4237 + $0x3d0] sm:$0xff]
    %v4361 = vld [vmem:[%s4237 + $0x3d8] sm:$0xff]
    %v4362 = vld [vmem:[%s4237 + $0x3e0] sm:$0xff]
    %v4363 = vld [vmem:[%s4237 + $0x3e8] sm:$0xff]
    %v4364 = vld [vmem:[%s4237 + $0x3f0] sm:$0xff]
    %v4365 = vld [vmem:[%s4237 + $0x3f8] sm:$0xff]
    %v4366 = vld [vmem:[%s4237 + $0x400] sm:$0xff]
    %v4367 = vld [vmem:[%s4237 + $0x408] sm:$0xff]
    %v4368 = vld [vmem:[%s4237 + $0x410] sm:$0xff]
    %v4369 = vld [vmem:[%s4237 + $0x418] sm:$0xff]
    %v4370 = vld [vmem:[%s4237 + $0x420] sm:$0xff]
    %v4371 = vld [vmem:[%s4237 + $0x428] sm:$0xff]
    %v4372 = vld [vmem:[%s4237 + $0x430] sm:$0xff]
    %v4373 = vld [vmem:[%s4237 + $0x438] sm:$0xff]
    %v4374 = vld [vmem:[%s4237 + $0x440] sm:$0xff]
    %v4375 = vld [vmem:[%s4237 + $0x448] sm:$0xff]
    %v4376 = vld [vmem:[%s4237 + $0x450] sm:$0xff]
    %v4377 = vld [vmem:[%s4237 + $0x458] sm:$0xff]
    %v4378 = vld [vmem:[%s4237 + $0x460] sm:$0xff]
    %v4379 = vld [vmem:[%s4237 + $0x468] sm:$0xff]
    %v4380 = vld [vmem:[%s4237 + $0x470] sm:$0xff]
    %v4381 = vld [vmem:[%s4237 + $0x478] sm:$0xff]
    %v4382 = vld [vmem:[%s4237 + $0x480] sm:$0xff]
    %v4383 = vld [vmem:[%s4237 + $0x488] sm:$0xff]
    %v4384 = vld [vmem:[%s4237 + $0x490] sm:$0xff]
    %v4385 = vld [vmem:[%s4237 + $0x498] sm:$0xff]
    %v4386 = vld [vmem:[%s4237 + $0x4a0] sm:$0xff]
    %v4387 = vld [vmem:[%s4237 + $0x4a8] sm:$0xff]
    %v4388 = vld [vmem:[%s4237 + $0x4b0] sm:$0xff]
    %v4389 = vld [vmem:[%s4237 + $0x4b8] sm:$0xff]
    %v4390 = vld [vmem:[%s4237 + $0x4c0] sm:$0xff]
    %v4391 = vld [vmem:[%s4237 + $0x4c8] sm:$0xff]
    %v4392 = vld [vmem:[%s4237 + $0x4d0] sm:$0xff]
    %v4393 = vld [vmem:[%s4237 + $0x4d8] sm:$0xff]
    %v4394 = vld [vmem:[%s4237 + $0x4e0] sm:$0xff]
    %v4395 = vld [vmem:[%s4237 + $0x4e8] sm:$0xff]
    %v4396 = vld [vmem:[%s4237 + $0x4f0] sm:$0xff]
    %v4397 = vld [vmem:[%s4237 + $0x4f8] sm:$0xff]
    %v4398 = vld [vmem:[%s4237 + $0x500] sm:$0xff]
    %v4399 = vld [vmem:[%s4237 + $0x508] sm:$0xff]
    %v4400 = vld [vmem:[%s4237 + $0x510] sm:$0xff]
    %v4401 = vld [vmem:[%s4237 + $0x518] sm:$0xff]
    %v4402 = vld [vmem:[%s4237 + $0x520] sm:$0xff]
    %v4403 = vld [vmem:[%s4237 + $0x528] sm:$0xff]
    %v4404 = vld [vmem:[%s4237 + $0x530] sm:$0xff]
    %v4405 = vld [vmem:[%s4237 + $0x538] sm:$0xff]
    %v4406 = vld [vmem:[%s4237 + $0x540] sm:$0xff]
    %v4407 = vld [vmem:[%s4237 + $0x548] sm:$0xff]
    %v4408 = vld [vmem:[%s4237 + $0x550] sm:$0xff]
    %v4409 = vld [vmem:[%s4237 + $0x558] sm:$0xff]
    %v4410 = vld [vmem:[%s4237 + $0x560] sm:$0xff]
    %v4411 = vld [vmem:[%s4237 + $0x568] sm:$0xff]
    %v4412 = vld [vmem:[%s4237 + $0x570] sm:$0xff]
    %v4413 = vld [vmem:[%s4237 + $0x578] sm:$0xff]
    %v4414 = vld [vmem:[%s4237 + $0x580] sm:$0xff]
    %v4415 = vld [vmem:[%s4237 + $0x588] sm:$0xff]
    %v4416 = vld [vmem:[%s4237 + $0x590] sm:$0xff]
    %v4417 = vld [vmem:[%s4237 + $0x598] sm:$0xff]
    %v4418 = vld [vmem:[%s4237 + $0x5a0] sm:$0xff]
    %v4419 = vld [vmem:[%s4237 + $0x5a8] sm:$0xff]
    %v4420 = vld [vmem:[%s4237 + $0x5b0] sm:$0xff]
    %v4421 = vld [vmem:[%s4237 + $0x5b8] sm:$0xff]
    %v4422 = vld [vmem:[%s4237 + $0x5c0] sm:$0xff]
    %v4423 = vld [vmem:[%s4237 + $0x5c8] sm:$0xff]
    %v4424 = vld [vmem:[%s4237 + $0x5d0] sm:$0xff]
    %v4425 = vld [vmem:[%s4237 + $0x5d8] sm:$0xff]
    %v4426 = vld [vmem:[%s4237 + $0x5e0] sm:$0xff]
    %v4427 = vld [vmem:[%s4237 + $0x5e8] sm:$0xff]
    %v4428 = vld [vmem:[%s4237 + $0x5f0] sm:$0xff]
    %v4429 = vld [vmem:[%s4237 + $0x5f8] sm:$0xff]
    %v4430 = vld [vmem:[%s4237 + $0x600] sm:$0xff]
    %v4431 = vld [vmem:[%s4237 + $0x608] sm:$0xff]
    %v4432 = vld [vmem:[%s4237 + $0x610] sm:$0xff]
    %v4433 = vld [vmem:[%s4237 + $0x618] sm:$0xff]
    %v4434 = vld [vmem:[%s4237 + $0x620] sm:$0xff]
    %v4435 = vld [vmem:[%s4237 + $0x628] sm:$0xff]
    %v4436 = vld [vmem:[%s4237 + $0x630] sm:$0xff]
    %v4437 = vld [vmem:[%s4237 + $0x638] sm:$0xff]
    %v4438 = vld [vmem:[%s4237 + $0x640] sm:$0xff]
    %v4439 = vld [vmem:[%s4237 + $0x648] sm:$0xff]
    %v4440 = vld [vmem:[%s4237 + $0x650] sm:$0xff]
    %v4441 = vld [vmem:[%s4237 + $0x658] sm:$0xff]
    %v4442 = vld [vmem:[%s4237 + $0x660] sm:$0xff]
    %v4443 = vld [vmem:[%s4237 + $0x668] sm:$0xff]
    %v4444 = vld [vmem:[%s4237 + $0x670] sm:$0xff]
    %v4445 = vld [vmem:[%s4237 + $0x678] sm:$0xff]
    %v4446 = vld [vmem:[%s4237 + $0x680] sm:$0xff]
    %v4447 = vld [vmem:[%s4237 + $0x688] sm:$0xff]
    %v4448 = vld [vmem:[%s4237 + $0x690] sm:$0xff]
    %v4449 = vld [vmem:[%s4237 + $0x698] sm:$0xff]
    %v4450 = vld [vmem:[%s4237 + $0x6a0] sm:$0xff]
    %v4451 = vld [vmem:[%s4237 + $0x6a8] sm:$0xff]
    %v4452 = vld [vmem:[%s4237 + $0x6b0] sm:$0xff]
    %v4453 = vld [vmem:[%s4237 + $0x6b8] sm:$0xff]
    %v4454 = vld [vmem:[%s4237 + $0x6c0] sm:$0xff]
    %v4455 = vld [vmem:[%s4237 + $0x6c8] sm:$0xff]
    %v4456 = vld [vmem:[%s4237 + $0x6d0] sm:$0xff]
    %v4457 = vld [vmem:[%s4237 + $0x6d8] sm:$0xff]
    %v4458 = vld [vmem:[%s4237 + $0x6e0] sm:$0xff]
    %v4459 = vld [vmem:[%s4237 + $0x6e8] sm:$0xff]
    %v4460 = vld [vmem:[%s4237 + $0x6f0] sm:$0xff]
    %v4461 = vld [vmem:[%s4237 + $0x6f8] sm:$0xff]
    %v4462 = vld [vmem:[%s4237 + $0x700] sm:$0xff]
    %v4463 = vld [vmem:[%s4237 + $0x708] sm:$0xff]
    %v4464 = vld [vmem:[%s4237 + $0x710] sm:$0xff]
    %v4465 = vld [vmem:[%s4237 + $0x718] sm:$0xff]
    %v4466 = vld [vmem:[%s4237 + $0x720] sm:$0xff]
    %v4467 = vld [vmem:[%s4237 + $0x728] sm:$0xff]
    %v4468 = vld [vmem:[%s4237 + $0x730] sm:$0xff]
    %v4469 = vld [vmem:[%s4237 + $0x738] sm:$0xff]
    %v4470 = vld [vmem:[%s4237 + $0x740] sm:$0xff]
    %v4471 = vld [vmem:[%s4237 + $0x748] sm:$0xff]
    %v4472 = vld [vmem:[%s4237 + $0x750] sm:$0xff]
    %v4473 = vld [vmem:[%s4237 + $0x758] sm:$0xff]
    %v4474 = vld [vmem:[%s4237 + $0x760] sm:$0xff]
    %v4475 = vld [vmem:[%s4237 + $0x768] sm:$0xff]
    %v4476 = vld [vmem:[%s4237 + $0x770] sm:$0xff]
    %v4477 = vld [vmem:[%s4237 + $0x778] sm:$0xff]
    %v4478 = vld [vmem:[%s4237 + $0x780] sm:$0xff]
    %v4479 = vld [vmem:[%s4237 + $0x788] sm:$0xff]
    %v4480 = vld [vmem:[%s4237 + $0x790] sm:$0xff]
    %v4481 = vld [vmem:[%s4237 + $0x798] sm:$0xff]
    %v4482 = vld [vmem:[%s4237 + $0x7a0] sm:$0xff]
    %v4483 = vld [vmem:[%s4237 + $0x7a8] sm:$0xff]
    %v4484 = vld [vmem:[%s4237 + $0x7b0] sm:$0xff]
    %v4485 = vld [vmem:[%s4237 + $0x7b8] sm:$0xff]
    %v4486 = vld [vmem:[%s4237 + $0x7c0] sm:$0xff]
    %v4487 = vld [vmem:[%s4237 + $0x7c8] sm:$0xff]
    %v4488 = vld [vmem:[%s4237 + $0x7d0] sm:$0xff]
    %v4489 = vld [vmem:[%s4237 + $0x7d8] sm:$0xff]
    %v4490 = vld [vmem:[%s4237 + $0x7e0] sm:$0xff]
    %v4491 = vld [vmem:[%s4237 + $0x7e8] sm:$0xff]
    %v4492 = vld [vmem:[%s4237 + $0x7f0] sm:$0xff]
    %v4493 = vld [vmem:[%s4237 + $0x7f8] sm:$0xff]
    %s4494 = scalar_lea.vmem [#allocation10], 32
    %v4495 = vld [vmem:[%s4494] sm:$0xff]
    %v4496 = vld [vmem:[%s4494 + $0x8] sm:$0xff]
    %v4497 = vld [vmem:[%s4494 + $0x10] sm:$0xff]
    %v4498 = vld [vmem:[%s4494 + $0x18] sm:$0xff]
    %s4499 = scalar_lea.vmem [#allocation12], 1
    %v4500 = vld [vmem:[%s4499] sm:$0x1]
    %v4502 = vlaneseq
    %v4503 = vshrl.u32 %v4502, 7
    %v4504 = vsub.s32 0, %v4503
    %v4505 = vrot.slane %v4500, %v4504
    %v4508 = vsel %vm1249, %v4173, 0
    %v4511 = vsel %vm1249, %v4174, 0
    %v4514 = vsel %vm1249, %v4175, 0
    %v4517 = vsel %vm1249, %v4176, 0
    %v4520 = vsel %vm1249, %v4177, 0
    %v4523 = vsel %vm1249, %v4178, 0
    %v4526 = vsel %vm1249, %v4179, 0
    %v4529 = vsel %vm1249, %v4180, 0
    %v4532 = vsel %vm1249, %v4181, 0
    %v4535 = vsel %vm1249, %v4182, 0
    %v4538 = vsel %vm1249, %v4183, 0
    %v4541 = vsel %vm1249, %v4184, 0
    %v4544 = vsel %vm1249, %v4185, 0
    %v4547 = vsel %vm1249, %v4186, 0
    %v4550 = vsel %vm1249, %v4187, 0
    %v4553 = vsel %vm1249, %v4188, 0
    %v4556 = vsel %vm1249, %v4189, 0
    %v4559 = vsel %vm1249, %v4190, 0
    %v4562 = vsel %vm1249, %v4191, 0
    %v4565 = vsel %vm1249, %v4192, 0
    %v4568 = vsel %vm1249, %v4193, 0
    %v4571 = vsel %vm1249, %v4194, 0
    %v4574 = vsel %vm1249, %v4195, 0
    %v4577 = vsel %vm1249, %v4196, 0
    %v4580 = vsel %vm1249, %v4197, 0
    %v4583 = vsel %vm1249, %v4198, 0
    %v4586 = vsel %vm1249, %v4199, 0
    %v4589 = vsel %vm1249, %v4200, 0
    %v4592 = vsel %vm1249, %v4201, 0
    %v4595 = vsel %vm1249, %v4202, 0
    %v4598 = vsel %vm1249, %v4203, 0
    %v4601 = vsel %vm1249, %v4204, 0
    %v4604 = vsel %vm1249, %v4205, 0
    %v4607 = vsel %vm1249, %v4206, 0
    %v4610 = vsel %vm1249, %v4207, 0
    %v4613 = vsel %vm1249, %v4208, 0
    %v4616 = vsel %vm1249, %v4209, 0
    %v4619 = vsel %vm1249, %v4210, 0
    %v4622 = vsel %vm1249, %v4211, 0
    %v4625 = vsel %vm1249, %v4212, 0
    %v4628 = vsel %vm1249, %v4213, 0
    %v4631 = vsel %vm1249, %v4214, 0
    %v4634 = vsel %vm1249, %v4215, 0
    %v4637 = vsel %vm1249, %v4216, 0
    %v4640 = vsel %vm1249, %v4217, 0
    %v4643 = vsel %vm1249, %v4218, 0
    %v4646 = vsel %vm1249, %v4219, 0
    %v4649 = vsel %vm1249, %v4220, 0
    %v4652 = vsel %vm1249, %v4221, 0
    %v4655 = vsel %vm1249, %v4222, 0
    %v4658 = vsel %vm1249, %v4223, 0
    %v4661 = vsel %vm1249, %v4224, 0
    %v4664 = vsel %vm1249, %v4225, 0
    %v4667 = vsel %vm1249, %v4226, 0
    %v4670 = vsel %vm1249, %v4227, 0
    %v4673 = vsel %vm1249, %v4228, 0
    %v4676 = vsel %vm1249, %v4229, 0
    %v4679 = vsel %vm1249, %v4230, 0
    %v4682 = vsel %vm1249, %v4231, 0
    %v4685 = vsel %vm1249, %v4232, 0
    %v4688 = vsel %vm1249, %v4233, 0
    %v4691 = vsel %vm1249, %v4234, 0
    %v4694 = vsel %vm1249, %v4235, 0
    %v4697 = vsel %vm1249, %v4236, 0
    %4699 = vmatprep.subr.mxu0 0.0
    %4700 = vmatpush1.msra.mxu0 %v4495
    %4701 = vmatprep.subr.mxu0 0.0
    %4702 = vmatpush1.msra.mxu0 %v4496
    %4703 = vmatprep.subr.mxu0 0.0
    %4704 = vmatpush1.msra.mxu0 %v4497
    %4705 = vmatprep.subr.mxu0 0.0
    %4706 = vmatpush1.msra.mxu0 %v4498
    %4707 = vmatprep.subr.mxu0 0.0
    %4708 = vmatpush1.msra.mxu0 0.0
    %4709 = vmatprep.subr.mxu0 0.0
    %4710 = vmatpush1.msra.mxu0 0.0
    %4711 = vmatprep.subr.mxu0 0.0
    %4712 = vmatpush1.msra.mxu0 0.0
    %4713 = vmatprep.subr.mxu0 0.0
    %4714 = vmatpush1.msra.mxu0 0.0
    %4715 = vmatprep.subr.mxu0 0.0
    %4716 = vmatpush1.msra.mxu0 0.0
    %4717 = vmatprep.subr.mxu0 0.0
    %4718 = vmatpush1.msra.mxu0 0.0
    %4719 = vmatprep.subr.mxu0 0.0
    %4720 = vmatpush1.msra.mxu0 0.0
    %4721 = vmatprep.subr.mxu0 0.0
    %4722 = vmatpush1.msra.mxu0 0.0
    %4723 = vmatprep.subr.mxu0 0.0
    %4724 = vmatpush1.msra.mxu0 0.0
    %4725 = vmatprep.subr.mxu0 0.0
    %4726 = vmatpush1.msra.mxu0 0.0
    %4727 = vmatprep.subr.mxu0 0.0
    %4728 = vmatpush1.msra.mxu0 0.0
    %4729 = vmatprep.subr.mxu0 0.0
    %4730 = vmatpush1.msra.mxu0 0.0
    %4731 = vmatprep.subr.mxu0 0.0
    %4732 = vmatpush1.msra.mxu0 0.0
    %4733 = vmatprep.subr.mxu0 0.0
    %4734 = vmatpush1.msra.mxu0 0.0
    %4735 = vmatprep.subr.mxu0 0.0
    %4736 = vmatpush1.msra.mxu0 0.0
    %4737 = vmatprep.subr.mxu0 0.0
    %4738 = vmatpush1.msra.mxu0 0.0
    %4739 = vmatprep.subr.mxu0 0.0
    %4740 = vmatpush1.msra.mxu0 0.0
    %4741 = vmatprep.subr.mxu0 0.0
    %4742 = vmatpush1.msra.mxu0 0.0
    %4743 = vmatprep.subr.mxu0 0.0
    %4744 = vmatpush1.msra.mxu0 0.0
    %4745 = vmatprep.subr.mxu0 0.0
    %4746 = vmatpush1.msra.mxu0 0.0
    %4747 = vmatprep.subr.mxu0 0.0
    %4748 = vmatpush1.msra.mxu0 0.0
    %4749 = vmatprep.subr.mxu0 0.0
    %4750 = vmatpush1.msra.mxu0 0.0
    %4751 = vmatprep.subr.mxu0 0.0
    %4752 = vmatpush1.msra.mxu0 0.0
    %4753 = vmatprep.subr.mxu0 0.0
    %4754 = vmatpush1.msra.mxu0 0.0
    %4755 = vmatprep.subr.mxu0 0.0
    %4756 = vmatpush1.msra.mxu0 0.0
    %4757 = vmatprep.subr.mxu0 0.0
    %4758 = vmatpush1.msra.mxu0 0.0
    %4759 = vmatprep.subr.mxu0 0.0
    %4760 = vmatpush1.msra.mxu0 0.0
    %4761 = vmatprep.subr.mxu0 0.0
    %4762 = vmatpush1.msra.mxu0 0.0
    %4763 = vmatprep.mubr.f32.mxu0 0.0
    %4764 = vmatmul.mubr.f32.gmra.mrb[0].mxu0 %v4508
    %v4765 = vpop.f32.mrb[0].mxu0
    %v4766 = vadd.f32 %v4505, %v4765
    %v4767 = vpop.f32.mrb[0].mxu0
    %4768 = vmatprep.mubr.f32.mxu0 0.0
    %4769 = vmatmul.mubr.f32.gmra.mrb[0].mxu0 %v4511
    %v4770 = vpop.f32.mrb[0].mxu0
    %v4771 = vadd.f32 %v4505, %v4770
    %v4772 = vpop.f32.mrb[0].mxu0
    %4773 = vmatprep.mubr.f32.mxu0 0.0
    %4774 = vmatmul.mubr.f32.gmra.mrb[0].mxu0 %v4514
    %v4775 = vpop.f32.mrb[0].mxu0
    %v4776 = vadd.f32 %v4505, %v4775
    %v4777 = vpop.f32.mrb[0].mxu0
    %4778 = vmatprep.mubr.f32.mxu0 0.0
    %4779 = vmatmul.mubr.f32.gmra.mrb[0].mxu0 %v4517
    %v4780 = vpop.f32.mrb[0].mxu0
    %v4781 = vadd.f32 %v4505, %v4780
    %v4782 = vpop.f32.mrb[0].mxu0
    %4783 = vmatprep.mubr.f32.mxu0 0.0
    %4784 = vmatmul.mubr.f32.gmra.mrb[0].mxu0 %v4520
    %v4785 = vpop.f32.mrb[0].mxu0
    %v4786 = vadd.f32 %v4505, %v4785
    %v4787 = vpop.f32.mrb[0].mxu0
    %4788 = vmatprep.mubr.f32.mxu0 0.0
    %4789 = vmatmul.mubr.f32.gmra.mrb[0].mxu0 %v4523
    %v4790 = vpop.f32.mrb[0].mxu0
    %v4791 = vadd.f32 %v4505, %v4790
    %v4792 = vpop.f32.mrb[0].mxu0
    %4793 = vmatprep.mubr.f32.mxu0 0.0
    %4794 = vmatmul.mubr.f32.gmra.mrb[0].mxu0 %v4526
    %v4795 = vpop.f32.mrb[0].mxu0
    %v4796 = vadd.f32 %v4505, %v4795
    %v4797 = vpop.f32.mrb[0].mxu0
    %4798 = vmatprep.mubr.f32.mxu0 0.0
    %4799 = vmatmul.mubr.f32.gmra.mrb[0].mxu0 %v4529
    %v4800 = vpop.f32.mrb[0].mxu0
    %v4801 = vadd.f32 %v4505, %v4800
    %v4802 = vpop.f32.mrb[0].mxu0
    %4803 = vmatprep.mubr.f32.mxu0 0.0
    %4804 = vmatmul.mubr.f32.gmra.mrb[0].mxu0 %v4532
    %v4805 = vpop.f32.mrb[0].mxu0
    %v4806 = vadd.f32 %v4505, %v4805
    %v4807 = vpop.f32.mrb[0].mxu0
    %4808 = vmatprep.mubr.f32.mxu0 0.0
    %4809 = vmatmul.mubr.f32.gmra.mrb[0].mxu0 %v4535
    %v4810 = vpop.f32.mrb[0].mxu0
    %v4811 = vadd.f32 %v4505, %v4810
    %v4812 = vpop.f32.mrb[0].mxu0
    %4813 = vmatprep.mubr.f32.mxu0 0.0
    %4814 = vmatmul.mubr.f32.gmra.mrb[0].mxu0 %v4538
    %v4815 = vpop.f32.mrb[0].mxu0
    %v4816 = vadd.f32 %v4505, %v4815
    %v4817 = vpop.f32.mrb[0].mxu0
    %4818 = vmatprep.mubr.f32.mxu0 0.0
    %4819 = vmatmul.mubr.f32.gmra.mrb[0].mxu0 %v4541
    %v4820 = vpop.f32.mrb[0].mxu0
    %v4821 = vadd.f32 %v4505, %v4820
    %v4822 = vpop.f32.mrb[0].mxu0
    %4823 = vmatprep.mubr.f32.mxu0 0.0
    %4824 = vmatmul.mubr.f32.gmra.mrb[0].mxu0 %v4544
    %v4825 = vpop.f32.mrb[0].mxu0
    %v4826 = vadd.f32 %v4505, %v4825
    %v4827 = vpop.f32.mrb[0].mxu0
    %4828 = vmatprep.mubr.f32.mxu0 0.0
    %4829 = vmatmul.mubr.f32.gmra.mrb[0].mxu0 %v4547
    %v4830 = vpop.f32.mrb[0].mxu0
    %v4831 = vadd.f32 %v4505, %v4830
    %v4832 = vpop.f32.mrb[0].mxu0
    %4833 = vmatprep.mubr.f32.mxu0 0.0
    %4834 = vmatmul.mubr.f32.gmra.mrb[0].mxu0 %v4550
    %v4835 = vpop.f32.mrb[0].mxu0
    %v4836 = vadd.f32 %v4505, %v4835
    %v4837 = vpop.f32.mrb[0].mxu0
    %4838 = vmatprep.mubr.f32.mxu0 0.0
    %4839 = vmatmul.mubr.f32.gmra.mrb[0].mxu0 %v4553
    %v4840 = vpop.f32.mrb[0].mxu0
    %v4841 = vadd.f32 %v4505, %v4840
    %v4842 = vpop.f32.mrb[0].mxu0
    %4843 = vmatprep.mubr.f32.mxu0 0.0
    %4844 = vmatmul.mubr.f32.gmra.mrb[0].mxu0 %v4556
    %v4845 = vpop.f32.mrb[0].mxu0
    %v4846 = vadd.f32 %v4505, %v4845
    %v4847 = vpop.f32.mrb[0].mxu0
    %4848 = vmatprep.mubr.f32.mxu0 0.0
    %4849 = vmatmul.mubr.f32.gmra.mrb[0].mxu0 %v4559
    %v4850 = vpop.f32.mrb[0].mxu0
    %v4851 = vadd.f32 %v4505, %v4850
    %v4852 = vpop.f32.mrb[0].mxu0
    %4853 = vmatprep.mubr.f32.mxu0 0.0
    %4854 = vmatmul.mubr.f32.gmra.mrb[0].mxu0 %v4562
    %v4855 = vpop.f32.mrb[0].mxu0
    %v4856 = vadd.f32 %v4505, %v4855
    %v4857 = vpop.f32.mrb[0].mxu0
    %4858 = vmatprep.mubr.f32.mxu0 0.0
    %4859 = vmatmul.mubr.f32.gmra.mrb[0].mxu0 %v4565
    %v4860 = vpop.f32.mrb[0].mxu0
    %v4861 = vadd.f32 %v4505, %v4860
    %v4862 = vpop.f32.mrb[0].mxu0
    %4863 = vmatprep.mubr.f32.mxu0 0.0
    %4864 = vmatmul.mubr.f32.gmra.mrb[0].mxu0 %v4568
    %v4865 = vpop.f32.mrb[0].mxu0
    %v4866 = vadd.f32 %v4505, %v4865
    %v4867 = vpop.f32.mrb[0].mxu0
    %4868 = vmatprep.mubr.f32.mxu0 0.0
    %4869 = vmatmul.mubr.f32.gmra.mrb[0].mxu0 %v4571
    %v4870 = vpop.f32.mrb[0].mxu0
    %v4871 = vadd.f32 %v4505, %v4870
    %v4872 = vpop.f32.mrb[0].mxu0
    %4873 = vmatprep.mubr.f32.mxu0 0.0
    %4874 = vmatmul.mubr.f32.gmra.mrb[0].mxu0 %v4574
    %v4875 = vpop.f32.mrb[0].mxu0
    %v4876 = vadd.f32 %v4505, %v4875
    %v4877 = vpop.f32.mrb[0].mxu0
    %4878 = vmatprep.mubr.f32.mxu0 0.0
    %4879 = vmatmul.mubr.f32.gmra.mrb[0].mxu0 %v4577
    %v4880 = vpop.f32.mrb[0].mxu0
    %v4881 = vadd.f32 %v4505, %v4880
    %v4882 = vpop.f32.mrb[0].mxu0
    %4883 = vmatprep.mubr.f32.mxu0 0.0
    %4884 = vmatmul.mubr.f32.gmra.mrb[0].mxu0 %v4580
    %v4885 = vpop.f32.mrb[0].mxu0
    %v4886 = vadd.f32 %v4505, %v4885
    %v4887 = vpop.f32.mrb[0].mxu0
    %4888 = vmatprep.mubr.f32.mxu0 0.0
    %4889 = vmatmul.mubr.f32.gmra.mrb[0].mxu0 %v4583
    %v4890 = vpop.f32.mrb[0].mxu0
    %v4891 = vadd.f32 %v4505, %v4890
    %v4892 = vpop.f32.mrb[0].mxu0
    %4893 = vmatprep.mubr.f32.mxu0 0.0
    %4894 = vmatmul.mubr.f32.gmra.mrb[0].mxu0 %v4586
    %v4895 = vpop.f32.mrb[0].mxu0
    %v4896 = vadd.f32 %v4505, %v4895
    %v4897 = vpop.f32.mrb[0].mxu0
    %4898 = vmatprep.mubr.f32.mxu0 0.0
    %4899 = vmatmul.mubr.f32.gmra.mrb[0].mxu0 %v4589
    %v4900 = vpop.f32.mrb[0].mxu0
    %v4901 = vadd.f32 %v4505, %v4900
    %v4902 = vpop.f32.mrb[0].mxu0
    %4903 = vmatprep.mubr.f32.mxu0 0.0
    %4904 = vmatmul.mubr.f32.gmra.mrb[0].mxu0 %v4592
    %v4905 = vpop.f32.mrb[0].mxu0
    %v4906 = vadd.f32 %v4505, %v4905
    %v4907 = vpop.f32.mrb[0].mxu0
    %4908 = vmatprep.mubr.f32.mxu0 0.0
    %4909 = vmatmul.mubr.f32.gmra.mrb[0].mxu0 %v4595
    %v4910 = vpop.f32.mrb[0].mxu0
    %v4911 = vadd.f32 %v4505, %v4910
    %v4912 = vpop.f32.mrb[0].mxu0
    %4913 = vmatprep.mubr.f32.mxu0 0.0
    %4914 = vmatmul.mubr.f32.gmra.mrb[0].mxu0 %v4598
    %v4915 = vpop.f32.mrb[0].mxu0
    %v4916 = vadd.f32 %v4505, %v4915
    %v4917 = vpop.f32.mrb[0].mxu0
    %4918 = vmatprep.mubr.f32.mxu0 0.0
    %4919 = vmatmul.mubr.f32.gmra.mrb[0].mxu0 %v4601
    %v4920 = vpop.f32.mrb[0].mxu0
    %v4921 = vadd.f32 %v4505, %v4920
    %v4922 = vpop.f32.mrb[0].mxu0
    %4923 = vmatprep.mubr.f32.mxu0 0.0
    %4924 = vmatmul.mubr.f32.gmra.mrb[0].mxu0 %v4604
    %v4925 = vpop.f32.mrb[0].mxu0
    %v4926 = vadd.f32 %v4505, %v4925
    %v4927 = vpop.f32.mrb[0].mxu0
    %4928 = vmatprep.mubr.f32.mxu0 0.0
    %4929 = vmatmul.mubr.f32.gmra.mrb[0].mxu0 %v4607
    %v4930 = vpop.f32.mrb[0].mxu0
    %v4931 = vadd.f32 %v4505, %v4930
    %v4932 = vpop.f32.mrb[0].mxu0
    %4933 = vmatprep.mubr.f32.mxu0 0.0
    %4934 = vmatmul.mubr.f32.gmra.mrb[0].mxu0 %v4610
    %v4935 = vpop.f32.mrb[0].mxu0
    %v4936 = vadd.f32 %v4505, %v4935
    %v4937 = vpop.f32.mrb[0].mxu0
    %4938 = vmatprep.mubr.f32.mxu0 0.0
    %4939 = vmatmul.mubr.f32.gmra.mrb[0].mxu0 %v4613
    %v4940 = vpop.f32.mrb[0].mxu0
    %v4941 = vadd.f32 %v4505, %v4940
    %v4942 = vpop.f32.mrb[0].mxu0
    %4943 = vmatprep.mubr.f32.mxu0 0.0
    %4944 = vmatmul.mubr.f32.gmra.mrb[0].mxu0 %v4616
    %v4945 = vpop.f32.mrb[0].mxu0
    %v4946 = vadd.f32 %v4505, %v4945
    %v4947 = vpop.f32.mrb[0].mxu0
    %4948 = vmatprep.mubr.f32.mxu0 0.0
    %4949 = vmatmul.mubr.f32.gmra.mrb[0].mxu0 %v4619
    %v4950 = vpop.f32.mrb[0].mxu0
    %v4951 = vadd.f32 %v4505, %v4950
    %v4952 = vpop.f32.mrb[0].mxu0
    %4953 = vmatprep.mubr.f32.mxu0 0.0
    %4954 = vmatmul.mubr.f32.gmra.mrb[0].mxu0 %v4622
    %v4955 = vpop.f32.mrb[0].mxu0
    %v4956 = vadd.f32 %v4505, %v4955
    %v4957 = vpop.f32.mrb[0].mxu0
    %4958 = vmatprep.mubr.f32.mxu0 0.0
    %4959 = vmatmul.mubr.f32.gmra.mrb[0].mxu0 %v4625
    %v4960 = vpop.f32.mrb[0].mxu0
    %v4961 = vadd.f32 %v4505, %v4960
    %v4962 = vpop.f32.mrb[0].mxu0
    %4963 = vmatprep.mubr.f32.mxu0 0.0
    %4964 = vmatmul.mubr.f32.gmra.mrb[0].mxu0 %v4628
    %v4965 = vpop.f32.mrb[0].mxu0
    %v4966 = vadd.f32 %v4505, %v4965
    %v4967 = vpop.f32.mrb[0].mxu0
    %4968 = vmatprep.mubr.f32.mxu0 0.0
    %4969 = vmatmul.mubr.f32.gmra.mrb[0].mxu0 %v4631
    %v4970 = vpop.f32.mrb[0].mxu0
    %v4971 = vadd.f32 %v4505, %v4970
    %v4972 = vpop.f32.mrb[0].mxu0
    %4973 = vmatprep.mubr.f32.mxu0 0.0
    %4974 = vmatmul.mubr.f32.gmra.mrb[0].mxu0 %v4634
    %v4975 = vpop.f32.mrb[0].mxu0
    %v4976 = vadd.f32 %v4505, %v4975
    %v4977 = vpop.f32.mrb[0].mxu0
    %4978 = vmatprep.mubr.f32.mxu0 0.0
    %4979 = vmatmul.mubr.f32.gmra.mrb[0].mxu0 %v4637
    %v4980 = vpop.f32.mrb[0].mxu0
    %v4981 = vadd.f32 %v4505, %v4980
    %v4982 = vpop.f32.mrb[0].mxu0
    %4983 = vmatprep.mubr.f32.mxu0 0.0
    %4984 = vmatmul.mubr.f32.gmra.mrb[0].mxu0 %v4640
    %v4985 = vpop.f32.mrb[0].mxu0
    %v4986 = vadd.f32 %v4505, %v4985
    %v4987 = vpop.f32.mrb[0].mxu0
    %4988 = vmatprep.mubr.f32.mxu0 0.0
    %4989 = vmatmul.mubr.f32.gmra.mrb[0].mxu0 %v4643
    %v4990 = vpop.f32.mrb[0].mxu0
    %v4991 = vadd.f32 %v4505, %v4990
    %v4992 = vpop.f32.mrb[0].mxu0
    %4993 = vmatprep.mubr.f32.mxu0 0.0
    %4994 = vmatmul.mubr.f32.gmra.mrb[0].mxu0 %v4646
    %v4995 = vpop.f32.mrb[0].mxu0
    %v4996 = vadd.f32 %v4505, %v4995
    %v4997 = vpop.f32.mrb[0].mxu0
    %4998 = vmatprep.mubr.f32.mxu0 0.0
    %4999 = vmatmul.mubr.f32.gmra.mrb[0].mxu0 %v4649
    %v5000 = vpop.f32.mrb[0].mxu0
    %v5001 = vadd.f32 %v4505, %v5000
    %v5002 = vpop.f32.mrb[0].mxu0
    %5003 = vmatprep.mubr.f32.mxu0 0.0
    %5004 = vmatmul.mubr.f32.gmra.mrb[0].mxu0 %v4652
    %v5005 = vpop.f32.mrb[0].mxu0
    %v5006 = vadd.f32 %v4505, %v5005
    %v5007 = vpop.f32.mrb[0].mxu0
    %5008 = vmatprep.mubr.f32.mxu0 0.0
    %5009 = vmatmul.mubr.f32.gmra.mrb[0].mxu0 %v4655
    %v5010 = vpop.f32.mrb[0].mxu0
    %v5011 = vadd.f32 %v4505, %v5010
    %v5012 = vpop.f32.mrb[0].mxu0
    %5013 = vmatprep.mubr.f32.mxu0 0.0
    %5014 = vmatmul.mubr.f32.gmra.mrb[0].mxu0 %v4658
    %v5015 = vpop.f32.mrb[0].mxu0
    %v5016 = vadd.f32 %v4505, %v5015
    %v5017 = vpop.f32.mrb[0].mxu0
    %5018 = vmatprep.mubr.f32.mxu0 0.0
    %5019 = vmatmul.mubr.f32.gmra.mrb[0].mxu0 %v4661
    %v5020 = vpop.f32.mrb[0].mxu0
    %v5021 = vadd.f32 %v4505, %v5020
    %v5022 = vpop.f32.mrb[0].mxu0
    %5023 = vmatprep.mubr.f32.mxu0 0.0
    %5024 = vmatmul.mubr.f32.gmra.mrb[0].mxu0 %v4664
    %v5025 = vpop.f32.mrb[0].mxu0
    %v5026 = vadd.f32 %v4505, %v5025
    %v5027 = vpop.f32.mrb[0].mxu0
    %5028 = vmatprep.mubr.f32.mxu0 0.0
    %5029 = vmatmul.mubr.f32.gmra.mrb[0].mxu0 %v4667
    %v5030 = vpop.f32.mrb[0].mxu0
    %v5031 = vadd.f32 %v4505, %v5030
    %v5032 = vpop.f32.mrb[0].mxu0
    %5033 = vmatprep.mubr.f32.mxu0 0.0
    %5034 = vmatmul.mubr.f32.gmra.mrb[0].mxu0 %v4670
    %v5035 = vpop.f32.mrb[0].mxu0
    %v5036 = vadd.f32 %v4505, %v5035
    %v5037 = vpop.f32.mrb[0].mxu0
    %5038 = vmatprep.mubr.f32.mxu0 0.0
    %5039 = vmatmul.mubr.f32.gmra.mrb[0].mxu0 %v4673
    %v5040 = vpop.f32.mrb[0].mxu0
    %v5041 = vadd.f32 %v4505, %v5040
    %v5042 = vpop.f32.mrb[0].mxu0
    %5043 = vmatprep.mubr.f32.mxu0 0.0
    %5044 = vmatmul.mubr.f32.gmra.mrb[0].mxu0 %v4676
    %v5045 = vpop.f32.mrb[0].mxu0
    %v5046 = vadd.f32 %v4505, %v5045
    %v5047 = vpop.f32.mrb[0].mxu0
    %5048 = vmatprep.mubr.f32.mxu0 0.0
    %5049 = vmatmul.mubr.f32.gmra.mrb[0].mxu0 %v4679
    %v5050 = vpop.f32.mrb[0].mxu0
    %v5051 = vadd.f32 %v4505, %v5050
    %v5052 = vpop.f32.mrb[0].mxu0
    %5053 = vmatprep.mubr.f32.mxu0 0.0
    %5054 = vmatmul.mubr.f32.gmra.mrb[0].mxu0 %v4682
    %v5055 = vpop.f32.mrb[0].mxu0
    %v5056 = vadd.f32 %v4505, %v5055
    %v5057 = vpop.f32.mrb[0].mxu0
    %5058 = vmatprep.mubr.f32.mxu0 0.0
    %5059 = vmatmul.mubr.f32.gmra.mrb[0].mxu0 %v4685
    %v5060 = vpop.f32.mrb[0].mxu0
    %v5061 = vadd.f32 %v4505, %v5060
    %v5062 = vpop.f32.mrb[0].mxu0
    %5063 = vmatprep.mubr.f32.mxu0 0.0
    %5064 = vmatmul.mubr.f32.gmra.mrb[0].mxu0 %v4688
    %v5065 = vpop.f32.mrb[0].mxu0
    %v5066 = vadd.f32 %v4505, %v5065
    %v5067 = vpop.f32.mrb[0].mxu0
    %5068 = vmatprep.mubr.f32.mxu0 0.0
    %5069 = vmatmul.mubr.f32.gmra.mrb[0].mxu0 %v4691
    %v5070 = vpop.f32.mrb[0].mxu0
    %v5071 = vadd.f32 %v4505, %v5070
    %v5072 = vpop.f32.mrb[0].mxu0
    %5073 = vmatprep.mubr.f32.mxu0 0.0
    %5074 = vmatmul.mubr.f32.gmra.mrb[0].mxu0 %v4694
    %v5075 = vpop.f32.mrb[0].mxu0
    %v5076 = vadd.f32 %v4505, %v5075
    %v5077 = vpop.f32.mrb[0].mxu0
    %5078 = vmatprep.mubr.f32.mxu0 0.0
    %5079 = vmatmul.mubr.f32.gmra.mrb[0].mxu0 %v4697
    %v5080 = vpop.f32.mrb[0].mxu0
    %v5081 = vadd.f32 %v4505, %v5080
    %v5082 = vpop.f32.mrb[0].mxu0
    %5083 = vdwg.mxu0
    %5084 = vmatprep.subr.mxu0 0.0
    %5085 = vmatpush1.msra.mxu0 %v4173
    %5086 = vmatprep.subr.mxu0 0.0
    %5087 = vmatpush1.msra.mxu0 %v4174
    %5088 = vmatprep.subr.mxu0 0.0
    %5089 = vmatpush1.msra.mxu0 %v4175
    %5090 = vmatprep.subr.mxu0 0.0
    %5091 = vmatpush1.msra.mxu0 %v4176
    %5092 = vmatprep.subr.mxu0 0.0
    %5093 = vmatpush1.msra.mxu0 %v4177
    %5094 = vmatprep.subr.mxu0 0.0
    %5095 = vmatpush1.msra.mxu0 %v4178
    %5096 = vmatprep.subr.mxu0 0.0
    %5097 = vmatpush1.msra.mxu0 %v4179
    %5098 = vmatprep.subr.mxu0 0.0
    %5099 = vmatpush1.msra.mxu0 %v4180
    %5100 = vmatprep.subr.mxu0 0.0
    %5101 = vmatpush1.msra.mxu0 %v4181
    %5102 = vmatprep.subr.mxu0 0.0
    %5103 = vmatpush1.msra.mxu0 %v4182
    %5104 = vmatprep.subr.mxu0 0.0
    %5105 = vmatpush1.msra.mxu0 %v4183
    %5106 = vmatprep.subr.mxu0 0.0
    %5107 = vmatpush1.msra.mxu0 %v4184
    %5108 = vmatprep.subr.mxu0 0.0
    %5109 = vmatpush1.msra.mxu0 %v4185
    %5110 = vmatprep.subr.mxu0 0.0
    %5111 = vmatpush1.msra.mxu0 %v4186
    %5112 = vmatprep.subr.mxu0 0.0
    %5113 = vmatpush1.msra.mxu0 %v4187
    %5114 = vmatprep.subr.mxu0 0.0
    %5115 = vmatpush1.msra.mxu0 %v4188
    %5116 = vmatprep.subr.mxu0 0.0
    %5117 = vmatpush1.msra.mxu0 %v4189
    %5118 = vmatprep.subr.mxu0 0.0
    %5119 = vmatpush1.msra.mxu0 %v4190
    %5120 = vmatprep.subr.mxu0 0.0
    %5121 = vmatpush1.msra.mxu0 %v4191
    %5122 = vmatprep.subr.mxu0 0.0
    %5123 = vmatpush1.msra.mxu0 %v4192
    %5124 = vmatprep.subr.mxu0 0.0
    %5125 = vmatpush1.msra.mxu0 %v4193
    %5126 = vmatprep.subr.mxu0 0.0
    %5127 = vmatpush1.msra.mxu0 %v4194
    %5128 = vmatprep.subr.mxu0 0.0
    %5129 = vmatpush1.msra.mxu0 %v4195
    %5130 = vmatprep.subr.mxu0 0.0
    %5131 = vmatpush1.msra.mxu0 %v4196
    %5132 = vmatprep.subr.mxu0 0.0
    %5133 = vmatpush1.msra.mxu0 %v4197
    %5134 = vmatprep.subr.mxu0 0.0
    %5135 = vmatpush1.msra.mxu0 %v4198
    %5136 = vmatprep.subr.mxu0 0.0
    %5137 = vmatpush1.msra.mxu0 %v4199
    %5138 = vmatprep.subr.mxu0 0.0
    %5139 = vmatpush1.msra.mxu0 %v4200
    %5140 = vmatprep.subr.mxu0 0.0
    %5141 = vmatpush1.msra.mxu0 %v4201
    %5142 = vmatprep.subr.mxu0 0.0
    %5143 = vmatpush1.msra.mxu0 %v4202
    %5144 = vmatprep.subr.mxu0 0.0
    %5145 = vmatpush1.msra.mxu0 %v4203
    %5146 = vmatprep.subr.mxu0 0.0
    %5147 = vmatpush1.msra.mxu0 %v4204
    %5148 = vmatprep.mubr.f32.mxu0 %v201
    %5149 = vmatmul.mubr.f32.gmra.mrb[0].mxu0 %v200
    %v5150 = vpop.f32.mrb[0].mxu0
    %v5151 = vadd.f32 0.0, %v5150
    %v5152 = vpop.f32.mrb[0].mxu0
    %5153 = vmatprep.mubr.f32.mxu0 %v205
    %5154 = vmatmul.mubr.f32.gmra.mrb[0].mxu0 %v204
    %v5155 = vpop.f32.mrb[0].mxu0
    %v5156 = vadd.f32 0.0, %v5155
    %v5157 = vpop.f32.mrb[0].mxu0
    %5158 = vmatprep.mubr.f32.mxu0 %v209
    %5159 = vmatmul.mubr.f32.gmra.mrb[0].mxu0 %v208
    %v5160 = vpop.f32.mrb[0].mxu0
    %v5161 = vadd.f32 0.0, %v5160
    %v5162 = vpop.f32.mrb[0].mxu0
    %5163 = vmatprep.mubr.f32.mxu0 %v213
    %5164 = vmatmul.mubr.f32.gmra.mrb[0].mxu0 %v212
    %v5165 = vpop.f32.mrb[0].mxu0
    %v5166 = vadd.f32 0.0, %v5165
    %v5167 = vpop.f32.mrb[0].mxu0
    %5168 = vmatprep.mubr.f32.mxu0 %v217
    %5169 = vmatmul.mubr.f32.gmra.mrb[0].mxu0 %v216
    %v5170 = vpop.f32.mrb[0].mxu0
    %v5171 = vadd.f32 0.0, %v5170
    %v5172 = vpop.f32.mrb[0].mxu0
    %5173 = vmatprep.mubr.f32.mxu0 %v221
    %5174 = vmatmul.mubr.f32.gmra.mrb[0].mxu0 %v220
    %v5175 = vpop.f32.mrb[0].mxu0
    %v5176 = vadd.f32 0.0, %v5175
    %v5177 = vpop.f32.mrb[0].mxu0
    %5178 = vmatprep.mubr.f32.mxu0 %v225
    %5179 = vmatmul.mubr.f32.gmra.mrb[0].mxu0 %v224
    %v5180 = vpop.f32.mrb[0].mxu0
    %v5181 = vadd.f32 0.0, %v5180
    %v5182 = vpop.f32.mrb[0].mxu0
    %5183 = vmatprep.mubr.f32.mxu0 %v229
    %5184 = vmatmul.mubr.f32.gmra.mrb[0].mxu0 %v228
    %v5185 = vpop.f32.mrb[0].mxu0
    %v5186 = vadd.f32 0.0, %v5185
    %v5187 = vpop.f32.mrb[0].mxu0
    %5188 = vmatprep.mubr.f32.mxu0 %v233
    %5189 = vmatmul.mubr.f32.gmra.mrb[0].mxu0 %v232
    %v5190 = vpop.f32.mrb[0].mxu0
    %v5191 = vadd.f32 0.0, %v5190
    %v5192 = vpop.f32.mrb[0].mxu0
    %5193 = vmatprep.mubr.f32.mxu0 %v237
    %5194 = vmatmul.mubr.f32.gmra.mrb[0].mxu0 %v236
    %v5195 = vpop.f32.mrb[0].mxu0
    %v5196 = vadd.f32 0.0, %v5195
    %v5197 = vpop.f32.mrb[0].mxu0
    %5198 = vmatprep.mubr.f32.mxu0 %v241
    %5199 = vmatmul.mubr.f32.gmra.mrb[0].mxu0 %v240
    %v5200 = vpop.f32.mrb[0].mxu0
    %v5201 = vadd.f32 0.0, %v5200
    %v5202 = vpop.f32.mrb[0].mxu0
    %5203 = vmatprep.mubr.f32.mxu0 %v245
    %5204 = vmatmul.mubr.f32.gmra.mrb[0].mxu0 %v244
    %v5205 = vpop.f32.mrb[0].mxu0
    %v5206 = vadd.f32 0.0, %v5205
    %v5207 = vpop.f32.mrb[0].mxu0
    %5208 = vmatprep.mubr.f32.mxu0 %v249
    %5209 = vmatmul.mubr.f32.gmra.mrb[0].mxu0 %v248
    %v5210 = vpop.f32.mrb[0].mxu0
    %v5211 = vadd.f32 0.0, %v5210
    %v5212 = vpop.f32.mrb[0].mxu0
    %5213 = vmatprep.mubr.f32.mxu0 %v253
    %5214 = vmatmul.mubr.f32.gmra.mrb[0].mxu0 %v252
    %v5215 = vpop.f32.mrb[0].mxu0
    %v5216 = vadd.f32 0.0, %v5215
    %v5217 = vpop.f32.mrb[0].mxu0
    %5218 = vmatprep.mubr.f32.mxu0 %v257
    %5219 = vmatmul.mubr.f32.gmra.mrb[0].mxu0 %v256
    %v5220 = vpop.f32.mrb[0].mxu0
    %v5221 = vadd.f32 0.0, %v5220
    %v5222 = vpop.f32.mrb[0].mxu0
    %5223 = vmatprep.mubr.f32.mxu0 %v261
    %5224 = vmatmul.mubr.f32.gmra.mrb[0].mxu0 %v260
    %v5225 = vpop.f32.mrb[0].mxu0
    %v5226 = vadd.f32 0.0, %v5225
    %v5227 = vpop.f32.mrb[0].mxu0
    %5228 = vdwg.mxu0
    %5229 = vmatprep.subr.mxu0 0.0
    %5230 = vmatpush1.msra.mxu0 %v4205
    %5231 = vmatprep.subr.mxu0 0.0
    %5232 = vmatpush1.msra.mxu0 %v4206
    %5233 = vmatprep.subr.mxu0 0.0
    %5234 = vmatpush1.msra.mxu0 %v4207
    %5235 = vmatprep.subr.mxu0 0.0
    %5236 = vmatpush1.msra.mxu0 %v4208
    %5237 = vmatprep.subr.mxu0 0.0
    %5238 = vmatpush1.msra.mxu0 %v4209
    %5239 = vmatprep.subr.mxu0 0.0
    %5240 = vmatpush1.msra.mxu0 %v4210
    %5241 = vmatprep.subr.mxu0 0.0
    %5242 = vmatpush1.msra.mxu0 %v4211
    %5243 = vmatprep.subr.mxu0 0.0
    %5244 = vmatpush1.msra.mxu0 %v4212
    %5245 = vmatprep.subr.mxu0 0.0
    %5246 = vmatpush1.msra.mxu0 %v4213
    %5247 = vmatprep.subr.mxu0 0.0
    %5248 = vmatpush1.msra.mxu0 %v4214
    %5249 = vmatprep.subr.mxu0 0.0
    %5250 = vmatpush1.msra.mxu0 %v4215
    %5251 = vmatprep.subr.mxu0 0.0
    %5252 = vmatpush1.msra.mxu0 %v4216
    %5253 = vmatprep.subr.mxu0 0.0
    %5254 = vmatpush1.msra.mxu0 %v4217
    %5255 = vmatprep.subr.mxu0 0.0
    %5256 = vmatpush1.msra.mxu0 %v4218
    %5257 = vmatprep.subr.mxu0 0.0
    %5258 = vmatpush1.msra.mxu0 %v4219
    %5259 = vmatprep.subr.mxu0 0.0
    %5260 = vmatpush1.msra.mxu0 %v4220
    %5261 = vmatprep.subr.mxu0 0.0
    %5262 = vmatpush1.msra.mxu0 %v4221
    %5263 = vmatprep.subr.mxu0 0.0
    %5264 = vmatpush1.msra.mxu0 %v4222
    %5265 = vmatprep.subr.mxu0 0.0
    %5266 = vmatpush1.msra.mxu0 %v4223
    %5267 = vmatprep.subr.mxu0 0.0
    %5268 = vmatpush1.msra.mxu0 %v4224
    %5269 = vmatprep.subr.mxu0 0.0
    %5270 = vmatpush1.msra.mxu0 %v4225
    %5271 = vmatprep.subr.mxu0 0.0
    %5272 = vmatpush1.msra.mxu0 %v4226
    %5273 = vmatprep.subr.mxu0 0.0
    %5274 = vmatpush1.msra.mxu0 %v4227
    %5275 = vmatprep.subr.mxu0 0.0
    %5276 = vmatpush1.msra.mxu0 %v4228
    %5277 = vmatprep.subr.mxu0 0.0
    %5278 = vmatpush1.msra.mxu0 %v4229
    %5279 = vmatprep.subr.mxu0 0.0
    %5280 = vmatpush1.msra.mxu0 %v4230
    %5281 = vmatprep.subr.mxu0 0.0
    %5282 = vmatpush1.msra.mxu0 %v4231
    %5283 = vmatprep.subr.mxu0 0.0
    %5284 = vmatpush1.msra.mxu0 %v4232
    %5285 = vmatprep.subr.mxu0 0.0
    %5286 = vmatpush1.msra.mxu0 %v4233
    %5287 = vmatprep.subr.mxu0 0.0
    %5288 = vmatpush1.msra.mxu0 %v4234
    %5289 = vmatprep.subr.mxu0 0.0
    %5290 = vmatpush1.msra.mxu0 %v4235
    %5291 = vmatprep.subr.mxu0 0.0
    %5292 = vmatpush1.msra.mxu0 %v4236
    %5293 = vmatprep.mubr.f32.mxu0 %v203
    %5294 = vmatmul.mubr.f32.gmra.mrb[0].mxu0 %v202
    %v5295 = vpop.f32.mrb[0].mxu0
    %v5296 = vadd.f32 %v5151, %v5295
    %v5297 = vpop.f32.mrb[0].mxu0
    %5298 = vmatprep.mubr.f32.mxu0 %v207
    %5299 = vmatmul.mubr.f32.gmra.mrb[0].mxu0 %v206
    %v5300 = vpop.f32.mrb[0].mxu0
    %v5301 = vadd.f32 %v5156, %v5300
    %v5302 = vpop.f32.mrb[0].mxu0
    %5303 = vmatprep.mubr.f32.mxu0 %v211
    %5304 = vmatmul.mubr.f32.gmra.mrb[0].mxu0 %v210
    %v5305 = vpop.f32.mrb[0].mxu0
    %v5306 = vadd.f32 %v5161, %v5305
    %v5307 = vpop.f32.mrb[0].mxu0
    %5308 = vmatprep.mubr.f32.mxu0 %v215
    %5309 = vmatmul.mubr.f32.gmra.mrb[0].mxu0 %v214
    %v5310 = vpop.f32.mrb[0].mxu0
    %v5311 = vadd.f32 %v5166, %v5310
    %v5312 = vpop.f32.mrb[0].mxu0
    %5313 = vmatprep.mubr.f32.mxu0 %v219
    %5314 = vmatmul.mubr.f32.gmra.mrb[0].mxu0 %v218
    %v5315 = vpop.f32.mrb[0].mxu0
    %v5316 = vadd.f32 %v5171, %v5315
    %v5317 = vpop.f32.mrb[0].mxu0
    %5318 = vmatprep.mubr.f32.mxu0 %v223
    %5319 = vmatmul.mubr.f32.gmra.mrb[0].mxu0 %v222
    %v5320 = vpop.f32.mrb[0].mxu0
    %v5321 = vadd.f32 %v5176, %v5320
    %v5322 = vpop.f32.mrb[0].mxu0
    %5323 = vmatprep.mubr.f32.mxu0 %v227
    %5324 = vmatmul.mubr.f32.gmra.mrb[0].mxu0 %v226
    %v5325 = vpop.f32.mrb[0].mxu0
    %v5326 = vadd.f32 %v5181, %v5325
    %v5327 = vpop.f32.mrb[0].mxu0
    %5328 = vmatprep.mubr.f32.mxu0 %v231
    %5329 = vmatmul.mubr.f32.gmra.mrb[0].mxu0 %v230
    %v5330 = vpop.f32.mrb[0].mxu0
    %v5331 = vadd.f32 %v5186, %v5330
    %v5332 = vpop.f32.mrb[0].mxu0
    %5333 = vmatprep.mubr.f32.mxu0 %v235
    %5334 = vmatmul.mubr.f32.gmra.mrb[0].mxu0 %v234
    %v5335 = vpop.f32.mrb[0].mxu0
    %v5336 = vadd.f32 %v5191, %v5335
    %v5337 = vpop.f32.mrb[0].mxu0
    %5338 = vmatprep.mubr.f32.mxu0 %v239
    %5339 = vmatmul.mubr.f32.gmra.mrb[0].mxu0 %v238
    %v5340 = vpop.f32.mrb[0].mxu0
    %v5341 = vadd.f32 %v5196, %v5340
    %v5342 = vpop.f32.mrb[0].mxu0
    %5343 = vmatprep.mubr.f32.mxu0 %v243
    %5344 = vmatmul.mubr.f32.gmra.mrb[0].mxu0 %v242
    %v5345 = vpop.f32.mrb[0].mxu0
    %v5346 = vadd.f32 %v5201, %v5345
    %v5347 = vpop.f32.mrb[0].mxu0
    %5348 = vmatprep.mubr.f32.mxu0 %v247
    %5349 = vmatmul.mubr.f32.gmra.mrb[0].mxu0 %v246
    %v5350 = vpop.f32.mrb[0].mxu0
    %v5351 = vadd.f32 %v5206, %v5350
    %v5352 = vpop.f32.mrb[0].mxu0
    %5353 = vmatprep.mubr.f32.mxu0 %v251
    %5354 = vmatmul.mubr.f32.gmra.mrb[0].mxu0 %v250
    %v5355 = vpop.f32.mrb[0].mxu0
    %v5356 = vadd.f32 %v5211, %v5355
    %v5357 = vpop.f32.mrb[0].mxu0
    %5358 = vmatprep.mubr.f32.mxu0 %v255
    %5359 = vmatmul.mubr.f32.gmra.mrb[0].mxu0 %v254
    %v5360 = vpop.f32.mrb[0].mxu0
    %v5361 = vadd.f32 %v5216, %v5360
    %v5362 = vpop.f32.mrb[0].mxu0
    %5363 = vmatprep.mubr.f32.mxu0 %v259
    %5364 = vmatmul.mubr.f32.gmra.mrb[0].mxu0 %v258
    %v5365 = vpop.f32.mrb[0].mxu0
    %v5366 = vadd.f32 %v5221, %v5365
    %v5367 = vpop.f32.mrb[0].mxu0
    %5368 = vmatprep.mubr.f32.mxu0 %v263
    %5369 = vmatmul.mubr.f32.gmra.mrb[0].mxu0 %v262
    %v5370 = vpop.f32.mrb[0].mxu0
    %v5371 = vadd.f32 %v5226, %v5370
    %v5372 = vpop.f32.mrb[0].mxu0
    %5373 = vdwg.mxu0
    %v5382 = vrot.slane %v5306, 7
    %v5383 = vsel %vm2126, %v5382, %v5296
    %v5384 = vrot.slane %v5316, 6
    %v5385 = vsel %vm2129, %v5384, %v5383
    %v5386 = vrot.slane %v5326, 5
    %v5387 = vsel %vm2132, %v5386, %v5385
    %v5388 = vrot.slane %v5336, 4
    %v5389 = vsel %vm2135, %v5388, %v5387
    %v5390 = vrot.slane %v5346, 3
    %v5391 = vsel %vm2138, %v5390, %v5389
    %v5392 = vrot.slane %v5356, 2
    %v5393 = vsel %vm2141, %v5392, %v5391
    %v5394 = vrot.slane %v5366, 1
    %v5395 = vsel %vm2144, %v5394, %v5393
    %v5397 = vrot.slane %v5296, 1
    %v5398 = vsel %vm2126, %v5306, %v5397
    %v5399 = vrot.slane %v5316, 7
    %v5400 = vsel %vm2129, %v5399, %v5398
    %v5401 = vrot.slane %v5326, 6
    %v5402 = vsel %vm2132, %v5401, %v5400
    %v5403 = vrot.slane %v5336, 5
    %v5404 = vsel %vm2135, %v5403, %v5402
    %v5405 = vrot.slane %v5346, 4
    %v5406 = vsel %vm2138, %v5405, %v5404
    %v5407 = vrot.slane %v5356, 3
    %v5408 = vsel %vm2141, %v5407, %v5406
    %v5409 = vrot.slane %v5366, 2
    %v5410 = vsel %vm2144, %v5409, %v5408
    %5411 = vrot.lane.b32.xlu0 %v5410, 32
    %v5412 = vpop.permute.xlu0 %5411
    %v5414 = vrot.slane %v5296, 2
    %v5415 = vrot.slane %v5306, 1
    %v5416 = vsel %vm2126, %v5415, %v5414
    %v5417 = vsel %vm2129, %v5316, %v5416
    %v5418 = vrot.slane %v5326, 7
    %v5419 = vsel %vm2132, %v5418, %v5417
    %v5420 = vrot.slane %v5336, 6
    %v5421 = vsel %vm2135, %v5420, %v5419
    %v5422 = vrot.slane %v5346, 5
    %v5423 = vsel %vm2138, %v5422, %v5421
    %v5424 = vrot.slane %v5356, 4
    %v5425 = vsel %vm2141, %v5424, %v5423
    %v5426 = vrot.slane %v5366, 3
    %v5427 = vsel %vm2144, %v5426, %v5425
    %5428 = vrot.lane.b32.xlu0 %v5427, 64
    %v5429 = vpop.permute.xlu0 %5428
    %v5431 = vrot.slane %v5296, 3
    %v5432 = vrot.slane %v5306, 2
    %v5433 = vsel %vm2126, %v5432, %v5431
    %v5434 = vrot.slane %v5316, 1
    %v5435 = vsel %vm2129, %v5434, %v5433
    %v5436 = vsel %vm2132, %v5326, %v5435
    %v5437 = vrot.slane %v5336, 7
    %v5438 = vsel %vm2135, %v5437, %v5436
    %v5439 = vrot.slane %v5346, 6
    %v5440 = vsel %vm2138, %v5439, %v5438
    %v5441 = vrot.slane %v5356, 5
    %v5442 = vsel %vm2141, %v5441, %v5440
    %v5443 = vrot.slane %v5366, 4
    %v5444 = vsel %vm2144, %v5443, %v5442
    %5445 = vrot.lane.b32.xlu0 %v5444, 96
    %v5446 = vpop.permute.xlu0 %5445
    %v5448 = vrot.slane %v5296, 4
    %v5449 = vrot.slane %v5306, 3
    %v5450 = vsel %vm2126, %v5449, %v5448
    %v5451 = vrot.slane %v5316, 2
    %v5452 = vsel %vm2129, %v5451, %v5450
    %v5453 = vrot.slane %v5326, 1
    %v5454 = vsel %vm2132, %v5453, %v5452
    %v5455 = vsel %vm2135, %v5336, %v5454
    %v5456 = vrot.slane %v5346, 7
    %v5457 = vsel %vm2138, %v5456, %v5455
    %v5458 = vrot.slane %v5356, 6
    %v5459 = vsel %vm2141, %v5458, %v5457
    %v5460 = vrot.slane %v5366, 5
    %v5461 = vsel %vm2144, %v5460, %v5459
    %v5463 = vrot.slane %v5296, 5
    %v5464 = vrot.slane %v5306, 4
    %v5465 = vsel %vm2126, %v5464, %v5463
    %v5466 = vrot.slane %v5316, 3
    %v5467 = vsel %vm2129, %v5466, %v5465
    %v5468 = vrot.slane %v5326, 2
    %v5469 = vsel %vm2132, %v5468, %v5467
    %v5470 = vrot.slane %v5336, 1
    %v5471 = vsel %vm2135, %v5470, %v5469
    %v5472 = vsel %vm2138, %v5346, %v5471
    %v5473 = vrot.slane %v5356, 7
    %v5474 = vsel %vm2141, %v5473, %v5472
    %v5475 = vrot.slane %v5366, 6
    %v5476 = vsel %vm2144, %v5475, %v5474
    %5477 = vrot.lane.b32.xlu0 %v5476, 32
    %v5478 = vpop.permute.xlu0 %5477
    %v5480 = vrot.slane %v5296, 6
    %v5481 = vrot.slane %v5306, 5
    %v5482 = vsel %vm2126, %v5481, %v5480
    %v5483 = vrot.slane %v5316, 4
    %v5484 = vsel %vm2129, %v5483, %v5482
    %v5485 = vrot.slane %v5326, 3
    %v5486 = vsel %vm2132, %v5485, %v5484
    %v5487 = vrot.slane %v5336, 2
    %v5488 = vsel %vm2135, %v5487, %v5486
    %v5489 = vrot.slane %v5346, 1
    %v5490 = vsel %vm2138, %v5489, %v5488
    %v5491 = vsel %vm2141, %v5356, %v5490
    %v5492 = vrot.slane %v5366, 7
    %v5493 = vsel %vm2144, %v5492, %v5491
    %5494 = vrot.lane.b32.xlu0 %v5493, 64
    %v5495 = vpop.permute.xlu0 %5494
    %v5497 = vrot.slane %v5296, 7
    %v5498 = vrot.slane %v5306, 6
    %v5499 = vsel %vm2126, %v5498, %v5497
    %v5500 = vrot.slane %v5316, 5
    %v5501 = vsel %vm2129, %v5500, %v5499
    %v5502 = vrot.slane %v5326, 4
    %v5503 = vsel %vm2132, %v5502, %v5501
    %v5504 = vrot.slane %v5336, 3
    %v5505 = vsel %vm2135, %v5504, %v5503
    %v5506 = vrot.slane %v5346, 2
    %v5507 = vsel %vm2138, %v5506, %v5505
    %v5508 = vrot.slane %v5356, 1
    %v5509 = vsel %vm2141, %v5508, %v5507
    %v5510 = vsel %vm2144, %v5366, %v5509
    %5511 = vrot.lane.b32.xlu0 %v5510, 96
    %v5512 = vpop.permute.xlu0 %5511
    %v5522 = vrot.slane %v5311, 7
    %v5523 = vsel %vm2126, %v5522, %v5301
    %v5524 = vrot.slane %v5321, 6
    %v5525 = vsel %vm2129, %v5524, %v5523
    %v5526 = vrot.slane %v5331, 5
    %v5527 = vsel %vm2132, %v5526, %v5525
    %v5528 = vrot.slane %v5341, 4
    %v5529 = vsel %vm2135, %v5528, %v5527
    %v5530 = vrot.slane %v5351, 3
    %v5531 = vsel %vm2138, %v5530, %v5529
    %v5532 = vrot.slane %v5361, 2
    %v5533 = vsel %vm2141, %v5532, %v5531
    %v5534 = vrot.slane %v5371, 1
    %v5535 = vsel %vm2144, %v5534, %v5533
    %v5537 = vrot.slane %v5301, 1
    %v5538 = vsel %vm2126, %v5311, %v5537
    %v5539 = vrot.slane %v5321, 7
    %v5540 = vsel %vm2129, %v5539, %v5538
    %v5541 = vrot.slane %v5331, 6
    %v5542 = vsel %vm2132, %v5541, %v5540
    %v5543 = vrot.slane %v5341, 5
    %v5544 = vsel %vm2135, %v5543, %v5542
    %v5545 = vrot.slane %v5351, 4
    %v5546 = vsel %vm2138, %v5545, %v5544
    %v5547 = vrot.slane %v5361, 3
    %v5548 = vsel %vm2141, %v5547, %v5546
    %v5549 = vrot.slane %v5371, 2
    %v5550 = vsel %vm2144, %v5549, %v5548
    %5551 = vrot.lane.b32.xlu0 %v5550, 32
    %v5552 = vpop.permute.xlu0 %5551
    %v5554 = vrot.slane %v5301, 2
    %v5555 = vrot.slane %v5311, 1
    %v5556 = vsel %vm2126, %v5555, %v5554
    %v5557 = vsel %vm2129, %v5321, %v5556
    %v5558 = vrot.slane %v5331, 7
    %v5559 = vsel %vm2132, %v5558, %v5557
    %v5560 = vrot.slane %v5341, 6
    %v5561 = vsel %vm2135, %v5560, %v5559
    %v5562 = vrot.slane %v5351, 5
    %v5563 = vsel %vm2138, %v5562, %v5561
    %v5564 = vrot.slane %v5361, 4
    %v5565 = vsel %vm2141, %v5564, %v5563
    %v5566 = vrot.slane %v5371, 3
    %v5567 = vsel %vm2144, %v5566, %v5565
    %5568 = vrot.lane.b32.xlu0 %v5567, 64
    %v5569 = vpop.permute.xlu0 %5568
    %v5571 = vrot.slane %v5301, 3
    %v5572 = vrot.slane %v5311, 2
    %v5573 = vsel %vm2126, %v5572, %v5571
    %v5574 = vrot.slane %v5321, 1
    %v5575 = vsel %vm2129, %v5574, %v5573
    %v5576 = vsel %vm2132, %v5331, %v5575
    %v5577 = vrot.slane %v5341, 7
    %v5578 = vsel %vm2135, %v5577, %v5576
    %v5579 = vrot.slane %v5351, 6
    %v5580 = vsel %vm2138, %v5579, %v5578
    %v5581 = vrot.slane %v5361, 5
    %v5582 = vsel %vm2141, %v5581, %v5580
    %v5583 = vrot.slane %v5371, 4
    %v5584 = vsel %vm2144, %v5583, %v5582
    %5585 = vrot.lane.b32.xlu0 %v5584, 96
    %v5586 = vpop.permute.xlu0 %5585
    %v5588 = vrot.slane %v5301, 4
    %v5589 = vrot.slane %v5311, 3
    %v5590 = vsel %vm2126, %v5589, %v5588
    %v5591 = vrot.slane %v5321, 2
    %v5592 = vsel %vm2129, %v5591, %v5590
    %v5593 = vrot.slane %v5331, 1
    %v5594 = vsel %vm2132, %v5593, %v5592
    %v5595 = vsel %vm2135, %v5341, %v5594
    %v5596 = vrot.slane %v5351, 7
    %v5597 = vsel %vm2138, %v5596, %v5595
    %v5598 = vrot.slane %v5361, 6
    %v5599 = vsel %vm2141, %v5598, %v5597
    %v5600 = vrot.slane %v5371, 5
    %v5601 = vsel %vm2144, %v5600, %v5599
    %v5603 = vrot.slane %v5301, 5
    %v5604 = vrot.slane %v5311, 4
    %v5605 = vsel %vm2126, %v5604, %v5603
    %v5606 = vrot.slane %v5321, 3
    %v5607 = vsel %vm2129, %v5606, %v5605
    %v5608 = vrot.slane %v5331, 2
    %v5609 = vsel %vm2132, %v5608, %v5607
    %v5610 = vrot.slane %v5341, 1
    %v5611 = vsel %vm2135, %v5610, %v5609
    %v5612 = vsel %vm2138, %v5351, %v5611
    %v5613 = vrot.slane %v5361, 7
    %v5614 = vsel %vm2141, %v5613, %v5612
    %v5615 = vrot.slane %v5371, 6
    %v5616 = vsel %vm2144, %v5615, %v5614
    %5617 = vrot.lane.b32.xlu0 %v5616, 32
    %v5618 = vpop.permute.xlu0 %5617
    %v5620 = vrot.slane %v5301, 6
    %v5621 = vrot.slane %v5311, 5
    %v5622 = vsel %vm2126, %v5621, %v5620
    %v5623 = vrot.slane %v5321, 4
    %v5624 = vsel %vm2129, %v5623, %v5622
    %v5625 = vrot.slane %v5331, 3
    %v5626 = vsel %vm2132, %v5625, %v5624
    %v5627 = vrot.slane %v5341, 2
    %v5628 = vsel %vm2135, %v5627, %v5626
    %v5629 = vrot.slane %v5351, 1
    %v5630 = vsel %vm2138, %v5629, %v5628
    %v5631 = vsel %vm2141, %v5361, %v5630
    %v5632 = vrot.slane %v5371, 7
    %v5633 = vsel %vm2144, %v5632, %v5631
    %5634 = vrot.lane.b32.xlu0 %v5633, 64
    %v5635 = vpop.permute.xlu0 %5634
    %v5637 = vrot.slane %v5301, 7
    %v5638 = vrot.slane %v5311, 6
    %v5639 = vsel %vm2126, %v5638, %v5637
    %v5640 = vrot.slane %v5321, 5
    %v5641 = vsel %vm2129, %v5640, %v5639
    %v5642 = vrot.slane %v5331, 4
    %v5643 = vsel %vm2132, %v5642, %v5641
    %v5644 = vrot.slane %v5341, 3
    %v5645 = vsel %vm2135, %v5644, %v5643
    %v5646 = vrot.slane %v5351, 2
    %v5647 = vsel %vm2138, %v5646, %v5645
    %v5648 = vrot.slane %v5361, 1
    %v5649 = vsel %vm2141, %v5648, %v5647
    %v5650 = vsel %vm2144, %v5371, %v5649
    %5651 = vrot.lane.b32.xlu0 %v5650, 96
    %v5652 = vpop.permute.xlu0 %5651
    %v5654 = vsel %vm1249, %v5395, %v5412
    %v5655 = vsel %vm2405, %v5654, %v5429
    %v5656 = vsel %vm2407, %v5655, %v5446
    %v5657 = vsel %vm1249, %v5461, %v5478
    %v5658 = vsel %vm2405, %v5657, %v5495
    %v5659 = vsel %vm2407, %v5658, %v5512
    %v5660 = vsel %vm1249, %v5535, %v5552
    %v5661 = vsel %vm2405, %v5660, %v5569
    %v5662 = vsel %vm2407, %v5661, %v5586
    %v5663 = vsel %vm1249, %v5601, %v5618
    %v5664 = vsel %vm2405, %v5663, %v5635
    %v5665 = vsel %vm2407, %v5664, %v5652
    %5666 = vmatprep.subr.mxu0 %v4239
    %5667 = vmatpush1.msra.mxu0 %v4238
    %5668 = vmatprep.subr.mxu0 %v4243
    %5669 = vmatpush1.msra.mxu0 %v4242
    %5670 = vmatprep.subr.mxu0 %v4247
    %5671 = vmatpush1.msra.mxu0 %v4246
    %5672 = vmatprep.subr.mxu0 %v4251
    %5673 = vmatpush1.msra.mxu0 %v4250
    %5674 = vmatprep.subr.mxu0 %v4255
    %5675 = vmatpush1.msra.mxu0 %v4254
    %5676 = vmatprep.subr.mxu0 %v4259
    %5677 = vmatpush1.msra.mxu0 %v4258
    %5678 = vmatprep.subr.mxu0 %v4263
    %5679 = vmatpush1.msra.mxu0 %v4262
    %5680 = vmatprep.subr.mxu0 %v4267
    %5681 = vmatpush1.msra.mxu0 %v4266
    %5682 = vmatprep.subr.mxu0 %v4271
    %5683 = vmatpush1.msra.mxu0 %v4270
    %5684 = vmatprep.subr.mxu0 %v4275
    %5685 = vmatpush1.msra.mxu0 %v4274
    %5686 = vmatprep.subr.mxu0 %v4279
    %5687 = vmatpush1.msra.mxu0 %v4278
    %5688 = vmatprep.subr.mxu0 %v4283
    %5689 = vmatpush1.msra.mxu0 %v4282
    %5690 = vmatprep.subr.mxu0 %v4287
    %5691 = vmatpush1.msra.mxu0 %v4286
    %5692 = vmatprep.subr.mxu0 %v4291
    %5693 = vmatpush1.msra.mxu0 %v4290
    %5694 = vmatprep.subr.mxu0 %v4295
    %5695 = vmatpush1.msra.mxu0 %v4294
    %5696 = vmatprep.subr.mxu0 %v4299
    %5697 = vmatpush1.msra.mxu0 %v4298
    %5698 = vmatprep.subr.mxu0 %v4303
    %5699 = vmatpush1.msra.mxu0 %v4302
    %5700 = vmatprep.subr.mxu0 %v4307
    %5701 = vmatpush1.msra.mxu0 %v4306
    %5702 = vmatprep.subr.mxu0 %v4311
    %5703 = vmatpush1.msra.mxu0 %v4310
    %5704 = vmatprep.subr.mxu0 %v4315
    %5705 = vmatpush1.msra.mxu0 %v4314
    %5706 = vmatprep.subr.mxu0 %v4319
    %5707 = vmatpush1.msra.mxu0 %v4318
    %5708 = vmatprep.subr.mxu0 %v4323
    %5709 = vmatpush1.msra.mxu0 %v4322
    %5710 = vmatprep.subr.mxu0 %v4327
    %5711 = vmatpush1.msra.mxu0 %v4326
    %5712 = vmatprep.subr.mxu0 %v4331
    %5713 = vmatpush1.msra.mxu0 %v4330
    %5714 = vmatprep.subr.mxu0 %v4335
    %5715 = vmatpush1.msra.mxu0 %v4334
    %5716 = vmatprep.subr.mxu0 %v4339
    %5717 = vmatpush1.msra.mxu0 %v4338
    %5718 = vmatprep.subr.mxu0 %v4343
    %5719 = vmatpush1.msra.mxu0 %v4342
    %5720 = vmatprep.subr.mxu0 %v4347
    %5721 = vmatpush1.msra.mxu0 %v4346
    %5722 = vmatprep.subr.mxu0 %v4351
    %5723 = vmatpush1.msra.mxu0 %v4350
    %5724 = vmatprep.subr.mxu0 %v4355
    %5725 = vmatpush1.msra.mxu0 %v4354
    %5726 = vmatprep.subr.mxu0 %v4359
    %5727 = vmatpush1.msra.mxu0 %v4358
    %5728 = vmatprep.subr.mxu0 %v4363
    %5729 = vmatpush1.msra.mxu0 %v4362
    %5730 = vmatprep.mubr.f32.mxu0 %v5659
    %5731 = vmatmul.mubr.f32.gmra.mrb[0].mxu0 %v5656
    %v5732 = vpop.f32.mrb[0].mxu0
    %v5733 = vadd.f32 0.0, %v5732
    %v5734 = vpop.f32.mrb[0].mxu0
    %v5735 = vadd.f32 0.0, %v5734
    %5736 = vdwg.mxu0
    %5737 = vmatprep.subr.mxu0 %v4367
    %5738 = vmatpush1.msra.mxu0 %v4366
    %5739 = vmatprep.subr.mxu0 %v4371
    %5740 = vmatpush1.msra.mxu0 %v4370
    %5741 = vmatprep.subr.mxu0 %v4375
    %5742 = vmatpush1.msra.mxu0 %v4374
    %5743 = vmatprep.subr.mxu0 %v4379
    %5744 = vmatpush1.msra.mxu0 %v4378
    %5745 = vmatprep.subr.mxu0 %v4383
    %5746 = vmatpush1.msra.mxu0 %v4382
    %5747 = vmatprep.subr.mxu0 %v4387
    %5748 = vmatpush1.msra.mxu0 %v4386
    %5749 = vmatprep.subr.mxu0 %v4391
    %5750 = vmatpush1.msra.mxu0 %v4390
    %5751 = vmatprep.subr.mxu0 %v4395
    %5752 = vmatpush1.msra.mxu0 %v4394
    %5753 = vmatprep.subr.mxu0 %v4399
    %5754 = vmatpush1.msra.mxu0 %v4398
    %5755 = vmatprep.subr.mxu0 %v4403
    %5756 = vmatpush1.msra.mxu0 %v4402
    %5757 = vmatprep.subr.mxu0 %v4407
    %5758 = vmatpush1.msra.mxu0 %v4406
    %5759 = vmatprep.subr.mxu0 %v4411
    %5760 = vmatpush1.msra.mxu0 %v4410
    %5761 = vmatprep.subr.mxu0 %v4415
    %5762 = vmatpush1.msra.mxu0 %v4414
    %5763 = vmatprep.subr.mxu0 %v4419
    %5764 = vmatpush1.msra.mxu0 %v4418
    %5765 = vmatprep.subr.mxu0 %v4423
    %5766 = vmatpush1.msra.mxu0 %v4422
    %5767 = vmatprep.subr.mxu0 %v4427
    %5768 = vmatpush1.msra.mxu0 %v4426
    %5769 = vmatprep.subr.mxu0 %v4431
    %5770 = vmatpush1.msra.mxu0 %v4430
    %5771 = vmatprep.subr.mxu0 %v4435
    %5772 = vmatpush1.msra.mxu0 %v4434
    %5773 = vmatprep.subr.mxu0 %v4439
    %5774 = vmatpush1.msra.mxu0 %v4438
    %5775 = vmatprep.subr.mxu0 %v4443
    %5776 = vmatpush1.msra.mxu0 %v4442
    %5777 = vmatprep.subr.mxu0 %v4447
    %5778 = vmatpush1.msra.mxu0 %v4446
    %5779 = vmatprep.subr.mxu0 %v4451
    %5780 = vmatpush1.msra.mxu0 %v4450
    %5781 = vmatprep.subr.mxu0 %v4455
    %5782 = vmatpush1.msra.mxu0 %v4454
    %5783 = vmatprep.subr.mxu0 %v4459
    %5784 = vmatpush1.msra.mxu0 %v4458
    %5785 = vmatprep.subr.mxu0 %v4463
    %5786 = vmatpush1.msra.mxu0 %v4462
    %5787 = vmatprep.subr.mxu0 %v4467
    %5788 = vmatpush1.msra.mxu0 %v4466
    %5789 = vmatprep.subr.mxu0 %v4471
    %5790 = vmatpush1.msra.mxu0 %v4470
    %5791 = vmatprep.subr.mxu0 %v4475
    %5792 = vmatpush1.msra.mxu0 %v4474
    %5793 = vmatprep.subr.mxu0 %v4479
    %5794 = vmatpush1.msra.mxu0 %v4478
    %5795 = vmatprep.subr.mxu0 %v4483
    %5796 = vmatpush1.msra.mxu0 %v4482
    %5797 = vmatprep.subr.mxu0 %v4487
    %5798 = vmatpush1.msra.mxu0 %v4486
    %5799 = vmatprep.subr.mxu0 %v4491
    %5800 = vmatpush1.msra.mxu0 %v4490
    %5801 = vmatprep.mubr.f32.mxu0 %v5665
    %5802 = vmatmul.mubr.f32.gmra.mrb[0].mxu0 %v5662
    %v5803 = vpop.f32.mrb[0].mxu0
    %v5804 = vadd.f32 %v5733, %v5803
    %v5805 = vpop.f32.mrb[0].mxu0
    %v5806 = vadd.f32 %v5735, %v5805
    %5807 = vdwg.mxu0
    %5808 = vmatprep.subr.mxu0 %v4241
    %5809 = vmatpush1.msra.mxu0 %v4240
    %5810 = vmatprep.subr.mxu0 %v4245
    %5811 = vmatpush1.msra.mxu0 %v4244
    %5812 = vmatprep.subr.mxu0 %v4249
    %5813 = vmatpush1.msra.mxu0 %v4248
    %5814 = vmatprep.subr.mxu0 %v4253
    %5815 = vmatpush1.msra.mxu0 %v4252
    %5816 = vmatprep.subr.mxu0 %v4257
    %5817 = vmatpush1.msra.mxu0 %v4256
    %5818 = vmatprep.subr.mxu0 %v4261
    %5819 = vmatpush1.msra.mxu0 %v4260
    %5820 = vmatprep.subr.mxu0 %v4265
    %5821 = vmatpush1.msra.mxu0 %v4264
    %5822 = vmatprep.subr.mxu0 %v4269
    %5823 = vmatpush1.msra.mxu0 %v4268
    %5824 = vmatprep.subr.mxu0 %v4273
    %5825 = vmatpush1.msra.mxu0 %v4272
    %5826 = vmatprep.subr.mxu0 %v4277
    %5827 = vmatpush1.msra.mxu0 %v4276
    %5828 = vmatprep.subr.mxu0 %v4281
    %5829 = vmatpush1.msra.mxu0 %v4280
    %5830 = vmatprep.subr.mxu0 %v4285
    %5831 = vmatpush1.msra.mxu0 %v4284
    %5832 = vmatprep.subr.mxu0 %v4289
    %5833 = vmatpush1.msra.mxu0 %v4288
    %5834 = vmatprep.subr.mxu0 %v4293
    %5835 = vmatpush1.msra.mxu0 %v4292
    %5836 = vmatprep.subr.mxu0 %v4297
    %5837 = vmatpush1.msra.mxu0 %v4296
    %5838 = vmatprep.subr.mxu0 %v4301
    %5839 = vmatpush1.msra.mxu0 %v4300
    %5840 = vmatprep.subr.mxu0 %v4305
    %5841 = vmatpush1.msra.mxu0 %v4304
    %5842 = vmatprep.subr.mxu0 %v4309
    %5843 = vmatpush1.msra.mxu0 %v4308
    %5844 = vmatprep.subr.mxu0 %v4313
    %5845 = vmatpush1.msra.mxu0 %v4312
    %5846 = vmatprep.subr.mxu0 %v4317
    %5847 = vmatpush1.msra.mxu0 %v4316
    %5848 = vmatprep.subr.mxu0 %v4321
    %5849 = vmatpush1.msra.mxu0 %v4320
    %5850 = vmatprep.subr.mxu0 %v4325
    %5851 = vmatpush1.msra.mxu0 %v4324
    %5852 = vmatprep.subr.mxu0 %v4329
    %5853 = vmatpush1.msra.mxu0 %v4328
    %5854 = vmatprep.subr.mxu0 %v4333
    %5855 = vmatpush1.msra.mxu0 %v4332
    %5856 = vmatprep.subr.mxu0 %v4337
    %5857 = vmatpush1.msra.mxu0 %v4336
    %5858 = vmatprep.subr.mxu0 %v4341
    %5859 = vmatpush1.msra.mxu0 %v4340
    %5860 = vmatprep.subr.mxu0 %v4345
    %5861 = vmatpush1.msra.mxu0 %v4344
    %5862 = vmatprep.subr.mxu0 %v4349
    %5863 = vmatpush1.msra.mxu0 %v4348
    %5864 = vmatprep.subr.mxu0 %v4353
    %5865 = vmatpush1.msra.mxu0 %v4352
    %5866 = vmatprep.subr.mxu0 %v4357
    %5867 = vmatpush1.msra.mxu0 %v4356
    %5868 = vmatprep.subr.mxu0 %v4361
    %5869 = vmatpush1.msra.mxu0 %v4360
    %5870 = vmatprep.subr.mxu0 %v4365
    %5871 = vmatpush1.msra.mxu0 %v4364
    %5872 = vmatprep.mubr.f32.mxu0 %v5659
    %5873 = vmatmul.mubr.f32.gmra.mrb[0].mxu0 %v5656
    %v5874 = vpop.f32.mrb[0].mxu0
    %v5875 = vadd.f32 0.0, %v5874
    %v5876 = vpop.f32.mrb[0].mxu0
    %v5877 = vadd.f32 0.0, %v5876
    %5878 = vdwg.mxu0
    %5879 = vmatprep.subr.mxu0 %v4369
    %5880 = vmatpush1.msra.mxu0 %v4368
    %5881 = vmatprep.subr.mxu0 %v4373
    %5882 = vmatpush1.msra.mxu0 %v4372
    %5883 = vmatprep.subr.mxu0 %v4377
    %5884 = vmatpush1.msra.mxu0 %v4376
    %5885 = vmatprep.subr.mxu0 %v4381
    %5886 = vmatpush1.msra.mxu0 %v4380
    %5887 = vmatprep.subr.mxu0 %v4385
    %5888 = vmatpush1.msra.mxu0 %v4384
    %5889 = vmatprep.subr.mxu0 %v4389
    %5890 = vmatpush1.msra.mxu0 %v4388
    %5891 = vmatprep.subr.mxu0 %v4393
    %5892 = vmatpush1.msra.mxu0 %v4392
    %5893 = vmatprep.subr.mxu0 %v4397
    %5894 = vmatpush1.msra.mxu0 %v4396
    %5895 = vmatprep.subr.mxu0 %v4401
    %5896 = vmatpush1.msra.mxu0 %v4400
    %5897 = vmatprep.subr.mxu0 %v4405
    %5898 = vmatpush1.msra.mxu0 %v4404
    %5899 = vmatprep.subr.mxu0 %v4409
    %5900 = vmatpush1.msra.mxu0 %v4408
    %5901 = vmatprep.subr.mxu0 %v4413
    %5902 = vmatpush1.msra.mxu0 %v4412
    %5903 = vmatprep.subr.mxu0 %v4417
    %5904 = vmatpush1.msra.mxu0 %v4416
    %5905 = vmatprep.subr.mxu0 %v4421
    %5906 = vmatpush1.msra.mxu0 %v4420
    %5907 = vmatprep.subr.mxu0 %v4425
    %5908 = vmatpush1.msra.mxu0 %v4424
    %5909 = vmatprep.subr.mxu0 %v4429
    %5910 = vmatpush1.msra.mxu0 %v4428
    %5911 = vmatprep.subr.mxu0 %v4433
    %5912 = vmatpush1.msra.mxu0 %v4432
    %5913 = vmatprep.subr.mxu0 %v4437
    %5914 = vmatpush1.msra.mxu0 %v4436
    %5915 = vmatprep.subr.mxu0 %v4441
    %5916 = vmatpush1.msra.mxu0 %v4440
    %5917 = vmatprep.subr.mxu0 %v4445
    %5918 = vmatpush1.msra.mxu0 %v4444
    %5919 = vmatprep.subr.mxu0 %v4449
    %5920 = vmatpush1.msra.mxu0 %v4448
    %5921 = vmatprep.subr.mxu0 %v4453
    %5922 = vmatpush1.msra.mxu0 %v4452
    %5923 = vmatprep.subr.mxu0 %v4457
    %5924 = vmatpush1.msra.mxu0 %v4456
    %5925 = vmatprep.subr.mxu0 %v4461
    %5926 = vmatpush1.msra.mxu0 %v4460
    %5927 = vmatprep.subr.mxu0 %v4465
    %5928 = vmatpush1.msra.mxu0 %v4464
    %5929 = vmatprep.subr.mxu0 %v4469
    %5930 = vmatpush1.msra.mxu0 %v4468
    %5931 = vmatprep.subr.mxu0 %v4473
    %5932 = vmatpush1.msra.mxu0 %v4472
    %5933 = vmatprep.subr.mxu0 %v4477
    %5934 = vmatpush1.msra.mxu0 %v4476
    %5935 = vmatprep.subr.mxu0 %v4481
    %5936 = vmatpush1.msra.mxu0 %v4480
    %5937 = vmatprep.subr.mxu0 %v4485
    %5938 = vmatpush1.msra.mxu0 %v4484
    %5939 = vmatprep.subr.mxu0 %v4489
    %5940 = vmatpush1.msra.mxu0 %v4488
    %5941 = vmatprep.subr.mxu0 %v4493
    %5942 = vmatpush1.msra.mxu0 %v4492
    %5943 = vmatprep.mubr.f32.mxu0 %v5665
    %5944 = vmatmul.mubr.f32.gmra.mrb[0].mxu0 %v5662
    %v5945 = vpop.f32.mrb[0].mxu0
    %v5946 = vadd.f32 %v5875, %v5945
    %v5947 = vpop.f32.mrb[0].mxu0
    %v5948 = vadd.f32 %v5877, %v5947
    %5949 = vdwg.mxu0
    %v5951 = vcombine.high %v5804, %v5804
    %v5953 = vunpack.c.l.s4 1966171168
    %v5954 = vunpack.c.0.s8 %v5953
    %v5955 = vlaneseq
    %v5956 = vshrl.u32 %v5955, 7
    %v5957 = vsub.s32 %v5954, %v5956
    %v5958 = vrot.slane %v5804, %v5957
    %v5960 = vunpack.c.l.s4 1966171168
    %v5961 = vunpack.c.0.s8 %v5960
    %v5962 = vlaneseq
    %v5963 = vshrl.u32 %v5962, 7
    %v5964 = vsub.s32 %v5961, %v5963
    %v5965 = vrot.slane %v5951, %v5964
    %v5966 = vcombine.high %v5958, %v5958
    %v5967 = vcombine.high %v5965, %v5965
    %v5969 = vunpack.c.l.s4 1966171168
    %v5970 = vunpack.c.0.s8 %v5969
    %v5971 = vlaneseq
    %v5972 = vshrl.u32 %v5971, 7
    %v5973 = vsub.s32 %v5970, %v5972
    %v5974 = vrot.slane %v5958, %v5973
    %v5976 = vunpack.c.l.s4 1966171168
    %v5977 = vunpack.c.0.s8 %v5976
    %v5978 = vlaneseq
    %v5979 = vshrl.u32 %v5978, 7
    %v5980 = vsub.s32 %v5977, %v5979
    %v5981 = vrot.slane %v5965, %v5980
    %v5983 = vunpack.c.l.s4 1966171168
    %v5984 = vunpack.c.0.s8 %v5983
    %v5985 = vlaneseq
    %v5986 = vshrl.u32 %v5985, 7
    %v5987 = vsub.s32 %v5984, %v5986
    %v5988 = vrot.slane %v5966, %v5987
    %v5990 = vunpack.c.l.s4 1966171168
    %v5991 = vunpack.c.0.s8 %v5990
    %v5992 = vlaneseq
    %v5993 = vshrl.u32 %v5992, 7
    %v5994 = vsub.s32 %v5991, %v5993
    %v5995 = vrot.slane %v5967, %v5994
    %v5996 = vcombine.high %v5974, %v5974
    %v5997 = vcombine.high %v5981, %v5981
    %v5998 = vcombine.high %v5988, %v5988
    %v5999 = vcombine.high %v5995, %v5995
    %v6009 = vcombine.high %v5806, %v5806
    %v6011 = vunpack.c.l.s4 1966171168
    %v6012 = vunpack.c.0.s8 %v6011
    %v6013 = vlaneseq
    %v6014 = vshrl.u32 %v6013, 7
    %v6015 = vsub.s32 %v6012, %v6014
    %v6016 = vrot.slane %v5806, %v6015
    %v6018 = vunpack.c.l.s4 1966171168
    %v6019 = vunpack.c.0.s8 %v6018
    %v6020 = vlaneseq
    %v6021 = vshrl.u32 %v6020, 7
    %v6022 = vsub.s32 %v6019, %v6021
    %v6023 = vrot.slane %v6009, %v6022
    %v6024 = vcombine.high %v6016, %v6016
    %v6025 = vcombine.high %v6023, %v6023
    %v6027 = vunpack.c.l.s4 1966171168
    %v6028 = vunpack.c.0.s8 %v6027
    %v6029 = vlaneseq
    %v6030 = vshrl.u32 %v6029, 7
    %v6031 = vsub.s32 %v6028, %v6030
    %v6032 = vrot.slane %v6016, %v6031
    %v6034 = vunpack.c.l.s4 1966171168
    %v6035 = vunpack.c.0.s8 %v6034
    %v6036 = vlaneseq
    %v6037 = vshrl.u32 %v6036, 7
    %v6038 = vsub.s32 %v6035, %v6037
    %v6039 = vrot.slane %v6023, %v6038
    %v6041 = vunpack.c.l.s4 1966171168
    %v6042 = vunpack.c.0.s8 %v6041
    %v6043 = vlaneseq
    %v6044 = vshrl.u32 %v6043, 7
    %v6045 = vsub.s32 %v6042, %v6044
    %v6046 = vrot.slane %v6024, %v6045
    %v6048 = vunpack.c.l.s4 1966171168
    %v6049 = vunpack.c.0.s8 %v6048
    %v6050 = vlaneseq
    %v6051 = vshrl.u32 %v6050, 7
    %v6052 = vsub.s32 %v6049, %v6051
    %v6053 = vrot.slane %v6025, %v6052
    %v6054 = vcombine.high %v6032, %v6032
    %v6055 = vcombine.high %v6039, %v6039
    %v6056 = vcombine.high %v6046, %v6046
    %v6057 = vcombine.high %v6053, %v6053
    %v6059 = vcombine.high %v5946, %v5946
    %v6061 = vunpack.c.l.s4 1966171168
    %v6062 = vunpack.c.0.s8 %v6061
    %v6063 = vlaneseq
    %v6064 = vshrl.u32 %v6063, 7
    %v6065 = vsub.s32 %v6062, %v6064
    %v6066 = vrot.slane %v5946, %v6065
    %v6068 = vunpack.c.l.s4 1966171168
    %v6069 = vunpack.c.0.s8 %v6068
    %v6070 = vlaneseq
    %v6071 = vshrl.u32 %v6070, 7
    %v6072 = vsub.s32 %v6069, %v6071
    %v6073 = vrot.slane %v6059, %v6072
    %v6074 = vcombine.high %v6066, %v6066
    %v6075 = vcombine.high %v6073, %v6073
    %v6077 = vunpack.c.l.s4 1966171168
    %v6078 = vunpack.c.0.s8 %v6077
    %v6079 = vlaneseq
    %v6080 = vshrl.u32 %v6079, 7
    %v6081 = vsub.s32 %v6078, %v6080
    %v6082 = vrot.slane %v6066, %v6081
    %v6084 = vunpack.c.l.s4 1966171168
    %v6085 = vunpack.c.0.s8 %v6084
    %v6086 = vlaneseq
    %v6087 = vshrl.u32 %v6086, 7
    %v6088 = vsub.s32 %v6085, %v6087
    %v6089 = vrot.slane %v6073, %v6088
    %v6091 = vunpack.c.l.s4 1966171168
    %v6092 = vunpack.c.0.s8 %v6091
    %v6093 = vlaneseq
    %v6094 = vshrl.u32 %v6093, 7
    %v6095 = vsub.s32 %v6092, %v6094
    %v6096 = vrot.slane %v6074, %v6095
    %v6098 = vunpack.c.l.s4 1966171168
    %v6099 = vunpack.c.0.s8 %v6098
    %v6100 = vlaneseq
    %v6101 = vshrl.u32 %v6100, 7
    %v6102 = vsub.s32 %v6099, %v6101
    %v6103 = vrot.slane %v6075, %v6102
    %v6104 = vcombine.high %v6082, %v6082
    %v6105 = vcombine.high %v6089, %v6089
    %v6106 = vcombine.high %v6096, %v6096
    %v6107 = vcombine.high %v6103, %v6103
    %v6117 = vcombine.high %v5948, %v5948
    %v6119 = vunpack.c.l.s4 1966171168
    %v6120 = vunpack.c.0.s8 %v6119
    %v6121 = vlaneseq
    %v6122 = vshrl.u32 %v6121, 7
    %v6123 = vsub.s32 %v6120, %v6122
    %v6124 = vrot.slane %v5948, %v6123
    %v6126 = vunpack.c.l.s4 1966171168
    %v6127 = vunpack.c.0.s8 %v6126
    %v6128 = vlaneseq
    %v6129 = vshrl.u32 %v6128, 7
    %v6130 = vsub.s32 %v6127, %v6129
    %v6131 = vrot.slane %v6117, %v6130
    %v6132 = vcombine.high %v6124, %v6124
    %v6133 = vcombine.high %v6131, %v6131
    %v6135 = vunpack.c.l.s4 1966171168
    %v6136 = vunpack.c.0.s8 %v6135
    %v6137 = vlaneseq
    %v6138 = vshrl.u32 %v6137, 7
    %v6139 = vsub.s32 %v6136, %v6138
    %v6140 = vrot.slane %v6124, %v6139
    %v6142 = vunpack.c.l.s4 1966171168
    %v6143 = vunpack.c.0.s8 %v6142
    %v6144 = vlaneseq
    %v6145 = vshrl.u32 %v6144, 7
    %v6146 = vsub.s32 %v6143, %v6145
    %v6147 = vrot.slane %v6131, %v6146
    %v6149 = vunpack.c.l.s4 1966171168
    %v6150 = vunpack.c.0.s8 %v6149
    %v6151 = vlaneseq
    %v6152 = vshrl.u32 %v6151, 7
    %v6153 = vsub.s32 %v6150, %v6152
    %v6154 = vrot.slane %v6132, %v6153
    %v6156 = vunpack.c.l.s4 1966171168
    %v6157 = vunpack.c.0.s8 %v6156
    %v6158 = vlaneseq
    %v6159 = vshrl.u32 %v6158, 7
    %v6160 = vsub.s32 %v6157, %v6159
    %v6161 = vrot.slane %v6133, %v6160
    %v6162 = vcombine.high %v6140, %v6140
    %v6163 = vcombine.high %v6147, %v6147
    %v6164 = vcombine.high %v6154, %v6154
    %v6165 = vcombine.high %v6161, %v6161
    %v6166 = vlaneseq
    %v6167 = vshrl.u32 %v6166, 7
    %v6168 = vsub.s32 0, %v6167
    %v6169 = vrot.slane %v5974, %v6168
    %v6170 = vlaneseq
    %v6171 = vshrl.u32 %v6170, 7
    %v6172 = vsub.s32 0, %v6171
    %v6173 = vrot.slane %v5988, %v6172
    %v6174 = vlaneseq
    %v6175 = vshrl.u32 %v6174, 7
    %v6176 = vsub.s32 0, %v6175
    %v6177 = vrot.slane %v5996, %v6176
    %v6178 = vlaneseq
    %v6179 = vshrl.u32 %v6178, 7
    %v6180 = vsub.s32 0, %v6179
    %v6181 = vrot.slane %v5998, %v6180
    %v6182 = vlaneseq
    %v6183 = vshrl.u32 %v6182, 7
    %v6184 = vsub.s32 0, %v6183
    %v6185 = vrot.slane %v5981, %v6184
    %v6186 = vlaneseq
    %v6187 = vshrl.u32 %v6186, 7
    %v6188 = vsub.s32 0, %v6187
    %v6189 = vrot.slane %v5995, %v6188
    %v6190 = vlaneseq
    %v6191 = vshrl.u32 %v6190, 7
    %v6192 = vsub.s32 0, %v6191
    %v6193 = vrot.slane %v5997, %v6192
    %v6194 = vlaneseq
    %v6195 = vshrl.u32 %v6194, 7
    %v6196 = vsub.s32 0, %v6195
    %v6197 = vrot.slane %v5999, %v6196
    %6198 = vrot.lane.b32.xlu0 %v6169, 96
    %v6199 = vpop.permute.xlu0 %6198
    %6200 = vrot.lane.b32.xlu0 %v6173, 96
    %v6201 = vpop.permute.xlu0 %6200
    %6202 = vrot.lane.b32.xlu0 %v6177, 96
    %v6203 = vpop.permute.xlu0 %6202
    %6204 = vrot.lane.b32.xlu0 %v6181, 96
    %v6205 = vpop.permute.xlu0 %6204
    %6206 = vrot.lane.b32.xlu0 %v6185, 96
    %v6207 = vpop.permute.xlu0 %6206
    %6208 = vrot.lane.b32.xlu0 %v6189, 96
    %v6209 = vpop.permute.xlu0 %6208
    %6210 = vrot.lane.b32.xlu0 %v6193, 96
    %v6211 = vpop.permute.xlu0 %6210
    %6212 = vrot.lane.b32.xlu0 %v6197, 96
    %v6213 = vpop.permute.xlu0 %6212
    %6222 = vrot.lane.b32.xlu0 %v6169, 64
    %v6223 = vpop.permute.xlu0 %6222
    %6224 = vrot.lane.b32.xlu0 %v6173, 64
    %v6225 = vpop.permute.xlu0 %6224
    %6226 = vrot.lane.b32.xlu0 %v6177, 64
    %v6227 = vpop.permute.xlu0 %6226
    %6228 = vrot.lane.b32.xlu0 %v6181, 64
    %v6229 = vpop.permute.xlu0 %6228
    %6230 = vrot.lane.b32.xlu0 %v6185, 64
    %v6231 = vpop.permute.xlu0 %6230
    %6232 = vrot.lane.b32.xlu0 %v6189, 64
    %v6233 = vpop.permute.xlu0 %6232
    %6234 = vrot.lane.b32.xlu0 %v6193, 64
    %v6235 = vpop.permute.xlu0 %6234
    %6236 = vrot.lane.b32.xlu0 %v6197, 64
    %v6237 = vpop.permute.xlu0 %6236
    %6246 = vrot.lane.b32.xlu0 %v6169, 32
    %v6247 = vpop.permute.xlu0 %6246
    %6248 = vrot.lane.b32.xlu0 %v6173, 32
    %v6249 = vpop.permute.xlu0 %6248
    %6250 = vrot.lane.b32.xlu0 %v6177, 32
    %v6251 = vpop.permute.xlu0 %6250
    %6252 = vrot.lane.b32.xlu0 %v6181, 32
    %v6253 = vpop.permute.xlu0 %6252
    %6254 = vrot.lane.b32.xlu0 %v6185, 32
    %v6255 = vpop.permute.xlu0 %6254
    %6256 = vrot.lane.b32.xlu0 %v6189, 32
    %v6257 = vpop.permute.xlu0 %6256
    %6258 = vrot.lane.b32.xlu0 %v6193, 32
    %v6259 = vpop.permute.xlu0 %6258
    %6260 = vrot.lane.b32.xlu0 %v6197, 32
    %v6261 = vpop.permute.xlu0 %6260
    %v6270 = vlaneseq
    %v6271 = vshrl.u32 %v6270, 7
    %v6272 = vsub.s32 0, %v6271
    %v6273 = vrot.slane %v6032, %v6272
    %v6274 = vlaneseq
    %v6275 = vshrl.u32 %v6274, 7
    %v6276 = vsub.s32 0, %v6275
    %v6277 = vrot.slane %v6046, %v6276
    %v6278 = vlaneseq
    %v6279 = vshrl.u32 %v6278, 7
    %v6280 = vsub.s32 0, %v6279
    %v6281 = vrot.slane %v6054, %v6280
    %v6282 = vlaneseq
    %v6283 = vshrl.u32 %v6282, 7
    %v6284 = vsub.s32 0, %v6283
    %v6285 = vrot.slane %v6056, %v6284
    %v6286 = vlaneseq
    %v6287 = vshrl.u32 %v6286, 7
    %v6288 = vsub.s32 0, %v6287
    %v6289 = vrot.slane %v6039, %v6288
    %v6290 = vlaneseq
    %v6291 = vshrl.u32 %v6290, 7
    %v6292 = vsub.s32 0, %v6291
    %v6293 = vrot.slane %v6053, %v6292
    %v6294 = vlaneseq
    %v6295 = vshrl.u32 %v6294, 7
    %v6296 = vsub.s32 0, %v6295
    %v6297 = vrot.slane %v6055, %v6296
    %v6298 = vlaneseq
    %v6299 = vshrl.u32 %v6298, 7
    %v6300 = vsub.s32 0, %v6299
    %v6301 = vrot.slane %v6057, %v6300
    %6310 = vrot.lane.b32.xlu0 %v6273, 96
    %v6311 = vpop.permute.xlu0 %6310
    %6312 = vrot.lane.b32.xlu0 %v6277, 96
    %v6313 = vpop.permute.xlu0 %6312
    %6314 = vrot.lane.b32.xlu0 %v6281, 96
    %v6315 = vpop.permute.xlu0 %6314
    %6316 = vrot.lane.b32.xlu0 %v6285, 96
    %v6317 = vpop.permute.xlu0 %6316
    %6318 = vrot.lane.b32.xlu0 %v6289, 96
    %v6319 = vpop.permute.xlu0 %6318
    %6320 = vrot.lane.b32.xlu0 %v6293, 96
    %v6321 = vpop.permute.xlu0 %6320
    %6322 = vrot.lane.b32.xlu0 %v6297, 96
    %v6323 = vpop.permute.xlu0 %6322
    %6324 = vrot.lane.b32.xlu0 %v6301, 96
    %v6325 = vpop.permute.xlu0 %6324
    %6334 = vrot.lane.b32.xlu0 %v6273, 64
    %v6335 = vpop.permute.xlu0 %6334
    %6336 = vrot.lane.b32.xlu0 %v6277, 64
    %v6337 = vpop.permute.xlu0 %6336
    %6338 = vrot.lane.b32.xlu0 %v6281, 64
    %v6339 = vpop.permute.xlu0 %6338
    %6340 = vrot.lane.b32.xlu0 %v6285, 64
    %v6341 = vpop.permute.xlu0 %6340
    %6342 = vrot.lane.b32.xlu0 %v6289, 64
    %v6343 = vpop.permute.xlu0 %6342
    %6344 = vrot.lane.b32.xlu0 %v6293, 64
    %v6345 = vpop.permute.xlu0 %6344
    %6346 = vrot.lane.b32.xlu0 %v6297, 64
    %v6347 = vpop.permute.xlu0 %6346
    %6348 = vrot.lane.b32.xlu0 %v6301, 64
    %v6349 = vpop.permute.xlu0 %6348
    %6358 = vrot.lane.b32.xlu0 %v6273, 32
    %v6359 = vpop.permute.xlu0 %6358
    %6360 = vrot.lane.b32.xlu0 %v6277, 32
    %v6361 = vpop.permute.xlu0 %6360
    %6362 = vrot.lane.b32.xlu0 %v6281, 32
    %v6363 = vpop.permute.xlu0 %6362
    %6364 = vrot.lane.b32.xlu0 %v6285, 32
    %v6365 = vpop.permute.xlu0 %6364
    %6366 = vrot.lane.b32.xlu0 %v6289, 32
    %v6367 = vpop.permute.xlu0 %6366
    %6368 = vrot.lane.b32.xlu0 %v6293, 32
    %v6369 = vpop.permute.xlu0 %6368
    %6370 = vrot.lane.b32.xlu0 %v6297, 32
    %v6371 = vpop.permute.xlu0 %6370
    %6372 = vrot.lane.b32.xlu0 %v6301, 32
    %v6373 = vpop.permute.xlu0 %6372
    %v6382 = vlaneseq
    %v6383 = vshrl.u32 %v6382, 7
    %v6384 = vsub.s32 0, %v6383
    %v6385 = vrot.slane %v6082, %v6384
    %v6386 = vlaneseq
    %v6387 = vshrl.u32 %v6386, 7
    %v6388 = vsub.s32 0, %v6387
    %v6389 = vrot.slane %v6096, %v6388
    %v6390 = vlaneseq
    %v6391 = vshrl.u32 %v6390, 7
    %v6392 = vsub.s32 0, %v6391
    %v6393 = vrot.slane %v6104, %v6392
    %v6394 = vlaneseq
    %v6395 = vshrl.u32 %v6394, 7
    %v6396 = vsub.s32 0, %v6395
    %v6397 = vrot.slane %v6106, %v6396
    %v6398 = vlaneseq
    %v6399 = vshrl.u32 %v6398, 7
    %v6400 = vsub.s32 0, %v6399
    %v6401 = vrot.slane %v6089, %v6400
    %v6402 = vlaneseq
    %v6403 = vshrl.u32 %v6402, 7
    %v6404 = vsub.s32 0, %v6403
    %v6405 = vrot.slane %v6103, %v6404
    %v6406 = vlaneseq
    %v6407 = vshrl.u32 %v6406, 7
    %v6408 = vsub.s32 0, %v6407
    %v6409 = vrot.slane %v6105, %v6408
    %v6410 = vlaneseq
    %v6411 = vshrl.u32 %v6410, 7
    %v6412 = vsub.s32 0, %v6411
    %v6413 = vrot.slane %v6107, %v6412
    %6414 = vrot.lane.b32.xlu0 %v6385, 96
    %v6415 = vpop.permute.xlu0 %6414
    %6416 = vrot.lane.b32.xlu0 %v6389, 96
    %v6417 = vpop.permute.xlu0 %6416
    %6418 = vrot.lane.b32.xlu0 %v6393, 96
    %v6419 = vpop.permute.xlu0 %6418
    %6420 = vrot.lane.b32.xlu0 %v6397, 96
    %v6421 = vpop.permute.xlu0 %6420
    %6422 = vrot.lane.b32.xlu0 %v6401, 96
    %v6423 = vpop.permute.xlu0 %6422
    %6424 = vrot.lane.b32.xlu0 %v6405, 96
    %v6425 = vpop.permute.xlu0 %6424
    %6426 = vrot.lane.b32.xlu0 %v6409, 96
    %v6427 = vpop.permute.xlu0 %6426
    %6428 = vrot.lane.b32.xlu0 %v6413, 96
    %v6429 = vpop.permute.xlu0 %6428
    %6438 = vrot.lane.b32.xlu0 %v6385, 64
    %v6439 = vpop.permute.xlu0 %6438
    %6440 = vrot.lane.b32.xlu0 %v6389, 64
    %v6441 = vpop.permute.xlu0 %6440
    %6442 = vrot.lane.b32.xlu0 %v6393, 64
    %v6443 = vpop.permute.xlu0 %6442
    %6444 = vrot.lane.b32.xlu0 %v6397, 64
    %v6445 = vpop.permute.xlu0 %6444
    %6446 = vrot.lane.b32.xlu0 %v6401, 64
    %v6447 = vpop.permute.xlu0 %6446
    %6448 = vrot.lane.b32.xlu0 %v6405, 64
    %v6449 = vpop.permute.xlu0 %6448
    %6450 = vrot.lane.b32.xlu0 %v6409, 64
    %v6451 = vpop.permute.xlu0 %6450
    %6452 = vrot.lane.b32.xlu0 %v6413, 64
    %v6453 = vpop.permute.xlu0 %6452
    %6462 = vrot.lane.b32.xlu0 %v6385, 32
    %v6463 = vpop.permute.xlu0 %6462
    %6464 = vrot.lane.b32.xlu0 %v6389, 32
    %v6465 = vpop.permute.xlu0 %6464
    %6466 = vrot.lane.b32.xlu0 %v6393, 32
    %v6467 = vpop.permute.xlu0 %6466
    %6468 = vrot.lane.b32.xlu0 %v6397, 32
    %v6469 = vpop.permute.xlu0 %6468
    %6470 = vrot.lane.b32.xlu0 %v6401, 32
    %v6471 = vpop.permute.xlu0 %6470
    %6472 = vrot.lane.b32.xlu0 %v6405, 32
    %v6473 = vpop.permute.xlu0 %6472
    %6474 = vrot.lane.b32.xlu0 %v6409, 32
    %v6475 = vpop.permute.xlu0 %6474
    %6476 = vrot.lane.b32.xlu0 %v6413, 32
    %v6477 = vpop.permute.xlu0 %6476
    %v6486 = vlaneseq
    %v6487 = vshrl.u32 %v6486, 7
    %v6488 = vsub.s32 0, %v6487
    %v6489 = vrot.slane %v6140, %v6488
    %v6490 = vlaneseq
    %v6491 = vshrl.u32 %v6490, 7
    %v6492 = vsub.s32 0, %v6491
    %v6493 = vrot.slane %v6154, %v6492
    %v6494 = vlaneseq
    %v6495 = vshrl.u32 %v6494, 7
    %v6496 = vsub.s32 0, %v6495
    %v6497 = vrot.slane %v6162, %v6496
    %v6498 = vlaneseq
    %v6499 = vshrl.u32 %v6498, 7
    %v6500 = vsub.s32 0, %v6499
    %v6501 = vrot.slane %v6164, %v6500
    %v6502 = vlaneseq
    %v6503 = vshrl.u32 %v6502, 7
    %v6504 = vsub.s32 0, %v6503
    %v6505 = vrot.slane %v6147, %v6504
    %v6506 = vlaneseq
    %v6507 = vshrl.u32 %v6506, 7
    %v6508 = vsub.s32 0, %v6507
    %v6509 = vrot.slane %v6161, %v6508
    %v6510 = vlaneseq
    %v6511 = vshrl.u32 %v6510, 7
    %v6512 = vsub.s32 0, %v6511
    %v6513 = vrot.slane %v6163, %v6512
    %v6514 = vlaneseq
    %v6515 = vshrl.u32 %v6514, 7
    %v6516 = vsub.s32 0, %v6515
    %v6517 = vrot.slane %v6165, %v6516
    %6526 = vrot.lane.b32.xlu0 %v6489, 96
    %v6527 = vpop.permute.xlu0 %6526
    %6528 = vrot.lane.b32.xlu0 %v6493, 96
    %v6529 = vpop.permute.xlu0 %6528
    %6530 = vrot.lane.b32.xlu0 %v6497, 96
    %v6531 = vpop.permute.xlu0 %6530
    %6532 = vrot.lane.b32.xlu0 %v6501, 96
    %v6533 = vpop.permute.xlu0 %6532
    %6534 = vrot.lane.b32.xlu0 %v6505, 96
    %v6535 = vpop.permute.xlu0 %6534
    %6536 = vrot.lane.b32.xlu0 %v6509, 96
    %v6537 = vpop.permute.xlu0 %6536
    %6538 = vrot.lane.b32.xlu0 %v6513, 96
    %v6539 = vpop.permute.xlu0 %6538
    %6540 = vrot.lane.b32.xlu0 %v6517, 96
    %v6541 = vpop.permute.xlu0 %6540
    %6550 = vrot.lane.b32.xlu0 %v6489, 64
    %v6551 = vpop.permute.xlu0 %6550
    %6552 = vrot.lane.b32.xlu0 %v6493, 64
    %v6553 = vpop.permute.xlu0 %6552
    %6554 = vrot.lane.b32.xlu0 %v6497, 64
    %v6555 = vpop.permute.xlu0 %6554
    %6556 = vrot.lane.b32.xlu0 %v6501, 64
    %v6557 = vpop.permute.xlu0 %6556
    %6558 = vrot.lane.b32.xlu0 %v6505, 64
    %v6559 = vpop.permute.xlu0 %6558
    %6560 = vrot.lane.b32.xlu0 %v6509, 64
    %v6561 = vpop.permute.xlu0 %6560
    %6562 = vrot.lane.b32.xlu0 %v6513, 64
    %v6563 = vpop.permute.xlu0 %6562
    %6564 = vrot.lane.b32.xlu0 %v6517, 64
    %v6565 = vpop.permute.xlu0 %6564
    %6574 = vrot.lane.b32.xlu0 %v6489, 32
    %v6575 = vpop.permute.xlu0 %6574
    %6576 = vrot.lane.b32.xlu0 %v6493, 32
    %v6577 = vpop.permute.xlu0 %6576
    %6578 = vrot.lane.b32.xlu0 %v6497, 32
    %v6579 = vpop.permute.xlu0 %6578
    %6580 = vrot.lane.b32.xlu0 %v6501, 32
    %v6581 = vpop.permute.xlu0 %6580
    %6582 = vrot.lane.b32.xlu0 %v6505, 32
    %v6583 = vpop.permute.xlu0 %6582
    %6584 = vrot.lane.b32.xlu0 %v6509, 32
    %v6585 = vpop.permute.xlu0 %6584
    %6586 = vrot.lane.b32.xlu0 %v6513, 32
    %v6587 = vpop.permute.xlu0 %6586
    %6588 = vrot.lane.b32.xlu0 %v6517, 32
    %v6589 = vpop.permute.xlu0 %6588
    %v6598 = vsel %vm3350, %v5974, %v6199
    %v6599 = vsel %vm3350, %v5988, %v6201
    %v6600 = vsel %vm3350, %v5996, %v6203
    %v6601 = vsel %vm3350, %v5998, %v6205
    %v6602 = vsel %vm3350, %v5981, %v6207
    %v6603 = vsel %vm3350, %v5995, %v6209
    %v6604 = vsel %vm3350, %v5997, %v6211
    %v6605 = vsel %vm3350, %v5999, %v6213
    %v6606 = vsel %vm3359, %v6598, %v6223
    %v6607 = vsel %vm3359, %v6599, %v6225
    %v6608 = vsel %vm3359, %v6600, %v6227
    %v6609 = vsel %vm3359, %v6601, %v6229
    %v6610 = vsel %vm3359, %v6602, %v6231
    %v6611 = vsel %vm3359, %v6603, %v6233
    %v6612 = vsel %vm3359, %v6604, %v6235
    %v6613 = vsel %vm3359, %v6605, %v6237
    %v6614 = vsel %vm3368, %v6606, %v6247
    %v6615 = vsel %vm3368, %v6607, %v6249
    %v6616 = vsel %vm3368, %v6608, %v6251
    %v6617 = vsel %vm3368, %v6609, %v6253
    %v6618 = vsel %vm3368, %v6610, %v6255
    %v6619 = vsel %vm3368, %v6611, %v6257
    %v6620 = vsel %vm3368, %v6612, %v6259
    %v6621 = vsel %vm3368, %v6613, %v6261
    %v6622 = vsel %vm3377, %v6614, %v6273
    %v6623 = vsel %vm3377, %v6615, %v6277
    %v6624 = vsel %vm3377, %v6616, %v6281
    %v6625 = vsel %vm3377, %v6617, %v6285
    %v6626 = vsel %vm3377, %v6618, %v6289
    %v6627 = vsel %vm3377, %v6619, %v6293
    %v6628 = vsel %vm3377, %v6620, %v6297
    %v6629 = vsel %vm3377, %v6621, %v6301
    %v6630 = vsel %vm593, %v6622, %v6311
    %v6631 = vsel %vm593, %v6623, %v6313
    %v6632 = vsel %vm593, %v6624, %v6315
    %v6633 = vsel %vm593, %v6625, %v6317
    %v6634 = vsel %vm593, %v6626, %v6319
    %v6635 = vsel %vm593, %v6627, %v6321
    %v6636 = vsel %vm593, %v6628, %v6323
    %v6637 = vsel %vm593, %v6629, %v6325
    %v6638 = vsel %vm3394, %v6630, %v6335
    %v6639 = vsel %vm3394, %v6631, %v6337
    %v6640 = vsel %vm3394, %v6632, %v6339
    %v6641 = vsel %vm3394, %v6633, %v6341
    %v6642 = vsel %vm3394, %v6634, %v6343
    %v6643 = vsel %vm3394, %v6635, %v6345
    %v6644 = vsel %vm3394, %v6636, %v6347
    %v6645 = vsel %vm3394, %v6637, %v6349
    %v6646 = vsel %vm3403, %v6638, %v6359
    %v6647 = vsel %vm3403, %v6639, %v6361
    %v6648 = vsel %vm3403, %v6640, %v6363
    %v6649 = vsel %vm3403, %v6641, %v6365
    %v6650 = vsel %vm3403, %v6642, %v6367
    %v6651 = vsel %vm3403, %v6643, %v6369
    %v6652 = vsel %vm3403, %v6644, %v6371
    %v6653 = vsel %vm3403, %v6645, %v6373
    %v6654 = vsel %vm3350, %v6082, %v6415
    %v6655 = vsel %vm3350, %v6096, %v6417
    %v6656 = vsel %vm3350, %v6104, %v6419
    %v6657 = vsel %vm3350, %v6106, %v6421
    %v6658 = vsel %vm3350, %v6089, %v6423
    %v6659 = vsel %vm3350, %v6103, %v6425
    %v6660 = vsel %vm3350, %v6105, %v6427
    %v6661 = vsel %vm3350, %v6107, %v6429
    %v6662 = vsel %vm3359, %v6654, %v6439
    %v6663 = vsel %vm3359, %v6655, %v6441
    %v6664 = vsel %vm3359, %v6656, %v6443
    %v6665 = vsel %vm3359, %v6657, %v6445
    %v6666 = vsel %vm3359, %v6658, %v6447
    %v6667 = vsel %vm3359, %v6659, %v6449
    %v6668 = vsel %vm3359, %v6660, %v6451
    %v6669 = vsel %vm3359, %v6661, %v6453
    %v6670 = vsel %vm3368, %v6662, %v6463
    %v6671 = vsel %vm3368, %v6663, %v6465
    %v6672 = vsel %vm3368, %v6664, %v6467
    %v6673 = vsel %vm3368, %v6665, %v6469
    %v6674 = vsel %vm3368, %v6666, %v6471
    %v6675 = vsel %vm3368, %v6667, %v6473
    %v6676 = vsel %vm3368, %v6668, %v6475
    %v6677 = vsel %vm3368, %v6669, %v6477
    %v6678 = vsel %vm3377, %v6670, %v6489
    %v6679 = vsel %vm3377, %v6671, %v6493
    %v6680 = vsel %vm3377, %v6672, %v6497
    %v6681 = vsel %vm3377, %v6673, %v6501
    %v6682 = vsel %vm3377, %v6674, %v6505
    %v6683 = vsel %vm3377, %v6675, %v6509
    %v6684 = vsel %vm3377, %v6676, %v6513
    %v6685 = vsel %vm3377, %v6677, %v6517
    %v6686 = vsel %vm593, %v6678, %v6527
    %v6687 = vsel %vm593, %v6679, %v6529
    %v6688 = vsel %vm593, %v6680, %v6531
    %v6689 = vsel %vm593, %v6681, %v6533
    %v6690 = vsel %vm593, %v6682, %v6535
    %v6691 = vsel %vm593, %v6683, %v6537
    %v6692 = vsel %vm593, %v6684, %v6539
    %v6693 = vsel %vm593, %v6685, %v6541
    %v6694 = vsel %vm3394, %v6686, %v6551
    %v6695 = vsel %vm3394, %v6687, %v6553
    %v6696 = vsel %vm3394, %v6688, %v6555
    %v6697 = vsel %vm3394, %v6689, %v6557
    %v6698 = vsel %vm3394, %v6690, %v6559
    %v6699 = vsel %vm3394, %v6691, %v6561
    %v6700 = vsel %vm3394, %v6692, %v6563
    %v6701 = vsel %vm3394, %v6693, %v6565
    %v6702 = vsel %vm3403, %v6694, %v6575
    %v6703 = vsel %vm3403, %v6695, %v6577
    %v6704 = vsel %vm3403, %v6696, %v6579
    %v6705 = vsel %vm3403, %v6697, %v6581
    %v6706 = vsel %vm3403, %v6698, %v6583
    %v6707 = vsel %vm3403, %v6699, %v6585
    %v6708 = vsel %vm3403, %v6700, %v6587
    %v6709 = vsel %vm3403, %v6701, %v6589
    %6710 = vmatprep.subr.mxu0 0.0
    %6711 = vmatpush1.msra.mxu0 %v6646
    %6712 = vmatprep.subr.mxu0 0.0
    %6713 = vmatpush1.msra.mxu0 %v6702
    %6714 = vmatprep.subr.mxu0 0.0
    %6715 = vmatpush1.msra.mxu0 %v6647
    %6716 = vmatprep.subr.mxu0 0.0
    %6717 = vmatpush1.msra.mxu0 %v6703
    %6718 = vmatprep.subr.mxu0 0.0
    %6719 = vmatpush1.msra.mxu0 %v6648
    %6720 = vmatprep.subr.mxu0 0.0
    %6721 = vmatpush1.msra.mxu0 %v6704
    %6722 = vmatprep.subr.mxu0 0.0
    %6723 = vmatpush1.msra.mxu0 %v6649
    %6724 = vmatprep.subr.mxu0 0.0
    %6725 = vmatpush1.msra.mxu0 %v6705
    %6726 = vmatprep.subr.mxu0 0.0
    %6727 = vmatpush1.msra.mxu0 %v6650
    %6728 = vmatprep.subr.mxu0 0.0
    %6729 = vmatpush1.msra.mxu0 %v6706
    %6730 = vmatprep.subr.mxu0 0.0
    %6731 = vmatpush1.msra.mxu0 %v6651
    %6732 = vmatprep.subr.mxu0 0.0
    %6733 = vmatpush1.msra.mxu0 %v6707
    %6734 = vmatprep.subr.mxu0 0.0
    %6735 = vmatpush1.msra.mxu0 %v6652
    %6736 = vmatprep.subr.mxu0 0.0
    %6737 = vmatpush1.msra.mxu0 %v6708
    %6738 = vmatprep.subr.mxu0 0.0
    %6739 = vmatpush1.msra.mxu0 %v6653
    %6740 = vmatprep.subr.mxu0 0.0
    %6741 = vmatpush1.msra.mxu0 %v6709
    %6742 = vmatprep.subr.mxu0 0.0
    %6743 = vmatpush1.msra.mxu0 0.0
    %6744 = vmatprep.subr.mxu0 0.0
    %6745 = vmatpush1.msra.mxu0 0.0
    %6746 = vmatprep.subr.mxu0 0.0
    %6747 = vmatpush1.msra.mxu0 0.0
    %6748 = vmatprep.subr.mxu0 0.0
    %6749 = vmatpush1.msra.mxu0 0.0
    %6750 = vmatprep.subr.mxu0 0.0
    %6751 = vmatpush1.msra.mxu0 0.0
    %6752 = vmatprep.subr.mxu0 0.0
    %6753 = vmatpush1.msra.mxu0 0.0
    %6754 = vmatprep.subr.mxu0 0.0
    %6755 = vmatpush1.msra.mxu0 0.0
    %6756 = vmatprep.subr.mxu0 0.0
    %6757 = vmatpush1.msra.mxu0 0.0
    %6758 = vmatprep.subr.mxu0 0.0
    %6759 = vmatpush1.msra.mxu0 0.0
    %6760 = vmatprep.subr.mxu0 0.0
    %6761 = vmatpush1.msra.mxu0 0.0
    %6762 = vmatprep.subr.mxu0 0.0
    %6763 = vmatpush1.msra.mxu0 0.0
    %6764 = vmatprep.subr.mxu0 0.0
    %6765 = vmatpush1.msra.mxu0 0.0
    %6766 = vmatprep.subr.mxu0 0.0
    %6767 = vmatpush1.msra.mxu0 0.0
    %6768 = vmatprep.subr.mxu0 0.0
    %6769 = vmatpush1.msra.mxu0 0.0
    %6770 = vmatprep.subr.mxu0 0.0
    %6771 = vmatpush1.msra.mxu0 0.0
    %6772 = vmatprep.subr.mxu0 0.0
    %6773 = vmatpush1.msra.mxu0 0.0
    %6774 = vmatprep.mubr.f32.mxu0 0.0
    %6775 = vmatmul.mubr.f32.gmra.mrb[0].mxu0 %v264
    %v6776 = vpop.f32.mrb[0].mxu0
    %v6777 = vadd.f32 %v4766, %v6776
    %v6778 = vpop.f32.mrb[0].mxu0
    %6779 = vmatprep.mubr.f32.mxu0 0.0
    %6780 = vmatmul.mubr.f32.gmra.mrb[0].mxu0 %v265
    %v6781 = vpop.f32.mrb[0].mxu0
    %v6782 = vadd.f32 %v4771, %v6781
    %v6783 = vpop.f32.mrb[0].mxu0
    %6784 = vmatprep.mubr.f32.mxu0 0.0
    %6785 = vmatmul.mubr.f32.gmra.mrb[0].mxu0 %v266
    %v6786 = vpop.f32.mrb[0].mxu0
    %v6787 = vadd.f32 %v4776, %v6786
    %v6788 = vpop.f32.mrb[0].mxu0
    %6789 = vmatprep.mubr.f32.mxu0 0.0
    %6790 = vmatmul.mubr.f32.gmra.mrb[0].mxu0 %v267
    %v6791 = vpop.f32.mrb[0].mxu0
    %v6792 = vadd.f32 %v4781, %v6791
    %v6793 = vpop.f32.mrb[0].mxu0
    %6794 = vmatprep.mubr.f32.mxu0 0.0
    %6795 = vmatmul.mubr.f32.gmra.mrb[0].mxu0 %v268
    %v6796 = vpop.f32.mrb[0].mxu0
    %v6797 = vadd.f32 %v4786, %v6796
    %v6798 = vpop.f32.mrb[0].mxu0
    %6799 = vmatprep.mubr.f32.mxu0 0.0
    %6800 = vmatmul.mubr.f32.gmra.mrb[0].mxu0 %v269
    %v6801 = vpop.f32.mrb[0].mxu0
    %v6802 = vadd.f32 %v4791, %v6801
    %v6803 = vpop.f32.mrb[0].mxu0
    %6804 = vmatprep.mubr.f32.mxu0 0.0
    %6805 = vmatmul.mubr.f32.gmra.mrb[0].mxu0 %v270
    %v6806 = vpop.f32.mrb[0].mxu0
    %v6807 = vadd.f32 %v4796, %v6806
    %v6808 = vpop.f32.mrb[0].mxu0
    %6809 = vmatprep.mubr.f32.mxu0 0.0
    %6810 = vmatmul.mubr.f32.gmra.mrb[0].mxu0 %v271
    %v6811 = vpop.f32.mrb[0].mxu0
    %v6812 = vadd.f32 %v4801, %v6811
    %v6813 = vpop.f32.mrb[0].mxu0
    %6814 = vmatprep.mubr.f32.mxu0 0.0
    %6815 = vmatmul.mubr.f32.gmra.mrb[0].mxu0 %v272
    %v6816 = vpop.f32.mrb[0].mxu0
    %v6817 = vadd.f32 %v4806, %v6816
    %v6818 = vpop.f32.mrb[0].mxu0
    %6819 = vmatprep.mubr.f32.mxu0 0.0
    %6820 = vmatmul.mubr.f32.gmra.mrb[0].mxu0 %v273
    %v6821 = vpop.f32.mrb[0].mxu0
    %v6822 = vadd.f32 %v4811, %v6821
    %v6823 = vpop.f32.mrb[0].mxu0
    %6824 = vmatprep.mubr.f32.mxu0 0.0
    %6825 = vmatmul.mubr.f32.gmra.mrb[0].mxu0 %v274
    %v6826 = vpop.f32.mrb[0].mxu0
    %v6827 = vadd.f32 %v4816, %v6826
    %v6828 = vpop.f32.mrb[0].mxu0
    %6829 = vmatprep.mubr.f32.mxu0 0.0
    %6830 = vmatmul.mubr.f32.gmra.mrb[0].mxu0 %v275
    %v6831 = vpop.f32.mrb[0].mxu0
    %v6832 = vadd.f32 %v4821, %v6831
    %v6833 = vpop.f32.mrb[0].mxu0
    %6834 = vmatprep.mubr.f32.mxu0 0.0
    %6835 = vmatmul.mubr.f32.gmra.mrb[0].mxu0 %v276
    %v6836 = vpop.f32.mrb[0].mxu0
    %v6837 = vadd.f32 %v4826, %v6836
    %v6838 = vpop.f32.mrb[0].mxu0
    %6839 = vmatprep.mubr.f32.mxu0 0.0
    %6840 = vmatmul.mubr.f32.gmra.mrb[0].mxu0 %v277
    %v6841 = vpop.f32.mrb[0].mxu0
    %v6842 = vadd.f32 %v4831, %v6841
    %v6843 = vpop.f32.mrb[0].mxu0
    %6844 = vmatprep.mubr.f32.mxu0 0.0
    %6845 = vmatmul.mubr.f32.gmra.mrb[0].mxu0 %v278
    %v6846 = vpop.f32.mrb[0].mxu0
    %v6847 = vadd.f32 %v4836, %v6846
    %v6848 = vpop.f32.mrb[0].mxu0
    %6849 = vmatprep.mubr.f32.mxu0 0.0
    %6850 = vmatmul.mubr.f32.gmra.mrb[0].mxu0 %v279
    %v6851 = vpop.f32.mrb[0].mxu0
    %v6852 = vadd.f32 %v4841, %v6851
    %v6853 = vpop.f32.mrb[0].mxu0
    %6854 = vmatprep.mubr.f32.mxu0 0.0
    %6855 = vmatmul.mubr.f32.gmra.mrb[0].mxu0 %v280
    %v6856 = vpop.f32.mrb[0].mxu0
    %v6857 = vadd.f32 %v4846, %v6856
    %v6858 = vpop.f32.mrb[0].mxu0
    %6859 = vmatprep.mubr.f32.mxu0 0.0
    %6860 = vmatmul.mubr.f32.gmra.mrb[0].mxu0 %v281
    %v6861 = vpop.f32.mrb[0].mxu0
    %v6862 = vadd.f32 %v4851, %v6861
    %v6863 = vpop.f32.mrb[0].mxu0
    %6864 = vmatprep.mubr.f32.mxu0 0.0
    %6865 = vmatmul.mubr.f32.gmra.mrb[0].mxu0 %v282
    %v6866 = vpop.f32.mrb[0].mxu0
    %v6867 = vadd.f32 %v4856, %v6866
    %v6868 = vpop.f32.mrb[0].mxu0
    %6869 = vmatprep.mubr.f32.mxu0 0.0
    %6870 = vmatmul.mubr.f32.gmra.mrb[0].mxu0 %v283
    %v6871 = vpop.f32.mrb[0].mxu0
    %v6872 = vadd.f32 %v4861, %v6871
    %v6873 = vpop.f32.mrb[0].mxu0
    %6874 = vmatprep.mubr.f32.mxu0 0.0
    %6875 = vmatmul.mubr.f32.gmra.mrb[0].mxu0 %v284
    %v6876 = vpop.f32.mrb[0].mxu0
    %v6877 = vadd.f32 %v4866, %v6876
    %v6878 = vpop.f32.mrb[0].mxu0
    %6879 = vmatprep.mubr.f32.mxu0 0.0
    %6880 = vmatmul.mubr.f32.gmra.mrb[0].mxu0 %v285
    %v6881 = vpop.f32.mrb[0].mxu0
    %v6882 = vadd.f32 %v4871, %v6881
    %v6883 = vpop.f32.mrb[0].mxu0
    %6884 = vmatprep.mubr.f32.mxu0 0.0
    %6885 = vmatmul.mubr.f32.gmra.mrb[0].mxu0 %v286
    %v6886 = vpop.f32.mrb[0].mxu0
    %v6887 = vadd.f32 %v4876, %v6886
    %v6888 = vpop.f32.mrb[0].mxu0
    %6889 = vmatprep.mubr.f32.mxu0 0.0
    %6890 = vmatmul.mubr.f32.gmra.mrb[0].mxu0 %v287
    %v6891 = vpop.f32.mrb[0].mxu0
    %v6892 = vadd.f32 %v4881, %v6891
    %v6893 = vpop.f32.mrb[0].mxu0
    %6894 = vmatprep.mubr.f32.mxu0 0.0
    %6895 = vmatmul.mubr.f32.gmra.mrb[0].mxu0 %v288
    %v6896 = vpop.f32.mrb[0].mxu0
    %v6897 = vadd.f32 %v4886, %v6896
    %v6898 = vpop.f32.mrb[0].mxu0
    %6899 = vmatprep.mubr.f32.mxu0 0.0
    %6900 = vmatmul.mubr.f32.gmra.mrb[0].mxu0 %v289
    %v6901 = vpop.f32.mrb[0].mxu0
    %v6902 = vadd.f32 %v4891, %v6901
    %v6903 = vpop.f32.mrb[0].mxu0
    %6904 = vmatprep.mubr.f32.mxu0 0.0
    %6905 = vmatmul.mubr.f32.gmra.mrb[0].mxu0 %v290
    %v6906 = vpop.f32.mrb[0].mxu0
    %v6907 = vadd.f32 %v4896, %v6906
    %v6908 = vpop.f32.mrb[0].mxu0
    %6909 = vmatprep.mubr.f32.mxu0 0.0
    %6910 = vmatmul.mubr.f32.gmra.mrb[0].mxu0 %v291
    %v6911 = vpop.f32.mrb[0].mxu0
    %v6912 = vadd.f32 %v4901, %v6911
    %v6913 = vpop.f32.mrb[0].mxu0
    %6914 = vmatprep.mubr.f32.mxu0 0.0
    %6915 = vmatmul.mubr.f32.gmra.mrb[0].mxu0 %v292
    %v6916 = vpop.f32.mrb[0].mxu0
    %v6917 = vadd.f32 %v4906, %v6916
    %v6918 = vpop.f32.mrb[0].mxu0
    %6919 = vmatprep.mubr.f32.mxu0 0.0
    %6920 = vmatmul.mubr.f32.gmra.mrb[0].mxu0 %v293
    %v6921 = vpop.f32.mrb[0].mxu0
    %v6922 = vadd.f32 %v4911, %v6921
    %v6923 = vpop.f32.mrb[0].mxu0
    %6924 = vmatprep.mubr.f32.mxu0 0.0
    %6925 = vmatmul.mubr.f32.gmra.mrb[0].mxu0 %v294
    %v6926 = vpop.f32.mrb[0].mxu0
    %v6927 = vadd.f32 %v4916, %v6926
    %v6928 = vpop.f32.mrb[0].mxu0
    %6929 = vmatprep.mubr.f32.mxu0 0.0
    %6930 = vmatmul.mubr.f32.gmra.mrb[0].mxu0 %v295
    %v6931 = vpop.f32.mrb[0].mxu0
    %v6932 = vadd.f32 %v4921, %v6931
    %v6933 = vpop.f32.mrb[0].mxu0
    %6934 = vmatprep.mubr.f32.mxu0 0.0
    %6935 = vmatmul.mubr.f32.gmra.mrb[0].mxu0 %v296
    %v6936 = vpop.f32.mrb[0].mxu0
    %v6937 = vadd.f32 %v4926, %v6936
    %v6938 = vpop.f32.mrb[0].mxu0
    %6939 = vmatprep.mubr.f32.mxu0 0.0
    %6940 = vmatmul.mubr.f32.gmra.mrb[0].mxu0 %v297
    %v6941 = vpop.f32.mrb[0].mxu0
    %v6942 = vadd.f32 %v4931, %v6941
    %v6943 = vpop.f32.mrb[0].mxu0
    %6944 = vmatprep.mubr.f32.mxu0 0.0
    %6945 = vmatmul.mubr.f32.gmra.mrb[0].mxu0 %v298
    %v6946 = vpop.f32.mrb[0].mxu0
    %v6947 = vadd.f32 %v4936, %v6946
    %v6948 = vpop.f32.mrb[0].mxu0
    %6949 = vmatprep.mubr.f32.mxu0 0.0
    %6950 = vmatmul.mubr.f32.gmra.mrb[0].mxu0 %v299
    %v6951 = vpop.f32.mrb[0].mxu0
    %v6952 = vadd.f32 %v4941, %v6951
    %v6953 = vpop.f32.mrb[0].mxu0
    %6954 = vmatprep.mubr.f32.mxu0 0.0
    %6955 = vmatmul.mubr.f32.gmra.mrb[0].mxu0 %v300
    %v6956 = vpop.f32.mrb[0].mxu0
    %v6957 = vadd.f32 %v4946, %v6956
    %v6958 = vpop.f32.mrb[0].mxu0
    %6959 = vmatprep.mubr.f32.mxu0 0.0
    %6960 = vmatmul.mubr.f32.gmra.mrb[0].mxu0 %v301
    %v6961 = vpop.f32.mrb[0].mxu0
    %v6962 = vadd.f32 %v4951, %v6961
    %v6963 = vpop.f32.mrb[0].mxu0
    %6964 = vmatprep.mubr.f32.mxu0 0.0
    %6965 = vmatmul.mubr.f32.gmra.mrb[0].mxu0 %v302
    %v6966 = vpop.f32.mrb[0].mxu0
    %v6967 = vadd.f32 %v4956, %v6966
    %v6968 = vpop.f32.mrb[0].mxu0
    %6969 = vmatprep.mubr.f32.mxu0 0.0
    %6970 = vmatmul.mubr.f32.gmra.mrb[0].mxu0 %v303
    %v6971 = vpop.f32.mrb[0].mxu0
    %v6972 = vadd.f32 %v4961, %v6971
    %v6973 = vpop.f32.mrb[0].mxu0
    %6974 = vmatprep.mubr.f32.mxu0 0.0
    %6975 = vmatmul.mubr.f32.gmra.mrb[0].mxu0 %v304
    %v6976 = vpop.f32.mrb[0].mxu0
    %v6977 = vadd.f32 %v4966, %v6976
    %v6978 = vpop.f32.mrb[0].mxu0
    %6979 = vmatprep.mubr.f32.mxu0 0.0
    %6980 = vmatmul.mubr.f32.gmra.mrb[0].mxu0 %v305
    %v6981 = vpop.f32.mrb[0].mxu0
    %v6982 = vadd.f32 %v4971, %v6981
    %v6983 = vpop.f32.mrb[0].mxu0
    %6984 = vmatprep.mubr.f32.mxu0 0.0
    %6985 = vmatmul.mubr.f32.gmra.mrb[0].mxu0 %v306
    %v6986 = vpop.f32.mrb[0].mxu0
    %v6987 = vadd.f32 %v4976, %v6986
    %v6988 = vpop.f32.mrb[0].mxu0
    %6989 = vmatprep.mubr.f32.mxu0 0.0
    %6990 = vmatmul.mubr.f32.gmra.mrb[0].mxu0 %v307
    %v6991 = vpop.f32.mrb[0].mxu0
    %v6992 = vadd.f32 %v4981, %v6991
    %v6993 = vpop.f32.mrb[0].mxu0
    %6994 = vmatprep.mubr.f32.mxu0 0.0
    %6995 = vmatmul.mubr.f32.gmra.mrb[0].mxu0 %v308
    %v6996 = vpop.f32.mrb[0].mxu0
    %v6997 = vadd.f32 %v4986, %v6996
    %v6998 = vpop.f32.mrb[0].mxu0
    %6999 = vmatprep.mubr.f32.mxu0 0.0
    %7000 = vmatmul.mubr.f32.gmra.mrb[0].mxu0 %v309
    %v7001 = vpop.f32.mrb[0].mxu0
    %v7002 = vadd.f32 %v4991, %v7001
    %v7003 = vpop.f32.mrb[0].mxu0
    %7004 = vmatprep.mubr.f32.mxu0 0.0
    %7005 = vmatmul.mubr.f32.gmra.mrb[0].mxu0 %v310
    %v7006 = vpop.f32.mrb[0].mxu0
    %v7007 = vadd.f32 %v4996, %v7006
    %v7008 = vpop.f32.mrb[0].mxu0
    %7009 = vmatprep.mubr.f32.mxu0 0.0
    %7010 = vmatmul.mubr.f32.gmra.mrb[0].mxu0 %v311
    %v7011 = vpop.f32.mrb[0].mxu0
    %v7012 = vadd.f32 %v5001, %v7011
    %v7013 = vpop.f32.mrb[0].mxu0
    %7014 = vmatprep.mubr.f32.mxu0 0.0
    %7015 = vmatmul.mubr.f32.gmra.mrb[0].mxu0 %v312
    %v7016 = vpop.f32.mrb[0].mxu0
    %v7017 = vadd.f32 %v5006, %v7016
    %v7018 = vpop.f32.mrb[0].mxu0
    %7019 = vmatprep.mubr.f32.mxu0 0.0
    %7020 = vmatmul.mubr.f32.gmra.mrb[0].mxu0 %v313
    %v7021 = vpop.f32.mrb[0].mxu0
    %v7022 = vadd.f32 %v5011, %v7021
    %v7023 = vpop.f32.mrb[0].mxu0
    %7024 = vmatprep.mubr.f32.mxu0 0.0
    %7025 = vmatmul.mubr.f32.gmra.mrb[0].mxu0 %v314
    %v7026 = vpop.f32.mrb[0].mxu0
    %v7027 = vadd.f32 %v5016, %v7026
    %v7028 = vpop.f32.mrb[0].mxu0
    %7029 = vmatprep.mubr.f32.mxu0 0.0
    %7030 = vmatmul.mubr.f32.gmra.mrb[0].mxu0 %v315
    %v7031 = vpop.f32.mrb[0].mxu0
    %v7032 = vadd.f32 %v5021, %v7031
    %v7033 = vpop.f32.mrb[0].mxu0
    %7034 = vmatprep.mubr.f32.mxu0 0.0
    %7035 = vmatmul.mubr.f32.gmra.mrb[0].mxu0 %v316
    %v7036 = vpop.f32.mrb[0].mxu0
    %v7037 = vadd.f32 %v5026, %v7036
    %v7038 = vpop.f32.mrb[0].mxu0
    %7039 = vmatprep.mubr.f32.mxu0 0.0
    %7040 = vmatmul.mubr.f32.gmra.mrb[0].mxu0 %v317
    %v7041 = vpop.f32.mrb[0].mxu0
    %v7042 = vadd.f32 %v5031, %v7041
    %v7043 = vpop.f32.mrb[0].mxu0
    %7044 = vmatprep.mubr.f32.mxu0 0.0
    %7045 = vmatmul.mubr.f32.gmra.mrb[0].mxu0 %v318
    %v7046 = vpop.f32.mrb[0].mxu0
    %v7047 = vadd.f32 %v5036, %v7046
    %v7048 = vpop.f32.mrb[0].mxu0
    %7049 = vmatprep.mubr.f32.mxu0 0.0
    %7050 = vmatmul.mubr.f32.gmra.mrb[0].mxu0 %v319
    %v7051 = vpop.f32.mrb[0].mxu0
    %v7052 = vadd.f32 %v5041, %v7051
    %v7053 = vpop.f32.mrb[0].mxu0
    %7054 = vmatprep.mubr.f32.mxu0 0.0
    %7055 = vmatmul.mubr.f32.gmra.mrb[0].mxu0 %v320
    %v7056 = vpop.f32.mrb[0].mxu0
    %v7057 = vadd.f32 %v5046, %v7056
    %v7058 = vpop.f32.mrb[0].mxu0
    %7059 = vmatprep.mubr.f32.mxu0 0.0
    %7060 = vmatmul.mubr.f32.gmra.mrb[0].mxu0 %v321
    %v7061 = vpop.f32.mrb[0].mxu0
    %v7062 = vadd.f32 %v5051, %v7061
    %v7063 = vpop.f32.mrb[0].mxu0
    %7064 = vmatprep.mubr.f32.mxu0 0.0
    %7065 = vmatmul.mubr.f32.gmra.mrb[0].mxu0 %v322
    %v7066 = vpop.f32.mrb[0].mxu0
    %v7067 = vadd.f32 %v5056, %v7066
    %v7068 = vpop.f32.mrb[0].mxu0
    %7069 = vmatprep.mubr.f32.mxu0 0.0
    %7070 = vmatmul.mubr.f32.gmra.mrb[0].mxu0 %v323
    %v7071 = vpop.f32.mrb[0].mxu0
    %v7072 = vadd.f32 %v5061, %v7071
    %v7073 = vpop.f32.mrb[0].mxu0
    %7074 = vmatprep.mubr.f32.mxu0 0.0
    %7075 = vmatmul.mubr.f32.gmra.mrb[0].mxu0 %v324
    %v7076 = vpop.f32.mrb[0].mxu0
    %v7077 = vadd.f32 %v5066, %v7076
    %v7078 = vpop.f32.mrb[0].mxu0
    %7079 = vmatprep.mubr.f32.mxu0 0.0
    %7080 = vmatmul.mubr.f32.gmra.mrb[0].mxu0 %v325
    %v7081 = vpop.f32.mrb[0].mxu0
    %v7082 = vadd.f32 %v5071, %v7081
    %v7083 = vpop.f32.mrb[0].mxu0
    %7084 = vmatprep.mubr.f32.mxu0 0.0
    %7085 = vmatmul.mubr.f32.gmra.mrb[0].mxu0 %v326
    %v7086 = vpop.f32.mrb[0].mxu0
    %v7087 = vadd.f32 %v5076, %v7086
    %v7088 = vpop.f32.mrb[0].mxu0
    %7089 = vmatprep.mubr.f32.mxu0 0.0
    %7090 = vmatmul.mubr.f32.gmra.mrb[0].mxu0 %v327
    %v7091 = vpop.f32.mrb[0].mxu0
    %v7092 = vadd.f32 %v5081, %v7091
    %v7093 = vpop.f32.mrb[0].mxu0
    %7094 = vdwg.mxu0
    %v7095 = vmul.f32 %v6777, 0.5
    %v7096 = vmul.f32 %v6782, 0.5
    %v7097 = vmul.f32 %v6787, 0.5
    %v7098 = vmul.f32 %v6792, 0.5
    %v7099 = vmul.f32 %v6797, 0.5
    %v7100 = vmul.f32 %v6802, 0.5
    %v7101 = vmul.f32 %v6807, 0.5
    %v7102 = vmul.f32 %v6812, 0.5
    %v7103 = vmul.f32 %v6817, 0.5
    %v7104 = vmul.f32 %v6822, 0.5
    %v7105 = vmul.f32 %v6827, 0.5
    %v7106 = vmul.f32 %v6832, 0.5
    %v7107 = vmul.f32 %v6837, 0.5
    %v7108 = vmul.f32 %v6842, 0.5
    %v7109 = vmul.f32 %v6847, 0.5
    %v7110 = vmul.f32 %v6852, 0.5
    %v7111 = vmul.f32 %v6857, 0.5
    %v7112 = vmul.f32 %v6862, 0.5
    %v7113 = vmul.f32 %v6867, 0.5
    %v7114 = vmul.f32 %v6872, 0.5
    %v7115 = vmul.f32 %v6877, 0.5
    %v7116 = vmul.f32 %v6882, 0.5
    %v7117 = vmul.f32 %v6887, 0.5
    %v7118 = vmul.f32 %v6892, 0.5
    %v7119 = vmul.f32 %v6897, 0.5
    %v7120 = vmul.f32 %v6902, 0.5
    %v7121 = vmul.f32 %v6907, 0.5
    %v7122 = vmul.f32 %v6912, 0.5
    %v7123 = vmul.f32 %v6917, 0.5
    %v7124 = vmul.f32 %v6922, 0.5
    %v7125 = vmul.f32 %v6927, 0.5
    %v7126 = vmul.f32 %v6932, 0.5
    %v7127 = vmul.f32 %v6937, 0.5
    %v7128 = vmul.f32 %v6942, 0.5
    %v7129 = vmul.f32 %v6947, 0.5
    %v7130 = vmul.f32 %v6952, 0.5
    %v7131 = vmul.f32 %v6957, 0.5
    %v7132 = vmul.f32 %v6962, 0.5
    %v7133 = vmul.f32 %v6967, 0.5
    %v7134 = vmul.f32 %v6972, 0.5
    %v7135 = vmul.f32 %v6977, 0.5
    %v7136 = vmul.f32 %v6982, 0.5
    %v7137 = vmul.f32 %v6987, 0.5
    %v7138 = vmul.f32 %v6992, 0.5
    %v7139 = vmul.f32 %v6997, 0.5
    %v7140 = vmul.f32 %v7002, 0.5
    %v7141 = vmul.f32 %v7007, 0.5
    %v7142 = vmul.f32 %v7012, 0.5
    %v7143 = vmul.f32 %v7017, 0.5
    %v7144 = vmul.f32 %v7022, 0.5
    %v7145 = vmul.f32 %v7027, 0.5
    %v7146 = vmul.f32 %v7032, 0.5
    %v7147 = vmul.f32 %v7037, 0.5
    %v7148 = vmul.f32 %v7042, 0.5
    %v7149 = vmul.f32 %v7047, 0.5
    %v7150 = vmul.f32 %v7052, 0.5
    %v7151 = vmul.f32 %v7057, 0.5
    %v7152 = vmul.f32 %v7062, 0.5
    %v7153 = vmul.f32 %v7067, 0.5
    %v7154 = vmul.f32 %v7072, 0.5
    %v7155 = vmul.f32 %v7077, 0.5
    %v7156 = vmul.f32 %v7082, 0.5
    %v7157 = vmul.f32 %v7087, 0.5
    %v7158 = vmul.f32 %v7092, 0.5
    %v7159 = vmul.f32 %v6777, 0.70710677
    %v7160 = vmul.f32 %v6782, 0.70710677
    %v7161 = vmul.f32 %v6787, 0.70710677
    %v7162 = vmul.f32 %v6792, 0.70710677
    %v7163 = vmul.f32 %v6797, 0.70710677
    %v7164 = vmul.f32 %v6802, 0.70710677
    %v7165 = vmul.f32 %v6807, 0.70710677
    %v7166 = vmul.f32 %v6812, 0.70710677
    %v7167 = vmul.f32 %v6817, 0.70710677
    %v7168 = vmul.f32 %v6822, 0.70710677
    %v7169 = vmul.f32 %v6827, 0.70710677
    %v7170 = vmul.f32 %v6832, 0.70710677
    %v7171 = vmul.f32 %v6837, 0.70710677
    %v7172 = vmul.f32 %v6842, 0.70710677
    %v7173 = vmul.f32 %v6847, 0.70710677
    %v7174 = vmul.f32 %v6852, 0.70710677
    %v7175 = vmul.f32 %v6857, 0.70710677
    %v7176 = vmul.f32 %v6862, 0.70710677
    %v7177 = vmul.f32 %v6867, 0.70710677
    %v7178 = vmul.f32 %v6872, 0.70710677
    %v7179 = vmul.f32 %v6877, 0.70710677
    %v7180 = vmul.f32 %v6882, 0.70710677
    %v7181 = vmul.f32 %v6887, 0.70710677
    %v7182 = vmul.f32 %v6892, 0.70710677
    %v7183 = vmul.f32 %v6897, 0.70710677
    %v7184 = vmul.f32 %v6902, 0.70710677
    %v7185 = vmul.f32 %v6907, 0.70710677
    %v7186 = vmul.f32 %v6912, 0.70710677
    %v7187 = vmul.f32 %v6917, 0.70710677
    %v7188 = vmul.f32 %v6922, 0.70710677
    %v7189 = vmul.f32 %v6927, 0.70710677
    %v7190 = vmul.f32 %v6932, 0.70710677
    %v7191 = vmul.f32 %v6937, 0.70710677
    %v7192 = vmul.f32 %v6942, 0.70710677
    %v7193 = vmul.f32 %v6947, 0.70710677
    %v7194 = vmul.f32 %v6952, 0.70710677
    %v7195 = vmul.f32 %v6957, 0.70710677
    %v7196 = vmul.f32 %v6962, 0.70710677
    %v7197 = vmul.f32 %v6967, 0.70710677
    %v7198 = vmul.f32 %v6972, 0.70710677
    %v7199 = vmul.f32 %v6977, 0.70710677
    %v7200 = vmul.f32 %v6982, 0.70710677
    %v7201 = vmul.f32 %v6987, 0.70710677
    %v7202 = vmul.f32 %v6992, 0.70710677
    %v7203 = vmul.f32 %v6997, 0.70710677
    %v7204 = vmul.f32 %v7002, 0.70710677
    %v7205 = vmul.f32 %v7007, 0.70710677
    %v7206 = vmul.f32 %v7012, 0.70710677
    %v7207 = vmul.f32 %v7017, 0.70710677
    %v7208 = vmul.f32 %v7022, 0.70710677
    %v7209 = vmul.f32 %v7027, 0.70710677
    %v7210 = vmul.f32 %v7032, 0.70710677
    %v7211 = vmul.f32 %v7037, 0.70710677
    %v7212 = vmul.f32 %v7042, 0.70710677
    %v7213 = vmul.f32 %v7047, 0.70710677
    %v7214 = vmul.f32 %v7052, 0.70710677
    %v7215 = vmul.f32 %v7057, 0.70710677
    %v7216 = vmul.f32 %v7062, 0.70710677
    %v7217 = vmul.f32 %v7067, 0.70710677
    %v7218 = vmul.f32 %v7072, 0.70710677
    %v7219 = vmul.f32 %v7077, 0.70710677
    %v7220 = vmul.f32 %v7082, 0.70710677
    %v7221 = vmul.f32 %v7087, 0.70710677
    %v7222 = vmul.f32 %v7092, 0.70710677
    %v7223 = verf.f32.pop %v7159
    %v7224 = verf.f32.pop %v7160
    %v7225 = verf.f32.pop %v7161
    %v7226 = verf.f32.pop %v7162
    %v7227 = verf.f32.pop %v7163
    %v7228 = verf.f32.pop %v7164
    %v7229 = verf.f32.pop %v7165
    %v7230 = verf.f32.pop %v7166
    %v7231 = verf.f32.pop %v7167
    %v7232 = verf.f32.pop %v7168
    %v7233 = verf.f32.pop %v7169
    %v7234 = verf.f32.pop %v7170
    %v7235 = verf.f32.pop %v7171
    %v7236 = verf.f32.pop %v7172
    %v7237 = verf.f32.pop %v7173
    %v7238 = verf.f32.pop %v7174
    %v7239 = verf.f32.pop %v7175
    %v7240 = verf.f32.pop %v7176
    %v7241 = verf.f32.pop %v7177
    %v7242 = verf.f32.pop %v7178
    %v7243 = verf.f32.pop %v7179
    %v7244 = verf.f32.pop %v7180
    %v7245 = verf.f32.pop %v7181
    %v7246 = verf.f32.pop %v7182
    %v7247 = verf.f32.pop %v7183
    %v7248 = verf.f32.pop %v7184
    %v7249 = verf.f32.pop %v7185
    %v7250 = verf.f32.pop %v7186
    %v7251 = verf.f32.pop %v7187
    %v7252 = verf.f32.pop %v7188
    %v7253 = verf.f32.pop %v7189
    %v7254 = verf.f32.pop %v7190
    %v7255 = verf.f32.pop %v7191
    %v7256 = verf.f32.pop %v7192
    %v7257 = verf.f32.pop %v7193
    %v7258 = verf.f32.pop %v7194
    %v7259 = verf.f32.pop %v7195
    %v7260 = verf.f32.pop %v7196
    %v7261 = verf.f32.pop %v7197
    %v7262 = verf.f32.pop %v7198
    %v7263 = verf.f32.pop %v7199
    %v7264 = verf.f32.pop %v7200
    %v7265 = verf.f32.pop %v7201
    %v7266 = verf.f32.pop %v7202
    %v7267 = verf.f32.pop %v7203
    %v7268 = verf.f32.pop %v7204
    %v7269 = verf.f32.pop %v7205
    %v7270 = verf.f32.pop %v7206
    %v7271 = verf.f32.pop %v7207
    %v7272 = verf.f32.pop %v7208
    %v7273 = verf.f32.pop %v7209
    %v7274 = verf.f32.pop %v7210
    %v7275 = verf.f32.pop %v7211
    %v7276 = verf.f32.pop %v7212
    %v7277 = verf.f32.pop %v7213
    %v7278 = verf.f32.pop %v7214
    %v7279 = verf.f32.pop %v7215
    %v7280 = verf.f32.pop %v7216
    %v7281 = verf.f32.pop %v7217
    %v7282 = verf.f32.pop %v7218
    %v7283 = verf.f32.pop %v7219
    %v7284 = verf.f32.pop %v7220
    %v7285 = verf.f32.pop %v7221
    %v7286 = verf.f32.pop %v7222
    %v7287 = vadd.f32 %v7223, 1.0
    %v7288 = vadd.f32 %v7224, 1.0
    %v7289 = vadd.f32 %v7225, 1.0
    %v7290 = vadd.f32 %v7226, 1.0
    %v7291 = vadd.f32 %v7227, 1.0
    %v7292 = vadd.f32 %v7228, 1.0
    %v7293 = vadd.f32 %v7229, 1.0
    %v7294 = vadd.f32 %v7230, 1.0
    %v7295 = vadd.f32 %v7231, 1.0
    %v7296 = vadd.f32 %v7232, 1.0
    %v7297 = vadd.f32 %v7233, 1.0
    %v7298 = vadd.f32 %v7234, 1.0
    %v7299 = vadd.f32 %v7235, 1.0
    %v7300 = vadd.f32 %v7236, 1.0
    %v7301 = vadd.f32 %v7237, 1.0
    %v7302 = vadd.f32 %v7238, 1.0
    %v7303 = vadd.f32 %v7239, 1.0
    %v7304 = vadd.f32 %v7240, 1.0
    %v7305 = vadd.f32 %v7241, 1.0
    %v7306 = vadd.f32 %v7242, 1.0
    %v7307 = vadd.f32 %v7243, 1.0
    %v7308 = vadd.f32 %v7244, 1.0
    %v7309 = vadd.f32 %v7245, 1.0
    %v7310 = vadd.f32 %v7246, 1.0
    %v7311 = vadd.f32 %v7247, 1.0
    %v7312 = vadd.f32 %v7248, 1.0
    %v7313 = vadd.f32 %v7249, 1.0
    %v7314 = vadd.f32 %v7250, 1.0
    %v7315 = vadd.f32 %v7251, 1.0
    %v7316 = vadd.f32 %v7252, 1.0
    %v7317 = vadd.f32 %v7253, 1.0
    %v7318 = vadd.f32 %v7254, 1.0
    %v7319 = vadd.f32 %v7255, 1.0
    %v7320 = vadd.f32 %v7256, 1.0
    %v7321 = vadd.f32 %v7257, 1.0
    %v7322 = vadd.f32 %v7258, 1.0
    %v7323 = vadd.f32 %v7259, 1.0
    %v7324 = vadd.f32 %v7260, 1.0
    %v7325 = vadd.f32 %v7261, 1.0
    %v7326 = vadd.f32 %v7262, 1.0
    %v7327 = vadd.f32 %v7263, 1.0
    %v7328 = vadd.f32 %v7264, 1.0
    %v7329 = vadd.f32 %v7265, 1.0
    %v7330 = vadd.f32 %v7266, 1.0
    %v7331 = vadd.f32 %v7267, 1.0
    %v7332 = vadd.f32 %v7268, 1.0
    %v7333 = vadd.f32 %v7269, 1.0
    %v7334 = vadd.f32 %v7270, 1.0
    %v7335 = vadd.f32 %v7271, 1.0
    %v7336 = vadd.f32 %v7272, 1.0
    %v7337 = vadd.f32 %v7273, 1.0
    %v7338 = vadd.f32 %v7274, 1.0
    %v7339 = vadd.f32 %v7275, 1.0
    %v7340 = vadd.f32 %v7276, 1.0
    %v7341 = vadd.f32 %v7277, 1.0
    %v7342 = vadd.f32 %v7278, 1.0
    %v7343 = vadd.f32 %v7279, 1.0
    %v7344 = vadd.f32 %v7280, 1.0
    %v7345 = vadd.f32 %v7281, 1.0
    %v7346 = vadd.f32 %v7282, 1.0
    %v7347 = vadd.f32 %v7283, 1.0
    %v7348 = vadd.f32 %v7284, 1.0
    %v7349 = vadd.f32 %v7285, 1.0
    %v7350 = vadd.f32 %v7286, 1.0
    %v7351 = vmul.f32 %v7095, %v7287
    %v7352 = vmul.f32 %v7096, %v7288
    %v7353 = vmul.f32 %v7097, %v7289
    %v7354 = vmul.f32 %v7098, %v7290
    %v7355 = vmul.f32 %v7099, %v7291
    %v7356 = vmul.f32 %v7100, %v7292
    %v7357 = vmul.f32 %v7101, %v7293
    %v7358 = vmul.f32 %v7102, %v7294
    %v7359 = vmul.f32 %v7103, %v7295
    %v7360 = vmul.f32 %v7104, %v7296
    %v7361 = vmul.f32 %v7105, %v7297
    %v7362 = vmul.f32 %v7106, %v7298
    %v7363 = vmul.f32 %v7107, %v7299
    %v7364 = vmul.f32 %v7108, %v7300
    %v7365 = vmul.f32 %v7109, %v7301
    %v7366 = vmul.f32 %v7110, %v7302
    %v7367 = vmul.f32 %v7111, %v7303
    %v7368 = vmul.f32 %v7112, %v7304
    %v7369 = vmul.f32 %v7113, %v7305
    %v7370 = vmul.f32 %v7114, %v7306
    %v7371 = vmul.f32 %v7115, %v7307
    %v7372 = vmul.f32 %v7116, %v7308
    %v7373 = vmul.f32 %v7117, %v7309
    %v7374 = vmul.f32 %v7118, %v7310
    %v7375 = vmul.f32 %v7119, %v7311
    %v7376 = vmul.f32 %v7120, %v7312
    %v7377 = vmul.f32 %v7121, %v7313
    %v7378 = vmul.f32 %v7122, %v7314
    %v7379 = vmul.f32 %v7123, %v7315
    %v7380 = vmul.f32 %v7124, %v7316
    %v7381 = vmul.f32 %v7125, %v7317
    %v7382 = vmul.f32 %v7126, %v7318
    %v7383 = vmul.f32 %v7127, %v7319
    %v7384 = vmul.f32 %v7128, %v7320
    %v7385 = vmul.f32 %v7129, %v7321
    %v7386 = vmul.f32 %v7130, %v7322
    %v7387 = vmul.f32 %v7131, %v7323
    %v7388 = vmul.f32 %v7132, %v7324
    %v7389 = vmul.f32 %v7133, %v7325
    %v7390 = vmul.f32 %v7134, %v7326
    %v7391 = vmul.f32 %v7135, %v7327
    %v7392 = vmul.f32 %v7136, %v7328
    %v7393 = vmul.f32 %v7137, %v7329
    %v7394 = vmul.f32 %v7138, %v7330
    %v7395 = vmul.f32 %v7139, %v7331
    %v7396 = vmul.f32 %v7140, %v7332
    %v7397 = vmul.f32 %v7141, %v7333
    %v7398 = vmul.f32 %v7142, %v7334
    %v7399 = vmul.f32 %v7143, %v7335
    %v7400 = vmul.f32 %v7144, %v7336
    %v7401 = vmul.f32 %v7145, %v7337
    %v7402 = vmul.f32 %v7146, %v7338
    %v7403 = vmul.f32 %v7147, %v7339
    %v7404 = vmul.f32 %v7148, %v7340
    %v7405 = vmul.f32 %v7149, %v7341
    %v7406 = vmul.f32 %v7150, %v7342
    %v7407 = vmul.f32 %v7151, %v7343
    %v7408 = vmul.f32 %v7152, %v7344
    %v7409 = vmul.f32 %v7153, %v7345
    %v7410 = vmul.f32 %v7154, %v7346
    %v7411 = vmul.f32 %v7155, %v7347
    %v7412 = vmul.f32 %v7156, %v7348
    %v7413 = vmul.f32 %v7157, %v7349
    %v7414 = vmul.f32 %v7158, %v7350
    %v7415 = vadd.f32 %v4173, %v7351
    %v7416 = vadd.f32 %v4174, %v7352
    %v7417 = vadd.f32 %v4175, %v7353
    %v7418 = vadd.f32 %v4176, %v7354
    %v7419 = vadd.f32 %v4177, %v7355
    %v7420 = vadd.f32 %v4178, %v7356
    %v7421 = vadd.f32 %v4179, %v7357
    %v7422 = vadd.f32 %v4180, %v7358
    %v7423 = vadd.f32 %v4181, %v7359
    %v7424 = vadd.f32 %v4182, %v7360
    %v7425 = vadd.f32 %v4183, %v7361
    %v7426 = vadd.f32 %v4184, %v7362
    %v7427 = vadd.f32 %v4185, %v7363
    %v7428 = vadd.f32 %v4186, %v7364
    %v7429 = vadd.f32 %v4187, %v7365
    %v7430 = vadd.f32 %v4188, %v7366
    %v7431 = vadd.f32 %v4189, %v7367
    %v7432 = vadd.f32 %v4190, %v7368
    %v7433 = vadd.f32 %v4191, %v7369
    %v7434 = vadd.f32 %v4192, %v7370
    %v7435 = vadd.f32 %v4193, %v7371
    %v7436 = vadd.f32 %v4194, %v7372
    %v7437 = vadd.f32 %v4195, %v7373
    %v7438 = vadd.f32 %v4196, %v7374
    %v7439 = vadd.f32 %v4197, %v7375
    %v7440 = vadd.f32 %v4198, %v7376
    %v7441 = vadd.f32 %v4199, %v7377
    %v7442 = vadd.f32 %v4200, %v7378
    %v7443 = vadd.f32 %v4201, %v7379
    %v7444 = vadd.f32 %v4202, %v7380
    %v7445 = vadd.f32 %v4203, %v7381
    %v7446 = vadd.f32 %v4204, %v7382
    %v7447 = vadd.f32 %v4205, %v7383
    %v7448 = vadd.f32 %v4206, %v7384
    %v7449 = vadd.f32 %v4207, %v7385
    %v7450 = vadd.f32 %v4208, %v7386
    %v7451 = vadd.f32 %v4209, %v7387
    %v7452 = vadd.f32 %v4210, %v7388
    %v7453 = vadd.f32 %v4211, %v7389
    %v7454 = vadd.f32 %v4212, %v7390
    %v7455 = vadd.f32 %v4213, %v7391
    %v7456 = vadd.f32 %v4214, %v7392
    %v7457 = vadd.f32 %v4215, %v7393
    %v7458 = vadd.f32 %v4216, %v7394
    %v7459 = vadd.f32 %v4217, %v7395
    %v7460 = vadd.f32 %v4218, %v7396
    %v7461 = vadd.f32 %v4219, %v7397
    %v7462 = vadd.f32 %v4220, %v7398
    %v7463 = vadd.f32 %v4221, %v7399
    %v7464 = vadd.f32 %v4222, %v7400
    %v7465 = vadd.f32 %v4223, %v7401
    %v7466 = vadd.f32 %v4224, %v7402
    %v7467 = vadd.f32 %v4225, %v7403
    %v7468 = vadd.f32 %v4226, %v7404
    %v7469 = vadd.f32 %v4227, %v7405
    %v7470 = vadd.f32 %v4228, %v7406
    %v7471 = vadd.f32 %v4229, %v7407
    %v7472 = vadd.f32 %v4230, %v7408
    %v7473 = vadd.f32 %v4231, %v7409
    %v7474 = vadd.f32 %v4232, %v7410
    %v7475 = vadd.f32 %v4233, %v7411
    %v7476 = vadd.f32 %v4234, %v7412
    %v7477 = vadd.f32 %v4235, %v7413
    %v7478 = vadd.f32 %v4236, %v7414
    %v7479 = vld [vmem:[#allocation13] sm:$0xff]
    %v7480 = vld [vmem:[#allocation13 + $0x8] sm:$0xff]
    %v7481 = vld [vmem:[#allocation13 + $0x10] sm:$0xff]
    %v7482 = vld [vmem:[#allocation13 + $0x18] sm:$0xff]
    %v7483 = vld [vmem:[#allocation15] sm:$0x1]
    %v7485 = vlaneseq
    %v7486 = vshrl.u32 %v7485, 7
    %v7487 = vsub.s32 0, %v7486
    %v7488 = vrot.slane %v7483, %v7487
    %v7491 = vsel %vm1249, %v7415, 0
    %v7494 = vsel %vm1249, %v7416, 0
    %v7497 = vsel %vm1249, %v7417, 0
    %v7500 = vsel %vm1249, %v7418, 0
    %v7503 = vsel %vm1249, %v7419, 0
    %v7506 = vsel %vm1249, %v7420, 0
    %v7509 = vsel %vm1249, %v7421, 0
    %v7512 = vsel %vm1249, %v7422, 0
    %v7515 = vsel %vm1249, %v7423, 0
    %v7518 = vsel %vm1249, %v7424, 0
    %v7521 = vsel %vm1249, %v7425, 0
    %v7524 = vsel %vm1249, %v7426, 0
    %v7527 = vsel %vm1249, %v7427, 0
    %v7530 = vsel %vm1249, %v7428, 0
    %v7533 = vsel %vm1249, %v7429, 0
    %v7536 = vsel %vm1249, %v7430, 0
    %v7539 = vsel %vm1249, %v7431, 0
    %v7542 = vsel %vm1249, %v7432, 0
    %v7545 = vsel %vm1249, %v7433, 0
    %v7548 = vsel %vm1249, %v7434, 0
    %v7551 = vsel %vm1249, %v7435, 0
    %v7554 = vsel %vm1249, %v7436, 0
    %v7557 = vsel %vm1249, %v7437, 0
    %v7560 = vsel %vm1249, %v7438, 0
    %v7563 = vsel %vm1249, %v7439, 0
    %v7566 = vsel %vm1249, %v7440, 0
    %v7569 = vsel %vm1249, %v7441, 0
    %v7572 = vsel %vm1249, %v7442, 0
    %v7575 = vsel %vm1249, %v7443, 0
    %v7578 = vsel %vm1249, %v7444, 0
    %v7581 = vsel %vm1249, %v7445, 0
    %v7584 = vsel %vm1249, %v7446, 0
    %v7587 = vsel %vm1249, %v7447, 0
    %v7590 = vsel %vm1249, %v7448, 0
    %v7593 = vsel %vm1249, %v7449, 0
    %v7596 = vsel %vm1249, %v7450, 0
    %v7599 = vsel %vm1249, %v7451, 0
    %v7602 = vsel %vm1249, %v7452, 0
    %v7605 = vsel %vm1249, %v7453, 0
    %v7608 = vsel %vm1249, %v7454, 0
    %v7611 = vsel %vm1249, %v7455, 0
    %v7614 = vsel %vm1249, %v7456, 0
    %v7617 = vsel %vm1249, %v7457, 0
    %v7620 = vsel %vm1249, %v7458, 0
    %v7623 = vsel %vm1249, %v7459, 0
    %v7626 = vsel %vm1249, %v7460, 0
    %v7629 = vsel %vm1249, %v7461, 0
    %v7632 = vsel %vm1249, %v7462, 0
    %v7635 = vsel %vm1249, %v7463, 0
    %v7638 = vsel %vm1249, %v7464, 0
    %v7641 = vsel %vm1249, %v7465, 0
    %v7644 = vsel %vm1249, %v7466, 0
    %v7647 = vsel %vm1249, %v7467, 0
    %v7650 = vsel %vm1249, %v7468, 0
    %v7653 = vsel %vm1249, %v7469, 0
    %v7656 = vsel %vm1249, %v7470, 0
    %v7659 = vsel %vm1249, %v7471, 0
    %v7662 = vsel %vm1249, %v7472, 0
    %v7665 = vsel %vm1249, %v7473, 0
    %v7668 = vsel %vm1249, %v7474, 0
    %v7671 = vsel %vm1249, %v7475, 0
    %v7674 = vsel %vm1249, %v7476, 0
    %v7677 = vsel %vm1249, %v7477, 0
    %v7680 = vsel %vm1249, %v7478, 0
    %7682 = vmatprep.subr.mxu0 0.0
    %7683 = vmatpush1.msra.mxu0 %v7479
    %7684 = vmatprep.subr.mxu0 0.0
    %7685 = vmatpush1.msra.mxu0 %v7480
    %7686 = vmatprep.subr.mxu0 0.0
    %7687 = vmatpush1.msra.mxu0 %v7481
    %7688 = vmatprep.subr.mxu0 0.0
    %7689 = vmatpush1.msra.mxu0 %v7482
    %7690 = vmatprep.subr.mxu0 0.0
    %7691 = vmatpush1.msra.mxu0 0.0
    %7692 = vmatprep.subr.mxu0 0.0
    %7693 = vmatpush1.msra.mxu0 0.0
    %7694 = vmatprep.subr.mxu0 0.0
    %7695 = vmatpush1.msra.mxu0 0.0
    %7696 = vmatprep.subr.mxu0 0.0
    %7697 = vmatpush1.msra.mxu0 0.0
    %7698 = vmatprep.subr.mxu0 0.0
    %7699 = vmatpush1.msra.mxu0 0.0
    %7700 = vmatprep.subr.mxu0 0.0
    %7701 = vmatpush1.msra.mxu0 0.0
    %7702 = vmatprep.subr.mxu0 0.0
    %7703 = vmatpush1.msra.mxu0 0.0
    %7704 = vmatprep.subr.mxu0 0.0
    %7705 = vmatpush1.msra.mxu0 0.0
    %7706 = vmatprep.subr.mxu0 0.0
    %7707 = vmatpush1.msra.mxu0 0.0
    %7708 = vmatprep.subr.mxu0 0.0
    %7709 = vmatpush1.msra.mxu0 0.0
    %7710 = vmatprep.subr.mxu0 0.0
    %7711 = vmatpush1.msra.mxu0 0.0
    %7712 = vmatprep.subr.mxu0 0.0
    %7713 = vmatpush1.msra.mxu0 0.0
    %7714 = vmatprep.subr.mxu0 0.0
    %7715 = vmatpush1.msra.mxu0 0.0
    %7716 = vmatprep.subr.mxu0 0.0
    %7717 = vmatpush1.msra.mxu0 0.0
    %7718 = vmatprep.subr.mxu0 0.0
    %7719 = vmatpush1.msra.mxu0 0.0
    %7720 = vmatprep.subr.mxu0 0.0
    %7721 = vmatpush1.msra.mxu0 0.0
    %7722 = vmatprep.subr.mxu0 0.0
    %7723 = vmatpush1.msra.mxu0 0.0
    %7724 = vmatprep.subr.mxu0 0.0
    %7725 = vmatpush1.msra.mxu0 0.0
    %7726 = vmatprep.subr.mxu0 0.0
    %7727 = vmatpush1.msra.mxu0 0.0
    %7728 = vmatprep.subr.mxu0 0.0
    %7729 = vmatpush1.msra.mxu0 0.0
    %7730 = vmatprep.subr.mxu0 0.0
    %7731 = vmatpush1.msra.mxu0 0.0
    %7732 = vmatprep.subr.mxu0 0.0
    %7733 = vmatpush1.msra.mxu0 0.0
    %7734 = vmatprep.subr.mxu0 0.0
    %7735 = vmatpush1.msra.mxu0 0.0
    %7736 = vmatprep.subr.mxu0 0.0
    %7737 = vmatpush1.msra.mxu0 0.0
    %7738 = vmatprep.subr.mxu0 0.0
    %7739 = vmatpush1.msra.mxu0 0.0
    %7740 = vmatprep.subr.mxu0 0.0
    %7741 = vmatpush1.msra.mxu0 0.0
    %7742 = vmatprep.subr.mxu0 0.0
    %7743 = vmatpush1.msra.mxu0 0.0
    %7744 = vmatprep.subr.mxu0 0.0
    %7745 = vmatpush1.msra.mxu0 0.0
    %7746 = vmatprep.mubr.f32.mxu0 0.0
    %7747 = vmatmul.mubr.f32.gmra.mrb[0].mxu0 %v7491
    %v7748 = vpop.f32.mrb[0].mxu0
    %v7749 = vadd.f32 %v7488, %v7748
    %v7750 = vpop.f32.mrb[0].mxu0
    %7751 = vmatprep.mubr.f32.mxu0 0.0
    %7752 = vmatmul.mubr.f32.gmra.mrb[0].mxu0 %v7494
    %v7753 = vpop.f32.mrb[0].mxu0
    %v7754 = vadd.f32 %v7488, %v7753
    %v7755 = vpop.f32.mrb[0].mxu0
    %7756 = vmatprep.mubr.f32.mxu0 0.0
    %7757 = vmatmul.mubr.f32.gmra.mrb[0].mxu0 %v7497
    %v7758 = vpop.f32.mrb[0].mxu0
    %v7759 = vadd.f32 %v7488, %v7758
    %v7760 = vpop.f32.mrb[0].mxu0
    %7761 = vmatprep.mubr.f32.mxu0 0.0
    %7762 = vmatmul.mubr.f32.gmra.mrb[0].mxu0 %v7500
    %v7763 = vpop.f32.mrb[0].mxu0
    %v7764 = vadd.f32 %v7488, %v7763
    %v7765 = vpop.f32.mrb[0].mxu0
    %7766 = vmatprep.mubr.f32.mxu0 0.0
    %7767 = vmatmul.mubr.f32.gmra.mrb[0].mxu0 %v7503
    %v7768 = vpop.f32.mrb[0].mxu0
    %v7769 = vadd.f32 %v7488, %v7768
    %v7770 = vpop.f32.mrb[0].mxu0
    %7771 = vmatprep.mubr.f32.mxu0 0.0
    %7772 = vmatmul.mubr.f32.gmra.mrb[0].mxu0 %v7506
    %v7773 = vpop.f32.mrb[0].mxu0
    %v7774 = vadd.f32 %v7488, %v7773
    %v7775 = vpop.f32.mrb[0].mxu0
    %7776 = vmatprep.mubr.f32.mxu0 0.0
    %7777 = vmatmul.mubr.f32.gmra.mrb[0].mxu0 %v7509
    %v7778 = vpop.f32.mrb[0].mxu0
    %v7779 = vadd.f32 %v7488, %v7778
    %v7780 = vpop.f32.mrb[0].mxu0
    %7781 = vmatprep.mubr.f32.mxu0 0.0
    %7782 = vmatmul.mubr.f32.gmra.mrb[0].mxu0 %v7512
    %v7783 = vpop.f32.mrb[0].mxu0
    %v7784 = vadd.f32 %v7488, %v7783
    %v7785 = vpop.f32.mrb[0].mxu0
    %7786 = vmatprep.mubr.f32.mxu0 0.0
    %7787 = vmatmul.mubr.f32.gmra.mrb[0].mxu0 %v7515
    %v7788 = vpop.f32.mrb[0].mxu0
    %v7789 = vadd.f32 %v7488, %v7788
    %v7790 = vpop.f32.mrb[0].mxu0
    %7791 = vmatprep.mubr.f32.mxu0 0.0
    %7792 = vmatmul.mubr.f32.gmra.mrb[0].mxu0 %v7518
    %v7793 = vpop.f32.mrb[0].mxu0
    %v7794 = vadd.f32 %v7488, %v7793
    %v7795 = vpop.f32.mrb[0].mxu0
    %7796 = vmatprep.mubr.f32.mxu0 0.0
    %7797 = vmatmul.mubr.f32.gmra.mrb[0].mxu0 %v7521
    %v7798 = vpop.f32.mrb[0].mxu0
    %v7799 = vadd.f32 %v7488, %v7798
    %v7800 = vpop.f32.mrb[0].mxu0
    %7801 = vmatprep.mubr.f32.mxu0 0.0
    %7802 = vmatmul.mubr.f32.gmra.mrb[0].mxu0 %v7524
    %v7803 = vpop.f32.mrb[0].mxu0
    %v7804 = vadd.f32 %v7488, %v7803
    %v7805 = vpop.f32.mrb[0].mxu0
    %7806 = vmatprep.mubr.f32.mxu0 0.0
    %7807 = vmatmul.mubr.f32.gmra.mrb[0].mxu0 %v7527
    %v7808 = vpop.f32.mrb[0].mxu0
    %v7809 = vadd.f32 %v7488, %v7808
    %v7810 = vpop.f32.mrb[0].mxu0
    %7811 = vmatprep.mubr.f32.mxu0 0.0
    %7812 = vmatmul.mubr.f32.gmra.mrb[0].mxu0 %v7530
    %v7813 = vpop.f32.mrb[0].mxu0
    %v7814 = vadd.f32 %v7488, %v7813
    %v7815 = vpop.f32.mrb[0].mxu0
    %7816 = vmatprep.mubr.f32.mxu0 0.0
    %7817 = vmatmul.mubr.f32.gmra.mrb[0].mxu0 %v7533
    %v7818 = vpop.f32.mrb[0].mxu0
    %v7819 = vadd.f32 %v7488, %v7818
    %v7820 = vpop.f32.mrb[0].mxu0
    %7821 = vmatprep.mubr.f32.mxu0 0.0
    %7822 = vmatmul.mubr.f32.gmra.mrb[0].mxu0 %v7536
    %v7823 = vpop.f32.mrb[0].mxu0
    %v7824 = vadd.f32 %v7488, %v7823
    %v7825 = vpop.f32.mrb[0].mxu0
    %7826 = vmatprep.mubr.f32.mxu0 0.0
    %7827 = vmatmul.mubr.f32.gmra.mrb[0].mxu0 %v7539
    %v7828 = vpop.f32.mrb[0].mxu0
    %v7829 = vadd.f32 %v7488, %v7828
    %v7830 = vpop.f32.mrb[0].mxu0
    %7831 = vmatprep.mubr.f32.mxu0 0.0
    %7832 = vmatmul.mubr.f32.gmra.mrb[0].mxu0 %v7542
    %v7833 = vpop.f32.mrb[0].mxu0
    %v7834 = vadd.f32 %v7488, %v7833
    %v7835 = vpop.f32.mrb[0].mxu0
    %7836 = vmatprep.mubr.f32.mxu0 0.0
    %7837 = vmatmul.mubr.f32.gmra.mrb[0].mxu0 %v7545
    %v7838 = vpop.f32.mrb[0].mxu0
    %v7839 = vadd.f32 %v7488, %v7838
    %v7840 = vpop.f32.mrb[0].mxu0
    %7841 = vmatprep.mubr.f32.mxu0 0.0
    %7842 = vmatmul.mubr.f32.gmra.mrb[0].mxu0 %v7548
    %v7843 = vpop.f32.mrb[0].mxu0
    %v7844 = vadd.f32 %v7488, %v7843
    %v7845 = vpop.f32.mrb[0].mxu0
    %7846 = vmatprep.mubr.f32.mxu0 0.0
    %7847 = vmatmul.mubr.f32.gmra.mrb[0].mxu0 %v7551
    %v7848 = vpop.f32.mrb[0].mxu0
    %v7849 = vadd.f32 %v7488, %v7848
    %v7850 = vpop.f32.mrb[0].mxu0
    %7851 = vmatprep.mubr.f32.mxu0 0.0
    %7852 = vmatmul.mubr.f32.gmra.mrb[0].mxu0 %v7554
    %v7853 = vpop.f32.mrb[0].mxu0
    %v7854 = vadd.f32 %v7488, %v7853
    %v7855 = vpop.f32.mrb[0].mxu0
    %7856 = vmatprep.mubr.f32.mxu0 0.0
    %7857 = vmatmul.mubr.f32.gmra.mrb[0].mxu0 %v7557
    %v7858 = vpop.f32.mrb[0].mxu0
    %v7859 = vadd.f32 %v7488, %v7858
    %v7860 = vpop.f32.mrb[0].mxu0
    %7861 = vmatprep.mubr.f32.mxu0 0.0
    %7862 = vmatmul.mubr.f32.gmra.mrb[0].mxu0 %v7560
    %v7863 = vpop.f32.mrb[0].mxu0
    %v7864 = vadd.f32 %v7488, %v7863
    %v7865 = vpop.f32.mrb[0].mxu0
    %7866 = vmatprep.mubr.f32.mxu0 0.0
    %7867 = vmatmul.mubr.f32.gmra.mrb[0].mxu0 %v7563
    %v7868 = vpop.f32.mrb[0].mxu0
    %v7869 = vadd.f32 %v7488, %v7868
    %v7870 = vpop.f32.mrb[0].mxu0
    %7871 = vmatprep.mubr.f32.mxu0 0.0
    %7872 = vmatmul.mubr.f32.gmra.mrb[0].mxu0 %v7566
    %v7873 = vpop.f32.mrb[0].mxu0
    %v7874 = vadd.f32 %v7488, %v7873
    %v7875 = vpop.f32.mrb[0].mxu0
    %7876 = vmatprep.mubr.f32.mxu0 0.0
    %7877 = vmatmul.mubr.f32.gmra.mrb[0].mxu0 %v7569
    %v7878 = vpop.f32.mrb[0].mxu0
    %v7879 = vadd.f32 %v7488, %v7878
    %v7880 = vpop.f32.mrb[0].mxu0
    %7881 = vmatprep.mubr.f32.mxu0 0.0
    %7882 = vmatmul.mubr.f32.gmra.mrb[0].mxu0 %v7572
    %v7883 = vpop.f32.mrb[0].mxu0
    %v7884 = vadd.f32 %v7488, %v7883
    %v7885 = vpop.f32.mrb[0].mxu0
    %7886 = vmatprep.mubr.f32.mxu0 0.0
    %7887 = vmatmul.mubr.f32.gmra.mrb[0].mxu0 %v7575
    %v7888 = vpop.f32.mrb[0].mxu0
    %v7889 = vadd.f32 %v7488, %v7888
    %v7890 = vpop.f32.mrb[0].mxu0
    %7891 = vmatprep.mubr.f32.mxu0 0.0
    %7892 = vmatmul.mubr.f32.gmra.mrb[0].mxu0 %v7578
    %v7893 = vpop.f32.mrb[0].mxu0
    %v7894 = vadd.f32 %v7488, %v7893
    %v7895 = vpop.f32.mrb[0].mxu0
    %7896 = vmatprep.mubr.f32.mxu0 0.0
    %7897 = vmatmul.mubr.f32.gmra.mrb[0].mxu0 %v7581
    %v7898 = vpop.f32.mrb[0].mxu0
    %v7899 = vadd.f32 %v7488, %v7898
    %v7900 = vpop.f32.mrb[0].mxu0
    %7901 = vmatprep.mubr.f32.mxu0 0.0
    %7902 = vmatmul.mubr.f32.gmra.mrb[0].mxu0 %v7584
    %v7903 = vpop.f32.mrb[0].mxu0
    %v7904 = vadd.f32 %v7488, %v7903
    %v7905 = vpop.f32.mrb[0].mxu0
    %7906 = vmatprep.mubr.f32.mxu0 0.0
    %7907 = vmatmul.mubr.f32.gmra.mrb[0].mxu0 %v7587
    %v7908 = vpop.f32.mrb[0].mxu0
    %v7909 = vadd.f32 %v7488, %v7908
    %v7910 = vpop.f32.mrb[0].mxu0
    %7911 = vmatprep.mubr.f32.mxu0 0.0
    %7912 = vmatmul.mubr.f32.gmra.mrb[0].mxu0 %v7590
    %v7913 = vpop.f32.mrb[0].mxu0
    %v7914 = vadd.f32 %v7488, %v7913
    %v7915 = vpop.f32.mrb[0].mxu0
    %7916 = vmatprep.mubr.f32.mxu0 0.0
    %7917 = vmatmul.mubr.f32.gmra.mrb[0].mxu0 %v7593
    %v7918 = vpop.f32.mrb[0].mxu0
    %v7919 = vadd.f32 %v7488, %v7918
    %v7920 = vpop.f32.mrb[0].mxu0
    %7921 = vmatprep.mubr.f32.mxu0 0.0
    %7922 = vmatmul.mubr.f32.gmra.mrb[0].mxu0 %v7596
    %v7923 = vpop.f32.mrb[0].mxu0
    %v7924 = vadd.f32 %v7488, %v7923
    %v7925 = vpop.f32.mrb[0].mxu0
    %7926 = vmatprep.mubr.f32.mxu0 0.0
    %7927 = vmatmul.mubr.f32.gmra.mrb[0].mxu0 %v7599
    %v7928 = vpop.f32.mrb[0].mxu0
    %v7929 = vadd.f32 %v7488, %v7928
    %v7930 = vpop.f32.mrb[0].mxu0
    %7931 = vmatprep.mubr.f32.mxu0 0.0
    %7932 = vmatmul.mubr.f32.gmra.mrb[0].mxu0 %v7602
    %v7933 = vpop.f32.mrb[0].mxu0
    %v7934 = vadd.f32 %v7488, %v7933
    %v7935 = vpop.f32.mrb[0].mxu0
    %7936 = vmatprep.mubr.f32.mxu0 0.0
    %7937 = vmatmul.mubr.f32.gmra.mrb[0].mxu0 %v7605
    %v7938 = vpop.f32.mrb[0].mxu0
    %v7939 = vadd.f32 %v7488, %v7938
    %v7940 = vpop.f32.mrb[0].mxu0
    %7941 = vmatprep.mubr.f32.mxu0 0.0
    %7942 = vmatmul.mubr.f32.gmra.mrb[0].mxu0 %v7608
    %v7943 = vpop.f32.mrb[0].mxu0
    %v7944 = vadd.f32 %v7488, %v7943
    %v7945 = vpop.f32.mrb[0].mxu0
    %7946 = vmatprep.mubr.f32.mxu0 0.0
    %7947 = vmatmul.mubr.f32.gmra.mrb[0].mxu0 %v7611
    %v7948 = vpop.f32.mrb[0].mxu0
    %v7949 = vadd.f32 %v7488, %v7948
    %v7950 = vpop.f32.mrb[0].mxu0
    %7951 = vmatprep.mubr.f32.mxu0 0.0
    %7952 = vmatmul.mubr.f32.gmra.mrb[0].mxu0 %v7614
    %v7953 = vpop.f32.mrb[0].mxu0
    %v7954 = vadd.f32 %v7488, %v7953
    %v7955 = vpop.f32.mrb[0].mxu0
    %7956 = vmatprep.mubr.f32.mxu0 0.0
    %7957 = vmatmul.mubr.f32.gmra.mrb[0].mxu0 %v7617
    %v7958 = vpop.f32.mrb[0].mxu0
    %v7959 = vadd.f32 %v7488, %v7958
    %v7960 = vpop.f32.mrb[0].mxu0
    %7961 = vmatprep.mubr.f32.mxu0 0.0
    %7962 = vmatmul.mubr.f32.gmra.mrb[0].mxu0 %v7620
    %v7963 = vpop.f32.mrb[0].mxu0
    %v7964 = vadd.f32 %v7488, %v7963
    %v7965 = vpop.f32.mrb[0].mxu0
    %7966 = vmatprep.mubr.f32.mxu0 0.0
    %7967 = vmatmul.mubr.f32.gmra.mrb[0].mxu0 %v7623
    %v7968 = vpop.f32.mrb[0].mxu0
    %v7969 = vadd.f32 %v7488, %v7968
    %v7970 = vpop.f32.mrb[0].mxu0
    %7971 = vmatprep.mubr.f32.mxu0 0.0
    %7972 = vmatmul.mubr.f32.gmra.mrb[0].mxu0 %v7626
    %v7973 = vpop.f32.mrb[0].mxu0
    %v7974 = vadd.f32 %v7488, %v7973
    %v7975 = vpop.f32.mrb[0].mxu0
    %7976 = vmatprep.mubr.f32.mxu0 0.0
    %7977 = vmatmul.mubr.f32.gmra.mrb[0].mxu0 %v7629
    %v7978 = vpop.f32.mrb[0].mxu0
    %v7979 = vadd.f32 %v7488, %v7978
    %v7980 = vpop.f32.mrb[0].mxu0
    %7981 = vmatprep.mubr.f32.mxu0 0.0
    %7982 = vmatmul.mubr.f32.gmra.mrb[0].mxu0 %v7632
    %v7983 = vpop.f32.mrb[0].mxu0
    %v7984 = vadd.f32 %v7488, %v7983
    %v7985 = vpop.f32.mrb[0].mxu0
    %7986 = vmatprep.mubr.f32.mxu0 0.0
    %7987 = vmatmul.mubr.f32.gmra.mrb[0].mxu0 %v7635
    %v7988 = vpop.f32.mrb[0].mxu0
    %v7989 = vadd.f32 %v7488, %v7988
    %v7990 = vpop.f32.mrb[0].mxu0
    %7991 = vmatprep.mubr.f32.mxu0 0.0
    %7992 = vmatmul.mubr.f32.gmra.mrb[0].mxu0 %v7638
    %v7993 = vpop.f32.mrb[0].mxu0
    %v7994 = vadd.f32 %v7488, %v7993
    %v7995 = vpop.f32.mrb[0].mxu0
    %7996 = vmatprep.mubr.f32.mxu0 0.0
    %7997 = vmatmul.mubr.f32.gmra.mrb[0].mxu0 %v7641
    %v7998 = vpop.f32.mrb[0].mxu0
    %v7999 = vadd.f32 %v7488, %v7998
    %v8000 = vpop.f32.mrb[0].mxu0
    %8001 = vmatprep.mubr.f32.mxu0 0.0
    %8002 = vmatmul.mubr.f32.gmra.mrb[0].mxu0 %v7644
    %v8003 = vpop.f32.mrb[0].mxu0
    %v8004 = vadd.f32 %v7488, %v8003
    %v8005 = vpop.f32.mrb[0].mxu0
    %8006 = vmatprep.mubr.f32.mxu0 0.0
    %8007 = vmatmul.mubr.f32.gmra.mrb[0].mxu0 %v7647
    %v8008 = vpop.f32.mrb[0].mxu0
    %v8009 = vadd.f32 %v7488, %v8008
    %v8010 = vpop.f32.mrb[0].mxu0
    %8011 = vmatprep.mubr.f32.mxu0 0.0
    %8012 = vmatmul.mubr.f32.gmra.mrb[0].mxu0 %v7650
    %v8013 = vpop.f32.mrb[0].mxu0
    %v8014 = vadd.f32 %v7488, %v8013
    %v8015 = vpop.f32.mrb[0].mxu0
    %8016 = vmatprep.mubr.f32.mxu0 0.0
    %8017 = vmatmul.mubr.f32.gmra.mrb[0].mxu0 %v7653
    %v8018 = vpop.f32.mrb[0].mxu0
    %v8019 = vadd.f32 %v7488, %v8018
    %v8020 = vpop.f32.mrb[0].mxu0
    %8021 = vmatprep.mubr.f32.mxu0 0.0
    %8022 = vmatmul.mubr.f32.gmra.mrb[0].mxu0 %v7656
    %v8023 = vpop.f32.mrb[0].mxu0
    %v8024 = vadd.f32 %v7488, %v8023
    %v8025 = vpop.f32.mrb[0].mxu0
    %8026 = vmatprep.mubr.f32.mxu0 0.0
    %8027 = vmatmul.mubr.f32.gmra.mrb[0].mxu0 %v7659
    %v8028 = vpop.f32.mrb[0].mxu0
    %v8029 = vadd.f32 %v7488, %v8028
    %v8030 = vpop.f32.mrb[0].mxu0
    %8031 = vmatprep.mubr.f32.mxu0 0.0
    %8032 = vmatmul.mubr.f32.gmra.mrb[0].mxu0 %v7662
    %v8033 = vpop.f32.mrb[0].mxu0
    %v8034 = vadd.f32 %v7488, %v8033
    %v8035 = vpop.f32.mrb[0].mxu0
    %8036 = vmatprep.mubr.f32.mxu0 0.0
    %8037 = vmatmul.mubr.f32.gmra.mrb[0].mxu0 %v7665
    %v8038 = vpop.f32.mrb[0].mxu0
    %v8039 = vadd.f32 %v7488, %v8038
    %v8040 = vpop.f32.mrb[0].mxu0
    %8041 = vmatprep.mubr.f32.mxu0 0.0
    %8042 = vmatmul.mubr.f32.gmra.mrb[0].mxu0 %v7668
    %v8043 = vpop.f32.mrb[0].mxu0
    %v8044 = vadd.f32 %v7488, %v8043
    %v8045 = vpop.f32.mrb[0].mxu0
    %8046 = vmatprep.mubr.f32.mxu0 0.0
    %8047 = vmatmul.mubr.f32.gmra.mrb[0].mxu0 %v7671
    %v8048 = vpop.f32.mrb[0].mxu0
    %v8049 = vadd.f32 %v7488, %v8048
    %v8050 = vpop.f32.mrb[0].mxu0
    %8051 = vmatprep.mubr.f32.mxu0 0.0
    %8052 = vmatmul.mubr.f32.gmra.mrb[0].mxu0 %v7674
    %v8053 = vpop.f32.mrb[0].mxu0
    %v8054 = vadd.f32 %v7488, %v8053
    %v8055 = vpop.f32.mrb[0].mxu0
    %8056 = vmatprep.mubr.f32.mxu0 0.0
    %8057 = vmatmul.mubr.f32.gmra.mrb[0].mxu0 %v7677
    %v8058 = vpop.f32.mrb[0].mxu0
    %v8059 = vadd.f32 %v7488, %v8058
    %v8060 = vpop.f32.mrb[0].mxu0
    %8061 = vmatprep.mubr.f32.mxu0 0.0
    %8062 = vmatmul.mubr.f32.gmra.mrb[0].mxu0 %v7680
    %v8063 = vpop.f32.mrb[0].mxu0
    %v8064 = vadd.f32 %v7488, %v8063
    %v8065 = vpop.f32.mrb[0].mxu0
    %8066 = vdwg.mxu0
    %v8067 = vmul.f32 %v7749, 0.5
    %v8068 = vmul.f32 %v7754, 0.5
    %v8069 = vmul.f32 %v7759, 0.5
    %v8070 = vmul.f32 %v7764, 0.5
    %v8071 = vmul.f32 %v7769, 0.5
    %v8072 = vmul.f32 %v7774, 0.5
    %v8073 = vmul.f32 %v7779, 0.5
    %v8074 = vmul.f32 %v7784, 0.5
    %v8075 = vmul.f32 %v7789, 0.5
    %v8076 = vmul.f32 %v7794, 0.5
    %v8077 = vmul.f32 %v7799, 0.5
    %v8078 = vmul.f32 %v7804, 0.5
    %v8079 = vmul.f32 %v7809, 0.5
    %v8080 = vmul.f32 %v7814, 0.5
    %v8081 = vmul.f32 %v7819, 0.5
    %v8082 = vmul.f32 %v7824, 0.5
    %v8083 = vmul.f32 %v7829, 0.5
    %v8084 = vmul.f32 %v7834, 0.5
    %v8085 = vmul.f32 %v7839, 0.5
    %v8086 = vmul.f32 %v7844, 0.5
    %v8087 = vmul.f32 %v7849, 0.5
    %v8088 = vmul.f32 %v7854, 0.5
    %v8089 = vmul.f32 %v7859, 0.5
    %v8090 = vmul.f32 %v7864, 0.5
    %v8091 = vmul.f32 %v7869, 0.5
    %v8092 = vmul.f32 %v7874, 0.5
    %v8093 = vmul.f32 %v7879, 0.5
    %v8094 = vmul.f32 %v7884, 0.5
    %v8095 = vmul.f32 %v7889, 0.5
    %v8096 = vmul.f32 %v7894, 0.5
    %v8097 = vmul.f32 %v7899, 0.5
    %v8098 = vmul.f32 %v7904, 0.5
    %v8099 = vmul.f32 %v7909, 0.5
    %v8100 = vmul.f32 %v7914, 0.5
    %v8101 = vmul.f32 %v7919, 0.5
    %v8102 = vmul.f32 %v7924, 0.5
    %v8103 = vmul.f32 %v7929, 0.5
    %v8104 = vmul.f32 %v7934, 0.5
    %v8105 = vmul.f32 %v7939, 0.5
    %v8106 = vmul.f32 %v7944, 0.5
    %v8107 = vmul.f32 %v7949, 0.5
    %v8108 = vmul.f32 %v7954, 0.5
    %v8109 = vmul.f32 %v7959, 0.5
    %v8110 = vmul.f32 %v7964, 0.5
    %v8111 = vmul.f32 %v7969, 0.5
    %v8112 = vmul.f32 %v7974, 0.5
    %v8113 = vmul.f32 %v7979, 0.5
    %v8114 = vmul.f32 %v7984, 0.5
    %v8115 = vmul.f32 %v7989, 0.5
    %v8116 = vmul.f32 %v7994, 0.5
    %v8117 = vmul.f32 %v7999, 0.5
    %v8118 = vmul.f32 %v8004, 0.5
    %v8119 = vmul.f32 %v8009, 0.5
    %v8120 = vmul.f32 %v8014, 0.5
    %v8121 = vmul.f32 %v8019, 0.5
    %v8122 = vmul.f32 %v8024, 0.5
    %v8123 = vmul.f32 %v8029, 0.5
    %v8124 = vmul.f32 %v8034, 0.5
    %v8125 = vmul.f32 %v8039, 0.5
    %v8126 = vmul.f32 %v8044, 0.5
    %v8127 = vmul.f32 %v8049, 0.5
    %v8128 = vmul.f32 %v8054, 0.5
    %v8129 = vmul.f32 %v8059, 0.5
    %v8130 = vmul.f32 %v8064, 0.5
    %v8131 = vmul.f32 %v7749, 0.70710677
    %v8132 = vmul.f32 %v7754, 0.70710677
    %v8133 = vmul.f32 %v7759, 0.70710677
    %v8134 = vmul.f32 %v7764, 0.70710677
    %v8135 = vmul.f32 %v7769, 0.70710677
    %v8136 = vmul.f32 %v7774, 0.70710677
    %v8137 = vmul.f32 %v7779, 0.70710677
    %v8138 = vmul.f32 %v7784, 0.70710677
    %v8139 = vmul.f32 %v7789, 0.70710677
    %v8140 = vmul.f32 %v7794, 0.70710677
    %v8141 = vmul.f32 %v7799, 0.70710677
    %v8142 = vmul.f32 %v7804, 0.70710677
    %v8143 = vmul.f32 %v7809, 0.70710677
    %v8144 = vmul.f32 %v7814, 0.70710677
    %v8145 = vmul.f32 %v7819, 0.70710677
    %v8146 = vmul.f32 %v7824, 0.70710677
    %v8147 = vmul.f32 %v7829, 0.70710677
    %v8148 = vmul.f32 %v7834, 0.70710677
    %v8149 = vmul.f32 %v7839, 0.70710677
    %v8150 = vmul.f32 %v7844, 0.70710677
    %v8151 = vmul.f32 %v7849, 0.70710677
    %v8152 = vmul.f32 %v7854, 0.70710677
    %v8153 = vmul.f32 %v7859, 0.70710677
    %v8154 = vmul.f32 %v7864, 0.70710677
    %v8155 = vmul.f32 %v7869, 0.70710677
    %v8156 = vmul.f32 %v7874, 0.70710677
    %v8157 = vmul.f32 %v7879, 0.70710677
    %v8158 = vmul.f32 %v7884, 0.70710677
    %v8159 = vmul.f32 %v7889, 0.70710677
    %v8160 = vmul.f32 %v7894, 0.70710677
    %v8161 = vmul.f32 %v7899, 0.70710677
    %v8162 = vmul.f32 %v7904, 0.70710677
    %v8163 = vmul.f32 %v7909, 0.70710677
    %v8164 = vmul.f32 %v7914, 0.70710677
    %v8165 = vmul.f32 %v7919, 0.70710677
    %v8166 = vmul.f32 %v7924, 0.70710677
    %v8167 = vmul.f32 %v7929, 0.70710677
    %v8168 = vmul.f32 %v7934, 0.70710677
    %v8169 = vmul.f32 %v7939, 0.70710677
    %v8170 = vmul.f32 %v7944, 0.70710677
    %v8171 = vmul.f32 %v7949, 0.70710677
    %v8172 = vmul.f32 %v7954, 0.70710677
    %v8173 = vmul.f32 %v7959, 0.70710677
    %v8174 = vmul.f32 %v7964, 0.70710677
    %v8175 = vmul.f32 %v7969, 0.70710677
    %v8176 = vmul.f32 %v7974, 0.70710677
    %v8177 = vmul.f32 %v7979, 0.70710677
    %v8178 = vmul.f32 %v7984, 0.70710677
    %v8179 = vmul.f32 %v7989, 0.70710677
    %v8180 = vmul.f32 %v7994, 0.70710677
    %v8181 = vmul.f32 %v7999, 0.70710677
    %v8182 = vmul.f32 %v8004, 0.70710677
    %v8183 = vmul.f32 %v8009, 0.70710677
    %v8184 = vmul.f32 %v8014, 0.70710677
    %v8185 = vmul.f32 %v8019, 0.70710677
    %v8186 = vmul.f32 %v8024, 0.70710677
    %v8187 = vmul.f32 %v8029, 0.70710677
    %v8188 = vmul.f32 %v8034, 0.70710677
    %v8189 = vmul.f32 %v8039, 0.70710677
    %v8190 = vmul.f32 %v8044, 0.70710677
    %v8191 = vmul.f32 %v8049, 0.70710677
    %v8192 = vmul.f32 %v8054, 0.70710677
    %v8193 = vmul.f32 %v8059, 0.70710677
    %v8194 = vmul.f32 %v8064, 0.70710677
    %v8195 = verf.f32.pop %v8131
    %v8196 = verf.f32.pop %v8132
    %v8197 = verf.f32.pop %v8133
    %v8198 = verf.f32.pop %v8134
    %v8199 = verf.f32.pop %v8135
    %v8200 = verf.f32.pop %v8136
    %v8201 = verf.f32.pop %v8137
    %v8202 = verf.f32.pop %v8138
    %v8203 = verf.f32.pop %v8139
    %v8204 = verf.f32.pop %v8140
    %v8205 = verf.f32.pop %v8141
    %v8206 = verf.f32.pop %v8142
    %v8207 = verf.f32.pop %v8143
    %v8208 = verf.f32.pop %v8144
    %v8209 = verf.f32.pop %v8145
    %v8210 = verf.f32.pop %v8146
    %v8211 = verf.f32.pop %v8147
    %v8212 = verf.f32.pop %v8148
    %v8213 = verf.f32.pop %v8149
    %v8214 = verf.f32.pop %v8150
    %v8215 = verf.f32.pop %v8151
    %v8216 = verf.f32.pop %v8152
    %v8217 = verf.f32.pop %v8153
    %v8218 = verf.f32.pop %v8154
    %v8219 = verf.f32.pop %v8155
    %v8220 = verf.f32.pop %v8156
    %v8221 = verf.f32.pop %v8157
    %v8222 = verf.f32.pop %v8158
    %v8223 = verf.f32.pop %v8159
    %v8224 = verf.f32.pop %v8160
    %v8225 = verf.f32.pop %v8161
    %v8226 = verf.f32.pop %v8162
    %v8227 = verf.f32.pop %v8163
    %v8228 = verf.f32.pop %v8164
    %v8229 = verf.f32.pop %v8165
    %v8230 = verf.f32.pop %v8166
    %v8231 = verf.f32.pop %v8167
    %v8232 = verf.f32.pop %v8168
    %v8233 = verf.f32.pop %v8169
    %v8234 = verf.f32.pop %v8170
    %v8235 = verf.f32.pop %v8171
    %v8236 = verf.f32.pop %v8172
    %v8237 = verf.f32.pop %v8173
    %v8238 = verf.f32.pop %v8174
    %v8239 = verf.f32.pop %v8175
    %v8240 = verf.f32.pop %v8176
    %v8241 = verf.f32.pop %v8177
    %v8242 = verf.f32.pop %v8178
    %v8243 = verf.f32.pop %v8179
    %v8244 = verf.f32.pop %v8180
    %v8245 = verf.f32.pop %v8181
    %v8246 = verf.f32.pop %v8182
    %v8247 = verf.f32.pop %v8183
    %v8248 = verf.f32.pop %v8184
    %v8249 = verf.f32.pop %v8185
    %v8250 = verf.f32.pop %v8186
    %v8251 = verf.f32.pop %v8187
    %v8252 = verf.f32.pop %v8188
    %v8253 = verf.f32.pop %v8189
    %v8254 = verf.f32.pop %v8190
    %v8255 = verf.f32.pop %v8191
    %v8256 = verf.f32.pop %v8192
    %v8257 = verf.f32.pop %v8193
    %v8258 = verf.f32.pop %v8194
    %v8259 = vadd.f32 %v8195, 1.0
    %v8260 = vadd.f32 %v8196, 1.0
    %v8261 = vadd.f32 %v8197, 1.0
    %v8262 = vadd.f32 %v8198, 1.0
    %v8263 = vadd.f32 %v8199, 1.0
    %v8264 = vadd.f32 %v8200, 1.0
    %v8265 = vadd.f32 %v8201, 1.0
    %v8266 = vadd.f32 %v8202, 1.0
    %v8267 = vadd.f32 %v8203, 1.0
    %v8268 = vadd.f32 %v8204, 1.0
    %v8269 = vadd.f32 %v8205, 1.0
    %v8270 = vadd.f32 %v8206, 1.0
    %v8271 = vadd.f32 %v8207, 1.0
    %v8272 = vadd.f32 %v8208, 1.0
    %v8273 = vadd.f32 %v8209, 1.0
    %v8274 = vadd.f32 %v8210, 1.0
    %v8275 = vadd.f32 %v8211, 1.0
    %v8276 = vadd.f32 %v8212, 1.0
    %v8277 = vadd.f32 %v8213, 1.0
    %v8278 = vadd.f32 %v8214, 1.0
    %v8279 = vadd.f32 %v8215, 1.0
    %v8280 = vadd.f32 %v8216, 1.0
    %v8281 = vadd.f32 %v8217, 1.0
    %v8282 = vadd.f32 %v8218, 1.0
    %v8283 = vadd.f32 %v8219, 1.0
    %v8284 = vadd.f32 %v8220, 1.0
    %v8285 = vadd.f32 %v8221, 1.0
    %v8286 = vadd.f32 %v8222, 1.0
    %v8287 = vadd.f32 %v8223, 1.0
    %v8288 = vadd.f32 %v8224, 1.0
    %v8289 = vadd.f32 %v8225, 1.0
    %v8290 = vadd.f32 %v8226, 1.0
    %v8291 = vadd.f32 %v8227, 1.0
    %v8292 = vadd.f32 %v8228, 1.0
    %v8293 = vadd.f32 %v8229, 1.0
    %v8294 = vadd.f32 %v8230, 1.0
    %v8295 = vadd.f32 %v8231, 1.0
    %v8296 = vadd.f32 %v8232, 1.0
    %v8297 = vadd.f32 %v8233, 1.0
    %v8298 = vadd.f32 %v8234, 1.0
    %v8299 = vadd.f32 %v8235, 1.0
    %v8300 = vadd.f32 %v8236, 1.0
    %v8301 = vadd.f32 %v8237, 1.0
    %v8302 = vadd.f32 %v8238, 1.0
    %v8303 = vadd.f32 %v8239, 1.0
    %v8304 = vadd.f32 %v8240, 1.0
    %v8305 = vadd.f32 %v8241, 1.0
    %v8306 = vadd.f32 %v8242, 1.0
    %v8307 = vadd.f32 %v8243, 1.0
    %v8308 = vadd.f32 %v8244, 1.0
    %v8309 = vadd.f32 %v8245, 1.0
    %v8310 = vadd.f32 %v8246, 1.0
    %v8311 = vadd.f32 %v8247, 1.0
    %v8312 = vadd.f32 %v8248, 1.0
    %v8313 = vadd.f32 %v8249, 1.0
    %v8314 = vadd.f32 %v8250, 1.0
    %v8315 = vadd.f32 %v8251, 1.0
    %v8316 = vadd.f32 %v8252, 1.0
    %v8317 = vadd.f32 %v8253, 1.0
    %v8318 = vadd.f32 %v8254, 1.0
    %v8319 = vadd.f32 %v8255, 1.0
    %v8320 = vadd.f32 %v8256, 1.0
    %v8321 = vadd.f32 %v8257, 1.0
    %v8322 = vadd.f32 %v8258, 1.0
    %v8323 = vmul.f32 %v8067, %v8259
    %v8324 = vmul.f32 %v8068, %v8260
    %v8325 = vmul.f32 %v8069, %v8261
    %v8326 = vmul.f32 %v8070, %v8262
    %v8327 = vmul.f32 %v8071, %v8263
    %v8328 = vmul.f32 %v8072, %v8264
    %v8329 = vmul.f32 %v8073, %v8265
    %v8330 = vmul.f32 %v8074, %v8266
    %v8331 = vmul.f32 %v8075, %v8267
    %v8332 = vmul.f32 %v8076, %v8268
    %v8333 = vmul.f32 %v8077, %v8269
    %v8334 = vmul.f32 %v8078, %v8270
    %v8335 = vmul.f32 %v8079, %v8271
    %v8336 = vmul.f32 %v8080, %v8272
    %v8337 = vmul.f32 %v8081, %v8273
    %v8338 = vmul.f32 %v8082, %v8274
    %v8339 = vmul.f32 %v8083, %v8275
    %v8340 = vmul.f32 %v8084, %v8276
    %v8341 = vmul.f32 %v8085, %v8277
    %v8342 = vmul.f32 %v8086, %v8278
    %v8343 = vmul.f32 %v8087, %v8279
    %v8344 = vmul.f32 %v8088, %v8280
    %v8345 = vmul.f32 %v8089, %v8281
    %v8346 = vmul.f32 %v8090, %v8282
    %v8347 = vmul.f32 %v8091, %v8283
    %v8348 = vmul.f32 %v8092, %v8284
    %v8349 = vmul.f32 %v8093, %v8285
    %v8350 = vmul.f32 %v8094, %v8286
    %v8351 = vmul.f32 %v8095, %v8287
    %v8352 = vmul.f32 %v8096, %v8288
    %v8353 = vmul.f32 %v8097, %v8289
    %v8354 = vmul.f32 %v8098, %v8290
    %v8355 = vmul.f32 %v8099, %v8291
    %v8356 = vmul.f32 %v8100, %v8292
    %v8357 = vmul.f32 %v8101, %v8293
    %v8358 = vmul.f32 %v8102, %v8294
    %v8359 = vmul.f32 %v8103, %v8295
    %v8360 = vmul.f32 %v8104, %v8296
    %v8361 = vmul.f32 %v8105, %v8297
    %v8362 = vmul.f32 %v8106, %v8298
    %v8363 = vmul.f32 %v8107, %v8299
    %v8364 = vmul.f32 %v8108, %v8300
    %v8365 = vmul.f32 %v8109, %v8301
    %v8366 = vmul.f32 %v8110, %v8302
    %v8367 = vmul.f32 %v8111, %v8303
    %v8368 = vmul.f32 %v8112, %v8304
    %v8369 = vmul.f32 %v8113, %v8305
    %v8370 = vmul.f32 %v8114, %v8306
    %v8371 = vmul.f32 %v8115, %v8307
    %v8372 = vmul.f32 %v8116, %v8308
    %v8373 = vmul.f32 %v8117, %v8309
    %v8374 = vmul.f32 %v8118, %v8310
    %v8375 = vmul.f32 %v8119, %v8311
    %v8376 = vmul.f32 %v8120, %v8312
    %v8377 = vmul.f32 %v8121, %v8313
    %v8378 = vmul.f32 %v8122, %v8314
    %v8379 = vmul.f32 %v8123, %v8315
    %v8380 = vmul.f32 %v8124, %v8316
    %v8381 = vmul.f32 %v8125, %v8317
    %v8382 = vmul.f32 %v8126, %v8318
    %v8383 = vmul.f32 %v8127, %v8319
    %v8384 = vmul.f32 %v8128, %v8320
    %v8385 = vmul.f32 %v8129, %v8321
    %v8386 = vmul.f32 %v8130, %v8322
    %v8387 = vld [vmem:[#allocation16] sm:$0xff]
    %v8388 = vld [vmem:[#allocation16 + $0x8] sm:$0xff]
    %v8389 = vld [vmem:[#allocation16 + $0x10] sm:$0xff]
    %v8390 = vld [vmem:[#allocation16 + $0x18] sm:$0xff]
    %v8391 = vld [vmem:[#allocation16 + $0x20] sm:$0xff]
    %v8392 = vld [vmem:[#allocation16 + $0x28] sm:$0xff]
    %v8393 = vld [vmem:[#allocation16 + $0x30] sm:$0xff]
    %v8394 = vld [vmem:[#allocation16 + $0x38] sm:$0xff]
    %v8395 = vld [vmem:[#allocation16 + $0x40] sm:$0xff]
    %v8396 = vld [vmem:[#allocation16 + $0x48] sm:$0xff]
    %v8397 = vld [vmem:[#allocation16 + $0x50] sm:$0xff]
    %v8398 = vld [vmem:[#allocation16 + $0x58] sm:$0xff]
    %v8399 = vld [vmem:[#allocation18] sm:$0x1]
    %v8401 = vlaneseq
    %v8402 = vshrl.u32 %v8401, 7
    %v8403 = vsub.s32 0, %v8402
    %v8404 = vrot.slane %v8399, %v8403
    %v8407 = vsel %vm2407, %v8323, 0
    %v8410 = vsel %vm2407, %v8324, 0
    %v8413 = vsel %vm2407, %v8325, 0
    %v8416 = vsel %vm2407, %v8326, 0
    %v8419 = vsel %vm2407, %v8327, 0
    %v8422 = vsel %vm2407, %v8328, 0
    %v8425 = vsel %vm2407, %v8329, 0
    %v8428 = vsel %vm2407, %v8330, 0
    %v8431 = vsel %vm2407, %v8331, 0
    %v8434 = vsel %vm2407, %v8332, 0
    %v8437 = vsel %vm2407, %v8333, 0
    %v8440 = vsel %vm2407, %v8334, 0
    %v8443 = vsel %vm2407, %v8335, 0
    %v8446 = vsel %vm2407, %v8336, 0
    %v8449 = vsel %vm2407, %v8337, 0
    %v8452 = vsel %vm2407, %v8338, 0
    %v8455 = vsel %vm2407, %v8339, 0
    %v8458 = vsel %vm2407, %v8340, 0
    %v8461 = vsel %vm2407, %v8341, 0
    %v8464 = vsel %vm2407, %v8342, 0
    %v8467 = vsel %vm2407, %v8343, 0
    %v8470 = vsel %vm2407, %v8344, 0
    %v8473 = vsel %vm2407, %v8345, 0
    %v8476 = vsel %vm2407, %v8346, 0
    %v8479 = vsel %vm2407, %v8347, 0
    %v8482 = vsel %vm2407, %v8348, 0
    %v8485 = vsel %vm2407, %v8349, 0
    %v8488 = vsel %vm2407, %v8350, 0
    %v8491 = vsel %vm2407, %v8351, 0
    %v8494 = vsel %vm2407, %v8352, 0
    %v8497 = vsel %vm2407, %v8353, 0
    %v8500 = vsel %vm2407, %v8354, 0
    %v8503 = vsel %vm2407, %v8355, 0
    %v8506 = vsel %vm2407, %v8356, 0
    %v8509 = vsel %vm2407, %v8357, 0
    %v8512 = vsel %vm2407, %v8358, 0
    %v8515 = vsel %vm2407, %v8359, 0
    %v8518 = vsel %vm2407, %v8360, 0
    %v8521 = vsel %vm2407, %v8361, 0
    %v8524 = vsel %vm2407, %v8362, 0
    %v8527 = vsel %vm2407, %v8363, 0
    %v8530 = vsel %vm2407, %v8364, 0
    %v8533 = vsel %vm2407, %v8365, 0
    %v8536 = vsel %vm2407, %v8366, 0
    %v8539 = vsel %vm2407, %v8367, 0
    %v8542 = vsel %vm2407, %v8368, 0
    %v8545 = vsel %vm2407, %v8369, 0
    %v8548 = vsel %vm2407, %v8370, 0
    %v8551 = vsel %vm2407, %v8371, 0
    %v8554 = vsel %vm2407, %v8372, 0
    %v8557 = vsel %vm2407, %v8373, 0
    %v8560 = vsel %vm2407, %v8374, 0
    %v8563 = vsel %vm2407, %v8375, 0
    %v8566 = vsel %vm2407, %v8376, 0
    %v8569 = vsel %vm2407, %v8377, 0
    %v8572 = vsel %vm2407, %v8378, 0
    %v8575 = vsel %vm2407, %v8379, 0
    %v8578 = vsel %vm2407, %v8380, 0
    %v8581 = vsel %vm2407, %v8381, 0
    %v8584 = vsel %vm2407, %v8382, 0
    %v8587 = vsel %vm2407, %v8383, 0
    %v8590 = vsel %vm2407, %v8384, 0
    %v8593 = vsel %vm2407, %v8385, 0
    %v8596 = vsel %vm2407, %v8386, 0
    %8598 = vmatprep.subr.mxu0 0.0
    %8599 = vmatpush1.msra.mxu0 %v8387
    %8600 = vmatprep.subr.mxu0 0.0
    %8601 = vmatpush1.msra.mxu0 %v8388
    %8602 = vmatprep.subr.mxu0 0.0
    %8603 = vmatpush1.msra.mxu0 %v8389
    %8604 = vmatprep.subr.mxu0 0.0
    %8605 = vmatpush1.msra.mxu0 %v8390
    %8606 = vmatprep.subr.mxu0 0.0
    %8607 = vmatpush1.msra.mxu0 %v8391
    %8608 = vmatprep.subr.mxu0 0.0
    %8609 = vmatpush1.msra.mxu0 %v8392
    %8610 = vmatprep.subr.mxu0 0.0
    %8611 = vmatpush1.msra.mxu0 %v8393
    %8612 = vmatprep.subr.mxu0 0.0
    %8613 = vmatpush1.msra.mxu0 %v8394
    %8614 = vmatprep.subr.mxu0 0.0
    %8615 = vmatpush1.msra.mxu0 %v8395
    %8616 = vmatprep.subr.mxu0 0.0
    %8617 = vmatpush1.msra.mxu0 %v8396
    %8618 = vmatprep.subr.mxu0 0.0
    %8619 = vmatpush1.msra.mxu0 %v8397
    %8620 = vmatprep.subr.mxu0 0.0
    %8621 = vmatpush1.msra.mxu0 %v8398
    %8622 = vmatprep.subr.mxu0 0.0
    %8623 = vmatpush1.msra.mxu0 0.0
    %8624 = vmatprep.subr.mxu0 0.0
    %8625 = vmatpush1.msra.mxu0 0.0
    %8626 = vmatprep.subr.mxu0 0.0
    %8627 = vmatpush1.msra.mxu0 0.0
    %8628 = vmatprep.subr.mxu0 0.0
    %8629 = vmatpush1.msra.mxu0 0.0
    %8630 = vmatprep.subr.mxu0 0.0
    %8631 = vmatpush1.msra.mxu0 0.0
    %8632 = vmatprep.subr.mxu0 0.0
    %8633 = vmatpush1.msra.mxu0 0.0
    %8634 = vmatprep.subr.mxu0 0.0
    %8635 = vmatpush1.msra.mxu0 0.0
    %8636 = vmatprep.subr.mxu0 0.0
    %8637 = vmatpush1.msra.mxu0 0.0
    %8638 = vmatprep.subr.mxu0 0.0
    %8639 = vmatpush1.msra.mxu0 0.0
    %8640 = vmatprep.subr.mxu0 0.0
    %8641 = vmatpush1.msra.mxu0 0.0
    %8642 = vmatprep.subr.mxu0 0.0
    %8643 = vmatpush1.msra.mxu0 0.0
    %8644 = vmatprep.subr.mxu0 0.0
    %8645 = vmatpush1.msra.mxu0 0.0
    %8646 = vmatprep.subr.mxu0 0.0
    %8647 = vmatpush1.msra.mxu0 0.0
    %8648 = vmatprep.subr.mxu0 0.0
    %8649 = vmatpush1.msra.mxu0 0.0
    %8650 = vmatprep.subr.mxu0 0.0
    %8651 = vmatpush1.msra.mxu0 0.0
    %8652 = vmatprep.subr.mxu0 0.0
    %8653 = vmatpush1.msra.mxu0 0.0
    %8654 = vmatprep.subr.mxu0 0.0
    %8655 = vmatpush1.msra.mxu0 0.0
    %8656 = vmatprep.subr.mxu0 0.0
    %8657 = vmatpush1.msra.mxu0 0.0
    %8658 = vmatprep.subr.mxu0 0.0
    %8659 = vmatpush1.msra.mxu0 0.0
    %8660 = vmatprep.subr.mxu0 0.0
    %8661 = vmatpush1.msra.mxu0 0.0
    %8662 = vmatprep.mubr.f32.mxu0 0.0
    %8663 = vmatmul.mubr.f32.gmra.mrb[0].mxu0 %v8407
    %v8664 = vpop.f32.mrb[0].mxu0
    %v8665 = vadd.f32 %v8404, %v8664
    %v8666 = vpop.f32.mrb[0].mxu0
    %8667 = vmatprep.mubr.f32.mxu0 0.0
    %8668 = vmatmul.mubr.f32.gmra.mrb[0].mxu0 %v8410
    %v8669 = vpop.f32.mrb[0].mxu0
    %v8670 = vadd.f32 %v8404, %v8669
    %v8671 = vpop.f32.mrb[0].mxu0
    %8672 = vmatprep.mubr.f32.mxu0 0.0
    %8673 = vmatmul.mubr.f32.gmra.mrb[0].mxu0 %v8413
    %v8674 = vpop.f32.mrb[0].mxu0
    %v8675 = vadd.f32 %v8404, %v8674
    %v8676 = vpop.f32.mrb[0].mxu0
    %8677 = vmatprep.mubr.f32.mxu0 0.0
    %8678 = vmatmul.mubr.f32.gmra.mrb[0].mxu0 %v8416
    %v8679 = vpop.f32.mrb[0].mxu0
    %v8680 = vadd.f32 %v8404, %v8679
    %v8681 = vpop.f32.mrb[0].mxu0
    %8682 = vmatprep.mubr.f32.mxu0 0.0
    %8683 = vmatmul.mubr.f32.gmra.mrb[0].mxu0 %v8419
    %v8684 = vpop.f32.mrb[0].mxu0
    %v8685 = vadd.f32 %v8404, %v8684
    %v8686 = vpop.f32.mrb[0].mxu0
    %8687 = vmatprep.mubr.f32.mxu0 0.0
    %8688 = vmatmul.mubr.f32.gmra.mrb[0].mxu0 %v8422
    %v8689 = vpop.f32.mrb[0].mxu0
    %v8690 = vadd.f32 %v8404, %v8689
    %v8691 = vpop.f32.mrb[0].mxu0
    %8692 = vmatprep.mubr.f32.mxu0 0.0
    %8693 = vmatmul.mubr.f32.gmra.mrb[0].mxu0 %v8425
    %v8694 = vpop.f32.mrb[0].mxu0
    %v8695 = vadd.f32 %v8404, %v8694
    %v8696 = vpop.f32.mrb[0].mxu0
    %8697 = vmatprep.mubr.f32.mxu0 0.0
    %8698 = vmatmul.mubr.f32.gmra.mrb[0].mxu0 %v8428
    %v8699 = vpop.f32.mrb[0].mxu0
    %v8700 = vadd.f32 %v8404, %v8699
    %v8701 = vpop.f32.mrb[0].mxu0
    %8702 = vmatprep.mubr.f32.mxu0 0.0
    %8703 = vmatmul.mubr.f32.gmra.mrb[0].mxu0 %v8431
    %v8704 = vpop.f32.mrb[0].mxu0
    %v8705 = vadd.f32 %v8404, %v8704
    %v8706 = vpop.f32.mrb[0].mxu0
    %8707 = vmatprep.mubr.f32.mxu0 0.0
    %8708 = vmatmul.mubr.f32.gmra.mrb[0].mxu0 %v8434
    %v8709 = vpop.f32.mrb[0].mxu0
    %v8710 = vadd.f32 %v8404, %v8709
    %v8711 = vpop.f32.mrb[0].mxu0
    %8712 = vmatprep.mubr.f32.mxu0 0.0
    %8713 = vmatmul.mubr.f32.gmra.mrb[0].mxu0 %v8437
    %v8714 = vpop.f32.mrb[0].mxu0
    %v8715 = vadd.f32 %v8404, %v8714
    %v8716 = vpop.f32.mrb[0].mxu0
    %8717 = vmatprep.mubr.f32.mxu0 0.0
    %8718 = vmatmul.mubr.f32.gmra.mrb[0].mxu0 %v8440
    %v8719 = vpop.f32.mrb[0].mxu0
    %v8720 = vadd.f32 %v8404, %v8719
    %v8721 = vpop.f32.mrb[0].mxu0
    %8722 = vmatprep.mubr.f32.mxu0 0.0
    %8723 = vmatmul.mubr.f32.gmra.mrb[0].mxu0 %v8443
    %v8724 = vpop.f32.mrb[0].mxu0
    %v8725 = vadd.f32 %v8404, %v8724
    %v8726 = vpop.f32.mrb[0].mxu0
    %8727 = vmatprep.mubr.f32.mxu0 0.0
    %8728 = vmatmul.mubr.f32.gmra.mrb[0].mxu0 %v8446
    %v8729 = vpop.f32.mrb[0].mxu0
    %v8730 = vadd.f32 %v8404, %v8729
    %v8731 = vpop.f32.mrb[0].mxu0
    %8732 = vmatprep.mubr.f32.mxu0 0.0
    %8733 = vmatmul.mubr.f32.gmra.mrb[0].mxu0 %v8449
    %v8734 = vpop.f32.mrb[0].mxu0
    %v8735 = vadd.f32 %v8404, %v8734
    %v8736 = vpop.f32.mrb[0].mxu0
    %8737 = vmatprep.mubr.f32.mxu0 0.0
    %8738 = vmatmul.mubr.f32.gmra.mrb[0].mxu0 %v8452
    %v8739 = vpop.f32.mrb[0].mxu0
    %v8740 = vadd.f32 %v8404, %v8739
    %v8741 = vpop.f32.mrb[0].mxu0
    %8742 = vmatprep.mubr.f32.mxu0 0.0
    %8743 = vmatmul.mubr.f32.gmra.mrb[0].mxu0 %v8455
    %v8744 = vpop.f32.mrb[0].mxu0
    %v8745 = vadd.f32 %v8404, %v8744
    %v8746 = vpop.f32.mrb[0].mxu0
    %8747 = vmatprep.mubr.f32.mxu0 0.0
    %8748 = vmatmul.mubr.f32.gmra.mrb[0].mxu0 %v8458
    %v8749 = vpop.f32.mrb[0].mxu0
    %v8750 = vadd.f32 %v8404, %v8749
    %v8751 = vpop.f32.mrb[0].mxu0
    %8752 = vmatprep.mubr.f32.mxu0 0.0
    %8753 = vmatmul.mubr.f32.gmra.mrb[0].mxu0 %v8461
    %v8754 = vpop.f32.mrb[0].mxu0
    %v8755 = vadd.f32 %v8404, %v8754
    %v8756 = vpop.f32.mrb[0].mxu0
    %8757 = vmatprep.mubr.f32.mxu0 0.0
    %8758 = vmatmul.mubr.f32.gmra.mrb[0].mxu0 %v8464
    %v8759 = vpop.f32.mrb[0].mxu0
    %v8760 = vadd.f32 %v8404, %v8759
    %v8761 = vpop.f32.mrb[0].mxu0
    %8762 = vmatprep.mubr.f32.mxu0 0.0
    %8763 = vmatmul.mubr.f32.gmra.mrb[0].mxu0 %v8467
    %v8764 = vpop.f32.mrb[0].mxu0
    %v8765 = vadd.f32 %v8404, %v8764
    %v8766 = vpop.f32.mrb[0].mxu0
    %8767 = vmatprep.mubr.f32.mxu0 0.0
    %8768 = vmatmul.mubr.f32.gmra.mrb[0].mxu0 %v8470
    %v8769 = vpop.f32.mrb[0].mxu0
    %v8770 = vadd.f32 %v8404, %v8769
    %v8771 = vpop.f32.mrb[0].mxu0
    %8772 = vmatprep.mubr.f32.mxu0 0.0
    %8773 = vmatmul.mubr.f32.gmra.mrb[0].mxu0 %v8473
    %v8774 = vpop.f32.mrb[0].mxu0
    %v8775 = vadd.f32 %v8404, %v8774
    %v8776 = vpop.f32.mrb[0].mxu0
    %8777 = vmatprep.mubr.f32.mxu0 0.0
    %8778 = vmatmul.mubr.f32.gmra.mrb[0].mxu0 %v8476
    %v8779 = vpop.f32.mrb[0].mxu0
    %v8780 = vadd.f32 %v8404, %v8779
    %v8781 = vpop.f32.mrb[0].mxu0
    %8782 = vmatprep.mubr.f32.mxu0 0.0
    %8783 = vmatmul.mubr.f32.gmra.mrb[0].mxu0 %v8479
    %v8784 = vpop.f32.mrb[0].mxu0
    %v8785 = vadd.f32 %v8404, %v8784
    %v8786 = vpop.f32.mrb[0].mxu0
    %8787 = vmatprep.mubr.f32.mxu0 0.0
    %8788 = vmatmul.mubr.f32.gmra.mrb[0].mxu0 %v8482
    %v8789 = vpop.f32.mrb[0].mxu0
    %v8790 = vadd.f32 %v8404, %v8789
    %v8791 = vpop.f32.mrb[0].mxu0
    %8792 = vmatprep.mubr.f32.mxu0 0.0
    %8793 = vmatmul.mubr.f32.gmra.mrb[0].mxu0 %v8485
    %v8794 = vpop.f32.mrb[0].mxu0
    %v8795 = vadd.f32 %v8404, %v8794
    %v8796 = vpop.f32.mrb[0].mxu0
    %8797 = vmatprep.mubr.f32.mxu0 0.0
    %8798 = vmatmul.mubr.f32.gmra.mrb[0].mxu0 %v8488
    %v8799 = vpop.f32.mrb[0].mxu0
    %v8800 = vadd.f32 %v8404, %v8799
    %v8801 = vpop.f32.mrb[0].mxu0
    %8802 = vmatprep.mubr.f32.mxu0 0.0
    %8803 = vmatmul.mubr.f32.gmra.mrb[0].mxu0 %v8491
    %v8804 = vpop.f32.mrb[0].mxu0
    %v8805 = vadd.f32 %v8404, %v8804
    %v8806 = vpop.f32.mrb[0].mxu0
    %8807 = vmatprep.mubr.f32.mxu0 0.0
    %8808 = vmatmul.mubr.f32.gmra.mrb[0].mxu0 %v8494
    %v8809 = vpop.f32.mrb[0].mxu0
    %v8810 = vadd.f32 %v8404, %v8809
    %v8811 = vpop.f32.mrb[0].mxu0
    %8812 = vmatprep.mubr.f32.mxu0 0.0
    %8813 = vmatmul.mubr.f32.gmra.mrb[0].mxu0 %v8497
    %v8814 = vpop.f32.mrb[0].mxu0
    %v8815 = vadd.f32 %v8404, %v8814
    %v8816 = vpop.f32.mrb[0].mxu0
    %8817 = vmatprep.mubr.f32.mxu0 0.0
    %8818 = vmatmul.mubr.f32.gmra.mrb[0].mxu0 %v8500
    %v8819 = vpop.f32.mrb[0].mxu0
    %v8820 = vadd.f32 %v8404, %v8819
    %v8821 = vpop.f32.mrb[0].mxu0
    %8822 = vmatprep.mubr.f32.mxu0 0.0
    %8823 = vmatmul.mubr.f32.gmra.mrb[0].mxu0 %v8503
    %v8824 = vpop.f32.mrb[0].mxu0
    %v8825 = vadd.f32 %v8404, %v8824
    %v8826 = vpop.f32.mrb[0].mxu0
    %8827 = vmatprep.mubr.f32.mxu0 0.0
    %8828 = vmatmul.mubr.f32.gmra.mrb[0].mxu0 %v8506
    %v8829 = vpop.f32.mrb[0].mxu0
    %v8830 = vadd.f32 %v8404, %v8829
    %v8831 = vpop.f32.mrb[0].mxu0
    %8832 = vmatprep.mubr.f32.mxu0 0.0
    %8833 = vmatmul.mubr.f32.gmra.mrb[0].mxu0 %v8509
    %v8834 = vpop.f32.mrb[0].mxu0
    %v8835 = vadd.f32 %v8404, %v8834
    %v8836 = vpop.f32.mrb[0].mxu0
    %8837 = vmatprep.mubr.f32.mxu0 0.0
    %8838 = vmatmul.mubr.f32.gmra.mrb[0].mxu0 %v8512
    %v8839 = vpop.f32.mrb[0].mxu0
    %v8840 = vadd.f32 %v8404, %v8839
    %v8841 = vpop.f32.mrb[0].mxu0
    %8842 = vmatprep.mubr.f32.mxu0 0.0
    %8843 = vmatmul.mubr.f32.gmra.mrb[0].mxu0 %v8515
    %v8844 = vpop.f32.mrb[0].mxu0
    %v8845 = vadd.f32 %v8404, %v8844
    %v8846 = vpop.f32.mrb[0].mxu0
    %8847 = vmatprep.mubr.f32.mxu0 0.0
    %8848 = vmatmul.mubr.f32.gmra.mrb[0].mxu0 %v8518
    %v8849 = vpop.f32.mrb[0].mxu0
    %v8850 = vadd.f32 %v8404, %v8849
    %v8851 = vpop.f32.mrb[0].mxu0
    %8852 = vmatprep.mubr.f32.mxu0 0.0
    %8853 = vmatmul.mubr.f32.gmra.mrb[0].mxu0 %v8521
    %v8854 = vpop.f32.mrb[0].mxu0
    %v8855 = vadd.f32 %v8404, %v8854
    %v8856 = vpop.f32.mrb[0].mxu0
    %8857 = vmatprep.mubr.f32.mxu0 0.0
    %8858 = vmatmul.mubr.f32.gmra.mrb[0].mxu0 %v8524
    %v8859 = vpop.f32.mrb[0].mxu0
    %v8860 = vadd.f32 %v8404, %v8859
    %v8861 = vpop.f32.mrb[0].mxu0
    %8862 = vmatprep.mubr.f32.mxu0 0.0
    %8863 = vmatmul.mubr.f32.gmra.mrb[0].mxu0 %v8527
    %v8864 = vpop.f32.mrb[0].mxu0
    %v8865 = vadd.f32 %v8404, %v8864
    %v8866 = vpop.f32.mrb[0].mxu0
    %8867 = vmatprep.mubr.f32.mxu0 0.0
    %8868 = vmatmul.mubr.f32.gmra.mrb[0].mxu0 %v8530
    %v8869 = vpop.f32.mrb[0].mxu0
    %v8870 = vadd.f32 %v8404, %v8869
    %v8871 = vpop.f32.mrb[0].mxu0
    %8872 = vmatprep.mubr.f32.mxu0 0.0
    %8873 = vmatmul.mubr.f32.gmra.mrb[0].mxu0 %v8533
    %v8874 = vpop.f32.mrb[0].mxu0
    %v8875 = vadd.f32 %v8404, %v8874
    %v8876 = vpop.f32.mrb[0].mxu0
    %8877 = vmatprep.mubr.f32.mxu0 0.0
    %8878 = vmatmul.mubr.f32.gmra.mrb[0].mxu0 %v8536
    %v8879 = vpop.f32.mrb[0].mxu0
    %v8880 = vadd.f32 %v8404, %v8879
    %v8881 = vpop.f32.mrb[0].mxu0
    %8882 = vmatprep.mubr.f32.mxu0 0.0
    %8883 = vmatmul.mubr.f32.gmra.mrb[0].mxu0 %v8539
    %v8884 = vpop.f32.mrb[0].mxu0
    %v8885 = vadd.f32 %v8404, %v8884
    %v8886 = vpop.f32.mrb[0].mxu0
    %8887 = vmatprep.mubr.f32.mxu0 0.0
    %8888 = vmatmul.mubr.f32.gmra.mrb[0].mxu0 %v8542
    %v8889 = vpop.f32.mrb[0].mxu0
    %v8890 = vadd.f32 %v8404, %v8889
    %v8891 = vpop.f32.mrb[0].mxu0
    %8892 = vmatprep.mubr.f32.mxu0 0.0
    %8893 = vmatmul.mubr.f32.gmra.mrb[0].mxu0 %v8545
    %v8894 = vpop.f32.mrb[0].mxu0
    %v8895 = vadd.f32 %v8404, %v8894
    %v8896 = vpop.f32.mrb[0].mxu0
    %8897 = vmatprep.mubr.f32.mxu0 0.0
    %8898 = vmatmul.mubr.f32.gmra.mrb[0].mxu0 %v8548
    %v8899 = vpop.f32.mrb[0].mxu0
    %v8900 = vadd.f32 %v8404, %v8899
    %v8901 = vpop.f32.mrb[0].mxu0
    %8902 = vmatprep.mubr.f32.mxu0 0.0
    %8903 = vmatmul.mubr.f32.gmra.mrb[0].mxu0 %v8551
    %v8904 = vpop.f32.mrb[0].mxu0
    %v8905 = vadd.f32 %v8404, %v8904
    %v8906 = vpop.f32.mrb[0].mxu0
    %8907 = vmatprep.mubr.f32.mxu0 0.0
    %8908 = vmatmul.mubr.f32.gmra.mrb[0].mxu0 %v8554
    %v8909 = vpop.f32.mrb[0].mxu0
    %v8910 = vadd.f32 %v8404, %v8909
    %v8911 = vpop.f32.mrb[0].mxu0
    %8912 = vmatprep.mubr.f32.mxu0 0.0
    %8913 = vmatmul.mubr.f32.gmra.mrb[0].mxu0 %v8557
    %v8914 = vpop.f32.mrb[0].mxu0
    %v8915 = vadd.f32 %v8404, %v8914
    %v8916 = vpop.f32.mrb[0].mxu0
    %8917 = vmatprep.mubr.f32.mxu0 0.0
    %8918 = vmatmul.mubr.f32.gmra.mrb[0].mxu0 %v8560
    %v8919 = vpop.f32.mrb[0].mxu0
    %v8920 = vadd.f32 %v8404, %v8919
    %v8921 = vpop.f32.mrb[0].mxu0
    %8922 = vmatprep.mubr.f32.mxu0 0.0
    %8923 = vmatmul.mubr.f32.gmra.mrb[0].mxu0 %v8563
    %v8924 = vpop.f32.mrb[0].mxu0
    %v8925 = vadd.f32 %v8404, %v8924
    %v8926 = vpop.f32.mrb[0].mxu0
    %8927 = vmatprep.mubr.f32.mxu0 0.0
    %8928 = vmatmul.mubr.f32.gmra.mrb[0].mxu0 %v8566
    %v8929 = vpop.f32.mrb[0].mxu0
    %v8930 = vadd.f32 %v8404, %v8929
    %v8931 = vpop.f32.mrb[0].mxu0
    %8932 = vmatprep.mubr.f32.mxu0 0.0
    %8933 = vmatmul.mubr.f32.gmra.mrb[0].mxu0 %v8569
    %v8934 = vpop.f32.mrb[0].mxu0
    %v8935 = vadd.f32 %v8404, %v8934
    %v8936 = vpop.f32.mrb[0].mxu0
    %8937 = vmatprep.mubr.f32.mxu0 0.0
    %8938 = vmatmul.mubr.f32.gmra.mrb[0].mxu0 %v8572
    %v8939 = vpop.f32.mrb[0].mxu0
    %v8940 = vadd.f32 %v8404, %v8939
    %v8941 = vpop.f32.mrb[0].mxu0
    %8942 = vmatprep.mubr.f32.mxu0 0.0
    %8943 = vmatmul.mubr.f32.gmra.mrb[0].mxu0 %v8575
    %v8944 = vpop.f32.mrb[0].mxu0
    %v8945 = vadd.f32 %v8404, %v8944
    %v8946 = vpop.f32.mrb[0].mxu0
    %8947 = vmatprep.mubr.f32.mxu0 0.0
    %8948 = vmatmul.mubr.f32.gmra.mrb[0].mxu0 %v8578
    %v8949 = vpop.f32.mrb[0].mxu0
    %v8950 = vadd.f32 %v8404, %v8949
    %v8951 = vpop.f32.mrb[0].mxu0
    %8952 = vmatprep.mubr.f32.mxu0 0.0
    %8953 = vmatmul.mubr.f32.gmra.mrb[0].mxu0 %v8581
    %v8954 = vpop.f32.mrb[0].mxu0
    %v8955 = vadd.f32 %v8404, %v8954
    %v8956 = vpop.f32.mrb[0].mxu0
    %8957 = vmatprep.mubr.f32.mxu0 0.0
    %8958 = vmatmul.mubr.f32.gmra.mrb[0].mxu0 %v8584
    %v8959 = vpop.f32.mrb[0].mxu0
    %v8960 = vadd.f32 %v8404, %v8959
    %v8961 = vpop.f32.mrb[0].mxu0
    %8962 = vmatprep.mubr.f32.mxu0 0.0
    %8963 = vmatmul.mubr.f32.gmra.mrb[0].mxu0 %v8587
    %v8964 = vpop.f32.mrb[0].mxu0
    %v8965 = vadd.f32 %v8404, %v8964
    %v8966 = vpop.f32.mrb[0].mxu0
    %8967 = vmatprep.mubr.f32.mxu0 0.0
    %8968 = vmatmul.mubr.f32.gmra.mrb[0].mxu0 %v8590
    %v8969 = vpop.f32.mrb[0].mxu0
    %v8970 = vadd.f32 %v8404, %v8969
    %v8971 = vpop.f32.mrb[0].mxu0
    %8972 = vmatprep.mubr.f32.mxu0 0.0
    %8973 = vmatmul.mubr.f32.gmra.mrb[0].mxu0 %v8593
    %v8974 = vpop.f32.mrb[0].mxu0
    %v8975 = vadd.f32 %v8404, %v8974
    %v8976 = vpop.f32.mrb[0].mxu0
    %8977 = vmatprep.mubr.f32.mxu0 0.0
    %8978 = vmatmul.mubr.f32.gmra.mrb[0].mxu0 %v8596
    %v8979 = vpop.f32.mrb[0].mxu0
    %v8980 = vadd.f32 %v8404, %v8979
    %v8981 = vpop.f32.mrb[0].mxu0
    %8982 = vdwg.mxu0
    %v8983 = vmul.f32 %v8665, 0.5
    %v8984 = vmul.f32 %v8670, 0.5
    %v8985 = vmul.f32 %v8675, 0.5
    %v8986 = vmul.f32 %v8680, 0.5
    %v8987 = vmul.f32 %v8685, 0.5
    %v8988 = vmul.f32 %v8690, 0.5
    %v8989 = vmul.f32 %v8695, 0.5
    %v8990 = vmul.f32 %v8700, 0.5
    %v8991 = vmul.f32 %v8705, 0.5
    %v8992 = vmul.f32 %v8710, 0.5
    %v8993 = vmul.f32 %v8715, 0.5
    %v8994 = vmul.f32 %v8720, 0.5
    %v8995 = vmul.f32 %v8725, 0.5
    %v8996 = vmul.f32 %v8730, 0.5
    %v8997 = vmul.f32 %v8735, 0.5
    %v8998 = vmul.f32 %v8740, 0.5
    %v8999 = vmul.f32 %v8745, 0.5
    %v9000 = vmul.f32 %v8750, 0.5
    %v9001 = vmul.f32 %v8755, 0.5
    %v9002 = vmul.f32 %v8760, 0.5
    %v9003 = vmul.f32 %v8765, 0.5
    %v9004 = vmul.f32 %v8770, 0.5
    %v9005 = vmul.f32 %v8775, 0.5
    %v9006 = vmul.f32 %v8780, 0.5
    %v9007 = vmul.f32 %v8785, 0.5
    %v9008 = vmul.f32 %v8790, 0.5
    %v9009 = vmul.f32 %v8795, 0.5
    %v9010 = vmul.f32 %v8800, 0.5
    %v9011 = vmul.f32 %v8805, 0.5
    %v9012 = vmul.f32 %v8810, 0.5
    %v9013 = vmul.f32 %v8815, 0.5
    %v9014 = vmul.f32 %v8820, 0.5
    %v9015 = vmul.f32 %v8825, 0.5
    %v9016 = vmul.f32 %v8830, 0.5
    %v9017 = vmul.f32 %v8835, 0.5
    %v9018 = vmul.f32 %v8840, 0.5
    %v9019 = vmul.f32 %v8845, 0.5
    %v9020 = vmul.f32 %v8850, 0.5
    %v9021 = vmul.f32 %v8855, 0.5
    %v9022 = vmul.f32 %v8860, 0.5
    %v9023 = vmul.f32 %v8865, 0.5
    %v9024 = vmul.f32 %v8870, 0.5
    %v9025 = vmul.f32 %v8875, 0.5
    %v9026 = vmul.f32 %v8880, 0.5
    %v9027 = vmul.f32 %v8885, 0.5
    %v9028 = vmul.f32 %v8890, 0.5
    %v9029 = vmul.f32 %v8895, 0.5
    %v9030 = vmul.f32 %v8900, 0.5
    %v9031 = vmul.f32 %v8905, 0.5
    %v9032 = vmul.f32 %v8910, 0.5
    %v9033 = vmul.f32 %v8915, 0.5
    %v9034 = vmul.f32 %v8920, 0.5
    %v9035 = vmul.f32 %v8925, 0.5
    %v9036 = vmul.f32 %v8930, 0.5
    %v9037 = vmul.f32 %v8935, 0.5
    %v9038 = vmul.f32 %v8940, 0.5
    %v9039 = vmul.f32 %v8945, 0.5
    %v9040 = vmul.f32 %v8950, 0.5
    %v9041 = vmul.f32 %v8955, 0.5
    %v9042 = vmul.f32 %v8960, 0.5
    %v9043 = vmul.f32 %v8965, 0.5
    %v9044 = vmul.f32 %v8970, 0.5
    %v9045 = vmul.f32 %v8975, 0.5
    %v9046 = vmul.f32 %v8980, 0.5
    %v9047 = vmul.f32 %v8665, 0.70710677
    %v9048 = vmul.f32 %v8670, 0.70710677
    %v9049 = vmul.f32 %v8675, 0.70710677
    %v9050 = vmul.f32 %v8680, 0.70710677
    %v9051 = vmul.f32 %v8685, 0.70710677
    %v9052 = vmul.f32 %v8690, 0.70710677
    %v9053 = vmul.f32 %v8695, 0.70710677
    %v9054 = vmul.f32 %v8700, 0.70710677
    %v9055 = vmul.f32 %v8705, 0.70710677
    %v9056 = vmul.f32 %v8710, 0.70710677
    %v9057 = vmul.f32 %v8715, 0.70710677
    %v9058 = vmul.f32 %v8720, 0.70710677
    %v9059 = vmul.f32 %v8725, 0.70710677
    %v9060 = vmul.f32 %v8730, 0.70710677
    %v9061 = vmul.f32 %v8735, 0.70710677
    %v9062 = vmul.f32 %v8740, 0.70710677
    %v9063 = vmul.f32 %v8745, 0.70710677
    %v9064 = vmul.f32 %v8750, 0.70710677
    %v9065 = vmul.f32 %v8755, 0.70710677
    %v9066 = vmul.f32 %v8760, 0.70710677
    %v9067 = vmul.f32 %v8765, 0.70710677
    %v9068 = vmul.f32 %v8770, 0.70710677
    %v9069 = vmul.f32 %v8775, 0.70710677
    %v9070 = vmul.f32 %v8780, 0.70710677
    %v9071 = vmul.f32 %v8785, 0.70710677
    %v9072 = vmul.f32 %v8790, 0.70710677
    %v9073 = vmul.f32 %v8795, 0.70710677
    %v9074 = vmul.f32 %v8800, 0.70710677
    %v9075 = vmul.f32 %v8805, 0.70710677
    %v9076 = vmul.f32 %v8810, 0.70710677
    %v9077 = vmul.f32 %v8815, 0.70710677
    %v9078 = vmul.f32 %v8820, 0.70710677
    %v9079 = vmul.f32 %v8825, 0.70710677
    %v9080 = vmul.f32 %v8830, 0.70710677
    %v9081 = vmul.f32 %v8835, 0.70710677
    %v9082 = vmul.f32 %v8840, 0.70710677
    %v9083 = vmul.f32 %v8845, 0.70710677
    %v9084 = vmul.f32 %v8850, 0.70710677
    %v9085 = vmul.f32 %v8855, 0.70710677
    %v9086 = vmul.f32 %v8860, 0.70710677
    %v9087 = vmul.f32 %v8865, 0.70710677
    %v9088 = vmul.f32 %v8870, 0.70710677
    %v9089 = vmul.f32 %v8875, 0.70710677
    %v9090 = vmul.f32 %v8880, 0.70710677
    %v9091 = vmul.f32 %v8885, 0.70710677
    %v9092 = vmul.f32 %v8890, 0.70710677
    %v9093 = vmul.f32 %v8895, 0.70710677
    %v9094 = vmul.f32 %v8900, 0.70710677
    %v9095 = vmul.f32 %v8905, 0.70710677
    %v9096 = vmul.f32 %v8910, 0.70710677
    %v9097 = vmul.f32 %v8915, 0.70710677
    %v9098 = vmul.f32 %v8920, 0.70710677
    %v9099 = vmul.f32 %v8925, 0.70710677
    %v9100 = vmul.f32 %v8930, 0.70710677
    %v9101 = vmul.f32 %v8935, 0.70710677
    %v9102 = vmul.f32 %v8940, 0.70710677
    %v9103 = vmul.f32 %v8945, 0.70710677
    %v9104 = vmul.f32 %v8950, 0.70710677
    %v9105 = vmul.f32 %v8955, 0.70710677
    %v9106 = vmul.f32 %v8960, 0.70710677
    %v9107 = vmul.f32 %v8965, 0.70710677
    %v9108 = vmul.f32 %v8970, 0.70710677
    %v9109 = vmul.f32 %v8975, 0.70710677
    %v9110 = vmul.f32 %v8980, 0.70710677
    %v9111 = verf.f32.pop %v9047
    %v9112 = verf.f32.pop %v9048
    %v9113 = verf.f32.pop %v9049
    %v9114 = verf.f32.pop %v9050
    %v9115 = verf.f32.pop %v9051
    %v9116 = verf.f32.pop %v9052
    %v9117 = verf.f32.pop %v9053
    %v9118 = verf.f32.pop %v9054
    %v9119 = verf.f32.pop %v9055
    %v9120 = verf.f32.pop %v9056
    %v9121 = verf.f32.pop %v9057
    %v9122 = verf.f32.pop %v9058
    %v9123 = verf.f32.pop %v9059
    %v9124 = verf.f32.pop %v9060
    %v9125 = verf.f32.pop %v9061
    %v9126 = verf.f32.pop %v9062
    %v9127 = verf.f32.pop %v9063
    %v9128 = verf.f32.pop %v9064
    %v9129 = verf.f32.pop %v9065
    %v9130 = verf.f32.pop %v9066
    %v9131 = verf.f32.pop %v9067
    %v9132 = verf.f32.pop %v9068
    %v9133 = verf.f32.pop %v9069
    %v9134 = verf.f32.pop %v9070
    %v9135 = verf.f32.pop %v9071
    %v9136 = verf.f32.pop %v9072
    %v9137 = verf.f32.pop %v9073
    %v9138 = verf.f32.pop %v9074
    %v9139 = verf.f32.pop %v9075
    %v9140 = verf.f32.pop %v9076
    %v9141 = verf.f32.pop %v9077
    %v9142 = verf.f32.pop %v9078
    %v9143 = verf.f32.pop %v9079
    %v9144 = verf.f32.pop %v9080
    %v9145 = verf.f32.pop %v9081
    %v9146 = verf.f32.pop %v9082
    %v9147 = verf.f32.pop %v9083
    %v9148 = verf.f32.pop %v9084
    %v9149 = verf.f32.pop %v9085
    %v9150 = verf.f32.pop %v9086
    %v9151 = verf.f32.pop %v9087
    %v9152 = verf.f32.pop %v9088
    %v9153 = verf.f32.pop %v9089
    %v9154 = verf.f32.pop %v9090
    %v9155 = verf.f32.pop %v9091
    %v9156 = verf.f32.pop %v9092
    %v9157 = verf.f32.pop %v9093
    %v9158 = verf.f32.pop %v9094
    %v9159 = verf.f32.pop %v9095
    %v9160 = verf.f32.pop %v9096
    %v9161 = verf.f32.pop %v9097
    %v9162 = verf.f32.pop %v9098
    %v9163 = verf.f32.pop %v9099
    %v9164 = verf.f32.pop %v9100
    %v9165 = verf.f32.pop %v9101
    %v9166 = verf.f32.pop %v9102
    %v9167 = verf.f32.pop %v9103
    %v9168 = verf.f32.pop %v9104
    %v9169 = verf.f32.pop %v9105
    %v9170 = verf.f32.pop %v9106
    %v9171 = verf.f32.pop %v9107
    %v9172 = verf.f32.pop %v9108
    %v9173 = verf.f32.pop %v9109
    %v9174 = verf.f32.pop %v9110
    %v9175 = vadd.f32 %v9111, 1.0
    %v9176 = vadd.f32 %v9112, 1.0
    %v9177 = vadd.f32 %v9113, 1.0
    %v9178 = vadd.f32 %v9114, 1.0
    %v9179 = vadd.f32 %v9115, 1.0
    %v9180 = vadd.f32 %v9116, 1.0
    %v9181 = vadd.f32 %v9117, 1.0
    %v9182 = vadd.f32 %v9118, 1.0
    %v9183 = vadd.f32 %v9119, 1.0
    %v9184 = vadd.f32 %v9120, 1.0
    %v9185 = vadd.f32 %v9121, 1.0
    %v9186 = vadd.f32 %v9122, 1.0
    %v9187 = vadd.f32 %v9123, 1.0
    %v9188 = vadd.f32 %v9124, 1.0
    %v9189 = vadd.f32 %v9125, 1.0
    %v9190 = vadd.f32 %v9126, 1.0
    %v9191 = vadd.f32 %v9127, 1.0
    %v9192 = vadd.f32 %v9128, 1.0
    %v9193 = vadd.f32 %v9129, 1.0
    %v9194 = vadd.f32 %v9130, 1.0
    %v9195 = vadd.f32 %v9131, 1.0
    %v9196 = vadd.f32 %v9132, 1.0
    %v9197 = vadd.f32 %v9133, 1.0
    %v9198 = vadd.f32 %v9134, 1.0
    %v9199 = vadd.f32 %v9135, 1.0
    %v9200 = vadd.f32 %v9136, 1.0
    %v9201 = vadd.f32 %v9137, 1.0
    %v9202 = vadd.f32 %v9138, 1.0
    %v9203 = vadd.f32 %v9139, 1.0
    %v9204 = vadd.f32 %v9140, 1.0
    %v9205 = vadd.f32 %v9141, 1.0
    %v9206 = vadd.f32 %v9142, 1.0
    %v9207 = vadd.f32 %v9143, 1.0
    %v9208 = vadd.f32 %v9144, 1.0
    %v9209 = vadd.f32 %v9145, 1.0
    %v9210 = vadd.f32 %v9146, 1.0
    %v9211 = vadd.f32 %v9147, 1.0
    %v9212 = vadd.f32 %v9148, 1.0
    %v9213 = vadd.f32 %v9149, 1.0
    %v9214 = vadd.f32 %v9150, 1.0
    %v9215 = vadd.f32 %v9151, 1.0
    %v9216 = vadd.f32 %v9152, 1.0
    %v9217 = vadd.f32 %v9153, 1.0
    %v9218 = vadd.f32 %v9154, 1.0
    %v9219 = vadd.f32 %v9155, 1.0
    %v9220 = vadd.f32 %v9156, 1.0
    %v9221 = vadd.f32 %v9157, 1.0
    %v9222 = vadd.f32 %v9158, 1.0
    %v9223 = vadd.f32 %v9159, 1.0
    %v9224 = vadd.f32 %v9160, 1.0
    %v9225 = vadd.f32 %v9161, 1.0
    %v9226 = vadd.f32 %v9162, 1.0
    %v9227 = vadd.f32 %v9163, 1.0
    %v9228 = vadd.f32 %v9164, 1.0
    %v9229 = vadd.f32 %v9165, 1.0
    %v9230 = vadd.f32 %v9166, 1.0
    %v9231 = vadd.f32 %v9167, 1.0
    %v9232 = vadd.f32 %v9168, 1.0
    %v9233 = vadd.f32 %v9169, 1.0
    %v9234 = vadd.f32 %v9170, 1.0
    %v9235 = vadd.f32 %v9171, 1.0
    %v9236 = vadd.f32 %v9172, 1.0
    %v9237 = vadd.f32 %v9173, 1.0
    %v9238 = vadd.f32 %v9174, 1.0
    %v9239 = vmul.f32 %v8983, %v9175
    %v9240 = vmul.f32 %v8984, %v9176
    %v9241 = vmul.f32 %v8985, %v9177
    %v9242 = vmul.f32 %v8986, %v9178
    %v9243 = vmul.f32 %v8987, %v9179
    %v9244 = vmul.f32 %v8988, %v9180
    %v9245 = vmul.f32 %v8989, %v9181
    %v9246 = vmul.f32 %v8990, %v9182
    %v9247 = vmul.f32 %v8991, %v9183
    %v9248 = vmul.f32 %v8992, %v9184
    %v9249 = vmul.f32 %v8993, %v9185
    %v9250 = vmul.f32 %v8994, %v9186
    %v9251 = vmul.f32 %v8995, %v9187
    %v9252 = vmul.f32 %v8996, %v9188
    %v9253 = vmul.f32 %v8997, %v9189
    %v9254 = vmul.f32 %v8998, %v9190
    %v9255 = vmul.f32 %v8999, %v9191
    %v9256 = vmul.f32 %v9000, %v9192
    %v9257 = vmul.f32 %v9001, %v9193
    %v9258 = vmul.f32 %v9002, %v9194
    %v9259 = vmul.f32 %v9003, %v9195
    %v9260 = vmul.f32 %v9004, %v9196
    %v9261 = vmul.f32 %v9005, %v9197
    %v9262 = vmul.f32 %v9006, %v9198
    %v9263 = vmul.f32 %v9007, %v9199
    %v9264 = vmul.f32 %v9008, %v9200
    %v9265 = vmul.f32 %v9009, %v9201
    %v9266 = vmul.f32 %v9010, %v9202
    %v9267 = vmul.f32 %v9011, %v9203
    %v9268 = vmul.f32 %v9012, %v9204
    %v9269 = vmul.f32 %v9013, %v9205
    %v9270 = vmul.f32 %v9014, %v9206
    %v9271 = vmul.f32 %v9015, %v9207
    %v9272 = vmul.f32 %v9016, %v9208
    %v9273 = vmul.f32 %v9017, %v9209
    %v9274 = vmul.f32 %v9018, %v9210
    %v9275 = vmul.f32 %v9019, %v9211
    %v9276 = vmul.f32 %v9020, %v9212
    %v9277 = vmul.f32 %v9021, %v9213
    %v9278 = vmul.f32 %v9022, %v9214
    %v9279 = vmul.f32 %v9023, %v9215
    %v9280 = vmul.f32 %v9024, %v9216
    %v9281 = vmul.f32 %v9025, %v9217
    %v9282 = vmul.f32 %v9026, %v9218
    %v9283 = vmul.f32 %v9027, %v9219
    %v9284 = vmul.f32 %v9028, %v9220
    %v9285 = vmul.f32 %v9029, %v9221
    %v9286 = vmul.f32 %v9030, %v9222
    %v9287 = vmul.f32 %v9031, %v9223
    %v9288 = vmul.f32 %v9032, %v9224
    %v9289 = vmul.f32 %v9033, %v9225
    %v9290 = vmul.f32 %v9034, %v9226
    %v9291 = vmul.f32 %v9035, %v9227
    %v9292 = vmul.f32 %v9036, %v9228
    %v9293 = vmul.f32 %v9037, %v9229
    %v9294 = vmul.f32 %v9038, %v9230
    %v9295 = vmul.f32 %v9039, %v9231
    %v9296 = vmul.f32 %v9040, %v9232
    %v9297 = vmul.f32 %v9041, %v9233
    %v9298 = vmul.f32 %v9042, %v9234
    %v9299 = vmul.f32 %v9043, %v9235
    %v9300 = vmul.f32 %v9044, %v9236
    %v9301 = vmul.f32 %v9045, %v9237
    %v9302 = vmul.f32 %v9046, %v9238
    %v9303 = vld [vmem:[%s12] sm:$0xff]
    %v9304 = vld [vmem:[%s12 + $0x8] sm:$0xff]
    %v9305 = vld [vmem:[%s12 + $0x10] sm:$0xff]
    %v9306 = vld [vmem:[%s12 + $0x18] sm:$0xff]
    %v9307 = vld [vmem:[%s12 + $0x20] sm:$0xff]
    %v9308 = vld [vmem:[%s12 + $0x28] sm:$0xff]
    %v9309 = vld [vmem:[%s12 + $0x30] sm:$0xff]
    %v9310 = vld [vmem:[%s12 + $0x38] sm:$0xff]
    %v9311 = vld [vmem:[%s12 + $0x40] sm:$0xff]
    %v9312 = vld [vmem:[%s12 + $0x48] sm:$0xff]
    %v9313 = vld [vmem:[%s12 + $0x50] sm:$0xff]
    %v9314 = vld [vmem:[%s12 + $0x58] sm:$0xff]
    %v9315 = vld [vmem:[#allocation19] sm:$0x1]
    %v9317 = vlaneseq
    %v9318 = vshrl.u32 %v9317, 7
    %v9319 = vsub.s32 0, %v9318
    %v9320 = vrot.slane %v9315, %v9319
    %v9323 = vsel %vm2407, %v9239, 0
    %v9326 = vsel %vm2407, %v9240, 0
    %v9329 = vsel %vm2407, %v9241, 0
    %v9332 = vsel %vm2407, %v9242, 0
    %v9335 = vsel %vm2407, %v9243, 0
    %v9338 = vsel %vm2407, %v9244, 0
    %v9341 = vsel %vm2407, %v9245, 0
    %v9344 = vsel %vm2407, %v9246, 0
    %v9347 = vsel %vm2407, %v9247, 0
    %v9350 = vsel %vm2407, %v9248, 0
    %v9353 = vsel %vm2407, %v9249, 0
    %v9356 = vsel %vm2407, %v9250, 0
    %v9359 = vsel %vm2407, %v9251, 0
    %v9362 = vsel %vm2407, %v9252, 0
    %v9365 = vsel %vm2407, %v9253, 0
    %v9368 = vsel %vm2407, %v9254, 0
    %v9371 = vsel %vm2407, %v9255, 0
    %v9374 = vsel %vm2407, %v9256, 0
    %v9377 = vsel %vm2407, %v9257, 0
    %v9380 = vsel %vm2407, %v9258, 0
    %v9383 = vsel %vm2407, %v9259, 0
    %v9386 = vsel %vm2407, %v9260, 0
    %v9389 = vsel %vm2407, %v9261, 0
    %v9392 = vsel %vm2407, %v9262, 0
    %v9395 = vsel %vm2407, %v9263, 0
    %v9398 = vsel %vm2407, %v9264, 0
    %v9401 = vsel %vm2407, %v9265, 0
    %v9404 = vsel %vm2407, %v9266, 0
    %v9407 = vsel %vm2407, %v9267, 0
    %v9410 = vsel %vm2407, %v9268, 0
    %v9413 = vsel %vm2407, %v9269, 0
    %v9416 = vsel %vm2407, %v9270, 0
    %v9419 = vsel %vm2407, %v9271, 0
    %v9422 = vsel %vm2407, %v9272, 0
    %v9425 = vsel %vm2407, %v9273, 0
    %v9428 = vsel %vm2407, %v9274, 0
    %v9431 = vsel %vm2407, %v9275, 0
    %v9434 = vsel %vm2407, %v9276, 0
    %v9437 = vsel %vm2407, %v9277, 0
    %v9440 = vsel %vm2407, %v9278, 0
    %v9443 = vsel %vm2407, %v9279, 0
    %v9446 = vsel %vm2407, %v9280, 0
    %v9449 = vsel %vm2407, %v9281, 0
    %v9452 = vsel %vm2407, %v9282, 0
    %v9455 = vsel %vm2407, %v9283, 0
    %v9458 = vsel %vm2407, %v9284, 0
    %v9461 = vsel %vm2407, %v9285, 0
    %v9464 = vsel %vm2407, %v9286, 0
    %v9467 = vsel %vm2407, %v9287, 0
    %v9470 = vsel %vm2407, %v9288, 0
    %v9473 = vsel %vm2407, %v9289, 0
    %v9476 = vsel %vm2407, %v9290, 0
    %v9479 = vsel %vm2407, %v9291, 0
    %v9482 = vsel %vm2407, %v9292, 0
    %v9485 = vsel %vm2407, %v9293, 0
    %v9488 = vsel %vm2407, %v9294, 0
    %v9491 = vsel %vm2407, %v9295, 0
    %v9494 = vsel %vm2407, %v9296, 0
    %v9497 = vsel %vm2407, %v9297, 0
    %v9500 = vsel %vm2407, %v9298, 0
    %v9503 = vsel %vm2407, %v9299, 0
    %v9506 = vsel %vm2407, %v9300, 0
    %v9509 = vsel %vm2407, %v9301, 0
    %v9512 = vsel %vm2407, %v9302, 0
    %9514 = vmatprep.subr.mxu0 0.0
    %9515 = vmatpush1.msra.mxu0 %v9303
    %9516 = vmatprep.subr.mxu0 0.0
    %9517 = vmatpush1.msra.mxu0 %v9304
    %9518 = vmatprep.subr.mxu0 0.0
    %9519 = vmatpush1.msra.mxu0 %v9305
    %9520 = vmatprep.subr.mxu0 0.0
    %9521 = vmatpush1.msra.mxu0 %v9306
    %9522 = vmatprep.subr.mxu0 0.0
    %9523 = vmatpush1.msra.mxu0 %v9307
    %9524 = vmatprep.subr.mxu0 0.0
    %9525 = vmatpush1.msra.mxu0 %v9308
    %9526 = vmatprep.subr.mxu0 0.0
    %9527 = vmatpush1.msra.mxu0 %v9309
    %9528 = vmatprep.subr.mxu0 0.0
    %9529 = vmatpush1.msra.mxu0 %v9310
    %9530 = vmatprep.subr.mxu0 0.0
    %9531 = vmatpush1.msra.mxu0 %v9311
    %9532 = vmatprep.subr.mxu0 0.0
    %9533 = vmatpush1.msra.mxu0 %v9312
    %9534 = vmatprep.subr.mxu0 0.0
    %9535 = vmatpush1.msra.mxu0 %v9313
    %9536 = vmatprep.subr.mxu0 0.0
    %9537 = vmatpush1.msra.mxu0 %v9314
    %9538 = vmatprep.subr.mxu0 0.0
    %9539 = vmatpush1.msra.mxu0 0.0
    %9540 = vmatprep.subr.mxu0 0.0
    %9541 = vmatpush1.msra.mxu0 0.0
    %9542 = vmatprep.subr.mxu0 0.0
    %9543 = vmatpush1.msra.mxu0 0.0
    %9544 = vmatprep.subr.mxu0 0.0
    %9545 = vmatpush1.msra.mxu0 0.0
    %9546 = vmatprep.subr.mxu0 0.0
    %9547 = vmatpush1.msra.mxu0 0.0
    %9548 = vmatprep.subr.mxu0 0.0
    %9549 = vmatpush1.msra.mxu0 0.0
    %9550 = vmatprep.subr.mxu0 0.0
    %9551 = vmatpush1.msra.mxu0 0.0
    %9552 = vmatprep.subr.mxu0 0.0
    %9553 = vmatpush1.msra.mxu0 0.0
    %9554 = vmatprep.subr.mxu0 0.0
    %9555 = vmatpush1.msra.mxu0 0.0
    %9556 = vmatprep.subr.mxu0 0.0
    %9557 = vmatpush1.msra.mxu0 0.0
    %9558 = vmatprep.subr.mxu0 0.0
    %9559 = vmatpush1.msra.mxu0 0.0
    %9560 = vmatprep.subr.mxu0 0.0
    %9561 = vmatpush1.msra.mxu0 0.0
    %9562 = vmatprep.subr.mxu0 0.0
    %9563 = vmatpush1.msra.mxu0 0.0
    %9564 = vmatprep.subr.mxu0 0.0
    %9565 = vmatpush1.msra.mxu0 0.0
    %9566 = vmatprep.subr.mxu0 0.0
    %9567 = vmatpush1.msra.mxu0 0.0
    %9568 = vmatprep.subr.mxu0 0.0
    %9569 = vmatpush1.msra.mxu0 0.0
    %9570 = vmatprep.subr.mxu0 0.0
    %9571 = vmatpush1.msra.mxu0 0.0
    %9572 = vmatprep.subr.mxu0 0.0
    %9573 = vmatpush1.msra.mxu0 0.0
    %9574 = vmatprep.subr.mxu0 0.0
    %9575 = vmatpush1.msra.mxu0 0.0
    %9576 = vmatprep.subr.mxu0 0.0
    %9577 = vmatpush1.msra.mxu0 0.0
    %9578 = vmatprep.mubr.f32.mxu0 0.0
    %9579 = vmatmul.mubr.f32.gmra.mrb[0].mxu0 %v9323
    %v9580 = vpop.f32.mrb[0].mxu0
    %v9581 = vadd.f32 %v9320, %v9580
    %v9582 = vpop.f32.mrb[0].mxu0
    %9583 = vmatprep.mubr.f32.mxu0 0.0
    %9584 = vmatmul.mubr.f32.gmra.mrb[0].mxu0 %v9326
    %v9585 = vpop.f32.mrb[0].mxu0
    %v9586 = vadd.f32 %v9320, %v9585
    %v9587 = vpop.f32.mrb[0].mxu0
    %9588 = vmatprep.mubr.f32.mxu0 0.0
    %9589 = vmatmul.mubr.f32.gmra.mrb[0].mxu0 %v9329
    %v9590 = vpop.f32.mrb[0].mxu0
    %v9591 = vadd.f32 %v9320, %v9590
    %v9592 = vpop.f32.mrb[0].mxu0
    %9593 = vmatprep.mubr.f32.mxu0 0.0
    %9594 = vmatmul.mubr.f32.gmra.mrb[0].mxu0 %v9332
    %v9595 = vpop.f32.mrb[0].mxu0
    %v9596 = vadd.f32 %v9320, %v9595
    %v9597 = vpop.f32.mrb[0].mxu0
    %9598 = vmatprep.mubr.f32.mxu0 0.0
    %9599 = vmatmul.mubr.f32.gmra.mrb[0].mxu0 %v9335
    %v9600 = vpop.f32.mrb[0].mxu0
    %v9601 = vadd.f32 %v9320, %v9600
    %v9602 = vpop.f32.mrb[0].mxu0
    %9603 = vmatprep.mubr.f32.mxu0 0.0
    %9604 = vmatmul.mubr.f32.gmra.mrb[0].mxu0 %v9338
    %v9605 = vpop.f32.mrb[0].mxu0
    %v9606 = vadd.f32 %v9320, %v9605
    %v9607 = vpop.f32.mrb[0].mxu0
    %9608 = vmatprep.mubr.f32.mxu0 0.0
    %9609 = vmatmul.mubr.f32.gmra.mrb[0].mxu0 %v9341
    %v9610 = vpop.f32.mrb[0].mxu0
    %v9611 = vadd.f32 %v9320, %v9610
    %v9612 = vpop.f32.mrb[0].mxu0
    %9613 = vmatprep.mubr.f32.mxu0 0.0
    %9614 = vmatmul.mubr.f32.gmra.mrb[0].mxu0 %v9344
    %v9615 = vpop.f32.mrb[0].mxu0
    %v9616 = vadd.f32 %v9320, %v9615
    %v9617 = vpop.f32.mrb[0].mxu0
    %9618 = vmatprep.mubr.f32.mxu0 0.0
    %9619 = vmatmul.mubr.f32.gmra.mrb[0].mxu0 %v9347
    %v9620 = vpop.f32.mrb[0].mxu0
    %v9621 = vadd.f32 %v9320, %v9620
    %v9622 = vpop.f32.mrb[0].mxu0
    %9623 = vmatprep.mubr.f32.mxu0 0.0
    %9624 = vmatmul.mubr.f32.gmra.mrb[0].mxu0 %v9350
    %v9625 = vpop.f32.mrb[0].mxu0
    %v9626 = vadd.f32 %v9320, %v9625
    %v9627 = vpop.f32.mrb[0].mxu0
    %9628 = vmatprep.mubr.f32.mxu0 0.0
    %9629 = vmatmul.mubr.f32.gmra.mrb[0].mxu0 %v9353
    %v9630 = vpop.f32.mrb[0].mxu0
    %v9631 = vadd.f32 %v9320, %v9630
    %v9632 = vpop.f32.mrb[0].mxu0
    %9633 = vmatprep.mubr.f32.mxu0 0.0
    %9634 = vmatmul.mubr.f32.gmra.mrb[0].mxu0 %v9356
    %v9635 = vpop.f32.mrb[0].mxu0
    %v9636 = vadd.f32 %v9320, %v9635
    %v9637 = vpop.f32.mrb[0].mxu0
    %9638 = vmatprep.mubr.f32.mxu0 0.0
    %9639 = vmatmul.mubr.f32.gmra.mrb[0].mxu0 %v9359
    %v9640 = vpop.f32.mrb[0].mxu0
    %v9641 = vadd.f32 %v9320, %v9640
    %v9642 = vpop.f32.mrb[0].mxu0
    %9643 = vmatprep.mubr.f32.mxu0 0.0
    %9644 = vmatmul.mubr.f32.gmra.mrb[0].mxu0 %v9362
    %v9645 = vpop.f32.mrb[0].mxu0
    %v9646 = vadd.f32 %v9320, %v9645
    %v9647 = vpop.f32.mrb[0].mxu0
    %9648 = vmatprep.mubr.f32.mxu0 0.0
    %9649 = vmatmul.mubr.f32.gmra.mrb[0].mxu0 %v9365
    %v9650 = vpop.f32.mrb[0].mxu0
    %v9651 = vadd.f32 %v9320, %v9650
    %v9652 = vpop.f32.mrb[0].mxu0
    %9653 = vmatprep.mubr.f32.mxu0 0.0
    %9654 = vmatmul.mubr.f32.gmra.mrb[0].mxu0 %v9368
    %v9655 = vpop.f32.mrb[0].mxu0
    %v9656 = vadd.f32 %v9320, %v9655
    %v9657 = vpop.f32.mrb[0].mxu0
    %9658 = vmatprep.mubr.f32.mxu0 0.0
    %9659 = vmatmul.mubr.f32.gmra.mrb[0].mxu0 %v9371
    %v9660 = vpop.f32.mrb[0].mxu0
    %v9661 = vadd.f32 %v9320, %v9660
    %v9662 = vpop.f32.mrb[0].mxu0
    %9663 = vmatprep.mubr.f32.mxu0 0.0
    %9664 = vmatmul.mubr.f32.gmra.mrb[0].mxu0 %v9374
    %v9665 = vpop.f32.mrb[0].mxu0
    %v9666 = vadd.f32 %v9320, %v9665
    %v9667 = vpop.f32.mrb[0].mxu0
    %9668 = vmatprep.mubr.f32.mxu0 0.0
    %9669 = vmatmul.mubr.f32.gmra.mrb[0].mxu0 %v9377
    %v9670 = vpop.f32.mrb[0].mxu0
    %v9671 = vadd.f32 %v9320, %v9670
    %v9672 = vpop.f32.mrb[0].mxu0
    %9673 = vmatprep.mubr.f32.mxu0 0.0
    %9674 = vmatmul.mubr.f32.gmra.mrb[0].mxu0 %v9380
    %v9675 = vpop.f32.mrb[0].mxu0
    %v9676 = vadd.f32 %v9320, %v9675
    %v9677 = vpop.f32.mrb[0].mxu0
    %9678 = vmatprep.mubr.f32.mxu0 0.0
    %9679 = vmatmul.mubr.f32.gmra.mrb[0].mxu0 %v9383
    %v9680 = vpop.f32.mrb[0].mxu0
    %v9681 = vadd.f32 %v9320, %v9680
    %v9682 = vpop.f32.mrb[0].mxu0
    %9683 = vmatprep.mubr.f32.mxu0 0.0
    %9684 = vmatmul.mubr.f32.gmra.mrb[0].mxu0 %v9386
    %v9685 = vpop.f32.mrb[0].mxu0
    %v9686 = vadd.f32 %v9320, %v9685
    %v9687 = vpop.f32.mrb[0].mxu0
    %9688 = vmatprep.mubr.f32.mxu0 0.0
    %9689 = vmatmul.mubr.f32.gmra.mrb[0].mxu0 %v9389
    %v9690 = vpop.f32.mrb[0].mxu0
    %v9691 = vadd.f32 %v9320, %v9690
    %v9692 = vpop.f32.mrb[0].mxu0
    %9693 = vmatprep.mubr.f32.mxu0 0.0
    %9694 = vmatmul.mubr.f32.gmra.mrb[0].mxu0 %v9392
    %v9695 = vpop.f32.mrb[0].mxu0
    %v9696 = vadd.f32 %v9320, %v9695
    %v9697 = vpop.f32.mrb[0].mxu0
    %9698 = vmatprep.mubr.f32.mxu0 0.0
    %9699 = vmatmul.mubr.f32.gmra.mrb[0].mxu0 %v9395
    %v9700 = vpop.f32.mrb[0].mxu0
    %v9701 = vadd.f32 %v9320, %v9700
    %v9702 = vpop.f32.mrb[0].mxu0
    %9703 = vmatprep.mubr.f32.mxu0 0.0
    %9704 = vmatmul.mubr.f32.gmra.mrb[0].mxu0 %v9398
    %v9705 = vpop.f32.mrb[0].mxu0
    %v9706 = vadd.f32 %v9320, %v9705
    %v9707 = vpop.f32.mrb[0].mxu0
    %9708 = vmatprep.mubr.f32.mxu0 0.0
    %9709 = vmatmul.mubr.f32.gmra.mrb[0].mxu0 %v9401
    %v9710 = vpop.f32.mrb[0].mxu0
    %v9711 = vadd.f32 %v9320, %v9710
    %v9712 = vpop.f32.mrb[0].mxu0
    %9713 = vmatprep.mubr.f32.mxu0 0.0
    %9714 = vmatmul.mubr.f32.gmra.mrb[0].mxu0 %v9404
    %v9715 = vpop.f32.mrb[0].mxu0
    %v9716 = vadd.f32 %v9320, %v9715
    %v9717 = vpop.f32.mrb[0].mxu0
    %9718 = vmatprep.mubr.f32.mxu0 0.0
    %9719 = vmatmul.mubr.f32.gmra.mrb[0].mxu0 %v9407
    %v9720 = vpop.f32.mrb[0].mxu0
    %v9721 = vadd.f32 %v9320, %v9720
    %v9722 = vpop.f32.mrb[0].mxu0
    %9723 = vmatprep.mubr.f32.mxu0 0.0
    %9724 = vmatmul.mubr.f32.gmra.mrb[0].mxu0 %v9410
    %v9725 = vpop.f32.mrb[0].mxu0
    %v9726 = vadd.f32 %v9320, %v9725
    %v9727 = vpop.f32.mrb[0].mxu0
    %9728 = vmatprep.mubr.f32.mxu0 0.0
    %9729 = vmatmul.mubr.f32.gmra.mrb[0].mxu0 %v9413
    %v9730 = vpop.f32.mrb[0].mxu0
    %v9731 = vadd.f32 %v9320, %v9730
    %v9732 = vpop.f32.mrb[0].mxu0
    %9733 = vmatprep.mubr.f32.mxu0 0.0
    %9734 = vmatmul.mubr.f32.gmra.mrb[0].mxu0 %v9416
    %v9735 = vpop.f32.mrb[0].mxu0
    %v9736 = vadd.f32 %v9320, %v9735
    %v9737 = vpop.f32.mrb[0].mxu0
    %9738 = vmatprep.mubr.f32.mxu0 0.0
    %9739 = vmatmul.mubr.f32.gmra.mrb[0].mxu0 %v9419
    %v9740 = vpop.f32.mrb[0].mxu0
    %v9741 = vadd.f32 %v9320, %v9740
    %v9742 = vpop.f32.mrb[0].mxu0
    %9743 = vmatprep.mubr.f32.mxu0 0.0
    %9744 = vmatmul.mubr.f32.gmra.mrb[0].mxu0 %v9422
    %v9745 = vpop.f32.mrb[0].mxu0
    %v9746 = vadd.f32 %v9320, %v9745
    %v9747 = vpop.f32.mrb[0].mxu0
    %9748 = vmatprep.mubr.f32.mxu0 0.0
    %9749 = vmatmul.mubr.f32.gmra.mrb[0].mxu0 %v9425
    %v9750 = vpop.f32.mrb[0].mxu0
    %v9751 = vadd.f32 %v9320, %v9750
    %v9752 = vpop.f32.mrb[0].mxu0
    %9753 = vmatprep.mubr.f32.mxu0 0.0
    %9754 = vmatmul.mubr.f32.gmra.mrb[0].mxu0 %v9428
    %v9755 = vpop.f32.mrb[0].mxu0
    %v9756 = vadd.f32 %v9320, %v9755
    %v9757 = vpop.f32.mrb[0].mxu0
    %9758 = vmatprep.mubr.f32.mxu0 0.0
    %9759 = vmatmul.mubr.f32.gmra.mrb[0].mxu0 %v9431
    %v9760 = vpop.f32.mrb[0].mxu0
    %v9761 = vadd.f32 %v9320, %v9760
    %v9762 = vpop.f32.mrb[0].mxu0
    %9763 = vmatprep.mubr.f32.mxu0 0.0
    %9764 = vmatmul.mubr.f32.gmra.mrb[0].mxu0 %v9434
    %v9765 = vpop.f32.mrb[0].mxu0
    %v9766 = vadd.f32 %v9320, %v9765
    %v9767 = vpop.f32.mrb[0].mxu0
    %9768 = vmatprep.mubr.f32.mxu0 0.0
    %9769 = vmatmul.mubr.f32.gmra.mrb[0].mxu0 %v9437
    %v9770 = vpop.f32.mrb[0].mxu0
    %v9771 = vadd.f32 %v9320, %v9770
    %v9772 = vpop.f32.mrb[0].mxu0
    %9773 = vmatprep.mubr.f32.mxu0 0.0
    %9774 = vmatmul.mubr.f32.gmra.mrb[0].mxu0 %v9440
    %v9775 = vpop.f32.mrb[0].mxu0
    %v9776 = vadd.f32 %v9320, %v9775
    %v9777 = vpop.f32.mrb[0].mxu0
    %9778 = vmatprep.mubr.f32.mxu0 0.0
    %9779 = vmatmul.mubr.f32.gmra.mrb[0].mxu0 %v9443
    %v9780 = vpop.f32.mrb[0].mxu0
    %v9781 = vadd.f32 %v9320, %v9780
    %v9782 = vpop.f32.mrb[0].mxu0
    %9783 = vmatprep.mubr.f32.mxu0 0.0
    %9784 = vmatmul.mubr.f32.gmra.mrb[0].mxu0 %v9446
    %v9785 = vpop.f32.mrb[0].mxu0
    %v9786 = vadd.f32 %v9320, %v9785
    %v9787 = vpop.f32.mrb[0].mxu0
    %9788 = vmatprep.mubr.f32.mxu0 0.0
    %9789 = vmatmul.mubr.f32.gmra.mrb[0].mxu0 %v9449
    %v9790 = vpop.f32.mrb[0].mxu0
    %v9791 = vadd.f32 %v9320, %v9790
    %v9792 = vpop.f32.mrb[0].mxu0
    %9793 = vmatprep.mubr.f32.mxu0 0.0
    %9794 = vmatmul.mubr.f32.gmra.mrb[0].mxu0 %v9452
    %v9795 = vpop.f32.mrb[0].mxu0
    %v9796 = vadd.f32 %v9320, %v9795
    %v9797 = vpop.f32.mrb[0].mxu0
    %9798 = vmatprep.mubr.f32.mxu0 0.0
    %9799 = vmatmul.mubr.f32.gmra.mrb[0].mxu0 %v9455
    %v9800 = vpop.f32.mrb[0].mxu0
    %v9801 = vadd.f32 %v9320, %v9800
    %v9802 = vpop.f32.mrb[0].mxu0
    %9803 = vmatprep.mubr.f32.mxu0 0.0
    %9804 = vmatmul.mubr.f32.gmra.mrb[0].mxu0 %v9458
    %v9805 = vpop.f32.mrb[0].mxu0
    %v9806 = vadd.f32 %v9320, %v9805
    %v9807 = vpop.f32.mrb[0].mxu0
    %9808 = vmatprep.mubr.f32.mxu0 0.0
    %9809 = vmatmul.mubr.f32.gmra.mrb[0].mxu0 %v9461
    %v9810 = vpop.f32.mrb[0].mxu0
    %v9811 = vadd.f32 %v9320, %v9810
    %v9812 = vpop.f32.mrb[0].mxu0
    %9813 = vmatprep.mubr.f32.mxu0 0.0
    %9814 = vmatmul.mubr.f32.gmra.mrb[0].mxu0 %v9464
    %v9815 = vpop.f32.mrb[0].mxu0
    %v9816 = vadd.f32 %v9320, %v9815
    %v9817 = vpop.f32.mrb[0].mxu0
    %9818 = vmatprep.mubr.f32.mxu0 0.0
    %9819 = vmatmul.mubr.f32.gmra.mrb[0].mxu0 %v9467
    %v9820 = vpop.f32.mrb[0].mxu0
    %v9821 = vadd.f32 %v9320, %v9820
    %v9822 = vpop.f32.mrb[0].mxu0
    %9823 = vmatprep.mubr.f32.mxu0 0.0
    %9824 = vmatmul.mubr.f32.gmra.mrb[0].mxu0 %v9470
    %v9825 = vpop.f32.mrb[0].mxu0
    %v9826 = vadd.f32 %v9320, %v9825
    %v9827 = vpop.f32.mrb[0].mxu0
    %9828 = vmatprep.mubr.f32.mxu0 0.0
    %9829 = vmatmul.mubr.f32.gmra.mrb[0].mxu0 %v9473
    %v9830 = vpop.f32.mrb[0].mxu0
    %v9831 = vadd.f32 %v9320, %v9830
    %v9832 = vpop.f32.mrb[0].mxu0
    %9833 = vmatprep.mubr.f32.mxu0 0.0
    %9834 = vmatmul.mubr.f32.gmra.mrb[0].mxu0 %v9476
    %v9835 = vpop.f32.mrb[0].mxu0
    %v9836 = vadd.f32 %v9320, %v9835
    %v9837 = vpop.f32.mrb[0].mxu0
    %9838 = vmatprep.mubr.f32.mxu0 0.0
    %9839 = vmatmul.mubr.f32.gmra.mrb[0].mxu0 %v9479
    %v9840 = vpop.f32.mrb[0].mxu0
    %v9841 = vadd.f32 %v9320, %v9840
    %v9842 = vpop.f32.mrb[0].mxu0
    %9843 = vmatprep.mubr.f32.mxu0 0.0
    %9844 = vmatmul.mubr.f32.gmra.mrb[0].mxu0 %v9482
    %v9845 = vpop.f32.mrb[0].mxu0
    %v9846 = vadd.f32 %v9320, %v9845
    %v9847 = vpop.f32.mrb[0].mxu0
    %9848 = vmatprep.mubr.f32.mxu0 0.0
    %9849 = vmatmul.mubr.f32.gmra.mrb[0].mxu0 %v9485
    %v9850 = vpop.f32.mrb[0].mxu0
    %v9851 = vadd.f32 %v9320, %v9850
    %v9852 = vpop.f32.mrb[0].mxu0
    %9853 = vmatprep.mubr.f32.mxu0 0.0
    %9854 = vmatmul.mubr.f32.gmra.mrb[0].mxu0 %v9488
    %v9855 = vpop.f32.mrb[0].mxu0
    %v9856 = vadd.f32 %v9320, %v9855
    %v9857 = vpop.f32.mrb[0].mxu0
    %9858 = vmatprep.mubr.f32.mxu0 0.0
    %9859 = vmatmul.mubr.f32.gmra.mrb[0].mxu0 %v9491
    %v9860 = vpop.f32.mrb[0].mxu0
    %v9861 = vadd.f32 %v9320, %v9860
    %v9862 = vpop.f32.mrb[0].mxu0
    %9863 = vmatprep.mubr.f32.mxu0 0.0
    %9864 = vmatmul.mubr.f32.gmra.mrb[0].mxu0 %v9494
    %v9865 = vpop.f32.mrb[0].mxu0
    %v9866 = vadd.f32 %v9320, %v9865
    %v9867 = vpop.f32.mrb[0].mxu0
    %9868 = vmatprep.mubr.f32.mxu0 0.0
    %9869 = vmatmul.mubr.f32.gmra.mrb[0].mxu0 %v9497
    %v9870 = vpop.f32.mrb[0].mxu0
    %v9871 = vadd.f32 %v9320, %v9870
    %v9872 = vpop.f32.mrb[0].mxu0
    %9873 = vmatprep.mubr.f32.mxu0 0.0
    %9874 = vmatmul.mubr.f32.gmra.mrb[0].mxu0 %v9500
    %v9875 = vpop.f32.mrb[0].mxu0
    %v9876 = vadd.f32 %v9320, %v9875
    %v9877 = vpop.f32.mrb[0].mxu0
    %9878 = vmatprep.mubr.f32.mxu0 0.0
    %9879 = vmatmul.mubr.f32.gmra.mrb[0].mxu0 %v9503
    %v9880 = vpop.f32.mrb[0].mxu0
    %v9881 = vadd.f32 %v9320, %v9880
    %v9882 = vpop.f32.mrb[0].mxu0
    %9883 = vmatprep.mubr.f32.mxu0 0.0
    %9884 = vmatmul.mubr.f32.gmra.mrb[0].mxu0 %v9506
    %v9885 = vpop.f32.mrb[0].mxu0
    %v9886 = vadd.f32 %v9320, %v9885
    %v9887 = vpop.f32.mrb[0].mxu0
    %9888 = vmatprep.mubr.f32.mxu0 0.0
    %9889 = vmatmul.mubr.f32.gmra.mrb[0].mxu0 %v9509
    %v9890 = vpop.f32.mrb[0].mxu0
    %v9891 = vadd.f32 %v9320, %v9890
    %v9892 = vpop.f32.mrb[0].mxu0
    %9893 = vmatprep.mubr.f32.mxu0 0.0
    %9894 = vmatmul.mubr.f32.gmra.mrb[0].mxu0 %v9512
    %v9895 = vpop.f32.mrb[0].mxu0
    %v9896 = vadd.f32 %v9320, %v9895
    %v9897 = vpop.f32.mrb[0].mxu0
    %9898 = vdwg.mxu0
    %vm9899 = vcmask 23552
    %9900 = vst.msk [vmem:[%s14] sm:$0xff] %vm9899, %v9581
    %9901 = vst.msk [vmem:[%s14 + $0x8] sm:$0xff] %vm9899, %v9586
    %9902 = vst.msk [vmem:[%s14 + $0x10] sm:$0xff] %vm9899, %v9591
    %9903 = vst.msk [vmem:[%s14 + $0x18] sm:$0xff] %vm9899, %v9596
    %9904 = vst.msk [vmem:[%s14 + $0x20] sm:$0xff] %vm9899, %v9601
    %9905 = vst.msk [vmem:[%s14 + $0x28] sm:$0xff] %vm9899, %v9606
    %9906 = vst.msk [vmem:[%s14 + $0x30] sm:$0xff] %vm9899, %v9611
    %9907 = vst.msk [vmem:[%s14 + $0x38] sm:$0xff] %vm9899, %v9616
    %9908 = vst.msk [vmem:[%s14 + $0x40] sm:$0xff] %vm9899, %v9621
    %9909 = vst.msk [vmem:[%s14 + $0x48] sm:$0xff] %vm9899, %v9626
    %9910 = vst.msk [vmem:[%s14 + $0x50] sm:$0xff] %vm9899, %v9631
    %9911 = vst.msk [vmem:[%s14 + $0x58] sm:$0xff] %vm9899, %v9636
    %9912 = vst.msk [vmem:[%s14 + $0x60] sm:$0xff] %vm9899, %v9641
    %9913 = vst.msk [vmem:[%s14 + $0x68] sm:$0xff] %vm9899, %v9646
    %9914 = vst.msk [vmem:[%s14 + $0x70] sm:$0xff] %vm9899, %v9651
    %9915 = vst.msk [vmem:[%s14 + $0x78] sm:$0xff] %vm9899, %v9656
    %9916 = vst.msk [vmem:[%s14 + $0x80] sm:$0xff] %vm9899, %v9661
    %9917 = vst.msk [vmem:[%s14 + $0x88] sm:$0xff] %vm9899, %v9666
    %9918 = vst.msk [vmem:[%s14 + $0x90] sm:$0xff] %vm9899, %v9671
    %9919 = vst.msk [vmem:[%s14 + $0x98] sm:$0xff] %vm9899, %v9676
    %9920 = vst.msk [vmem:[%s14 + $0xa0] sm:$0xff] %vm9899, %v9681
    %9921 = vst.msk [vmem:[%s14 + $0xa8] sm:$0xff] %vm9899, %v9686
    %9922 = vst.msk [vmem:[%s14 + $0xb0] sm:$0xff] %vm9899, %v9691
    %9923 = vst.msk [vmem:[%s14 + $0xb8] sm:$0xff] %vm9899, %v9696
    %9924 = vst.msk [vmem:[%s14 + $0xc0] sm:$0xff] %vm9899, %v9701
    %9925 = vst.msk [vmem:[%s14 + $0xc8] sm:$0xff] %vm9899, %v9706
    %9926 = vst.msk [vmem:[%s14 + $0xd0] sm:$0xff] %vm9899, %v9711
    %9927 = vst.msk [vmem:[%s14 + $0xd8] sm:$0xff] %vm9899, %v9716
    %9928 = vst.msk [vmem:[%s14 + $0xe0] sm:$0xff] %vm9899, %v9721
    %9929 = vst.msk [vmem:[%s14 + $0xe8] sm:$0xff] %vm9899, %v9726
    %9930 = vst.msk [vmem:[%s14 + $0xf0] sm:$0xff] %vm9899, %v9731
    %9931 = vst.msk [vmem:[%s14 + $0xf8] sm:$0xff] %vm9899, %v9736
    %9932 = vst.msk [vmem:[%s14 + $0x100] sm:$0xff] %vm9899, %v9741
    %9933 = vst.msk [vmem:[%s14 + $0x108] sm:$0xff] %vm9899, %v9746
    %9934 = vst.msk [vmem:[%s14 + $0x110] sm:$0xff] %vm9899, %v9751
    %9935 = vst.msk [vmem:[%s14 + $0x118] sm:$0xff] %vm9899, %v9756
    %9936 = vst.msk [vmem:[%s14 + $0x120] sm:$0xff] %vm9899, %v9761
    %9937 = vst.msk [vmem:[%s14 + $0x128] sm:$0xff] %vm9899, %v9766
    %9938 = vst.msk [vmem:[%s14 + $0x130] sm:$0xff] %vm9899, %v9771
    %9939 = vst.msk [vmem:[%s14 + $0x138] sm:$0xff] %vm9899, %v9776
    %9940 = vst.msk [vmem:[%s14 + $0x140] sm:$0xff] %vm9899, %v9781
    %9941 = vst.msk [vmem:[%s14 + $0x148] sm:$0xff] %vm9899, %v9786
    %9942 = vst.msk [vmem:[%s14 + $0x150] sm:$0xff] %vm9899, %v9791
    %9943 = vst.msk [vmem:[%s14 + $0x158] sm:$0xff] %vm9899, %v9796
    %9944 = vst.msk [vmem:[%s14 + $0x160] sm:$0xff] %vm9899, %v9801
    %9945 = vst.msk [vmem:[%s14 + $0x168] sm:$0xff] %vm9899, %v9806
    %9946 = vst.msk [vmem:[%s14 + $0x170] sm:$0xff] %vm9899, %v9811
    %9947 = vst.msk [vmem:[%s14 + $0x178] sm:$0xff] %vm9899, %v9816
    %9948 = vst.msk [vmem:[%s14 + $0x180] sm:$0xff] %vm9899, %v9821
    %9949 = vst.msk [vmem:[%s14 + $0x188] sm:$0xff] %vm9899, %v9826
    %9950 = vst.msk [vmem:[%s14 + $0x190] sm:$0xff] %vm9899, %v9831
    %9951 = vst.msk [vmem:[%s14 + $0x198] sm:$0xff] %vm9899, %v9836
    %9952 = vst.msk [vmem:[%s14 + $0x1a0] sm:$0xff] %vm9899, %v9841
    %9953 = vst.msk [vmem:[%s14 + $0x1a8] sm:$0xff] %vm9899, %v9846
    %9954 = vst.msk [vmem:[%s14 + $0x1b0] sm:$0xff] %vm9899, %v9851
    %9955 = vst.msk [vmem:[%s14 + $0x1b8] sm:$0xff] %vm9899, %v9856
    %9956 = vst.msk [vmem:[%s14 + $0x1c0] sm:$0xff] %vm9899, %v9861
    %9957 = vst.msk [vmem:[%s14 + $0x1c8] sm:$0xff] %vm9899, %v9866
    %9958 = vst.msk [vmem:[%s14 + $0x1d0] sm:$0xff] %vm9899, %v9871
    %9959 = vst.msk [vmem:[%s14 + $0x1d8] sm:$0xff] %vm9899, %v9876
    %9960 = vst.msk [vmem:[%s14 + $0x1e0] sm:$0xff] %vm9899, %v9881
    %9961 = vst.msk [vmem:[%s14 + $0x1e8] sm:$0xff] %vm9899, %v9886
    %9962 = vst.msk [vmem:[%s14 + $0x1f0] sm:$0xff] %vm9899, %v9891
    %9963 = vst.msk [vmem:[%s14 + $0x1f8] sm:$0xff] %vm9899, %v9896
    // Predicated region
    $region106: #{tpu_custom_call.1} parent=1 // pred_check
      _
    $region107: #{tpu_custom_call.1} parent=1 // pred_check_branch
      %9965 = sbr.rel (0) target = $region109
    $region108: #{tpu_custom_call.1} parent=1 // pred_region
      _
    $region109: #{tpu_custom_call.1} parent=1 // pred_fallthru
      _
    // Predicated region
    $region110: #{tpu_custom_call.1} parent=1 // pred_check
      _
    $region111: #{tpu_custom_call.1} parent=1 // pred_check_branch
      %9967 = sbr.rel (0) target = $region113
    $region112: #{tpu_custom_call.1} parent=1 // pred_region
      _
    $region113: #{tpu_custom_call.1} parent=1 // pred_fallthru
      _
    %9968 = vsyncpa [#allocation3], 1
    %9969 = vsyncpa [#allocation5], 1
    %9970 = vsyncpa [#allocation8], 1
    %9971 = vsyncpa [#allocation11], 1
    %9972 = vsyncpa [#allocation14], 1
    %9973 = vsyncpa [#allocation17], 1
    %9974 = vsyncpa [#allocation20], 1

</llo_original>
